<compile_context>
chip_gen: v5e
topology: v5e:2x2
jax: 0.10.0
libtpu: 0.0.40
codegen_flags: <defaults>
</compile_context>

<pallas_src>
import functools

import jax
import jax.numpy as jnp
from jax.experimental import pallas as pl
from jax.experimental.pallas import tpu as pltpu

SQRT_HALF = 0.7071067811865476
LN_EPS = 1e-5


def _gelu(x):
    # exact erf-based GELU, matching torch.nn.GELU() default
    return 0.5 * x * (1.0 + jax.lax.erf(x * SQRT_HALF))


def _layernorm(x):
    mu = jnp.mean(x, axis=-1, keepdims=True)
    var = jnp.mean(jnp.square(x - mu), axis=-1, keepdims=True)
    return (x - mu) * jax.lax.rsqrt(var + LN_EPS)


def _make_kernel(layout, feat):
    """layout: name -> (lane offset, length) into the packed small-vector operand."""

    def kernel(idx_ref, tnames_ref,
               uid_tbl_ref, ucty_tbl_ref, unam_tbl_ref,
               tid_tbl_ref, tart_tbl_ref, ttag_tbl_ref,
               wu1_ref, wu2_ref, wu3_ref,
               wd_ref, wi1_ref, wi2_ref, wi3_ref,
               ws1_ref, ws2_ref, vecs_ref, out_ref):
        dot = functools.partial(jnp.dot, preferred_element_type=jnp.float32)
        idx = idx_ref[...]                                  # [tb, 6] int32
        tb = idx.shape[0]
        F = feat

        def vec(name):
            off, n = layout[name]
            return vecs_ref[:, off:off + n]                 # [1, n], broadcasts over batch

        def gather(col, tbl_ref):
            # In-kernel embedding gather as a one-hot matmul: exactly one 1.0
            # per row (padding rows of the table are never selected).
            rows = tbl_ref.shape[0]
            ids = idx[:, col:col + 1]                       # [tb, 1]
            onehot = (jax.lax.broadcasted_iota(jnp.int32, (tb, rows), 1) == ids)
            return dot(onehot.astype(jnp.float32), tbl_ref[...])   # [tb, F]

        # ---- user tower: Linear -> LN -> GELU -> Linear -> LN -> GELU -> Linear -> GELU
        # concat(e0,e1,e2) @ W1 is computed as a sum of per-block matmuls (no
        # in-kernel lane concat needed).
        e0 = gather(0, uid_tbl_ref)
        e1 = gather(1, ucty_tbl_ref)
        e2 = gather(2, unam_tbl_ref)
        h = (dot(e0, wu1_ref[0:F, :]) + dot(e1, wu1_ref[F:2 * F, :])
             + dot(e2, wu1_ref[2 * F:3 * F, :]) + vec("bu1"))
        h = _gelu(_layernorm(h))
        h = dot(h, wu2_ref[...]) + vec("bu2")
        h = _gelu(_layernorm(h))
        user_emb = _gelu(dot(h, wu3_ref[...]) + vec("bu3"))          # [tb, 192]

        # ---- item tower: GELU(dense transform) + 3 sparse embeddings -> MLP
        d = _gelu(dot(tnames_ref[...], wd_ref[...]) + vec("bd"))     # [tb, 96]
        e3 = gather(3, tid_tbl_ref)
        e4 = gather(4, tart_tbl_ref)
        e5 = gather(5, ttag_tbl_ref)
        h = (dot(e3, wi1_ref[0:F, :]) + dot(e4, wi1_ref[F:2 * F, :])
             + dot(e5, wi1_ref[2 * F:3 * F, :]) + dot(d, wi1_ref[3 * F:4 * F, :])
             + vec("bi1"))
        h = _gelu(_layernorm(h))
        h = dot(h, wi2_ref[...]) + vec("bi2")
        h = _gelu(_layernorm(h))
        item_emb = _gelu(dot(h, wi3_ref[...]) + vec("bi3"))          # [tb, 192]

        # ---- dot-compress front end.
        # all = stack([user, item], 1); compressed = (all @ (all^T @ W + b)).flatten(1)
        # reduces exactly to rank-1 combinations of the Gram entries of
        # [user, item]; build the full lane-dense [tb, 192] row so the first
        # scoring matmul is a single K=192 pass (no split-K).
        uu = jnp.sum(user_emb * user_emb, axis=-1, keepdims=True)
        ui = jnp.sum(user_emb * item_emb, axis=-1, keepdims=True)
        ii = jnp.sum(item_emb * item_emb, axis=-1, keepdims=True)
        su = jnp.sum(user_emb, axis=-1, keepdims=True)
        si = jnp.sum(item_emb, axis=-1, keepdims=True)
        c = (uu * vec("dc_w0") + ui * vec("dc_w1") + ii * vec("dc_w2")
             + su * vec("dc_bu") + si * vec("dc_bi"))                # [tb, 192]

        # ---- scoring MLP: Linear -> LN(affine) -> GELU -> Linear -> LN(affine) -> GELU -> Linear
        h = dot(c, ws1_ref[...]) + vec("bs1")
        h = _gelu(_layernorm(h) * vec("g1") + vec("be1"))
        h = dot(h, ws2_ref[...]) + vec("bs2")
        h = _gelu(_layernorm(h) * vec("g2") + vec("be2"))
        # final 64 -> 1 layer as VPU multiply + lane reduce (an MXU pass with
        # N=1 would waste the array plus a result-FIFO pop).
        score = jnp.sum(h * vec("ws3"), axis=-1, keepdims=True) + vec("bs3")

        # ---- final GELU applied by TrackSparseNN.forward
        out_ref[...] = _gelu(score)

    return kernel


def _pad_rows_to(tbl, mult=8):
    rows = tbl.shape[0]
    pad = (-rows) % mult
    if pad:
        tbl = jnp.concatenate([tbl, jnp.zeros((pad, tbl.shape[1]), tbl.dtype)], axis=0)
    return tbl


def _pack_vectors(named):
    """Pack many tiny [n]/[1,n] f32 vectors into one lane-aligned [1, V] operand."""
    layout, chunks, off = {}, [], 0
    for name, v in named:
        v = jnp.asarray(v, jnp.float32).reshape(1, -1)
        n = v.shape[1]
        pad = (-n) % 128                 # keep every in-kernel slice lane-aligned
        layout[name] = (off, n)
        chunks.append(v)
        if pad:
            chunks.append(jnp.zeros((1, pad), jnp.float32))
        off += n + pad
    return jnp.concatenate(chunks, axis=1), layout


def track_sparsenn_forward(user_ids, user_countries, user_names,
                           track_ids, track_artists, track_tags, track_names,
                           tables, weights, *, batch_tile=128,
                           vmem_limit_bytes=64 * 1024 * 1024):
    """tables: dict of the 6 embedding tables; weights: dict of Linear weights
    stored [in, out], biases [1, out], dot_w [2, out/2], dot_b [1, out/2],
    LN affine g*/be*, and ws3 [64, 1] / bs3 [1, 1]."""
    B = user_ids.shape[0]
    tb = min(batch_tile, B)
    assert B % tb == 0 and tb % 8 == 0, (B, tb)

    # sparse-feature ids packed into one narrow int32 tile per batch block
    idx = jnp.stack([user_ids, user_countries, user_names,
                     track_ids, track_artists, track_tags], axis=1).astype(jnp.int32)

    tbls = [_pad_rows_to(tables[k]) for k in
            ("user_id", "user_country", "user_name",
             "track_id", "track_artist", "track_tag")]
    feat = tbls[0].shape[1]

    w = weights
    half = w["dot_w"].shape[1]
    w0 = w["dot_w"][0:1, :]
    w1 = w["dot_w"][1:2, :]
    bb = jnp.asarray(w["dot_b"], jnp.float32).reshape(1, half)
    z = jnp.zeros_like(w0)
    vecs, layout = _pack_vectors([
        ("bu1", w["bu1"]), ("bu2", w["bu2"]), ("bu3", w["bu3"]),
        ("bd", w["bd"]), ("bi1", w["bi1"]), ("bi2", w["bi2"]), ("bi3", w["bi3"]),
        # dot-compress reduced to 5 constant [1, 192] coefficient rows for
        # (uu, ui, ii, sum(u), sum(i)) of the flattened compressed rep
        ("dc_w0", jnp.concatenate([w0, z], axis=1)),
        ("dc_w1", jnp.concatenate([w1, w0], axis=1)),
        ("dc_w2", jnp.concatenate([z, w1], axis=1)),
        ("dc_bu", jnp.concatenate([bb, jnp.zeros_like(bb)], axis=1)),
        ("dc_bi", jnp.concatenate([jnp.zeros_like(bb), bb], axis=1)),
        ("bs1", w["bs1"]), ("g1", w["g1"]), ("be1", w["be1"]),
        ("bs2", w["bs2"]), ("g2", w["g2"]), ("be2", w["be2"]),
        ("ws3", jnp.asarray(w["ws3"], jnp.float32).reshape(1, -1)),   # [64,1] -> [1,64]
        ("bs3", w["bs3"]),
    ])

    mats = [w["wu1"], w["wu2"], w["wu3"], w["wd"], w["wi1"], w["wi2"], w["wi3"],
            w["ws1"], w["ws2"]]

    def batched(arr):
        nd = arr.ndim
        return pl.BlockSpec((tb,) + tuple(arr.shape[1:]),
                            lambda b: (b,) + (0,) * (nd - 1))

    def replicated(arr):
        nd = arr.ndim
        return pl.BlockSpec(tuple(arr.shape), lambda b: (0,) * nd)

    ins = [idx, track_names] + tbls + mats + [vecs]
    in_specs = [batched(idx), batched(track_names)]
    in_specs += [replicated(a) for a in tbls + mats + [vecs]]

    return pl.pallas_call(
        _make_kernel(layout, feat),
        out_shape=jax.ShapeDtypeStruct((B, 1), jnp.float32),
        grid=(B // tb,),
        in_specs=in_specs,
        out_specs=pl.BlockSpec((tb, 1), lambda b: (b, 0)),
        compiler_params=pltpu.CompilerParams(
            dimension_semantics=("parallel",),
            vmem_limit_bytes=vmem_limit_bytes),
    )(*ins)


def reference_forward(u_sparse, i_sparse, t_names,
                      wu1, bu1, wu2, bu2, wu3, bu3,
                      wd, bd, wi1, bi1, wi2, bi2, wi3, bi3,
                      dot_w, dot_b, ws1, bs1, g1, be1, ws2, bs2, g2, be2, ws3, bs3):
    """Plain-JAX reference using the literal stack/matmul formulation."""
    hi = jax.lax.Precision.HIGHEST

    def gelu(x):
        return 0.5 * x * (1.0 + jax.lax.erf(x * SQRT_HALF))

    def ln(x):
        mu = jnp.mean(x, -1, keepdims=True)
        var = jnp.mean((x - mu) ** 2, -1, keepdims=True)
        return (x - mu) / jnp.sqrt(var + LN_EPS)

    h = jnp.dot(u_sparse, wu1, precision=hi) + bu1
    h = gelu(ln(h))
    h = jnp.dot(h, wu2, precision=hi) + bu2
    h = gelu(ln(h))
    user_emb = gelu(jnp.dot(h, wu3, precision=hi) + bu3)

    d = gelu(jnp.dot(t_names, wd, precision=hi) + bd)
    comb = jnp.concatenate([i_sparse, d], axis=1)
    h = jnp.dot(comb, wi1, precision=hi) + bi1
    h = gelu(ln(h))
    h = jnp.dot(h, wi2, precision=hi) + bi2
    h = gelu(ln(h))
    item_emb = gelu(jnp.dot(h, wi3, precision=hi) + bi3)

    all_emb = jnp.stack([user_emb, item_emb], axis=1)                      # [B, 2, 192]
    tmp = jnp.einsum('bkj,kc->bjc', all_emb, dot_w, precision=hi) + dot_b.reshape(-1)
    compressed = jnp.einsum('bkj,bjc->bkc', all_emb, tmp, precision=hi)
    compressed = compressed.reshape(all_emb.shape[0], -1)                  # [B, 192]

    h = jnp.dot(compressed, ws1, precision=hi) + bs1
    h = gelu(ln(h) * g1 + be1)
    h = jnp.dot(h, ws2, precision=hi) + bs2
    h = gelu(ln(h) * g2 + be2)
    score = jnp.dot(h, ws3, precision=hi) + bs3
    return gelu(score)


if __name__ == "__main__":
    B = 256            # small demo batch; grid = 4 tiles of 64 so pipelining /
    TILE = 64          # megacore sharding are actually exercised
    FEAT = 96          # feat_embed_dim
    DENSE = 384        # dense_feat_embed_dim
    OUT = 192          # output_embed_dim
    NUM_USER_IDS, NUM_USER_COUNTRIES, NUM_USER_NAMES = 37, 11, 23
    NUM_TRACK_IDS, NUM_TRACK_ARTISTS, NUM_TRACK_TAGS = 53, 19, 29

    key = jax.random.PRNGKey(0)
    _ks = iter(jax.random.split(key, 64))

    def xavier(shape):
        std = (2.0 / (shape[0] + shape[1])) ** 0.5
        return std * jax.random.normal(next(_ks), shape, jnp.float32)

    def bias(n):
        return 0.01 * jax.random.normal(next(_ks), (1, n), jnp.float32)

    def table(n, d):
        return 0.1 * jax.random.normal(next(_ks), (n, d), jnp.float32)

    tables = {
        "user_id": table(NUM_USER_IDS, FEAT),
        "user_country": table(NUM_USER_COUNTRIES, FEAT),
        "user_name": table(NUM_USER_NAMES, FEAT),
        "track_id": table(NUM_TRACK_IDS, FEAT),
        "track_artist": table(NUM_TRACK_ARTISTS, FEAT),
        "track_tag": table(NUM_TRACK_TAGS, FEAT),
    }

    # user tower MLP: 3*96 -> 128 -> 64 -> 192
    wu1, bu1 = xavier((3 * FEAT, 128)), bias(128)
    wu2, bu2 = xavier((128, 64)), bias(64)
    wu3, bu3 = xavier((64, OUT)), bias(OUT)
    # item tower: dense 384 -> 96, then 4*96 -> 128 -> 64 -> 192
    wd, bd = xavier((DENSE, FEAT)), bias(FEAT)
    wi1, bi1 = xavier((4 * FEAT, 128)), bias(128)
    wi2, bi2 = xavier((128, 64)), bias(64)
    wi3, bi3 = xavier((64, OUT)), bias(OUT)
    # dot-compress scoring: weight [2, 96] (xavier_normal), bias zeros
    dot_w = xavier((2, OUT // 2))
    dot_b = jnp.zeros((1, OUT // 2), jnp.float32)
    # scoring MLP: 192 -> 128 -> 64 -> 1, LN with affine (gamma=1, beta=0 init)
    ws1, bs1 = xavier((OUT, 128)), bias(128)
    g1, be1 = jnp.ones((1, 128), jnp.float32), jnp.zeros((1, 128), jnp.float32)
    ws2, bs2 = xavier((128, 64)), bias(64)
    g2, be2 = jnp.ones((1, 64), jnp.float32), jnp.zeros((1, 64), jnp.float32)
    ws3, bs3 = xavier((64, 1)), bias(1)

    weights = dict(wu1=wu1, bu1=bu1, wu2=wu2, bu2=bu2, wu3=wu3, bu3=bu3,
                   wd=wd, bd=bd, wi1=wi1, bi1=bi1, wi2=wi2, bi2=bi2, wi3=wi3, bi3=bi3,
                   dot_w=dot_w, dot_b=dot_b,
                   ws1=ws1, bs1=bs1, g1=g1, be1=be1,
                   ws2=ws2, bs2=bs2, g2=g2, be2=be2, ws3=ws3, bs3=bs3)

    # inputs
    user_ids = jax.random.randint(next(_ks), (B,), 0, NUM_USER_IDS)
    user_countries = jax.random.randint(next(_ks), (B,), 0, NUM_USER_COUNTRIES)
    user_names = jax.random.randint(next(_ks), (B,), 0, NUM_USER_NAMES)
    track_ids = jax.random.randint(next(_ks), (B,), 0, NUM_TRACK_IDS)
    track_artists = jax.random.randint(next(_ks), (B,), 0, NUM_TRACK_ARTISTS)
    track_tags = jax.random.randint(next(_ks), (B,), 0, NUM_TRACK_TAGS)
    track_names = jax.random.normal(next(_ks), (B, DENSE), jnp.float32)

    out = track_sparsenn_forward(user_ids, user_countries, user_names,
                                 track_ids, track_artists, track_tags, track_names,
                                 tables, weights, batch_tile=TILE)
    out = jax.block_until_ready(out)

    # reference path: host gathers + literal stack/einsum dot-compress at HIGHEST precision
    u_sparse = jnp.concatenate([tables["user_id"][user_ids],
                                tables["user_country"][user_countries],
                                tables["user_name"][user_names]], axis=1)      # [B, 288]
    i_sparse = jnp.concatenate([tables["track_id"][track_ids],
                                tables["track_artist"][track_artists],
                                tables["track_tag"][track_tags]], axis=1)      # [B, 288]
    ref = reference_forward(u_sparse, i_sparse, track_names,
                            wu1, bu1, wu2, bu2, wu3, bu3,
                            wd, bd, wi1, bi1, wi2, bi2, wi3, bi3,
                            dot_w, dot_b, ws1, bs1, g1, be1, ws2, bs2, g2, be2, ws3, bs3)

    assert out.shape == (B, 1)
    # kernel matmuls run at the MXU's default (bf16-operand) precision while the
    # reference uses Precision.HIGHEST; 5e-3 covers that documented precision gap
    # over the 32x larger validation batch (see perf-review correctness note).
    assert jnp.allclose(out, ref, rtol=5e-3, atol=5e-3), float(jnp.max(jnp.abs(out - ref)))

    print("KERNEL_OK")
</pallas_src>

<mosaic_0001>
module attributes {stable_mosaic.version = 11 : i64} {
  func.func @kernel(%arg0: i32, %arg1: memref<64x6xi32, #tpu.memory_space<vmem>>, %arg2: memref<64x384xf32, #tpu.memory_space<vmem>>, %arg3: memref<40x96xf32, #tpu.memory_space<vmem>>, %arg4: memref<16x96xf32, #tpu.memory_space<vmem>>, %arg5: memref<24x96xf32, #tpu.memory_space<vmem>>, %arg6: memref<56x96xf32, #tpu.memory_space<vmem>>, %arg7: memref<24x96xf32, #tpu.memory_space<vmem>>, %arg8: memref<32x96xf32, #tpu.memory_space<vmem>>, %arg9: memref<288x128xf32, #tpu.memory_space<vmem>>, %arg10: memref<128x64xf32, #tpu.memory_space<vmem>>, %arg11: memref<64x192xf32, #tpu.memory_space<vmem>>, %arg12: memref<384x96xf32, #tpu.memory_space<vmem>>, %arg13: memref<384x128xf32, #tpu.memory_space<vmem>>, %arg14: memref<128x64xf32, #tpu.memory_space<vmem>>, %arg15: memref<64x192xf32, #tpu.memory_space<vmem>>, %arg16: memref<192x128xf32, #tpu.memory_space<vmem>>, %arg17: memref<128x64xf32, #tpu.memory_space<vmem>>, %arg18: memref<1x3456xf32, #tpu.memory_space<vmem>>, %arg19: memref<64x1xf32, #tpu.memory_space<vmem>>) attributes {dimension_semantics = [#tpu.dimension_semantics<parallel>], iteration_bounds = array<i64: 4>, scalar_prefetch = 0 : i64, scratch_operands = 0 : i64, tpu.core_type = #tpu.core_type<tc>, window_params = [{transform_indices = @transform_0, window_bounds = array<i64: 64, 6>}, {transform_indices = @transform_1, window_bounds = array<i64: 64, 384>}, {pipeline_mode = #tpu.pipeline_mode<synchronous>, transform_indices = @transform_2, window_bounds = array<i64: 40, 96>}, {pipeline_mode = #tpu.pipeline_mode<synchronous>, transform_indices = @transform_3, window_bounds = array<i64: 16, 96>}, {pipeline_mode = #tpu.pipeline_mode<synchronous>, transform_indices = @transform_4, window_bounds = array<i64: 24, 96>}, {pipeline_mode = #tpu.pipeline_mode<synchronous>, transform_indices = @transform_5, window_bounds = array<i64: 56, 96>}, {pipeline_mode = #tpu.pipeline_mode<synchronous>, transform_indices = @transform_6, window_bounds = array<i64: 24, 96>}, {pipeline_mode = #tpu.pipeline_mode<synchronous>, transform_indices = @transform_7, window_bounds = array<i64: 32, 96>}, {pipeline_mode = #tpu.pipeline_mode<synchronous>, transform_indices = @transform_8, window_bounds = array<i64: 288, 128>}, {pipeline_mode = #tpu.pipeline_mode<synchronous>, transform_indices = @transform_9, window_bounds = array<i64: 128, 64>}, {pipeline_mode = #tpu.pipeline_mode<synchronous>, transform_indices = @transform_10, window_bounds = array<i64: 64, 192>}, {pipeline_mode = #tpu.pipeline_mode<synchronous>, transform_indices = @transform_11, window_bounds = array<i64: 384, 96>}, {pipeline_mode = #tpu.pipeline_mode<synchronous>, transform_indices = @transform_12, window_bounds = array<i64: 384, 128>}, {pipeline_mode = #tpu.pipeline_mode<synchronous>, transform_indices = @transform_13, window_bounds = array<i64: 128, 64>}, {pipeline_mode = #tpu.pipeline_mode<synchronous>, transform_indices = @transform_14, window_bounds = array<i64: 64, 192>}, {pipeline_mode = #tpu.pipeline_mode<synchronous>, transform_indices = @transform_15, window_bounds = array<i64: 192, 128>}, {pipeline_mode = #tpu.pipeline_mode<synchronous>, transform_indices = @transform_16, window_bounds = array<i64: 128, 64>}, {pipeline_mode = #tpu.pipeline_mode<synchronous>, transform_indices = @transform_17, window_bounds = array<i64: 1, 3456>}, {transform_indices = @transform_18, window_bounds = array<i64: 64, 1>}]} {
    %c0 = arith.constant 0 : index
    %c0_0 = arith.constant 0 : index
    %0 = vector.load %arg1[%c0, %c0_0] : memref<64x6xi32, #tpu.memory_space<vmem>>, vector<64x6xi32>
    %1 = vector.extract_strided_slice %0 {offsets = [0, 0], sizes = [64, 1], strides = [1, 1]} : vector<64x6xi32> to vector<64x1xi32>
    %2 = tpu.iota {dimensions = array<i32: 1>} : vector<64x40xi32>
    %3 = vector.broadcast %1 : vector<64x1xi32> to vector<64x40xi32>
    %4 = arith.cmpi eq, %2, %3 : vector<64x40xi32>
    %5 = arith.extui %4 : vector<64x40xi1> to vector<64x40xi32>
    %6 = arith.sitofp %5 : vector<64x40xi32> to vector<64x40xf32>
    %c0_1 = arith.constant 0 : index
    %c0_2 = arith.constant 0 : index
    %7 = vector.load %arg3[%c0_1, %c0_2] : memref<40x96xf32, #tpu.memory_space<vmem>>, vector<40x96xf32>
    %cst = arith.constant dense<0.000000e+00> : vector<64x96xf32>
    %8 = tpu.matmul %6, %7, %cst {dimension_numbers = #tpu.dot_dimension_numbers<[1], [0], [0], [1], [0, 0, 1, 1], [], []>} : vector<64x40xf32>, vector<40x96xf32>, vector<64x96xf32> -> vector<64x96xf32>
    %9 = vector.extract_strided_slice %0 {offsets = [0, 1], sizes = [64, 1], strides = [1, 1]} : vector<64x6xi32> to vector<64x1xi32>
    %10 = tpu.iota {dimensions = array<i32: 1>} : vector<64x16xi32>
    %11 = vector.broadcast %9 : vector<64x1xi32> to vector<64x16xi32>
    %12 = arith.cmpi eq, %10, %11 : vector<64x16xi32>
    %13 = arith.extui %12 : vector<64x16xi1> to vector<64x16xi32>
    %14 = arith.sitofp %13 : vector<64x16xi32> to vector<64x16xf32>
    %c0_3 = arith.constant 0 : index
    %c0_4 = arith.constant 0 : index
    %15 = vector.load %arg4[%c0_3, %c0_4] : memref<16x96xf32, #tpu.memory_space<vmem>>, vector<16x96xf32>
    %cst_5 = arith.constant dense<0.000000e+00> : vector<64x96xf32>
    %16 = tpu.matmul %14, %15, %cst_5 {dimension_numbers = #tpu.dot_dimension_numbers<[1], [0], [0], [1], [0, 0, 1, 1], [], []>} : vector<64x16xf32>, vector<16x96xf32>, vector<64x96xf32> -> vector<64x96xf32>
    %17 = vector.extract_strided_slice %0 {offsets = [0, 2], sizes = [64, 1], strides = [1, 1]} : vector<64x6xi32> to vector<64x1xi32>
    %18 = tpu.iota {dimensions = array<i32: 1>} : vector<64x24xi32>
    %19 = vector.broadcast %17 : vector<64x1xi32> to vector<64x24xi32>
    %20 = arith.cmpi eq, %18, %19 : vector<64x24xi32>
    %21 = arith.extui %20 : vector<64x24xi1> to vector<64x24xi32>
    %22 = arith.sitofp %21 : vector<64x24xi32> to vector<64x24xf32>
    %c0_6 = arith.constant 0 : index
    %c0_7 = arith.constant 0 : index
    %23 = vector.load %arg5[%c0_6, %c0_7] : memref<24x96xf32, #tpu.memory_space<vmem>>, vector<24x96xf32>
    %cst_8 = arith.constant dense<0.000000e+00> : vector<64x96xf32>
    %24 = tpu.matmul %22, %23, %cst_8 {dimension_numbers = #tpu.dot_dimension_numbers<[1], [0], [0], [1], [0, 0, 1, 1], [], []>} : vector<64x24xf32>, vector<24x96xf32>, vector<64x96xf32> -> vector<64x96xf32>
    %c0_9 = arith.constant 0 : index
    %c0_10 = arith.constant 0 : index
    %25 = vector.load %arg9[%c0_9, %c0_10] : memref<288x128xf32, #tpu.memory_space<vmem>>, vector<96x128xf32>
    %cst_11 = arith.constant dense<0.000000e+00> : vector<64x128xf32>
    %26 = tpu.matmul %8, %25, %cst_11 {dimension_numbers = #tpu.dot_dimension_numbers<[1], [0], [0], [1], [0, 0, 1, 1], [], []>} : vector<64x96xf32>, vector<96x128xf32>, vector<64x128xf32> -> vector<64x128xf32>
    %c96 = arith.constant 96 : index
    %c0_12 = arith.constant 0 : index
    %27 = vector.load %arg9[%c96, %c0_12] : memref<288x128xf32, #tpu.memory_space<vmem>>, vector<96x128xf32>
    %cst_13 = arith.constant dense<0.000000e+00> : vector<64x128xf32>
    %28 = tpu.matmul %16, %27, %cst_13 {dimension_numbers = #tpu.dot_dimension_numbers<[1], [0], [0], [1], [0, 0, 1, 1], [], []>} : vector<64x96xf32>, vector<96x128xf32>, vector<64x128xf32> -> vector<64x128xf32>
    %29 = arith.addf %26, %28 : vector<64x128xf32>
    %c192 = arith.constant 192 : index
    %c0_14 = arith.constant 0 : index
    %30 = vector.load %arg9[%c192, %c0_14] : memref<288x128xf32, #tpu.memory_space<vmem>>, vector<96x128xf32>
    %cst_15 = arith.constant dense<0.000000e+00> : vector<64x128xf32>
    %31 = tpu.matmul %24, %30, %cst_15 {dimension_numbers = #tpu.dot_dimension_numbers<[1], [0], [0], [1], [0, 0, 1, 1], [], []>} : vector<64x96xf32>, vector<96x128xf32>, vector<64x128xf32> -> vector<64x128xf32>
    %32 = arith.addf %29, %31 : vector<64x128xf32>
    %c0_16 = arith.constant 0 : index
    %c0_17 = arith.constant 0 : index
    %33 = vector.load %arg18[%c0_16, %c0_17] : memref<1x3456xf32, #tpu.memory_space<vmem>>, vector<1x128xf32>
    %34 = vector.broadcast %33 : vector<1x128xf32> to vector<64x128xf32>
    %35 = arith.addf %32, %34 : vector<64x128xf32>
    %cst_18 = arith.constant dense<0.000000e+00> : vector<64xf32>
    %36 = vector.multi_reduction <add>, %35, %cst_18 [1] : vector<64x128xf32> to vector<64xf32>
    %37 = vector.shape_cast %36 : vector<64xf32> to vector<64x1xf32>
    %cst_19 = arith.constant 1.280000e+02 : f32
    %38 = vector.broadcast %cst_19 : f32 to vector<64x1xf32>
    %39 = arith.divf %37, %38 : vector<64x1xf32>
    %40 = vector.broadcast %39 : vector<64x1xf32> to vector<64x128xf32>
    %41 = arith.subf %35, %40 : vector<64x128xf32>
    %42 = arith.mulf %41, %41 : vector<64x128xf32>
    %cst_20 = arith.constant dense<0.000000e+00> : vector<64xf32>
    %43 = vector.multi_reduction <add>, %42, %cst_20 [1] : vector<64x128xf32> to vector<64xf32>
    %44 = vector.shape_cast %43 : vector<64xf32> to vector<64x1xf32>
    %cst_21 = arith.constant 1.280000e+02 : f32
    %45 = vector.broadcast %cst_21 : f32 to vector<64x1xf32>
    %46 = arith.divf %44, %45 : vector<64x1xf32>
    %47 = vector.broadcast %39 : vector<64x1xf32> to vector<64x128xf32>
    %48 = arith.subf %35, %47 : vector<64x128xf32>
    %cst_22 = arith.constant 9.99999974E-6 : f32
    %49 = vector.broadcast %cst_22 : f32 to vector<64x1xf32>
    %50 = arith.addf %46, %49 : vector<64x1xf32>
    %51 = math.rsqrt %50 : vector<64x1xf32>
    %52 = vector.broadcast %51 : vector<64x1xf32> to vector<64x128xf32>
    %53 = arith.mulf %48, %52 : vector<64x128xf32>
    %cst_23 = arith.constant 5.000000e-01 : f32
    %54 = vector.broadcast %cst_23 : f32 to vector<64x128xf32>
    %55 = arith.mulf %54, %53 : vector<64x128xf32>
    %cst_24 = arith.constant 0.707106769 : f32
    %56 = vector.broadcast %cst_24 : f32 to vector<64x128xf32>
    %57 = arith.mulf %53, %56 : vector<64x128xf32>
    %58 = math.erf %57 : vector<64x128xf32>
    %cst_25 = arith.constant 1.000000e+00 : f32
    %59 = vector.broadcast %cst_25 : f32 to vector<64x128xf32>
    %60 = arith.addf %59, %58 : vector<64x128xf32>
    %61 = arith.mulf %55, %60 : vector<64x128xf32>
    %c0_26 = arith.constant 0 : index
    %c0_27 = arith.constant 0 : index
    %62 = vector.load %arg10[%c0_26, %c0_27] : memref<128x64xf32, #tpu.memory_space<vmem>>, vector<128x64xf32>
    %cst_28 = arith.constant dense<0.000000e+00> : vector<64x64xf32>
    %63 = tpu.matmul %61, %62, %cst_28 {dimension_numbers = #tpu.dot_dimension_numbers<[1], [0], [0], [1], [0, 0, 1, 1], [], []>} : vector<64x128xf32>, vector<128x64xf32>, vector<64x64xf32> -> vector<64x64xf32>
    %c0_29 = arith.constant 0 : index
    %c128 = arith.constant 128 : index
    %64 = vector.load %arg18[%c0_29, %c128] : memref<1x3456xf32, #tpu.memory_space<vmem>>, vector<1x64xf32>
    %65 = vector.broadcast %64 : vector<1x64xf32> to vector<64x64xf32>
    %66 = arith.addf %63, %65 : vector<64x64xf32>
    %cst_30 = arith.constant dense<0.000000e+00> : vector<64xf32>
    %67 = vector.multi_reduction <add>, %66, %cst_30 [1] : vector<64x64xf32> to vector<64xf32>
    %68 = vector.shape_cast %67 : vector<64xf32> to vector<64x1xf32>
    %cst_31 = arith.constant 6.400000e+01 : f32
    %69 = vector.broadcast %cst_31 : f32 to vector<64x1xf32>
    %70 = arith.divf %68, %69 : vector<64x1xf32>
    %71 = vector.broadcast %70 : vector<64x1xf32> to vector<64x64xf32>
    %72 = arith.subf %66, %71 : vector<64x64xf32>
    %73 = arith.mulf %72, %72 : vector<64x64xf32>
    %cst_32 = arith.constant dense<0.000000e+00> : vector<64xf32>
    %74 = vector.multi_reduction <add>, %73, %cst_32 [1] : vector<64x64xf32> to vector<64xf32>
    %75 = vector.shape_cast %74 : vector<64xf32> to vector<64x1xf32>
    %cst_33 = arith.constant 6.400000e+01 : f32
    %76 = vector.broadcast %cst_33 : f32 to vector<64x1xf32>
    %77 = arith.divf %75, %76 : vector<64x1xf32>
    %78 = vector.broadcast %70 : vector<64x1xf32> to vector<64x64xf32>
    %79 = arith.subf %66, %78 : vector<64x64xf32>
    %cst_34 = arith.constant 9.99999974E-6 : f32
    %80 = vector.broadcast %cst_34 : f32 to vector<64x1xf32>
    %81 = arith.addf %77, %80 : vector<64x1xf32>
    %82 = math.rsqrt %81 : vector<64x1xf32>
    %83 = vector.broadcast %82 : vector<64x1xf32> to vector<64x64xf32>
    %84 = arith.mulf %79, %83 : vector<64x64xf32>
    %cst_35 = arith.constant 5.000000e-01 : f32
    %85 = vector.broadcast %cst_35 : f32 to vector<64x64xf32>
    %86 = arith.mulf %85, %84 : vector<64x64xf32>
    %cst_36 = arith.constant 0.707106769 : f32
    %87 = vector.broadcast %cst_36 : f32 to vector<64x64xf32>
    %88 = arith.mulf %84, %87 : vector<64x64xf32>
    %89 = math.erf %88 : vector<64x64xf32>
    %cst_37 = arith.constant 1.000000e+00 : f32
    %90 = vector.broadcast %cst_37 : f32 to vector<64x64xf32>
    %91 = arith.addf %90, %89 : vector<64x64xf32>
    %92 = arith.mulf %86, %91 : vector<64x64xf32>
    %c0_38 = arith.constant 0 : index
    %c0_39 = arith.constant 0 : index
    %93 = vector.load %arg11[%c0_38, %c0_39] : memref<64x192xf32, #tpu.memory_space<vmem>>, vector<64x192xf32>
    %cst_40 = arith.constant dense<0.000000e+00> : vector<64x192xf32>
    %94 = tpu.matmul %92, %93, %cst_40 {dimension_numbers = #tpu.dot_dimension_numbers<[1], [0], [0], [1], [0, 0, 1, 1], [], []>} : vector<64x64xf32>, vector<64x192xf32>, vector<64x192xf32> -> vector<64x192xf32>
    %c0_41 = arith.constant 0 : index
    %c256 = arith.constant 256 : index
    %95 = vector.load %arg18[%c0_41, %c256] : memref<1x3456xf32, #tpu.memory_space<vmem>>, vector<1x192xf32>
    %96 = vector.broadcast %95 : vector<1x192xf32> to vector<64x192xf32>
    %97 = arith.addf %94, %96 : vector<64x192xf32>
    %cst_42 = arith.constant 5.000000e-01 : f32
    %98 = vector.broadcast %cst_42 : f32 to vector<64x192xf32>
    %99 = arith.mulf %98, %97 : vector<64x192xf32>
    %cst_43 = arith.constant 0.707106769 : f32
    %100 = vector.broadcast %cst_43 : f32 to vector<64x192xf32>
    %101 = arith.mulf %97, %100 : vector<64x192xf32>
    %102 = math.erf %101 : vector<64x192xf32>
    %cst_44 = arith.constant 1.000000e+00 : f32
    %103 = vector.broadcast %cst_44 : f32 to vector<64x192xf32>
    %104 = arith.addf %103, %102 : vector<64x192xf32>
    %105 = arith.mulf %99, %104 : vector<64x192xf32>
    %c0_45 = arith.constant 0 : index
    %c0_46 = arith.constant 0 : index
    %106 = vector.load %arg2[%c0_45, %c0_46] : memref<64x384xf32, #tpu.memory_space<vmem>>, vector<64x384xf32>
    %c0_47 = arith.constant 0 : index
    %c0_48 = arith.constant 0 : index
    %107 = vector.load %arg12[%c0_47, %c0_48] : memref<384x96xf32, #tpu.memory_space<vmem>>, vector<384x96xf32>
    %cst_49 = arith.constant dense<0.000000e+00> : vector<64x96xf32>
    %108 = tpu.matmul %106, %107, %cst_49 {dimension_numbers = #tpu.dot_dimension_numbers<[1], [0], [0], [1], [0, 0, 1, 1], [], []>} : vector<64x384xf32>, vector<384x96xf32>, vector<64x96xf32> -> vector<64x96xf32>
    %c0_50 = arith.constant 0 : index
    %c512 = arith.constant 512 : index
    %109 = vector.load %arg18[%c0_50, %c512] : memref<1x3456xf32, #tpu.memory_space<vmem>>, vector<1x96xf32>
    %110 = vector.broadcast %109 : vector<1x96xf32> to vector<64x96xf32>
    %111 = arith.addf %108, %110 : vector<64x96xf32>
    %cst_51 = arith.constant 5.000000e-01 : f32
    %112 = vector.broadcast %cst_51 : f32 to vector<64x96xf32>
    %113 = arith.mulf %112, %111 : vector<64x96xf32>
    %cst_52 = arith.constant 0.707106769 : f32
    %114 = vector.broadcast %cst_52 : f32 to vector<64x96xf32>
    %115 = arith.mulf %111, %114 : vector<64x96xf32>
    %116 = math.erf %115 : vector<64x96xf32>
    %cst_53 = arith.constant 1.000000e+00 : f32
    %117 = vector.broadcast %cst_53 : f32 to vector<64x96xf32>
    %118 = arith.addf %117, %116 : vector<64x96xf32>
    %119 = arith.mulf %113, %118 : vector<64x96xf32>
    %120 = vector.extract_strided_slice %0 {offsets = [0, 3], sizes = [64, 1], strides = [1, 1]} : vector<64x6xi32> to vector<64x1xi32>
    %121 = tpu.iota {dimensions = array<i32: 1>} : vector<64x56xi32>
    %122 = vector.broadcast %120 : vector<64x1xi32> to vector<64x56xi32>
    %123 = arith.cmpi eq, %121, %122 : vector<64x56xi32>
    %124 = arith.extui %123 : vector<64x56xi1> to vector<64x56xi32>
    %125 = arith.sitofp %124 : vector<64x56xi32> to vector<64x56xf32>
    %c0_54 = arith.constant 0 : index
    %c0_55 = arith.constant 0 : index
    %126 = vector.load %arg6[%c0_54, %c0_55] : memref<56x96xf32, #tpu.memory_space<vmem>>, vector<56x96xf32>
    %cst_56 = arith.constant dense<0.000000e+00> : vector<64x96xf32>
    %127 = tpu.matmul %125, %126, %cst_56 {dimension_numbers = #tpu.dot_dimension_numbers<[1], [0], [0], [1], [0, 0, 1, 1], [], []>} : vector<64x56xf32>, vector<56x96xf32>, vector<64x96xf32> -> vector<64x96xf32>
    %128 = vector.extract_strided_slice %0 {offsets = [0, 4], sizes = [64, 1], strides = [1, 1]} : vector<64x6xi32> to vector<64x1xi32>
    %129 = tpu.iota {dimensions = array<i32: 1>} : vector<64x24xi32>
    %130 = vector.broadcast %128 : vector<64x1xi32> to vector<64x24xi32>
    %131 = arith.cmpi eq, %129, %130 : vector<64x24xi32>
    %132 = arith.extui %131 : vector<64x24xi1> to vector<64x24xi32>
    %133 = arith.sitofp %132 : vector<64x24xi32> to vector<64x24xf32>
    %c0_57 = arith.constant 0 : index
    %c0_58 = arith.constant 0 : index
    %134 = vector.load %arg7[%c0_57, %c0_58] : memref<24x96xf32, #tpu.memory_space<vmem>>, vector<24x96xf32>
    %cst_59 = arith.constant dense<0.000000e+00> : vector<64x96xf32>
    %135 = tpu.matmul %133, %134, %cst_59 {dimension_numbers = #tpu.dot_dimension_numbers<[1], [0], [0], [1], [0, 0, 1, 1], [], []>} : vector<64x24xf32>, vector<24x96xf32>, vector<64x96xf32> -> vector<64x96xf32>
    %136 = vector.extract_strided_slice %0 {offsets = [0, 5], sizes = [64, 1], strides = [1, 1]} : vector<64x6xi32> to vector<64x1xi32>
    %137 = tpu.iota {dimensions = array<i32: 1>} : vector<64x32xi32>
    %138 = vector.broadcast %136 : vector<64x1xi32> to vector<64x32xi32>
    %139 = arith.cmpi eq, %137, %138 : vector<64x32xi32>
    %140 = arith.extui %139 : vector<64x32xi1> to vector<64x32xi32>
    %141 = arith.sitofp %140 : vector<64x32xi32> to vector<64x32xf32>
    %c0_60 = arith.constant 0 : index
    %c0_61 = arith.constant 0 : index
    %142 = vector.load %arg8[%c0_60, %c0_61] : memref<32x96xf32, #tpu.memory_space<vmem>>, vector<32x96xf32>
    %cst_62 = arith.constant dense<0.000000e+00> : vector<64x96xf32>
    %143 = tpu.matmul %141, %142, %cst_62 {dimension_numbers = #tpu.dot_dimension_numbers<[1], [0], [0], [1], [0, 0, 1, 1], [], []>} : vector<64x32xf32>, vector<32x96xf32>, vector<64x96xf32> -> vector<64x96xf32>
    %c0_63 = arith.constant 0 : index
    %c0_64 = arith.constant 0 : index
    %144 = vector.load %arg13[%c0_63, %c0_64] : memref<384x128xf32, #tpu.memory_space<vmem>>, vector<96x128xf32>
    %cst_65 = arith.constant dense<0.000000e+00> : vector<64x128xf32>
    %145 = tpu.matmul %127, %144, %cst_65 {dimension_numbers = #tpu.dot_dimension_numbers<[1], [0], [0], [1], [0, 0, 1, 1], [], []>} : vector<64x96xf32>, vector<96x128xf32>, vector<64x128xf32> -> vector<64x128xf32>
    %c96_66 = arith.constant 96 : index
    %c0_67 = arith.constant 0 : index
    %146 = vector.load %arg13[%c96_66, %c0_67] : memref<384x128xf32, #tpu.memory_space<vmem>>, vector<96x128xf32>
    %cst_68 = arith.constant dense<0.000000e+00> : vector<64x128xf32>
    %147 = tpu.matmul %135, %146, %cst_68 {dimension_numbers = #tpu.dot_dimension_numbers<[1], [0], [0], [1], [0, 0, 1, 1], [], []>} : vector<64x96xf32>, vector<96x128xf32>, vector<64x128xf32> -> vector<64x128xf32>
    %148 = arith.addf %145, %147 : vector<64x128xf32>
    %c192_69 = arith.constant 192 : index
    %c0_70 = arith.constant 0 : index
    %149 = vector.load %arg13[%c192_69, %c0_70] : memref<384x128xf32, #tpu.memory_space<vmem>>, vector<96x128xf32>
    %cst_71 = arith.constant dense<0.000000e+00> : vector<64x128xf32>
    %150 = tpu.matmul %143, %149, %cst_71 {dimension_numbers = #tpu.dot_dimension_numbers<[1], [0], [0], [1], [0, 0, 1, 1], [], []>} : vector<64x96xf32>, vector<96x128xf32>, vector<64x128xf32> -> vector<64x128xf32>
    %151 = arith.addf %148, %150 : vector<64x128xf32>
    %c288 = arith.constant 288 : index
    %c0_72 = arith.constant 0 : index
    %152 = vector.load %arg13[%c288, %c0_72] : memref<384x128xf32, #tpu.memory_space<vmem>>, vector<96x128xf32>
    %cst_73 = arith.constant dense<0.000000e+00> : vector<64x128xf32>
    %153 = tpu.matmul %119, %152, %cst_73 {dimension_numbers = #tpu.dot_dimension_numbers<[1], [0], [0], [1], [0, 0, 1, 1], [], []>} : vector<64x96xf32>, vector<96x128xf32>, vector<64x128xf32> -> vector<64x128xf32>
    %154 = arith.addf %151, %153 : vector<64x128xf32>
    %c0_74 = arith.constant 0 : index
    %c640 = arith.constant 640 : index
    %155 = vector.load %arg18[%c0_74, %c640] : memref<1x3456xf32, #tpu.memory_space<vmem>>, vector<1x128xf32>
    %156 = vector.broadcast %155 : vector<1x128xf32> to vector<64x128xf32>
    %157 = arith.addf %154, %156 : vector<64x128xf32>
    %cst_75 = arith.constant dense<0.000000e+00> : vector<64xf32>
    %158 = vector.multi_reduction <add>, %157, %cst_75 [1] : vector<64x128xf32> to vector<64xf32>
    %159 = vector.shape_cast %158 : vector<64xf32> to vector<64x1xf32>
    %cst_76 = arith.constant 1.280000e+02 : f32
    %160 = vector.broadcast %cst_76 : f32 to vector<64x1xf32>
    %161 = arith.divf %159, %160 : vector<64x1xf32>
    %162 = vector.broadcast %161 : vector<64x1xf32> to vector<64x128xf32>
    %163 = arith.subf %157, %162 : vector<64x128xf32>
    %164 = arith.mulf %163, %163 : vector<64x128xf32>
    %cst_77 = arith.constant dense<0.000000e+00> : vector<64xf32>
    %165 = vector.multi_reduction <add>, %164, %cst_77 [1] : vector<64x128xf32> to vector<64xf32>
    %166 = vector.shape_cast %165 : vector<64xf32> to vector<64x1xf32>
    %cst_78 = arith.constant 1.280000e+02 : f32
    %167 = vector.broadcast %cst_78 : f32 to vector<64x1xf32>
    %168 = arith.divf %166, %167 : vector<64x1xf32>
    %169 = vector.broadcast %161 : vector<64x1xf32> to vector<64x128xf32>
    %170 = arith.subf %157, %169 : vector<64x128xf32>
    %cst_79 = arith.constant 9.99999974E-6 : f32
    %171 = vector.broadcast %cst_79 : f32 to vector<64x1xf32>
    %172 = arith.addf %168, %171 : vector<64x1xf32>
    %173 = math.rsqrt %172 : vector<64x1xf32>
    %174 = vector.broadcast %173 : vector<64x1xf32> to vector<64x128xf32>
    %175 = arith.mulf %170, %174 : vector<64x128xf32>
    %cst_80 = arith.constant 5.000000e-01 : f32
    %176 = vector.broadcast %cst_80 : f32 to vector<64x128xf32>
    %177 = arith.mulf %176, %175 : vector<64x128xf32>
    %cst_81 = arith.constant 0.707106769 : f32
    %178 = vector.broadcast %cst_81 : f32 to vector<64x128xf32>
    %179 = arith.mulf %175, %178 : vector<64x128xf32>
    %180 = math.erf %179 : vector<64x128xf32>
    %cst_82 = arith.constant 1.000000e+00 : f32
    %181 = vector.broadcast %cst_82 : f32 to vector<64x128xf32>
    %182 = arith.addf %181, %180 : vector<64x128xf32>
    %183 = arith.mulf %177, %182 : vector<64x128xf32>
    %c0_83 = arith.constant 0 : index
    %c0_84 = arith.constant 0 : index
    %184 = vector.load %arg14[%c0_83, %c0_84] : memref<128x64xf32, #tpu.memory_space<vmem>>, vector<128x64xf32>
    %cst_85 = arith.constant dense<0.000000e+00> : vector<64x64xf32>
    %185 = tpu.matmul %183, %184, %cst_85 {dimension_numbers = #tpu.dot_dimension_numbers<[1], [0], [0], [1], [0, 0, 1, 1], [], []>} : vector<64x128xf32>, vector<128x64xf32>, vector<64x64xf32> -> vector<64x64xf32>
    %c0_86 = arith.constant 0 : index
    %c768 = arith.constant 768 : index
    %186 = vector.load %arg18[%c0_86, %c768] : memref<1x3456xf32, #tpu.memory_space<vmem>>, vector<1x64xf32>
    %187 = vector.broadcast %186 : vector<1x64xf32> to vector<64x64xf32>
    %188 = arith.addf %185, %187 : vector<64x64xf32>
    %cst_87 = arith.constant dense<0.000000e+00> : vector<64xf32>
    %189 = vector.multi_reduction <add>, %188, %cst_87 [1] : vector<64x64xf32> to vector<64xf32>
    %190 = vector.shape_cast %189 : vector<64xf32> to vector<64x1xf32>
    %cst_88 = arith.constant 6.400000e+01 : f32
    %191 = vector.broadcast %cst_88 : f32 to vector<64x1xf32>
    %192 = arith.divf %190, %191 : vector<64x1xf32>
    %193 = vector.broadcast %192 : vector<64x1xf32> to vector<64x64xf32>
    %194 = arith.subf %188, %193 : vector<64x64xf32>
    %195 = arith.mulf %194, %194 : vector<64x64xf32>
    %cst_89 = arith.constant dense<0.000000e+00> : vector<64xf32>
    %196 = vector.multi_reduction <add>, %195, %cst_89 [1] : vector<64x64xf32> to vector<64xf32>
    %197 = vector.shape_cast %196 : vector<64xf32> to vector<64x1xf32>
    %cst_90 = arith.constant 6.400000e+01 : f32
    %198 = vector.broadcast %cst_90 : f32 to vector<64x1xf32>
    %199 = arith.divf %197, %198 : vector<64x1xf32>
    %200 = vector.broadcast %192 : vector<64x1xf32> to vector<64x64xf32>
    %201 = arith.subf %188, %200 : vector<64x64xf32>
    %cst_91 = arith.constant 9.99999974E-6 : f32
    %202 = vector.broadcast %cst_91 : f32 to vector<64x1xf32>
    %203 = arith.addf %199, %202 : vector<64x1xf32>
    %204 = math.rsqrt %203 : vector<64x1xf32>
    %205 = vector.broadcast %204 : vector<64x1xf32> to vector<64x64xf32>
    %206 = arith.mulf %201, %205 : vector<64x64xf32>
    %cst_92 = arith.constant 5.000000e-01 : f32
    %207 = vector.broadcast %cst_92 : f32 to vector<64x64xf32>
    %208 = arith.mulf %207, %206 : vector<64x64xf32>
    %cst_93 = arith.constant 0.707106769 : f32
    %209 = vector.broadcast %cst_93 : f32 to vector<64x64xf32>
    %210 = arith.mulf %206, %209 : vector<64x64xf32>
    %211 = math.erf %210 : vector<64x64xf32>
    %cst_94 = arith.constant 1.000000e+00 : f32
    %212 = vector.broadcast %cst_94 : f32 to vector<64x64xf32>
    %213 = arith.addf %212, %211 : vector<64x64xf32>
    %214 = arith.mulf %208, %213 : vector<64x64xf32>
    %c0_95 = arith.constant 0 : index
    %c0_96 = arith.constant 0 : index
    %215 = vector.load %arg15[%c0_95, %c0_96] : memref<64x192xf32, #tpu.memory_space<vmem>>, vector<64x192xf32>
    %cst_97 = arith.constant dense<0.000000e+00> : vector<64x192xf32>
    %216 = tpu.matmul %214, %215, %cst_97 {dimension_numbers = #tpu.dot_dimension_numbers<[1], [0], [0], [1], [0, 0, 1, 1], [], []>} : vector<64x64xf32>, vector<64x192xf32>, vector<64x192xf32> -> vector<64x192xf32>
    %c0_98 = arith.constant 0 : index
    %c896 = arith.constant 896 : index
    %217 = vector.load %arg18[%c0_98, %c896] : memref<1x3456xf32, #tpu.memory_space<vmem>>, vector<1x192xf32>
    %218 = vector.broadcast %217 : vector<1x192xf32> to vector<64x192xf32>
    %219 = arith.addf %216, %218 : vector<64x192xf32>
    %cst_99 = arith.constant 5.000000e-01 : f32
    %220 = vector.broadcast %cst_99 : f32 to vector<64x192xf32>
    %221 = arith.mulf %220, %219 : vector<64x192xf32>
    %cst_100 = arith.constant 0.707106769 : f32
    %222 = vector.broadcast %cst_100 : f32 to vector<64x192xf32>
    %223 = arith.mulf %219, %222 : vector<64x192xf32>
    %224 = math.erf %223 : vector<64x192xf32>
    %cst_101 = arith.constant 1.000000e+00 : f32
    %225 = vector.broadcast %cst_101 : f32 to vector<64x192xf32>
    %226 = arith.addf %225, %224 : vector<64x192xf32>
    %227 = arith.mulf %221, %226 : vector<64x192xf32>
    %228 = arith.mulf %105, %105 : vector<64x192xf32>
    %cst_102 = arith.constant dense<0.000000e+00> : vector<64xf32>
    %229 = vector.multi_reduction <add>, %228, %cst_102 [1] : vector<64x192xf32> to vector<64xf32>
    %230 = vector.shape_cast %229 : vector<64xf32> to vector<64x1xf32>
    %231 = arith.mulf %105, %227 : vector<64x192xf32>
    %cst_103 = arith.constant dense<0.000000e+00> : vector<64xf32>
    %232 = vector.multi_reduction <add>, %231, %cst_103 [1] : vector<64x192xf32> to vector<64xf32>
    %233 = vector.shape_cast %232 : vector<64xf32> to vector<64x1xf32>
    %234 = arith.mulf %227, %227 : vector<64x192xf32>
    %cst_104 = arith.constant dense<0.000000e+00> : vector<64xf32>
    %235 = vector.multi_reduction <add>, %234, %cst_104 [1] : vector<64x192xf32> to vector<64xf32>
    %236 = vector.shape_cast %235 : vector<64xf32> to vector<64x1xf32>
    %cst_105 = arith.constant dense<0.000000e+00> : vector<64xf32>
    %237 = vector.multi_reduction <add>, %105, %cst_105 [1] : vector<64x192xf32> to vector<64xf32>
    %238 = vector.shape_cast %237 : vector<64xf32> to vector<64x1xf32>
    %cst_106 = arith.constant dense<0.000000e+00> : vector<64xf32>
    %239 = vector.multi_reduction <add>, %227, %cst_106 [1] : vector<64x192xf32> to vector<64xf32>
    %240 = vector.shape_cast %239 : vector<64xf32> to vector<64x1xf32>
    %c0_107 = arith.constant 0 : index
    %c1152 = arith.constant 1152 : index
    %241 = vector.load %arg18[%c0_107, %c1152] : memref<1x3456xf32, #tpu.memory_space<vmem>>, vector<1x192xf32>
    %242 = vector.broadcast %230 : vector<64x1xf32> to vector<64x192xf32>
    %243 = vector.broadcast %241 : vector<1x192xf32> to vector<64x192xf32>
    %244 = arith.mulf %242, %243 : vector<64x192xf32>
    %c0_108 = arith.constant 0 : index
    %c1408 = arith.constant 1408 : index
    %245 = vector.load %arg18[%c0_108, %c1408] : memref<1x3456xf32, #tpu.memory_space<vmem>>, vector<1x192xf32>
    %246 = vector.broadcast %233 : vector<64x1xf32> to vector<64x192xf32>
    %247 = vector.broadcast %245 : vector<1x192xf32> to vector<64x192xf32>
    %248 = arith.mulf %246, %247 : vector<64x192xf32>
    %249 = arith.addf %244, %248 : vector<64x192xf32>
    %c0_109 = arith.constant 0 : index
    %c1664 = arith.constant 1664 : index
    %250 = vector.load %arg18[%c0_109, %c1664] : memref<1x3456xf32, #tpu.memory_space<vmem>>, vector<1x192xf32>
    %251 = vector.broadcast %236 : vector<64x1xf32> to vector<64x192xf32>
    %252 = vector.broadcast %250 : vector<1x192xf32> to vector<64x192xf32>
    %253 = arith.mulf %251, %252 : vector<64x192xf32>
    %254 = arith.addf %249, %253 : vector<64x192xf32>
    %c0_110 = arith.constant 0 : index
    %c1920 = arith.constant 1920 : index
    %255 = vector.load %arg18[%c0_110, %c1920] : memref<1x3456xf32, #tpu.memory_space<vmem>>, vector<1x192xf32>
    %256 = vector.broadcast %238 : vector<64x1xf32> to vector<64x192xf32>
    %257 = vector.broadcast %255 : vector<1x192xf32> to vector<64x192xf32>
    %258 = arith.mulf %256, %257 : vector<64x192xf32>
    %259 = arith.addf %254, %258 : vector<64x192xf32>
    %c0_111 = arith.constant 0 : index
    %c2176 = arith.constant 2176 : index
    %260 = vector.load %arg18[%c0_111, %c2176] : memref<1x3456xf32, #tpu.memory_space<vmem>>, vector<1x192xf32>
    %261 = vector.broadcast %240 : vector<64x1xf32> to vector<64x192xf32>
    %262 = vector.broadcast %260 : vector<1x192xf32> to vector<64x192xf32>
    %263 = arith.mulf %261, %262 : vector<64x192xf32>
    %264 = arith.addf %259, %263 : vector<64x192xf32>
    %c0_112 = arith.constant 0 : index
    %c0_113 = arith.constant 0 : index
    %265 = vector.load %arg16[%c0_112, %c0_113] : memref<192x128xf32, #tpu.memory_space<vmem>>, vector<192x128xf32>
    %cst_114 = arith.constant dense<0.000000e+00> : vector<64x128xf32>
    %266 = tpu.matmul %264, %265, %cst_114 {dimension_numbers = #tpu.dot_dimension_numbers<[1], [0], [0], [1], [0, 0, 1, 1], [], []>} : vector<64x192xf32>, vector<192x128xf32>, vector<64x128xf32> -> vector<64x128xf32>
    %c0_115 = arith.constant 0 : index
    %c2432 = arith.constant 2432 : index
    %267 = vector.load %arg18[%c0_115, %c2432] : memref<1x3456xf32, #tpu.memory_space<vmem>>, vector<1x128xf32>
    %268 = vector.broadcast %267 : vector<1x128xf32> to vector<64x128xf32>
    %269 = arith.addf %266, %268 : vector<64x128xf32>
    %cst_116 = arith.constant dense<0.000000e+00> : vector<64xf32>
    %270 = vector.multi_reduction <add>, %269, %cst_116 [1] : vector<64x128xf32> to vector<64xf32>
    %271 = vector.shape_cast %270 : vector<64xf32> to vector<64x1xf32>
    %cst_117 = arith.constant 1.280000e+02 : f32
    %272 = vector.broadcast %cst_117 : f32 to vector<64x1xf32>
    %273 = arith.divf %271, %272 : vector<64x1xf32>
    %274 = vector.broadcast %273 : vector<64x1xf32> to vector<64x128xf32>
    %275 = arith.subf %269, %274 : vector<64x128xf32>
    %276 = arith.mulf %275, %275 : vector<64x128xf32>
    %cst_118 = arith.constant dense<0.000000e+00> : vector<64xf32>
    %277 = vector.multi_reduction <add>, %276, %cst_118 [1] : vector<64x128xf32> to vector<64xf32>
    %278 = vector.shape_cast %277 : vector<64xf32> to vector<64x1xf32>
    %cst_119 = arith.constant 1.280000e+02 : f32
    %279 = vector.broadcast %cst_119 : f32 to vector<64x1xf32>
    %280 = arith.divf %278, %279 : vector<64x1xf32>
    %281 = vector.broadcast %273 : vector<64x1xf32> to vector<64x128xf32>
    %282 = arith.subf %269, %281 : vector<64x128xf32>
    %cst_120 = arith.constant 9.99999974E-6 : f32
    %283 = vector.broadcast %cst_120 : f32 to vector<64x1xf32>
    %284 = arith.addf %280, %283 : vector<64x1xf32>
    %285 = math.rsqrt %284 : vector<64x1xf32>
    %286 = vector.broadcast %285 : vector<64x1xf32> to vector<64x128xf32>
    %287 = arith.mulf %282, %286 : vector<64x128xf32>
    %c0_121 = arith.constant 0 : index
    %c2560 = arith.constant 2560 : index
    %288 = vector.load %arg18[%c0_121, %c2560] : memref<1x3456xf32, #tpu.memory_space<vmem>>, vector<1x128xf32>
    %289 = vector.broadcast %288 : vector<1x128xf32> to vector<64x128xf32>
    %290 = arith.mulf %287, %289 : vector<64x128xf32>
    %c0_122 = arith.constant 0 : index
    %c2688 = arith.constant 2688 : index
    %291 = vector.load %arg18[%c0_122, %c2688] : memref<1x3456xf32, #tpu.memory_space<vmem>>, vector<1x128xf32>
    %292 = vector.broadcast %291 : vector<1x128xf32> to vector<64x128xf32>
    %293 = arith.addf %290, %292 : vector<64x128xf32>
    %cst_123 = arith.constant 5.000000e-01 : f32
    %294 = vector.broadcast %cst_123 : f32 to vector<64x128xf32>
    %295 = arith.mulf %294, %293 : vector<64x128xf32>
    %cst_124 = arith.constant 0.707106769 : f32
    %296 = vector.broadcast %cst_124 : f32 to vector<64x128xf32>
    %297 = arith.mulf %293, %296 : vector<64x128xf32>
    %298 = math.erf %297 : vector<64x128xf32>
    %cst_125 = arith.constant 1.000000e+00 : f32
    %299 = vector.broadcast %cst_125 : f32 to vector<64x128xf32>
    %300 = arith.addf %299, %298 : vector<64x128xf32>
    %301 = arith.mulf %295, %300 : vector<64x128xf32>
    %c0_126 = arith.constant 0 : index
    %c0_127 = arith.constant 0 : index
    %302 = vector.load %arg17[%c0_126, %c0_127] : memref<128x64xf32, #tpu.memory_space<vmem>>, vector<128x64xf32>
    %cst_128 = arith.constant dense<0.000000e+00> : vector<64x64xf32>
    %303 = tpu.matmul %301, %302, %cst_128 {dimension_numbers = #tpu.dot_dimension_numbers<[1], [0], [0], [1], [0, 0, 1, 1], [], []>} : vector<64x128xf32>, vector<128x64xf32>, vector<64x64xf32> -> vector<64x64xf32>
    %c0_129 = arith.constant 0 : index
    %c2816 = arith.constant 2816 : index
    %304 = vector.load %arg18[%c0_129, %c2816] : memref<1x3456xf32, #tpu.memory_space<vmem>>, vector<1x64xf32>
    %305 = vector.broadcast %304 : vector<1x64xf32> to vector<64x64xf32>
    %306 = arith.addf %303, %305 : vector<64x64xf32>
    %cst_130 = arith.constant dense<0.000000e+00> : vector<64xf32>
    %307 = vector.multi_reduction <add>, %306, %cst_130 [1] : vector<64x64xf32> to vector<64xf32>
    %308 = vector.shape_cast %307 : vector<64xf32> to vector<64x1xf32>
    %cst_131 = arith.constant 6.400000e+01 : f32
    %309 = vector.broadcast %cst_131 : f32 to vector<64x1xf32>
    %310 = arith.divf %308, %309 : vector<64x1xf32>
    %311 = vector.broadcast %310 : vector<64x1xf32> to vector<64x64xf32>
    %312 = arith.subf %306, %311 : vector<64x64xf32>
    %313 = arith.mulf %312, %312 : vector<64x64xf32>
    %cst_132 = arith.constant dense<0.000000e+00> : vector<64xf32>
    %314 = vector.multi_reduction <add>, %313, %cst_132 [1] : vector<64x64xf32> to vector<64xf32>
    %315 = vector.shape_cast %314 : vector<64xf32> to vector<64x1xf32>
    %cst_133 = arith.constant 6.400000e+01 : f32
    %316 = vector.broadcast %cst_133 : f32 to vector<64x1xf32>
    %317 = arith.divf %315, %316 : vector<64x1xf32>
    %318 = vector.broadcast %310 : vector<64x1xf32> to vector<64x64xf32>
    %319 = arith.subf %306, %318 : vector<64x64xf32>
    %cst_134 = arith.constant 9.99999974E-6 : f32
    %320 = vector.broadcast %cst_134 : f32 to vector<64x1xf32>
    %321 = arith.addf %317, %320 : vector<64x1xf32>
    %322 = math.rsqrt %321 : vector<64x1xf32>
    %323 = vector.broadcast %322 : vector<64x1xf32> to vector<64x64xf32>
    %324 = arith.mulf %319, %323 : vector<64x64xf32>
    %c0_135 = arith.constant 0 : index
    %c2944 = arith.constant 2944 : index
    %325 = vector.load %arg18[%c0_135, %c2944] : memref<1x3456xf32, #tpu.memory_space<vmem>>, vector<1x64xf32>
    %326 = vector.broadcast %325 : vector<1x64xf32> to vector<64x64xf32>
    %327 = arith.mulf %324, %326 : vector<64x64xf32>
    %c0_136 = arith.constant 0 : index
    %c3072 = arith.constant 3072 : index
    %328 = vector.load %arg18[%c0_136, %c3072] : memref<1x3456xf32, #tpu.memory_space<vmem>>, vector<1x64xf32>
    %329 = vector.broadcast %328 : vector<1x64xf32> to vector<64x64xf32>
    %330 = arith.addf %327, %329 : vector<64x64xf32>
    %cst_137 = arith.constant 5.000000e-01 : f32
    %331 = vector.broadcast %cst_137 : f32 to vector<64x64xf32>
    %332 = arith.mulf %331, %330 : vector<64x64xf32>
    %cst_138 = arith.constant 0.707106769 : f32
    %333 = vector.broadcast %cst_138 : f32 to vector<64x64xf32>
    %334 = arith.mulf %330, %333 : vector<64x64xf32>
    %335 = math.erf %334 : vector<64x64xf32>
    %cst_139 = arith.constant 1.000000e+00 : f32
    %336 = vector.broadcast %cst_139 : f32 to vector<64x64xf32>
    %337 = arith.addf %336, %335 : vector<64x64xf32>
    %338 = arith.mulf %332, %337 : vector<64x64xf32>
    %c0_140 = arith.constant 0 : index
    %c3200 = arith.constant 3200 : index
    %339 = vector.load %arg18[%c0_140, %c3200] : memref<1x3456xf32, #tpu.memory_space<vmem>>, vector<1x64xf32>
    %340 = vector.broadcast %339 : vector<1x64xf32> to vector<64x64xf32>
    %341 = arith.mulf %338, %340 : vector<64x64xf32>
    %cst_141 = arith.constant dense<0.000000e+00> : vector<64xf32>
    %342 = vector.multi_reduction <add>, %341, %cst_141 [1] : vector<64x64xf32> to vector<64xf32>
    %343 = vector.shape_cast %342 : vector<64xf32> to vector<64x1xf32>
    %c0_142 = arith.constant 0 : index
    %c3328 = arith.constant 3328 : index
    %344 = vector.load %arg18[%c0_142, %c3328] : memref<1x3456xf32, #tpu.memory_space<vmem>>, vector<1x1xf32>
    %345 = vector.broadcast %344 : vector<1x1xf32> to vector<64x1xf32>
    %346 = arith.addf %343, %345 : vector<64x1xf32>
    %cst_143 = arith.constant 5.000000e-01 : f32
    %347 = vector.broadcast %cst_143 : f32 to vector<64x1xf32>
    %348 = arith.mulf %347, %346 : vector<64x1xf32>
    %cst_144 = arith.constant 0.707106769 : f32
    %349 = vector.broadcast %cst_144 : f32 to vector<64x1xf32>
    %350 = arith.mulf %346, %349 : vector<64x1xf32>
    %351 = math.erf %350 : vector<64x1xf32>
    %cst_145 = arith.constant 1.000000e+00 : f32
    %352 = vector.broadcast %cst_145 : f32 to vector<64x1xf32>
    %353 = arith.addf %352, %351 : vector<64x1xf32>
    %354 = arith.mulf %348, %353 : vector<64x1xf32>
    %c0_146 = arith.constant 0 : index
    %c0_147 = arith.constant 0 : index
    %355 = vector.load %arg19[%c0_146, %c0_147] : memref<64x1xf32, #tpu.memory_space<vmem>>, vector<64x1xf32>
    tpu.vector_store %arg19[%c0_146, %c0_147], %354 {strides = array<i32>} : memref<64x1xf32, #tpu.memory_space<vmem>>, vector<64x1xf32>,
    return
  }
  func.func @transform_0(%arg0: i32) -> (i32, i32) {
    %c0_i32 = arith.constant 0 : i32
    %c0_i32_0 = arith.constant 0 : i32
    return %arg0, %c0_i32 : i32, i32
  }
  func.func @transform_1(%arg0: i32) -> (i32, i32) {
    %c0_i32 = arith.constant 0 : i32
    %c0_i32_0 = arith.constant 0 : i32
    return %arg0, %c0_i32 : i32, i32
  }
  func.func @transform_2(%arg0: i32) -> (i32, i32) {
    %c0_i32 = arith.constant 0 : i32
    %c0_i32_0 = arith.constant 0 : i32
    %c0_i32_1 = arith.constant 0 : i32
    return %c0_i32, %c0_i32_0 : i32, i32
  }
  func.func @transform_3(%arg0: i32) -> (i32, i32) {
    %c0_i32 = arith.constant 0 : i32
    %c0_i32_0 = arith.constant 0 : i32
    %c0_i32_1 = arith.constant 0 : i32
    return %c0_i32, %c0_i32_0 : i32, i32
  }
  func.func @transform_4(%arg0: i32) -> (i32, i32) {
    %c0_i32 = arith.constant 0 : i32
    %c0_i32_0 = arith.constant 0 : i32
    %c0_i32_1 = arith.constant 0 : i32
    return %c0_i32, %c0_i32_0 : i32, i32
  }
  func.func @transform_5(%arg0: i32) -> (i32, i32) {
    %c0_i32 = arith.constant 0 : i32
    %c0_i32_0 = arith.constant 0 : i32
    %c0_i32_1 = arith.constant 0 : i32
    return %c0_i32, %c0_i32_0 : i32, i32
  }
  func.func @transform_6(%arg0: i32) -> (i32, i32) {
    %c0_i32 = arith.constant 0 : i32
    %c0_i32_0 = arith.constant 0 : i32
    %c0_i32_1 = arith.constant 0 : i32
    return %c0_i32, %c0_i32_0 : i32, i32
  }
  func.func @transform_7(%arg0: i32) -> (i32, i32) {
    %c0_i32 = arith.constant 0 : i32
    %c0_i32_0 = arith.constant 0 : i32
    %c0_i32_1 = arith.constant 0 : i32
    return %c0_i32, %c0_i32_0 : i32, i32
  }
  func.func @transform_8(%arg0: i32) -> (i32, i32) {
    %c0_i32 = arith.constant 0 : i32
    %c0_i32_0 = arith.constant 0 : i32
    %c0_i32_1 = arith.constant 0 : i32
    return %c0_i32, %c0_i32_0 : i32, i32
  }
  func.func @transform_9(%arg0: i32) -> (i32, i32) {
    %c0_i32 = arith.constant 0 : i32
    %c0_i32_0 = arith.constant 0 : i32
    %c0_i32_1 = arith.constant 0 : i32
    return %c0_i32, %c0_i32_0 : i32, i32
  }
  func.func @transform_10(%arg0: i32) -> (i32, i32) {
    %c0_i32 = arith.constant 0 : i32
    %c0_i32_0 = arith.constant 0 : i32
    %c0_i32_1 = arith.constant 0 : i32
    return %c0_i32, %c0_i32_0 : i32, i32
  }
  func.func @transform_11(%arg0: i32) -> (i32, i32) {
    %c0_i32 = arith.constant 0 : i32
    %c0_i32_0 = arith.constant 0 : i32
    %c0_i32_1 = arith.constant 0 : i32
    return %c0_i32, %c0_i32_0 : i32, i32
  }
  func.func @transform_12(%arg0: i32) -> (i32, i32) {
    %c0_i32 = arith.constant 0 : i32
    %c0_i32_0 = arith.constant 0 : i32
    %c0_i32_1 = arith.constant 0 : i32
    return %c0_i32, %c0_i32_0 : i32, i32
  }
  func.func @transform_13(%arg0: i32) -> (i32, i32) {
    %c0_i32 = arith.constant 0 : i32
    %c0_i32_0 = arith.constant 0 : i32
    %c0_i32_1 = arith.constant 0 : i32
    return %c0_i32, %c0_i32_0 : i32, i32
  }
  func.func @transform_14(%arg0: i32) -> (i32, i32) {
    %c0_i32 = arith.constant 0 : i32
    %c0_i32_0 = arith.constant 0 : i32
    %c0_i32_1 = arith.constant 0 : i32
    return %c0_i32, %c0_i32_0 : i32, i32
  }
  func.func @transform_15(%arg0: i32) -> (i32, i32) {
    %c0_i32 = arith.constant 0 : i32
    %c0_i32_0 = arith.constant 0 : i32
    %c0_i32_1 = arith.constant 0 : i32
    return %c0_i32, %c0_i32_0 : i32, i32
  }
  func.func @transform_16(%arg0: i32) -> (i32, i32) {
    %c0_i32 = arith.constant 0 : i32
    %c0_i32_0 = arith.constant 0 : i32
    %c0_i32_1 = arith.constant 0 : i32
    return %c0_i32, %c0_i32_0 : i32, i32
  }
  func.func @transform_17(%arg0: i32) -> (i32, i32) {
    %c0_i32 = arith.constant 0 : i32
    %c0_i32_0 = arith.constant 0 : i32
    %c0_i32_1 = arith.constant 0 : i32
    return %c0_i32, %c0_i32_0 : i32, i32
  }
  func.func @transform_18(%arg0: i32) -> (i32, i32) {
    %c0_i32 = arith.constant 0 : i32
    %c0_i32_0 = arith.constant 0 : i32
    return %arg0, %c0_i32 : i32, i32
  }
}

</mosaic_0001>

<llo_original>
// kernel: tpu_custom_call.1
$region0: #{tpu_custom_call.1}
  #allocation0 [shape = 'u32[]', space=smem, size = 0x4, offset = 0x4, fixed_abs, tag = 'smem constant byte address 0x4 - core index']
  #allocation1 [shape = 'u32[72,128]{1,0:T(1,128)}', space=vmem, size = 0x9000, scoped, tag = 'internal scratch']
  %s0 = inlined_call_operand.vmem [shape: s32[256,6], index: 0, kind: input, shape index: {}]
  %s1 = inlined_call_operand.vmem [shape: f32[256,384], index: 1, kind: input, shape index: {}]
  %s2 = inlined_call_operand.hbm [shape: f32[40,96], index: 2, kind: input, shape index: {}]
  %s3 = inlined_call_operand.hbm [shape: f32[16,96], index: 3, kind: input, shape index: {}]
  %s4 = inlined_call_operand.hbm [shape: f32[24,96], index: 4, kind: input, shape index: {}]
  %s5 = inlined_call_operand.hbm [shape: f32[56,96], index: 5, kind: input, shape index: {}]
  %s6 = inlined_call_operand.hbm [shape: f32[24,96], index: 6, kind: input, shape index: {}]
  %s7 = inlined_call_operand.hbm [shape: f32[32,96], index: 7, kind: input, shape index: {}]
  %s8 = inlined_call_operand.hbm [shape: f32[288,128], index: 8, kind: input, shape index: {}]
  %s9 = inlined_call_operand.vmem [shape: f32[128,64], index: 9, kind: input, shape index: {}]
  %s10 = inlined_call_operand.vmem [shape: f32[64,192], index: 10, kind: input, shape index: {}]
  %s11 = inlined_call_operand.vmem [shape: f32[384,96], index: 11, kind: input, shape index: {}]
  %s12 = inlined_call_operand.hbm [shape: f32[384,128], index: 12, kind: input, shape index: {}]
  %s13 = inlined_call_operand.vmem [shape: f32[128,64], index: 13, kind: input, shape index: {}]
  %s14 = inlined_call_operand.hbm [shape: f32[64,192], index: 14, kind: input, shape index: {}]
  %s15 = inlined_call_operand.vmem [shape: f32[192,128], index: 15, kind: input, shape index: {}]
  %s16 = inlined_call_operand.vmem [shape: f32[128,64], index: 16, kind: input, shape index: {}]
  %s17 = inlined_call_operand.hbm [shape: f32[1,3456], index: 17, kind: input, shape index: {}]
  %s18 = inlined_call_operand.vmem [shape: f32[256,1], index: 18, kind: output, shape index: {}]
  %s19 = sld [smem:[#allocation0]]
  $region145: #{tpu_custom_call.1} parent=0
    _
  %s21 = ssub.s32 1, %s19
  %s22 = scalar_select 0, %s21, %s19
  $region1: #{tpu_custom_call.1} parent=0
    #allocation2 [shape = 'u8[20480]{0}', space=vmem, size = 0x5000, scoped, tag = 'input window, operand 2, single buffered']
    #allocation3 [shape = 's32[2]{0}', space=sflag, size = 0x8, scoped, tag = 'scoped memory for tpu_custom_call.1']
    #allocation4 [shape = 'u8[8192]{0}', space=vmem, size = 0x2000, scoped, tag = 'input window, operand 3, single buffered']
    #allocation5 [shape = 's32[1]{0}', space=sflag, size = 0x4, scoped, tag = 'scoped memory for tpu_custom_call.1']
    #allocation6 [shape = 'u8[12288]{0}', space=vmem, size = 0x3000, scoped, tag = 'input window, operand 4, single buffered']
    #allocation7 [shape = 'u8[28672]{0}', space=vmem, size = 0x7000, scoped, tag = 'input window, operand 5, single buffered']
    #allocation8 [shape = 's32[1]{0}', space=sflag, size = 0x4, scoped, tag = 'scoped memory for tpu_custom_call.1']
    #allocation9 [shape = 'u8[12288]{0}', space=vmem, size = 0x3000, scoped, tag = 'input window, operand 6, single buffered']
    #allocation10 [shape = 'u8[16384]{0}', space=vmem, size = 0x4000, scoped, tag = 'input window, operand 7, single buffered']
    #allocation11 [shape = 's32[1]{0}', space=sflag, size = 0x4, scoped, tag = 'scoped memory for tpu_custom_call.1']
    #allocation12 [shape = 'u8[147456]{0}', space=vmem, size = 0x24000, scoped, tag = 'input window, operand 8, single buffered']
    #allocation13 [shape = 'u8[196608]{0}', space=vmem, size = 0x30000, scoped, tag = 'input window, operand 12, single buffered']
    #allocation14 [shape = 's32[1]{0}', space=sflag, size = 0x4, scoped, tag = 'scoped memory for tpu_custom_call.1']
    #allocation15 [shape = 'u8[65536]{0}', space=vmem, size = 0x10000, scoped, tag = 'input window, operand 14, single buffered']
    #allocation16 [shape = 'u8[13824]{0}', space=vmem, size = 0x3800, scoped, tag = 'input window, operand 17, single buffered']
    #allocation17 [shape = 's32[1]{0}', space=sflag, size = 0x4, scoped, tag = 'scoped memory for tpu_custom_call.1']
    %23 = vsyncpa [#allocation3], 0
    %24 = vsyncpa [#allocation5], 0
    %25 = vsyncpa [#allocation8], 0
    %26 = vsyncpa [#allocation11], 0
    %27 = vsyncpa [#allocation14], 0
    %28 = vsyncpa [#allocation17], 0
    loop: start=0, step=1, limit=6
    $region2: #{tpu_custom_call.1} parent=1 // loop_pre_header
      _
    $region3: #{tpu_custom_call.1} parent=1 // loop_header
      %s30 = sphi 0, %s34
      %p31 = scmp.ge.s32.totalorder %s30, 6
      %s40 = sphi 0, %s42
      %s43 = sphi 0, %s40
      %s44 = sphi 0, %s43
      %s60 = sphi 0, %s44
      %s66 = sphi 0, %s68
      %s69 = sphi 0, %s66
      %s70 = sphi 0, %s69
      %s86 = sphi 0, %s70
      %s90 = sphi 0, %s90
      %s92 = sphi 0, %s90
      %s93 = sphi 0, %s92
      %s107 = sphi 0, %s93
      %s111 = sphi 0, %s111
      %s113 = sphi 0, %s111
      %s114 = sphi 0, %s113
      %s128 = sphi 0, %s114
      %s132 = sphi 0, %s132
      %s134 = sphi 0, %s132
      %s135 = sphi 0, %s134
      %s149 = sphi 0, %s135
      %s153 = sphi 0, %s153
      %s155 = sphi 0, %s153
      %s156 = sphi 0, %s155
      %s170 = sphi 0, %s156
      %s174 = sphi 0, %s174
      %s176 = sphi 0, %s174
      %s177 = sphi 0, %s176
      %s191 = sphi 0, %s177
      %s195 = sphi 0, %s195
      %s197 = sphi 0, %s195
      %s198 = sphi 0, %s197
      %s212 = sphi 0, %s198
      %s216 = sphi 0, %s216
      %s218 = sphi 0, %s216
      %s219 = sphi 0, %s218
      %s233 = sphi 0, %s219
      %s237 = sphi 0, %s237
      %s239 = sphi 0, %s237
      %s240 = sphi 0, %s239
      %s254 = sphi 0, %s240
      %s258 = sphi 0, %s258
      %s260 = sphi 0, %s258
      %s261 = sphi 0, %s260
      %s275 = sphi 0, %s261
      %s279 = sphi 0, %s279
      %s281 = sphi 0, %s279
      %s282 = sphi 0, %s281
      %s296 = sphi 0, %s282
      %s300 = sphi 0, %s300
      %s302 = sphi 0, %s300
      %s303 = sphi 0, %s302
      %s317 = sphi 0, %s303
      %s321 = sphi 0, %s321
      %s323 = sphi 0, %s321
      %s324 = sphi 0, %s323
      %s338 = sphi 0, %s324
      %s342 = sphi 0, %s342
      %s344 = sphi 0, %s342
      %s345 = sphi 0, %s344
      %s359 = sphi 0, %s345
      %s363 = sphi 0, %s363
      %s365 = sphi 0, %s363
      %s366 = sphi 0, %s365
      %s380 = sphi 0, %s366
      %s384 = sphi 0, %s384
      %s386 = sphi 0, %s384
      %s387 = sphi 0, %s386
      %s401 = sphi 0, %s387
      %s405 = sphi 0, %s405
      %s407 = sphi 0, %s405
      %s408 = sphi 0, %s407
      %s422 = sphi 0, %s408
      %s428 = sphi 0, %s430
      %s431 = sphi 0, %s428
      %s432 = sphi 0, %s431
      %s448 = sphi 0, %s432
    $region4: #{tpu_custom_call.1} parent=1 // loop_header_branch
      %33 = sbr.rel (%p31) target = $region8
    $region5: #{tpu_custom_call.1} parent=1 // loop_body
      %s35 = ssub.s32 %s30, 1
      %s36 = ssub.s32 %s30, 2
      %s37 = sadd.s32 %s30, 1
      %s38 = ssub.s32 %s30, %s37
      %p39 = scmp.eq.s32.totalorder %s38, 0
      %s41 = sadd.s32 %s40, 1
      %s42 = scalar_select %p39, %s40, %s41
      %p45 = pneg %p39
      %p46 = scmp.eq.s32.totalorder %s30, 3
      %p47 = por %p45, %p46
      %p48 = scmp.ne.s32.totalorder %s40, %s43
      %p49 = scmp.eq.s32.totalorder %s30, 0
      %p50 = por %p48, %p49
      %p51 = scmp.ne.s32.totalorder %s40, %s43
      %p52 = scmp.eq.s32.totalorder %s35, 3
      %p53 = por %p51, %p52
      %p54 = scmp.ne.s32.totalorder %s43, %s44
      %p55 = scmp.eq.s32.totalorder %s35, 0
      %p56 = por %p54, %p55
      %p57 = scmp.ne.s32.totalorder %s43, %s44
      %p58 = scmp.eq.s32.totalorder %s36, 3
      %p59 = por %p57, %p58
      %p61 = scmp.ne.s32.totalorder %s44, %s60
      %p62 = scmp.eq.s32.totalorder %s36, 0
      %p63 = por %p61, %p62
      %s64 = ssub.s32 %s30, %s37
      %p65 = scmp.eq.s32.totalorder %s64, 0
      %s67 = sadd.s32 %s66, 1
      %s68 = scalar_select %p65, %s66, %s67
      %p71 = pneg %p65
      %p72 = scmp.eq.s32.totalorder %s30, 3
      %p73 = por %p71, %p72
      %p74 = scmp.ne.s32.totalorder %s66, %s69
      %p75 = scmp.eq.s32.totalorder %s30, 0
      %p76 = por %p74, %p75
      %p77 = scmp.ne.s32.totalorder %s66, %s69
      %p78 = scmp.eq.s32.totalorder %s35, 3
      %p79 = por %p77, %p78
      %p80 = scmp.ne.s32.totalorder %s69, %s70
      %p81 = scmp.eq.s32.totalorder %s35, 0
      %p82 = por %p80, %p81
      %p83 = scmp.ne.s32.totalorder %s69, %s70
      %p84 = scmp.eq.s32.totalorder %s36, 3
      %p85 = por %p83, %p84
      %p87 = scmp.ne.s32.totalorder %s70, %s86
      %p88 = scmp.eq.s32.totalorder %s36, 0
      %p89 = por %p87, %p88
      %s91 = sadd.s32 %s90, 1
      %p94 = scmp.eq.s32.totalorder %s30, 3
      %p95 = scmp.ne.s32.totalorder %s90, %s92
      %p96 = scmp.eq.s32.totalorder %s30, 0
      %p97 = por %p95, %p96
      %p98 = scmp.ne.s32.totalorder %s90, %s92
      %p99 = scmp.eq.s32.totalorder %s35, 3
      %p100 = por %p98, %p99
      %p101 = scmp.ne.s32.totalorder %s92, %s93
      %p102 = scmp.eq.s32.totalorder %s35, 0
      %p103 = por %p101, %p102
      %p104 = scmp.ne.s32.totalorder %s92, %s93
      %p105 = scmp.eq.s32.totalorder %s36, 3
      %p106 = por %p104, %p105
      %p108 = scmp.ne.s32.totalorder %s93, %s107
      %p109 = scmp.eq.s32.totalorder %s36, 0
      %p110 = por %p108, %p109
      %s112 = sadd.s32 %s111, 1
      %p115 = scmp.eq.s32.totalorder %s30, 3
      %p116 = scmp.ne.s32.totalorder %s111, %s113
      %p117 = scmp.eq.s32.totalorder %s30, 0
      %p118 = por %p116, %p117
      %p119 = scmp.ne.s32.totalorder %s111, %s113
      %p120 = scmp.eq.s32.totalorder %s35, 3
      %p121 = por %p119, %p120
      %p122 = scmp.ne.s32.totalorder %s113, %s114
      %p123 = scmp.eq.s32.totalorder %s35, 0
      %p124 = por %p122, %p123
      %p125 = scmp.ne.s32.totalorder %s113, %s114
      %p126 = scmp.eq.s32.totalorder %s36, 3
      %p127 = por %p125, %p126
      %p129 = scmp.ne.s32.totalorder %s114, %s128
      %p130 = scmp.eq.s32.totalorder %s36, 0
      %p131 = por %p129, %p130
      %s133 = sadd.s32 %s132, 1
      %p136 = scmp.eq.s32.totalorder %s30, 3
      %p137 = scmp.ne.s32.totalorder %s132, %s134
      %p138 = scmp.eq.s32.totalorder %s30, 0
      %p139 = por %p137, %p138
      %p140 = scmp.ne.s32.totalorder %s132, %s134
      %p141 = scmp.eq.s32.totalorder %s35, 3
      %p142 = por %p140, %p141
      %p143 = scmp.ne.s32.totalorder %s134, %s135
      %p144 = scmp.eq.s32.totalorder %s35, 0
      %p145 = por %p143, %p144
      %p146 = scmp.ne.s32.totalorder %s134, %s135
      %p147 = scmp.eq.s32.totalorder %s36, 3
      %p148 = por %p146, %p147
      %p150 = scmp.ne.s32.totalorder %s135, %s149
      %p151 = scmp.eq.s32.totalorder %s36, 0
      %p152 = por %p150, %p151
      %s154 = sadd.s32 %s153, 1
      %p157 = scmp.eq.s32.totalorder %s30, 3
      %p158 = scmp.ne.s32.totalorder %s153, %s155
      %p159 = scmp.eq.s32.totalorder %s30, 0
      %p160 = por %p158, %p159
      %p161 = scmp.ne.s32.totalorder %s153, %s155
      %p162 = scmp.eq.s32.totalorder %s35, 3
      %p163 = por %p161, %p162
      %p164 = scmp.ne.s32.totalorder %s155, %s156
      %p165 = scmp.eq.s32.totalorder %s35, 0
      %p166 = por %p164, %p165
      %p167 = scmp.ne.s32.totalorder %s155, %s156
      %p168 = scmp.eq.s32.totalorder %s36, 3
      %p169 = por %p167, %p168
      %p171 = scmp.ne.s32.totalorder %s156, %s170
      %p172 = scmp.eq.s32.totalorder %s36, 0
      %p173 = por %p171, %p172
      %s175 = sadd.s32 %s174, 1
      %p178 = scmp.eq.s32.totalorder %s30, 3
      %p179 = scmp.ne.s32.totalorder %s174, %s176
      %p180 = scmp.eq.s32.totalorder %s30, 0
      %p181 = por %p179, %p180
      %p182 = scmp.ne.s32.totalorder %s174, %s176
      %p183 = scmp.eq.s32.totalorder %s35, 3
      %p184 = por %p182, %p183
      %p185 = scmp.ne.s32.totalorder %s176, %s177
      %p186 = scmp.eq.s32.totalorder %s35, 0
      %p187 = por %p185, %p186
      %p188 = scmp.ne.s32.totalorder %s176, %s177
      %p189 = scmp.eq.s32.totalorder %s36, 3
      %p190 = por %p188, %p189
      %p192 = scmp.ne.s32.totalorder %s177, %s191
      %p193 = scmp.eq.s32.totalorder %s36, 0
      %p194 = por %p192, %p193
      %s196 = sadd.s32 %s195, 1
      %p199 = scmp.eq.s32.totalorder %s30, 3
      %p200 = scmp.ne.s32.totalorder %s195, %s197
      %p201 = scmp.eq.s32.totalorder %s30, 0
      %p202 = por %p200, %p201
      %p203 = scmp.ne.s32.totalorder %s195, %s197
      %p204 = scmp.eq.s32.totalorder %s35, 3
      %p205 = por %p203, %p204
      %p206 = scmp.ne.s32.totalorder %s197, %s198
      %p207 = scmp.eq.s32.totalorder %s35, 0
      %p208 = por %p206, %p207
      %p209 = scmp.ne.s32.totalorder %s197, %s198
      %p210 = scmp.eq.s32.totalorder %s36, 3
      %p211 = por %p209, %p210
      %p213 = scmp.ne.s32.totalorder %s198, %s212
      %p214 = scmp.eq.s32.totalorder %s36, 0
      %p215 = por %p213, %p214
      %s217 = sadd.s32 %s216, 1
      %p220 = scmp.eq.s32.totalorder %s30, 3
      %p221 = scmp.ne.s32.totalorder %s216, %s218
      %p222 = scmp.eq.s32.totalorder %s30, 0
      %p223 = por %p221, %p222
      %p224 = scmp.ne.s32.totalorder %s216, %s218
      %p225 = scmp.eq.s32.totalorder %s35, 3
      %p226 = por %p224, %p225
      %p227 = scmp.ne.s32.totalorder %s218, %s219
      %p228 = scmp.eq.s32.totalorder %s35, 0
      %p229 = por %p227, %p228
      %p230 = scmp.ne.s32.totalorder %s218, %s219
      %p231 = scmp.eq.s32.totalorder %s36, 3
      %p232 = por %p230, %p231
      %p234 = scmp.ne.s32.totalorder %s219, %s233
      %p235 = scmp.eq.s32.totalorder %s36, 0
      %p236 = por %p234, %p235
      %s238 = sadd.s32 %s237, 1
      %p241 = scmp.eq.s32.totalorder %s30, 3
      %p242 = scmp.ne.s32.totalorder %s237, %s239
      %p243 = scmp.eq.s32.totalorder %s30, 0
      %p244 = por %p242, %p243
      %p245 = scmp.ne.s32.totalorder %s237, %s239
      %p246 = scmp.eq.s32.totalorder %s35, 3
      %p247 = por %p245, %p246
      %p248 = scmp.ne.s32.totalorder %s239, %s240
      %p249 = scmp.eq.s32.totalorder %s35, 0
      %p250 = por %p248, %p249
      %p251 = scmp.ne.s32.totalorder %s239, %s240
      %p252 = scmp.eq.s32.totalorder %s36, 3
      %p253 = por %p251, %p252
      %p255 = scmp.ne.s32.totalorder %s240, %s254
      %p256 = scmp.eq.s32.totalorder %s36, 0
      %p257 = por %p255, %p256
      %s259 = sadd.s32 %s258, 1
      %p262 = scmp.eq.s32.totalorder %s30, 3
      %p263 = scmp.ne.s32.totalorder %s258, %s260
      %p264 = scmp.eq.s32.totalorder %s30, 0
      %p265 = por %p263, %p264
      %p266 = scmp.ne.s32.totalorder %s258, %s260
      %p267 = scmp.eq.s32.totalorder %s35, 3
      %p268 = por %p266, %p267
      %p269 = scmp.ne.s32.totalorder %s260, %s261
      %p270 = scmp.eq.s32.totalorder %s35, 0
      %p271 = por %p269, %p270
      %p272 = scmp.ne.s32.totalorder %s260, %s261
      %p273 = scmp.eq.s32.totalorder %s36, 3
      %p274 = por %p272, %p273
      %p276 = scmp.ne.s32.totalorder %s261, %s275
      %p277 = scmp.eq.s32.totalorder %s36, 0
      %p278 = por %p276, %p277
      %s280 = sadd.s32 %s279, 1
      %p283 = scmp.eq.s32.totalorder %s30, 3
      %p284 = scmp.ne.s32.totalorder %s279, %s281
      %p285 = scmp.eq.s32.totalorder %s30, 0
      %p286 = por %p284, %p285
      %p287 = scmp.ne.s32.totalorder %s279, %s281
      %p288 = scmp.eq.s32.totalorder %s35, 3
      %p289 = por %p287, %p288
      %p290 = scmp.ne.s32.totalorder %s281, %s282
      %p291 = scmp.eq.s32.totalorder %s35, 0
      %p292 = por %p290, %p291
      %p293 = scmp.ne.s32.totalorder %s281, %s282
      %p294 = scmp.eq.s32.totalorder %s36, 3
      %p295 = por %p293, %p294
      %p297 = scmp.ne.s32.totalorder %s282, %s296
      %p298 = scmp.eq.s32.totalorder %s36, 0
      %p299 = por %p297, %p298
      %s301 = sadd.s32 %s300, 1
      %p304 = scmp.eq.s32.totalorder %s30, 3
      %p305 = scmp.ne.s32.totalorder %s300, %s302
      %p306 = scmp.eq.s32.totalorder %s30, 0
      %p307 = por %p305, %p306
      %p308 = scmp.ne.s32.totalorder %s300, %s302
      %p309 = scmp.eq.s32.totalorder %s35, 3
      %p310 = por %p308, %p309
      %p311 = scmp.ne.s32.totalorder %s302, %s303
      %p312 = scmp.eq.s32.totalorder %s35, 0
      %p313 = por %p311, %p312
      %p314 = scmp.ne.s32.totalorder %s302, %s303
      %p315 = scmp.eq.s32.totalorder %s36, 3
      %p316 = por %p314, %p315
      %p318 = scmp.ne.s32.totalorder %s303, %s317
      %p319 = scmp.eq.s32.totalorder %s36, 0
      %p320 = por %p318, %p319
      %s322 = sadd.s32 %s321, 1
      %p325 = scmp.eq.s32.totalorder %s30, 3
      %p326 = scmp.ne.s32.totalorder %s321, %s323
      %p327 = scmp.eq.s32.totalorder %s30, 0
      %p328 = por %p326, %p327
      %p329 = scmp.ne.s32.totalorder %s321, %s323
      %p330 = scmp.eq.s32.totalorder %s35, 3
      %p331 = por %p329, %p330
      %p332 = scmp.ne.s32.totalorder %s323, %s324
      %p333 = scmp.eq.s32.totalorder %s35, 0
      %p334 = por %p332, %p333
      %p335 = scmp.ne.s32.totalorder %s323, %s324
      %p336 = scmp.eq.s32.totalorder %s36, 3
      %p337 = por %p335, %p336
      %p339 = scmp.ne.s32.totalorder %s324, %s338
      %p340 = scmp.eq.s32.totalorder %s36, 0
      %p341 = por %p339, %p340
      %s343 = sadd.s32 %s342, 1
      %p346 = scmp.eq.s32.totalorder %s30, 3
      %p347 = scmp.ne.s32.totalorder %s342, %s344
      %p348 = scmp.eq.s32.totalorder %s30, 0
      %p349 = por %p347, %p348
      %p350 = scmp.ne.s32.totalorder %s342, %s344
      %p351 = scmp.eq.s32.totalorder %s35, 3
      %p352 = por %p350, %p351
      %p353 = scmp.ne.s32.totalorder %s344, %s345
      %p354 = scmp.eq.s32.totalorder %s35, 0
      %p355 = por %p353, %p354
      %p356 = scmp.ne.s32.totalorder %s344, %s345
      %p357 = scmp.eq.s32.totalorder %s36, 3
      %p358 = por %p356, %p357
      %p360 = scmp.ne.s32.totalorder %s345, %s359
      %p361 = scmp.eq.s32.totalorder %s36, 0
      %p362 = por %p360, %p361
      %s364 = sadd.s32 %s363, 1
      %p367 = scmp.eq.s32.totalorder %s30, 3
      %p368 = scmp.ne.s32.totalorder %s363, %s365
      %p369 = scmp.eq.s32.totalorder %s30, 0
      %p370 = por %p368, %p369
      %p371 = scmp.ne.s32.totalorder %s363, %s365
      %p372 = scmp.eq.s32.totalorder %s35, 3
      %p373 = por %p371, %p372
      %p374 = scmp.ne.s32.totalorder %s365, %s366
      %p375 = scmp.eq.s32.totalorder %s35, 0
      %p376 = por %p374, %p375
      %p377 = scmp.ne.s32.totalorder %s365, %s366
      %p378 = scmp.eq.s32.totalorder %s36, 3
      %p379 = por %p377, %p378
      %p381 = scmp.ne.s32.totalorder %s366, %s380
      %p382 = scmp.eq.s32.totalorder %s36, 0
      %p383 = por %p381, %p382
      %s385 = sadd.s32 %s384, 1
      %p388 = scmp.eq.s32.totalorder %s30, 3
      %p389 = scmp.ne.s32.totalorder %s384, %s386
      %p390 = scmp.eq.s32.totalorder %s30, 0
      %p391 = por %p389, %p390
      %p392 = scmp.ne.s32.totalorder %s384, %s386
      %p393 = scmp.eq.s32.totalorder %s35, 3
      %p394 = por %p392, %p393
      %p395 = scmp.ne.s32.totalorder %s386, %s387
      %p396 = scmp.eq.s32.totalorder %s35, 0
      %p397 = por %p395, %p396
      %p398 = scmp.ne.s32.totalorder %s386, %s387
      %p399 = scmp.eq.s32.totalorder %s36, 3
      %p400 = por %p398, %p399
      %p402 = scmp.ne.s32.totalorder %s387, %s401
      %p403 = scmp.eq.s32.totalorder %s36, 0
      %p404 = por %p402, %p403
      %s406 = sadd.s32 %s405, 1
      %p409 = scmp.eq.s32.totalorder %s30, 3
      %p410 = scmp.ne.s32.totalorder %s405, %s407
      %p411 = scmp.eq.s32.totalorder %s30, 0
      %p412 = por %p410, %p411
      %p413 = scmp.ne.s32.totalorder %s405, %s407
      %p414 = scmp.eq.s32.totalorder %s35, 3
      %p415 = por %p413, %p414
      %p416 = scmp.ne.s32.totalorder %s407, %s408
      %p417 = scmp.eq.s32.totalorder %s35, 0
      %p418 = por %p416, %p417
      %p419 = scmp.ne.s32.totalorder %s407, %s408
      %p420 = scmp.eq.s32.totalorder %s36, 3
      %p421 = por %p419, %p420
      %p423 = scmp.ne.s32.totalorder %s408, %s422
      %p424 = scmp.eq.s32.totalorder %s36, 0
      %p425 = por %p423, %p424
      %s426 = ssub.s32 %s30, %s37
      %p427 = scmp.eq.s32.totalorder %s426, 0
      %s429 = sadd.s32 %s428, 1
      %s430 = scalar_select %p427, %s428, %s429
      %p433 = pneg %p427
      %p434 = scmp.eq.s32.totalorder %s30, 3
      %p435 = por %p433, %p434
      %p436 = scmp.ne.s32.totalorder %s428, %s431
      %p437 = scmp.eq.s32.totalorder %s30, 0
      %p438 = por %p436, %p437
      %p439 = scmp.ne.s32.totalorder %s428, %s431
      %p440 = scmp.eq.s32.totalorder %s35, 3
      %p441 = por %p439, %p440
      %p442 = scmp.ne.s32.totalorder %s431, %s432
      %p443 = scmp.eq.s32.totalorder %s35, 0
      %p444 = por %p442, %p443
      %p445 = scmp.ne.s32.totalorder %s431, %s432
      %p446 = scmp.eq.s32.totalorder %s36, 3
      %p447 = por %p445, %p446
      %p449 = scmp.ne.s32.totalorder %s432, %s448
      %p450 = scmp.eq.s32.totalorder %s36, 0
      %p451 = por %p449, %p450
      %p452 = scmp.le.s32.totalorder 1, %s30
      %p453 = scmp.lt.s32.totalorder %s30, 5
      %p454 = pnand %p452, %p453
      %p455 = pneg %p454
      // Predicated region
      $region9: #{tpu_custom_call.1} parent=5 // pred_check
        _
      $region10: #{tpu_custom_call.1} parent=5 // pred_check_branch
        %457 = sbr.rel (%p454) target = $region12
      $region11: #{tpu_custom_call.1} parent=5 // pred_region
        %s458 = ssub.s32 %s30, 1
        // Predicated region
        $region13: #{tpu_custom_call.1} parent=11 // pred_check
          %p459 = pneg %p103
        $region14: #{tpu_custom_call.1} parent=11 // pred_check_branch
          %461 = sbr.rel (%p459) target = $region16
        $region15: #{tpu_custom_call.1} parent=11 // pred_region
          %463 = vsyncadd [#allocation3], 0
          %s464 = sshll.u32 %s2, 4
          %s465 = int_to_ptr.hbm [resolvable:$true] %s464
          %s466 = sshll.u32 [#allocation2], 4
          %s467 = int_to_ptr.vmem [resolvable:$true] %s466
          %472 = dma.hbm_to_vmem [thread:$0]  %s465, 640, %s467, [#allocation3], 128, 128, 8
        $region16: #{tpu_custom_call.1} parent=11 // pred_fallthru
          _
        // Predicated region
        $region17: #{tpu_custom_call.1} parent=11 // pred_check
          %p473 = pneg %p124
        $region18: #{tpu_custom_call.1} parent=11 // pred_check_branch
          %475 = sbr.rel (%p473) target = $region20
        $region19: #{tpu_custom_call.1} parent=11 // pred_region
          %477 = vsyncadd [#allocation5], 0
          %s478 = sshll.u32 %s3, 4
          %s479 = int_to_ptr.hbm [resolvable:$true] %s478
          %s480 = sshll.u32 [#allocation4], 4
          %s481 = int_to_ptr.vmem [resolvable:$true] %s480
          %486 = dma.hbm_to_vmem [thread:$0]  %s479, 256, %s481, [#allocation5], 128, 128, 8
        $region20: #{tpu_custom_call.1} parent=11 // pred_fallthru
          _
        // Predicated region
        $region21: #{tpu_custom_call.1} parent=11 // pred_check
          %p487 = pneg %p145
        $region22: #{tpu_custom_call.1} parent=11 // pred_check_branch
          %489 = sbr.rel (%p487) target = $region24
        $region23: #{tpu_custom_call.1} parent=11 // pred_region
          %491 = vsyncadd [#allocation5], 0
          %s492 = sshll.u32 %s4, 4
          %s493 = int_to_ptr.hbm [resolvable:$true] %s492
          %s494 = sshll.u32 [#allocation6], 4
          %s495 = int_to_ptr.vmem [resolvable:$true] %s494
          %500 = dma.hbm_to_vmem [thread:$0]  %s493, 384, %s495, [#allocation5], 128, 128, 8
        $region24: #{tpu_custom_call.1} parent=11 // pred_fallthru
          _
        // Predicated region
        $region25: #{tpu_custom_call.1} parent=11 // pred_check
          %p501 = pneg %p166
        $region26: #{tpu_custom_call.1} parent=11 // pred_check_branch
          %503 = sbr.rel (%p501) target = $region28
        $region27: #{tpu_custom_call.1} parent=11 // pred_region
          %505 = vsyncadd [#allocation8], 0
          %s506 = sshll.u32 %s5, 4
          %s507 = int_to_ptr.hbm [resolvable:$true] %s506
          %s508 = sshll.u32 [#allocation7], 4
          %s509 = int_to_ptr.vmem [resolvable:$true] %s508
          %514 = dma.hbm_to_vmem [thread:$0]  %s507, 896, %s509, [#allocation8], 128, 128, 8
        $region28: #{tpu_custom_call.1} parent=11 // pred_fallthru
          _
        // Predicated region
        $region29: #{tpu_custom_call.1} parent=11 // pred_check
          %p515 = pneg %p187
        $region30: #{tpu_custom_call.1} parent=11 // pred_check_branch
          %517 = sbr.rel (%p515) target = $region32
        $region31: #{tpu_custom_call.1} parent=11 // pred_region
          %519 = vsyncadd [#allocation8], 0
          %s520 = sshll.u32 %s6, 4
          %s521 = int_to_ptr.hbm [resolvable:$true] %s520
          %s522 = sshll.u32 [#allocation9], 4
          %s523 = int_to_ptr.vmem [resolvable:$true] %s522
          %528 = dma.hbm_to_vmem [thread:$0]  %s521, 384, %s523, [#allocation8], 128, 128, 8
        $region32: #{tpu_custom_call.1} parent=11 // pred_fallthru
          _
        // Predicated region
        $region33: #{tpu_custom_call.1} parent=11 // pred_check
          %p529 = pneg %p208
        $region34: #{tpu_custom_call.1} parent=11 // pred_check_branch
          %531 = sbr.rel (%p529) target = $region36
        $region35: #{tpu_custom_call.1} parent=11 // pred_region
          %533 = vsyncadd [#allocation11], 0
          %s534 = sshll.u32 %s7, 4
          %s535 = int_to_ptr.hbm [resolvable:$true] %s534
          %s536 = sshll.u32 [#allocation10], 4
          %s537 = int_to_ptr.vmem [resolvable:$true] %s536
          %542 = dma.hbm_to_vmem [thread:$0]  %s535, 512, %s537, [#allocation11], 128, 128, 8
        $region36: #{tpu_custom_call.1} parent=11 // pred_fallthru
          _
        // Predicated region
        $region37: #{tpu_custom_call.1} parent=11 // pred_check
          %p543 = pneg %p229
        $region38: #{tpu_custom_call.1} parent=11 // pred_check_branch
          %545 = sbr.rel (%p543) target = $region40
        $region39: #{tpu_custom_call.1} parent=11 // pred_region
          %547 = vsyncadd [#allocation11], 0
          %s548 = sshll.u32 %s8, 4
          %s549 = int_to_ptr.hbm [resolvable:$true] %s548
          %s550 = sshll.u32 [#allocation12], 4
          %s551 = int_to_ptr.vmem [resolvable:$true] %s550
          %556 = dma.hbm_to_vmem [thread:$0]  %s549, 4608, %s551, [#allocation11], 128, 128, 8
        $region40: #{tpu_custom_call.1} parent=11 // pred_fallthru
          _
        // Predicated region
        $region41: #{tpu_custom_call.1} parent=11 // pred_check
          %p557 = pneg %p250
        $region42: #{tpu_custom_call.1} parent=11 // pred_check_branch
          %559 = sbr.rel (%p557) target = $region44
        $region43: #{tpu_custom_call.1} parent=11 // pred_region
          _
        $region44: #{tpu_custom_call.1} parent=11 // pred_fallthru
          _
        // Predicated region
        $region45: #{tpu_custom_call.1} parent=11 // pred_check
          %p560 = pneg %p271
        $region46: #{tpu_custom_call.1} parent=11 // pred_check_branch
          %562 = sbr.rel (%p560) target = $region48
        $region47: #{tpu_custom_call.1} parent=11 // pred_region
          _
        $region48: #{tpu_custom_call.1} parent=11 // pred_fallthru
          _
        // Predicated region
        $region49: #{tpu_custom_call.1} parent=11 // pred_check
          %p563 = pneg %p292
        $region50: #{tpu_custom_call.1} parent=11 // pred_check_branch
          %565 = sbr.rel (%p563) target = $region52
        $region51: #{tpu_custom_call.1} parent=11 // pred_region
          _
        $region52: #{tpu_custom_call.1} parent=11 // pred_fallthru
          _
        // Predicated region
        $region53: #{tpu_custom_call.1} parent=11 // pred_check
          %p566 = pneg %p313
        $region54: #{tpu_custom_call.1} parent=11 // pred_check_branch
          %568 = sbr.rel (%p566) target = $region56
        $region55: #{tpu_custom_call.1} parent=11 // pred_region
          %570 = vsyncadd [#allocation14], 0
          %s571 = sshll.u32 %s12, 4
          %s572 = int_to_ptr.hbm [resolvable:$true] %s571
          %s573 = sshll.u32 [#allocation13], 4
          %s574 = int_to_ptr.vmem [resolvable:$true] %s573
          %579 = dma.hbm_to_vmem [thread:$0]  %s572, 6144, %s574, [#allocation14], 128, 128, 8
        $region56: #{tpu_custom_call.1} parent=11 // pred_fallthru
          _
        // Predicated region
        $region57: #{tpu_custom_call.1} parent=11 // pred_check
          %p580 = pneg %p334
        $region58: #{tpu_custom_call.1} parent=11 // pred_check_branch
          %582 = sbr.rel (%p580) target = $region60
        $region59: #{tpu_custom_call.1} parent=11 // pred_region
          _
        $region60: #{tpu_custom_call.1} parent=11 // pred_fallthru
          _
        // Predicated region
        $region61: #{tpu_custom_call.1} parent=11 // pred_check
          %p583 = pneg %p355
        $region62: #{tpu_custom_call.1} parent=11 // pred_check_branch
          %585 = sbr.rel (%p583) target = $region64
        $region63: #{tpu_custom_call.1} parent=11 // pred_region
          %587 = vsyncadd [#allocation14], 0
          %s588 = sshll.u32 %s14, 4
          %s589 = int_to_ptr.hbm [resolvable:$true] %s588
          %s590 = sshll.u32 [#allocation15], 4
          %s591 = int_to_ptr.vmem [resolvable:$true] %s590
          %596 = dma.hbm_to_vmem [thread:$0]  %s589, 2048, %s591, [#allocation14], 256, 256, 16
        $region64: #{tpu_custom_call.1} parent=11 // pred_fallthru
          _
        // Predicated region
        $region65: #{tpu_custom_call.1} parent=11 // pred_check
          %p597 = pneg %p376
        $region66: #{tpu_custom_call.1} parent=11 // pred_check_branch
          %599 = sbr.rel (%p597) target = $region68
        $region67: #{tpu_custom_call.1} parent=11 // pred_region
          _
        $region68: #{tpu_custom_call.1} parent=11 // pred_fallthru
          _
        // Predicated region
        $region69: #{tpu_custom_call.1} parent=11 // pred_check
          %p600 = pneg %p397
        $region70: #{tpu_custom_call.1} parent=11 // pred_check_branch
          %602 = sbr.rel (%p600) target = $region72
        $region71: #{tpu_custom_call.1} parent=11 // pred_region
          _
        $region72: #{tpu_custom_call.1} parent=11 // pred_fallthru
          _
        // Predicated region
        $region73: #{tpu_custom_call.1} parent=11 // pred_check
          %p603 = pneg %p418
        $region74: #{tpu_custom_call.1} parent=11 // pred_check_branch
          %605 = sbr.rel (%p603) target = $region76
        $region75: #{tpu_custom_call.1} parent=11 // pred_region
          %607 = vsyncadd [#allocation17], 0
          %s609 = sshll.u32 %s17, 4
          %s610 = int_to_ptr.hbm [resolvable:$true] %s609
          %s611 = sshll.u32 [#allocation16], 4
          %s612 = int_to_ptr.vmem [resolvable:$true] %s611
          %614 = dma.hbm_to_vmem [thread:$0]  %s610, 432, %s612, [#allocation17]
        $region76: #{tpu_custom_call.1} parent=11 // pred_fallthru
          _
      $region12: #{tpu_custom_call.1} parent=5 // pred_fallthru
        _
      %p615 = scmp.lt.s32.totalorder %s30, 4
      // Predicated region
      $region77: #{tpu_custom_call.1} parent=5 // pred_check
        %p616 = pneg %p615
      $region78: #{tpu_custom_call.1} parent=5 // pred_check_branch
        %618 = sbr.rel (%p616) target = $region80
      $region79: #{tpu_custom_call.1} parent=5 // pred_region
        // Predicated region
        $region81: #{tpu_custom_call.1} parent=79 // pred_check
          %p619 = pneg %p50
        $region82: #{tpu_custom_call.1} parent=79 // pred_check_branch
          %621 = sbr.rel (%p619) target = $region84
        $region83: #{tpu_custom_call.1} parent=79 // pred_region
          %s622 = smul.u32 8, %s30
          %p623 = scmp.lt.s32.totalorder %s622, 31
          %s624 = scalar_select %p623, %s622, 31
          %s625 = smul.addr %s624, 8
          %s626 = scalar_lea.vmem %s0, %s625
          %s627 = smul.u32 8, %s30
        $region84: #{tpu_custom_call.1} parent=79 // pred_fallthru
          _
        // Predicated region
        $region85: #{tpu_custom_call.1} parent=79 // pred_check
          %p628 = pneg %p76
        $region86: #{tpu_custom_call.1} parent=79 // pred_check_branch
          %630 = sbr.rel (%p628) target = $region88
        $region87: #{tpu_custom_call.1} parent=79 // pred_region
          %s631 = smul.u32 8, %s30
          %p632 = scmp.lt.s32.totalorder %s631, 31
          %s633 = scalar_select %p632, %s631, 31
          %s634 = smul.addr %s633, 3
          %s635 = smul.addr %s634, 8
          %s636 = scalar_lea.vmem %s1, %s635
          %s637 = smul.u32 8, %s30
        $region88: #{tpu_custom_call.1} parent=79 // pred_fallthru
          _
      $region80: #{tpu_custom_call.1} parent=5 // pred_fallthru
        _
      %p638 = scmp.le.s32.totalorder 1, %s30
      %p639 = scmp.lt.s32.totalorder %s30, 5
      %p640 = pnand %p638, %p639
      %p641 = pneg %p640
      // Predicated region
      $region89: #{tpu_custom_call.1} parent=5 // pred_check
        _
      $region90: #{tpu_custom_call.1} parent=5 // pred_check_branch
        %643 = sbr.rel (%p640) target = $region92
      $region91: #{tpu_custom_call.1} parent=5 // pred_region
        %s644 = ssub.s32 %s30, 1
        // Predicated region
        $region93: #{tpu_custom_call.1} parent=91 // pred_check
          %p645 = pneg %p103
        $region94: #{tpu_custom_call.1} parent=91 // pred_check_branch
          %647 = sbr.rel (%p645) target = $region96
        $region95: #{tpu_custom_call.1} parent=91 // pred_region
          %649 = dma.done [#allocation3], 640
        $region96: #{tpu_custom_call.1} parent=91 // pred_fallthru
          _
        // Predicated region
        $region97: #{tpu_custom_call.1} parent=91 // pred_check
          %p650 = pneg %p124
        $region98: #{tpu_custom_call.1} parent=91 // pred_check_branch
          %652 = sbr.rel (%p650) target = $region100
        $region99: #{tpu_custom_call.1} parent=91 // pred_region
          %654 = dma.done [#allocation5], 256
        $region100: #{tpu_custom_call.1} parent=91 // pred_fallthru
          _
        // Predicated region
        $region101: #{tpu_custom_call.1} parent=91 // pred_check
          %p655 = pneg %p145
        $region102: #{tpu_custom_call.1} parent=91 // pred_check_branch
          %657 = sbr.rel (%p655) target = $region104
        $region103: #{tpu_custom_call.1} parent=91 // pred_region
          %659 = dma.done [#allocation5], 384
        $region104: #{tpu_custom_call.1} parent=91 // pred_fallthru
          _
        // Predicated region
        $region105: #{tpu_custom_call.1} parent=91 // pred_check
          %p660 = pneg %p166
        $region106: #{tpu_custom_call.1} parent=91 // pred_check_branch
          %662 = sbr.rel (%p660) target = $region108
        $region107: #{tpu_custom_call.1} parent=91 // pred_region
          %664 = dma.done [#allocation8], 896
        $region108: #{tpu_custom_call.1} parent=91 // pred_fallthru
          _
        // Predicated region
        $region109: #{tpu_custom_call.1} parent=91 // pred_check
          %p665 = pneg %p187
        $region110: #{tpu_custom_call.1} parent=91 // pred_check_branch
          %667 = sbr.rel (%p665) target = $region112
        $region111: #{tpu_custom_call.1} parent=91 // pred_region
          %669 = dma.done [#allocation8], 384
        $region112: #{tpu_custom_call.1} parent=91 // pred_fallthru
          _
        // Predicated region
        $region113: #{tpu_custom_call.1} parent=91 // pred_check
          %p670 = pneg %p208
        $region114: #{tpu_custom_call.1} parent=91 // pred_check_branch
          %672 = sbr.rel (%p670) target = $region116
        $region115: #{tpu_custom_call.1} parent=91 // pred_region
          %674 = dma.done [#allocation11], 512
        $region116: #{tpu_custom_call.1} parent=91 // pred_fallthru
          _
        // Predicated region
        $region117: #{tpu_custom_call.1} parent=91 // pred_check
          %p675 = pneg %p229
        $region118: #{tpu_custom_call.1} parent=91 // pred_check_branch
          %677 = sbr.rel (%p675) target = $region120
        $region119: #{tpu_custom_call.1} parent=91 // pred_region
          %679 = dma.done [#allocation11], 4608
        $region120: #{tpu_custom_call.1} parent=91 // pred_fallthru
          _
        // Predicated region
        $region121: #{tpu_custom_call.1} parent=91 // pred_check
          %p680 = pneg %p313
        $region122: #{tpu_custom_call.1} parent=91 // pred_check_branch
          %682 = sbr.rel (%p680) target = $region124
        $region123: #{tpu_custom_call.1} parent=91 // pred_region
          %684 = dma.done [#allocation14], 6144
        $region124: #{tpu_custom_call.1} parent=91 // pred_fallthru
          _
        // Predicated region
        $region125: #{tpu_custom_call.1} parent=91 // pred_check
          %p685 = pneg %p355
        $region126: #{tpu_custom_call.1} parent=91 // pred_check_branch
          %687 = sbr.rel (%p685) target = $region128
        $region127: #{tpu_custom_call.1} parent=91 // pred_region
          %689 = dma.done [#allocation14], 2048
        $region128: #{tpu_custom_call.1} parent=91 // pred_fallthru
          _
        // Predicated region
        $region129: #{tpu_custom_call.1} parent=91 // pred_check
          %p690 = pneg %p418
        $region130: #{tpu_custom_call.1} parent=91 // pred_check_branch
          %692 = sbr.rel (%p690) target = $region132
        $region131: #{tpu_custom_call.1} parent=91 // pred_region
          %694 = dma.done [#allocation17], 432
        $region132: #{tpu_custom_call.1} parent=91 // pred_fallthru
          _
        %s695 = smul.u32 8, %s35
        %p696 = scmp.lt.s32.totalorder %s695, 31
        %s697 = scalar_select %p696, %s695, 31
        %s698 = smul.addr %s697, 8
        %s699 = scalar_lea.vmem %s0, %s698
        %p700 = pneg %p56
        %p701 = pneg %p53
        %s702 = smul.u32 8, %s35
        %p703 = scmp.lt.s32.totalorder %s702, 31
        %s704 = scalar_select %p703, %s702, 31
        %s705 = smul.addr %s704, 3
        %s706 = smul.addr %s705, 8
        %s707 = scalar_lea.vmem %s1, %s706
        %p708 = pneg %p82
        %p709 = pneg %p79
        %p710 = pneg %p103
        %p711 = pneg %p100
        %p712 = pneg %p124
        %p713 = pneg %p121
        %p714 = pneg %p145
        %p715 = pneg %p142
        %p716 = pneg %p166
        %p717 = pneg %p163
        %p718 = pneg %p187
        %p719 = pneg %p184
        %p720 = pneg %p208
        %p721 = pneg %p205
        %p722 = pneg %p229
        %p723 = pneg %p226
        %p724 = pneg %p250
        %p725 = pneg %p247
        %p726 = pneg %p271
        %p727 = pneg %p268
        %p728 = pneg %p292
        %p729 = pneg %p289
        %p730 = pneg %p313
        %p731 = pneg %p310
        %p732 = pneg %p334
        %p733 = pneg %p331
        %p734 = pneg %p355
        %p735 = pneg %p352
        %p736 = pneg %p376
        %p737 = pneg %p373
        %p738 = pneg %p397
        %p739 = pneg %p394
        %p740 = pneg %p418
        %p741 = pneg %p415
        %p742 = pneg %p444
        %p743 = pneg %p441
        %s744 = smul.u32 8, %s35
        %p745 = scmp.lt.s32.totalorder %s744, 31
        %s746 = scalar_select %p745, %s744, 31
        %s747 = smul.addr %s746, 8
        %s748 = scalar_lea.vmem %s18, %s747
        %s749 = smul.u32 8, %s35
        %p750 = scmp.lt.s32.totalorder %s749, 31
        %s751 = scalar_select %p750, %s749, 31
        %s752 = smul.addr %s751, 8
        %s753 = scalar_lea.vmem %s0, %s752
        %s754 = smul.u32 8, %s35
        %s755 = smul.u32 8, %s35
        %p756 = scmp.lt.s32.totalorder %s755, 31
        %s757 = scalar_select %p756, %s755, 31
        %s758 = smul.addr %s757, 3
        %s759 = smul.addr %s758, 8
        %s760 = scalar_lea.vmem %s1, %s759
        %s761 = smul.u32 8, %s35
        %s762 = smul.u32 8, %s35
        %p763 = scmp.lt.s32.totalorder %s762, 31
        %s764 = scalar_select %p763, %s762, 31
        %s765 = smul.addr %s764, 8
        %s766 = scalar_lea.vmem %s18, %s765
        %s767 = smul.u32 8, %s35
        %v768 = vld [vmem:[%s753] sm:$0xff]
        %v769 = vld [vmem:[%s753 + $0x8] sm:$0xff]
        %v770 = vld [vmem:[%s753 + $0x10] sm:$0xff]
        %v771 = vld [vmem:[%s753 + $0x18] sm:$0xff]
        %v772 = vld [vmem:[%s753 + $0x20] sm:$0xff]
        %v773 = vld [vmem:[%s753 + $0x28] sm:$0xff]
        %v774 = vld [vmem:[%s753 + $0x30] sm:$0xff]
        %v775 = vld [vmem:[%s753 + $0x38] sm:$0xff]
        %v776 = vlaneseq
        %v777 = vand.u32 %v776, 127
        %778 = vset.pattern.permute.xlu0 0
        %779 = vperm.xlu0 %778, %v768
        %v780 = vpop.permute.xlu0 %779
        %781 = vset.pattern.permute.xlu0 0
        %782 = vperm.xlu0 %781, %v769
        %v783 = vpop.permute.xlu0 %782
        %784 = vset.pattern.permute.xlu0 0
        %785 = vperm.xlu0 %784, %v770
        %v786 = vpop.permute.xlu0 %785
        %787 = vset.pattern.permute.xlu0 0
        %788 = vperm.xlu0 %787, %v771
        %v789 = vpop.permute.xlu0 %788
        %790 = vset.pattern.permute.xlu0 0
        %791 = vperm.xlu0 %790, %v772
        %v792 = vpop.permute.xlu0 %791
        %793 = vset.pattern.permute.xlu0 0
        %794 = vperm.xlu0 %793, %v773
        %v795 = vpop.permute.xlu0 %794
        %796 = vset.pattern.permute.xlu0 0
        %797 = vperm.xlu0 %796, %v774
        %v798 = vpop.permute.xlu0 %797
        %799 = vset.pattern.permute.xlu0 0
        %800 = vperm.xlu0 %799, %v775
        %v801 = vpop.permute.xlu0 %800
        %vm802 = vcmp.eq.s32.totalorder %v777, %v780
        %vm803 = vcmp.eq.s32.totalorder %v777, %v783
        %vm804 = vcmp.eq.s32.totalorder %v777, %v786
        %vm805 = vcmp.eq.s32.totalorder %v777, %v789
        %vm806 = vcmp.eq.s32.totalorder %v777, %v792
        %vm807 = vcmp.eq.s32.totalorder %v777, %v795
        %vm808 = vcmp.eq.s32.totalorder %v777, %v798
        %vm809 = vcmp.eq.s32.totalorder %v777, %v801
        %v810 = vsel %vm802, 1, 0
        %v811 = vsel %vm803, 1, 0
        %v812 = vsel %vm804, 1, 0
        %v813 = vsel %vm805, 1, 0
        %v814 = vsel %vm806, 1, 0
        %v815 = vsel %vm807, 1, 0
        %v816 = vsel %vm808, 1, 0
        %v817 = vsel %vm809, 1, 0
        %v818 = vcvt.s32.f32 %v810
        %v819 = vcvt.s32.f32 %v811
        %v820 = vcvt.s32.f32 %v812
        %v821 = vcvt.s32.f32 %v813
        %v822 = vcvt.s32.f32 %v814
        %v823 = vcvt.s32.f32 %v815
        %v824 = vcvt.s32.f32 %v816
        %v825 = vcvt.s32.f32 %v817
        %v826 = vld [vmem:[#allocation2] sm:$0xff]
        %v827 = vld [vmem:[#allocation2 + $0x8] sm:$0xff]
        %v828 = vld [vmem:[#allocation2 + $0x10] sm:$0xff]
        %v829 = vld [vmem:[#allocation2 + $0x18] sm:$0xff]
        %v830 = vld [vmem:[#allocation2 + $0x20] sm:$0xff]
        %vm831 = vcmask 326656
        %v833 = vsel %vm831, %v818, 0
        %v836 = vsel %vm831, %v819, 0
        %v839 = vsel %vm831, %v820, 0
        %v842 = vsel %vm831, %v821, 0
        %v845 = vsel %vm831, %v822, 0
        %v848 = vsel %vm831, %v823, 0
        %v851 = vsel %vm831, %v824, 0
        %v854 = vsel %vm831, %v825, 0
        %856 = vmatpush.msra.mxu0 0.0
        %857 = vmatpush.msra.mxu0 0.0
        %858 = vmatpush.msra.mxu0 0.0
        %859 = vmatpush.msra.mxu0 0.0
        %860 = vmatpush.msra.mxu0 0.0
        %861 = vmatpush.msra.mxu0 0.0
        %862 = vmatpush.msra.mxu0 0.0
        %863 = vmatpush.msra.mxu0 0.0
        %864 = vmatpush.msra.mxu0 0.0
        %865 = vmatpush.msra.mxu0 0.0
        %866 = vmatpush.msra.mxu0 0.0
        %867 = vmatpush.msra.mxu0 %v830
        %868 = vmatpush.msra.mxu0 %v829
        %869 = vmatpush.msra.mxu0 %v828
        %870 = vmatpush.msra.mxu0 %v827
        %871 = vmatpush.msra.mxu0 %v826
        %872 = vmatmul.f32.gmra.mxu0 %v833
        %v873 = vpop.f32.mrf.mxu0
        %v874 = vadd.f32 0.0, %v873
        %875 = vmatmul.f32.gmra.mxu0 %v836
        %v876 = vpop.f32.mrf.mxu0
        %v877 = vadd.f32 0.0, %v876
        %878 = vmatmul.f32.gmra.mxu0 %v839
        %v879 = vpop.f32.mrf.mxu0
        %v880 = vadd.f32 0.0, %v879
        %881 = vmatmul.f32.gmra.mxu0 %v842
        %v882 = vpop.f32.mrf.mxu0
        %v883 = vadd.f32 0.0, %v882
        %884 = vmatmul.f32.gmra.mxu0 %v845
        %v885 = vpop.f32.mrf.mxu0
        %v886 = vadd.f32 0.0, %v885
        %887 = vmatmul.f32.gmra.mxu0 %v848
        %v888 = vpop.f32.mrf.mxu0
        %v889 = vadd.f32 0.0, %v888
        %890 = vmatmul.f32.gmra.mxu0 %v851
        %v891 = vpop.f32.mrf.mxu0
        %v892 = vadd.f32 0.0, %v891
        %893 = vmatmul.f32.gmra.mxu0 %v854
        %v894 = vpop.f32.mrf.mxu0
        %v895 = vadd.f32 0.0, %v894
        %896 = vdwg.mxu0
        %897 = vset.pattern.permute.xlu0 1
        %898 = vperm.xlu0 %897, %v768
        %v899 = vpop.permute.xlu0 %898
        %900 = vset.pattern.permute.xlu0 1
        %901 = vperm.xlu0 %900, %v769
        %v902 = vpop.permute.xlu0 %901
        %903 = vset.pattern.permute.xlu0 1
        %904 = vperm.xlu0 %903, %v770
        %v905 = vpop.permute.xlu0 %904
        %906 = vset.pattern.permute.xlu0 1
        %907 = vperm.xlu0 %906, %v771
        %v908 = vpop.permute.xlu0 %907
        %909 = vset.pattern.permute.xlu0 1
        %910 = vperm.xlu0 %909, %v772
        %v911 = vpop.permute.xlu0 %910
        %912 = vset.pattern.permute.xlu0 1
        %913 = vperm.xlu0 %912, %v773
        %v914 = vpop.permute.xlu0 %913
        %915 = vset.pattern.permute.xlu0 1
        %916 = vperm.xlu0 %915, %v774
        %v917 = vpop.permute.xlu0 %916
        %918 = vset.pattern.permute.xlu0 1
        %919 = vperm.xlu0 %918, %v775
        %v920 = vpop.permute.xlu0 %919
        %vm921 = vcmp.eq.s32.totalorder %v777, %v899
        %vm922 = vcmp.eq.s32.totalorder %v777, %v902
        %vm923 = vcmp.eq.s32.totalorder %v777, %v905
        %vm924 = vcmp.eq.s32.totalorder %v777, %v908
        %vm925 = vcmp.eq.s32.totalorder %v777, %v911
        %vm926 = vcmp.eq.s32.totalorder %v777, %v914
        %vm927 = vcmp.eq.s32.totalorder %v777, %v917
        %vm928 = vcmp.eq.s32.totalorder %v777, %v920
        %v929 = vsel %vm921, 1, 0
        %v930 = vsel %vm922, 1, 0
        %v931 = vsel %vm923, 1, 0
        %v932 = vsel %vm924, 1, 0
        %v933 = vsel %vm925, 1, 0
        %v934 = vsel %vm926, 1, 0
        %v935 = vsel %vm927, 1, 0
        %v936 = vsel %vm928, 1, 0
        %v937 = vcvt.s32.f32 %v929
        %v938 = vcvt.s32.f32 %v930
        %v939 = vcvt.s32.f32 %v931
        %v940 = vcvt.s32.f32 %v932
        %v941 = vcvt.s32.f32 %v933
        %v942 = vcvt.s32.f32 %v934
        %v943 = vcvt.s32.f32 %v935
        %v944 = vcvt.s32.f32 %v936
        %v945 = vld [vmem:[#allocation4] sm:$0xff]
        %v946 = vld [vmem:[#allocation4 + $0x8] sm:$0xff]
        %vm947 = vcmask 130048
        %v949 = vsel %vm947, %v937, 0
        %v952 = vsel %vm947, %v938, 0
        %v955 = vsel %vm947, %v939, 0
        %v958 = vsel %vm947, %v940, 0
        %v961 = vsel %vm947, %v941, 0
        %v964 = vsel %vm947, %v942, 0
        %v967 = vsel %vm947, %v943, 0
        %v970 = vsel %vm947, %v944, 0
        %972 = vmatpush.msra.mxu0 0.0
        %973 = vmatpush.msra.mxu0 0.0
        %974 = vmatpush.msra.mxu0 0.0
        %975 = vmatpush.msra.mxu0 0.0
        %976 = vmatpush.msra.mxu0 0.0
        %977 = vmatpush.msra.mxu0 0.0
        %978 = vmatpush.msra.mxu0 0.0
        %979 = vmatpush.msra.mxu0 0.0
        %980 = vmatpush.msra.mxu0 0.0
        %981 = vmatpush.msra.mxu0 0.0
        %982 = vmatpush.msra.mxu0 0.0
        %983 = vmatpush.msra.mxu0 0.0
        %984 = vmatpush.msra.mxu0 0.0
        %985 = vmatpush.msra.mxu0 0.0
        %986 = vmatpush.msra.mxu0 %v946
        %987 = vmatpush.msra.mxu0 %v945
        %988 = vmatmul.f32.gmra.mxu0 %v949
        %v989 = vpop.f32.mrf.mxu0
        %v990 = vadd.f32 0.0, %v989
        %991 = vmatmul.f32.gmra.mxu0 %v952
        %v992 = vpop.f32.mrf.mxu0
        %v993 = vadd.f32 0.0, %v992
        %994 = vmatmul.f32.gmra.mxu0 %v955
        %v995 = vpop.f32.mrf.mxu0
        %v996 = vadd.f32 0.0, %v995
        %997 = vmatmul.f32.gmra.mxu0 %v958
        %v998 = vpop.f32.mrf.mxu0
        %v999 = vadd.f32 0.0, %v998
        %1000 = vmatmul.f32.gmra.mxu0 %v961
        %v1001 = vpop.f32.mrf.mxu0
        %v1002 = vadd.f32 0.0, %v1001
        %1003 = vmatmul.f32.gmra.mxu0 %v964
        %v1004 = vpop.f32.mrf.mxu0
        %v1005 = vadd.f32 0.0, %v1004
        %1006 = vmatmul.f32.gmra.mxu0 %v967
        %v1007 = vpop.f32.mrf.mxu0
        %v1008 = vadd.f32 0.0, %v1007
        %1009 = vmatmul.f32.gmra.mxu0 %v970
        %v1010 = vpop.f32.mrf.mxu0
        %v1011 = vadd.f32 0.0, %v1010
        %1012 = vdwg.mxu0
        %1013 = vset.pattern.permute.xlu0 2
        %1014 = vperm.xlu0 %1013, %v768
        %v1015 = vpop.permute.xlu0 %1014
        %1016 = vset.pattern.permute.xlu0 2
        %1017 = vperm.xlu0 %1016, %v769
        %v1018 = vpop.permute.xlu0 %1017
        %1019 = vset.pattern.permute.xlu0 2
        %1020 = vperm.xlu0 %1019, %v770
        %v1021 = vpop.permute.xlu0 %1020
        %1022 = vset.pattern.permute.xlu0 2
        %1023 = vperm.xlu0 %1022, %v771
        %v1024 = vpop.permute.xlu0 %1023
        %1025 = vset.pattern.permute.xlu0 2
        %1026 = vperm.xlu0 %1025, %v772
        %v1027 = vpop.permute.xlu0 %1026
        %1028 = vset.pattern.permute.xlu0 2
        %1029 = vperm.xlu0 %1028, %v773
        %v1030 = vpop.permute.xlu0 %1029
        %1031 = vset.pattern.permute.xlu0 2
        %1032 = vperm.xlu0 %1031, %v774
        %v1033 = vpop.permute.xlu0 %1032
        %1034 = vset.pattern.permute.xlu0 2
        %1035 = vperm.xlu0 %1034, %v775
        %v1036 = vpop.permute.xlu0 %1035
        %vm1037 = vcmp.eq.s32.totalorder %v777, %v1015
        %vm1038 = vcmp.eq.s32.totalorder %v777, %v1018
        %vm1039 = vcmp.eq.s32.totalorder %v777, %v1021
        %vm1040 = vcmp.eq.s32.totalorder %v777, %v1024
        %vm1041 = vcmp.eq.s32.totalorder %v777, %v1027
        %vm1042 = vcmp.eq.s32.totalorder %v777, %v1030
        %vm1043 = vcmp.eq.s32.totalorder %v777, %v1033
        %vm1044 = vcmp.eq.s32.totalorder %v777, %v1036
        %v1045 = vsel %vm1037, 1, 0
        %v1046 = vsel %vm1038, 1, 0
        %v1047 = vsel %vm1039, 1, 0
        %v1048 = vsel %vm1040, 1, 0
        %v1049 = vsel %vm1041, 1, 0
        %v1050 = vsel %vm1042, 1, 0
        %v1051 = vsel %vm1043, 1, 0
        %v1052 = vsel %vm1044, 1, 0
        %v1053 = vcvt.s32.f32 %v1045
        %v1054 = vcvt.s32.f32 %v1046
        %v1055 = vcvt.s32.f32 %v1047
        %v1056 = vcvt.s32.f32 %v1048
        %v1057 = vcvt.s32.f32 %v1049
        %v1058 = vcvt.s32.f32 %v1050
        %v1059 = vcvt.s32.f32 %v1051
        %v1060 = vcvt.s32.f32 %v1052
        %v1061 = vld [vmem:[#allocation6] sm:$0xff]
        %v1062 = vld [vmem:[#allocation6 + $0x8] sm:$0xff]
        %v1063 = vld [vmem:[#allocation6 + $0x10] sm:$0xff]
        %vm1064 = vcmask 195584
        %v1066 = vsel %vm1064, %v1053, 0
        %v1069 = vsel %vm1064, %v1054, 0
        %v1072 = vsel %vm1064, %v1055, 0
        %v1075 = vsel %vm1064, %v1056, 0
        %v1078 = vsel %vm1064, %v1057, 0
        %v1081 = vsel %vm1064, %v1058, 0
        %v1084 = vsel %vm1064, %v1059, 0
        %v1087 = vsel %vm1064, %v1060, 0
        %1089 = vmatpush.msra.mxu0 0.0
        %1090 = vmatpush.msra.mxu0 0.0
        %1091 = vmatpush.msra.mxu0 0.0
        %1092 = vmatpush.msra.mxu0 0.0
        %1093 = vmatpush.msra.mxu0 0.0
        %1094 = vmatpush.msra.mxu0 0.0
        %1095 = vmatpush.msra.mxu0 0.0
        %1096 = vmatpush.msra.mxu0 0.0
        %1097 = vmatpush.msra.mxu0 0.0
        %1098 = vmatpush.msra.mxu0 0.0
        %1099 = vmatpush.msra.mxu0 0.0
        %1100 = vmatpush.msra.mxu0 0.0
        %1101 = vmatpush.msra.mxu0 0.0
        %1102 = vmatpush.msra.mxu0 %v1063
        %1103 = vmatpush.msra.mxu0 %v1062
        %1104 = vmatpush.msra.mxu0 %v1061
        %1105 = vmatmul.f32.gmra.mxu0 %v1066
        %v1106 = vpop.f32.mrf.mxu0
        %v1107 = vadd.f32 0.0, %v1106
        %1108 = vmatmul.f32.gmra.mxu0 %v1069
        %v1109 = vpop.f32.mrf.mxu0
        %v1110 = vadd.f32 0.0, %v1109
        %1111 = vmatmul.f32.gmra.mxu0 %v1072
        %v1112 = vpop.f32.mrf.mxu0
        %v1113 = vadd.f32 0.0, %v1112
        %1114 = vmatmul.f32.gmra.mxu0 %v1075
        %v1115 = vpop.f32.mrf.mxu0
        %v1116 = vadd.f32 0.0, %v1115
        %1117 = vmatmul.f32.gmra.mxu0 %v1078
        %v1118 = vpop.f32.mrf.mxu0
        %v1119 = vadd.f32 0.0, %v1118
        %1120 = vmatmul.f32.gmra.mxu0 %v1081
        %v1121 = vpop.f32.mrf.mxu0
        %v1122 = vadd.f32 0.0, %v1121
        %1123 = vmatmul.f32.gmra.mxu0 %v1084
        %v1124 = vpop.f32.mrf.mxu0
        %v1125 = vadd.f32 0.0, %v1124
        %1126 = vmatmul.f32.gmra.mxu0 %v1087
        %v1127 = vpop.f32.mrf.mxu0
        %v1128 = vadd.f32 0.0, %v1127
        %1129 = vdwg.mxu0
        %v1130 = vld [vmem:[#allocation12] sm:$0xff]
        %v1131 = vld [vmem:[#allocation12 + $0x8] sm:$0xff]
        %v1132 = vld [vmem:[#allocation12 + $0x10] sm:$0xff]
        %v1133 = vld [vmem:[#allocation12 + $0x18] sm:$0xff]
        %v1134 = vld [vmem:[#allocation12 + $0x20] sm:$0xff]
        %v1135 = vld [vmem:[#allocation12 + $0x28] sm:$0xff]
        %v1136 = vld [vmem:[#allocation12 + $0x30] sm:$0xff]
        %v1137 = vld [vmem:[#allocation12 + $0x38] sm:$0xff]
        %v1138 = vld [vmem:[#allocation12 + $0x40] sm:$0xff]
        %v1139 = vld [vmem:[#allocation12 + $0x48] sm:$0xff]
        %v1140 = vld [vmem:[#allocation12 + $0x50] sm:$0xff]
        %v1141 = vld [vmem:[#allocation12 + $0x58] sm:$0xff]
        %v1142 = vld [vmem:[#allocation12 + $0x60] sm:$0xff]
        %v1143 = vld [vmem:[#allocation12 + $0x68] sm:$0xff]
        %v1144 = vld [vmem:[#allocation12 + $0x70] sm:$0xff]
        %v1145 = vld [vmem:[#allocation12 + $0x78] sm:$0xff]
        %v1146 = vld [vmem:[#allocation12 + $0x80] sm:$0xff]
        %v1147 = vld [vmem:[#allocation12 + $0x88] sm:$0xff]
        %v1148 = vld [vmem:[#allocation12 + $0x90] sm:$0xff]
        %v1149 = vld [vmem:[#allocation12 + $0x98] sm:$0xff]
        %v1150 = vld [vmem:[#allocation12 + $0xa0] sm:$0xff]
        %v1151 = vld [vmem:[#allocation12 + $0xa8] sm:$0xff]
        %v1152 = vld [vmem:[#allocation12 + $0xb0] sm:$0xff]
        %v1153 = vld [vmem:[#allocation12 + $0xb8] sm:$0xff]
        %vm1154 = vcmask 785408
        %v1156 = vsel %vm1154, %v990, 0
        %v1159 = vsel %vm1154, %v993, 0
        %v1162 = vsel %vm1154, %v996, 0
        %v1165 = vsel %vm1154, %v999, 0
        %v1168 = vsel %vm1154, %v1002, 0
        %v1171 = vsel %vm1154, %v1005, 0
        %v1174 = vsel %vm1154, %v1008, 0
        %v1177 = vsel %vm1154, %v1011, 0
        %1179 = vmatpush.msra.mxu0 0.0
        %1180 = vmatpush.msra.mxu0 0.0
        %1181 = vmatpush.msra.mxu0 0.0
        %1182 = vmatpush.msra.mxu0 0.0
        %1183 = vmatpush.msra.mxu0 %v1153
        %1184 = vmatpush.msra.mxu0 %v1152
        %1185 = vmatpush.msra.mxu0 %v1151
        %1186 = vmatpush.msra.mxu0 %v1150
        %1187 = vmatpush.msra.mxu0 %v1149
        %1188 = vmatpush.msra.mxu0 %v1148
        %1189 = vmatpush.msra.mxu0 %v1147
        %1190 = vmatpush.msra.mxu0 %v1146
        %1191 = vmatpush.msra.mxu0 %v1145
        %1192 = vmatpush.msra.mxu0 %v1144
        %1193 = vmatpush.msra.mxu0 %v1143
        %1194 = vmatpush.msra.mxu0 %v1142
        %1195 = vmatmul.f32.gmra.mxu0 %v1156
        %v1196 = vpop.f32.mrf.mxu0
        %v1197 = vadd.f32 0.0, %v1196
        %1198 = vmatmul.f32.gmra.mxu0 %v1159
        %v1199 = vpop.f32.mrf.mxu0
        %v1200 = vadd.f32 0.0, %v1199
        %1201 = vmatmul.f32.gmra.mxu0 %v1162
        %v1202 = vpop.f32.mrf.mxu0
        %v1203 = vadd.f32 0.0, %v1202
        %1204 = vmatmul.f32.gmra.mxu0 %v1165
        %v1205 = vpop.f32.mrf.mxu0
        %v1206 = vadd.f32 0.0, %v1205
        %1207 = vmatmul.f32.gmra.mxu0 %v1168
        %v1208 = vpop.f32.mrf.mxu0
        %v1209 = vadd.f32 0.0, %v1208
        %1210 = vmatmul.f32.gmra.mxu0 %v1171
        %v1211 = vpop.f32.mrf.mxu0
        %v1212 = vadd.f32 0.0, %v1211
        %1213 = vmatmul.f32.gmra.mxu0 %v1174
        %v1214 = vpop.f32.mrf.mxu0
        %v1215 = vadd.f32 0.0, %v1214
        %1216 = vmatmul.f32.gmra.mxu0 %v1177
        %v1217 = vpop.f32.mrf.mxu0
        %v1218 = vadd.f32 0.0, %v1217
        %1219 = vdwg.mxu0
        %v1221 = vsel %vm1154, %v874, 0
        %v1224 = vsel %vm1154, %v877, 0
        %v1227 = vsel %vm1154, %v880, 0
        %v1230 = vsel %vm1154, %v883, 0
        %v1233 = vsel %vm1154, %v886, 0
        %v1236 = vsel %vm1154, %v889, 0
        %v1239 = vsel %vm1154, %v892, 0
        %v1242 = vsel %vm1154, %v895, 0
        %1244 = vmatpush.msra.mxu0 0.0
        %1245 = vmatpush.msra.mxu0 0.0
        %1246 = vmatpush.msra.mxu0 0.0
        %1247 = vmatpush.msra.mxu0 0.0
        %1248 = vmatpush.msra.mxu0 %v1141
        %1249 = vmatpush.msra.mxu0 %v1140
        %1250 = vmatpush.msra.mxu0 %v1139
        %1251 = vmatpush.msra.mxu0 %v1138
        %1252 = vmatpush.msra.mxu0 %v1137
        %1253 = vmatpush.msra.mxu0 %v1136
        %1254 = vmatpush.msra.mxu0 %v1135
        %1255 = vmatpush.msra.mxu0 %v1134
        %1256 = vmatpush.msra.mxu0 %v1133
        %1257 = vmatpush.msra.mxu0 %v1132
        %1258 = vmatpush.msra.mxu0 %v1131
        %1259 = vmatpush.msra.mxu0 %v1130
        %1260 = vmatmul.f32.gmra.mxu0 %v1221
        %v1261 = vpop.f32.mrf.mxu0
        %v1262 = vadd.f32 %v1197, %v1261
        %1263 = vmatmul.f32.gmra.mxu0 %v1224
        %v1264 = vpop.f32.mrf.mxu0
        %v1265 = vadd.f32 %v1200, %v1264
        %1266 = vmatmul.f32.gmra.mxu0 %v1227
        %v1267 = vpop.f32.mrf.mxu0
        %v1268 = vadd.f32 %v1203, %v1267
        %1269 = vmatmul.f32.gmra.mxu0 %v1230
        %v1270 = vpop.f32.mrf.mxu0
        %v1271 = vadd.f32 %v1206, %v1270
        %1272 = vmatmul.f32.gmra.mxu0 %v1233
        %v1273 = vpop.f32.mrf.mxu0
        %v1274 = vadd.f32 %v1209, %v1273
        %1275 = vmatmul.f32.gmra.mxu0 %v1236
        %v1276 = vpop.f32.mrf.mxu0
        %v1277 = vadd.f32 %v1212, %v1276
        %1278 = vmatmul.f32.gmra.mxu0 %v1239
        %v1279 = vpop.f32.mrf.mxu0
        %v1280 = vadd.f32 %v1215, %v1279
        %1281 = vmatmul.f32.gmra.mxu0 %v1242
        %v1282 = vpop.f32.mrf.mxu0
        %v1283 = vadd.f32 %v1218, %v1282
        %1284 = vdwg.mxu0
        %v1285 = vld [vmem:[#allocation12 + $0xc0] sm:$0xff]
        %v1286 = vld [vmem:[#allocation12 + $0xc8] sm:$0xff]
        %v1287 = vld [vmem:[#allocation12 + $0xd0] sm:$0xff]
        %v1288 = vld [vmem:[#allocation12 + $0xd8] sm:$0xff]
        %v1289 = vld [vmem:[#allocation12 + $0xe0] sm:$0xff]
        %v1290 = vld [vmem:[#allocation12 + $0xe8] sm:$0xff]
        %v1291 = vld [vmem:[#allocation12 + $0xf0] sm:$0xff]
        %v1292 = vld [vmem:[#allocation12 + $0xf8] sm:$0xff]
        %v1293 = vld [vmem:[#allocation12 + $0x100] sm:$0xff]
        %v1294 = vld [vmem:[#allocation12 + $0x108] sm:$0xff]
        %v1295 = vld [vmem:[#allocation12 + $0x110] sm:$0xff]
        %v1296 = vld [vmem:[#allocation12 + $0x118] sm:$0xff]
        %v1298 = vsel %vm1154, %v1107, 0
        %v1301 = vsel %vm1154, %v1110, 0
        %v1304 = vsel %vm1154, %v1113, 0
        %v1307 = vsel %vm1154, %v1116, 0
        %v1310 = vsel %vm1154, %v1119, 0
        %v1313 = vsel %vm1154, %v1122, 0
        %v1316 = vsel %vm1154, %v1125, 0
        %v1319 = vsel %vm1154, %v1128, 0
        %1321 = vmatpush.msra.mxu0 0.0
        %1322 = vmatpush.msra.mxu0 0.0
        %1323 = vmatpush.msra.mxu0 0.0
        %1324 = vmatpush.msra.mxu0 0.0
        %1325 = vmatpush.msra.mxu0 %v1296
        %1326 = vmatpush.msra.mxu0 %v1295
        %1327 = vmatpush.msra.mxu0 %v1294
        %1328 = vmatpush.msra.mxu0 %v1293
        %1329 = vmatpush.msra.mxu0 %v1292
        %1330 = vmatpush.msra.mxu0 %v1291
        %1331 = vmatpush.msra.mxu0 %v1290
        %1332 = vmatpush.msra.mxu0 %v1289
        %1333 = vmatpush.msra.mxu0 %v1288
        %1334 = vmatpush.msra.mxu0 %v1287
        %1335 = vmatpush.msra.mxu0 %v1286
        %1336 = vmatpush.msra.mxu0 %v1285
        %1337 = vmatmul.f32.gmra.mxu0 %v1298
        %v1338 = vpop.f32.mrf.mxu0
        %v1339 = vadd.f32 0.0, %v1338
        %1340 = vmatmul.f32.gmra.mxu0 %v1301
        %v1341 = vpop.f32.mrf.mxu0
        %v1342 = vadd.f32 0.0, %v1341
        %1343 = vmatmul.f32.gmra.mxu0 %v1304
        %v1344 = vpop.f32.mrf.mxu0
        %v1345 = vadd.f32 0.0, %v1344
        %1346 = vmatmul.f32.gmra.mxu0 %v1307
        %v1347 = vpop.f32.mrf.mxu0
        %v1348 = vadd.f32 0.0, %v1347
        %1349 = vmatmul.f32.gmra.mxu0 %v1310
        %v1350 = vpop.f32.mrf.mxu0
        %v1351 = vadd.f32 0.0, %v1350
        %1352 = vmatmul.f32.gmra.mxu0 %v1313
        %v1353 = vpop.f32.mrf.mxu0
        %v1354 = vadd.f32 0.0, %v1353
        %1355 = vmatmul.f32.gmra.mxu0 %v1316
        %v1356 = vpop.f32.mrf.mxu0
        %v1357 = vadd.f32 0.0, %v1356
        %1358 = vmatmul.f32.gmra.mxu0 %v1319
        %v1359 = vpop.f32.mrf.mxu0
        %v1360 = vadd.f32 0.0, %v1359
        %1361 = vdwg.mxu0
        %v1362 = vadd.f32 %v1262, %v1339
        %v1363 = vadd.f32 %v1265, %v1342
        %v1364 = vadd.f32 %v1268, %v1345
        %v1365 = vadd.f32 %v1271, %v1348
        %v1366 = vadd.f32 %v1274, %v1351
        %v1367 = vadd.f32 %v1277, %v1354
        %v1368 = vadd.f32 %v1280, %v1357
        %v1369 = vadd.f32 %v1283, %v1360
        %v1370 = vld [vmem:[#allocation16] sm:$0x1]
        %v1372 = vperm.slane %v1370, 0
        %v1374 = vadd.f32 %v1362, %v1372
        %v1375 = vadd.f32 %v1363, %v1372
        %v1376 = vadd.f32 %v1364, %v1372
        %v1377 = vadd.f32 %v1365, %v1372
        %v1378 = vadd.f32 %v1366, %v1372
        %v1379 = vadd.f32 %v1367, %v1372
        %v1380 = vadd.f32 %v1368, %v1372
        %v1381 = vadd.f32 %v1369, %v1372
        %1382 = vadd.xlane.f32.xlu0 %v1374
        %v1383 = vpop.xlane.xlu0 %1382
        %1384 = vadd.xlane.f32.xlu0 %v1375
        %v1385 = vpop.xlane.xlu0 %1384
        %1386 = vadd.xlane.f32.xlu0 %v1376
        %v1387 = vpop.xlane.xlu0 %1386
        %1388 = vadd.xlane.f32.xlu0 %v1377
        %v1389 = vpop.xlane.xlu0 %1388
        %1390 = vadd.xlane.f32.xlu0 %v1378
        %v1391 = vpop.xlane.xlu0 %1390
        %1392 = vadd.xlane.f32.xlu0 %v1379
        %v1393 = vpop.xlane.xlu0 %1392
        %1394 = vadd.xlane.f32.xlu0 %v1380
        %v1395 = vpop.xlane.xlu0 %1394
        %1396 = vadd.xlane.f32.xlu0 %v1381
        %v1397 = vpop.xlane.xlu0 %1396
        %v1398 = vrcp.pop 128.0
        %v1399 = vmul.f32 128.0, %v1398
        %v1400 = vsub.f32 1.0, %v1399
        %v1401 = vmul.f32 %v1398, %v1400
        %v1402 = vadd.f32 %v1398, %v1401
        %vm1403 = vweird.f32 %v1398
        %v1404 = vsel %vm1403, %v1398, %v1402
        %v1405 = vmul.f32 %v1383, %v1404
        %v1406 = vmul.f32 %v1385, %v1404
        %v1407 = vmul.f32 %v1387, %v1404
        %v1408 = vmul.f32 %v1389, %v1404
        %v1409 = vmul.f32 %v1391, %v1404
        %v1410 = vmul.f32 %v1393, %v1404
        %v1411 = vmul.f32 %v1395, %v1404
        %v1412 = vmul.f32 %v1397, %v1404
        %v1413 = vsub.f32 %v1374, %v1405
        %v1414 = vsub.f32 %v1375, %v1406
        %v1415 = vsub.f32 %v1376, %v1407
        %v1416 = vsub.f32 %v1377, %v1408
        %v1417 = vsub.f32 %v1378, %v1409
        %v1418 = vsub.f32 %v1379, %v1410
        %v1419 = vsub.f32 %v1380, %v1411
        %v1420 = vsub.f32 %v1381, %v1412
        %v1421 = vmul.f32 %v1413, %v1413
        %v1422 = vmul.f32 %v1414, %v1414
        %v1423 = vmul.f32 %v1415, %v1415
        %v1424 = vmul.f32 %v1416, %v1416
        %v1425 = vmul.f32 %v1417, %v1417
        %v1426 = vmul.f32 %v1418, %v1418
        %v1427 = vmul.f32 %v1419, %v1419
        %v1428 = vmul.f32 %v1420, %v1420
        %1429 = vadd.xlane.f32.xlu0 %v1421
        %v1430 = vpop.xlane.xlu0 %1429
        %1431 = vadd.xlane.f32.xlu0 %v1422
        %v1432 = vpop.xlane.xlu0 %1431
        %1433 = vadd.xlane.f32.xlu0 %v1423
        %v1434 = vpop.xlane.xlu0 %1433
        %1435 = vadd.xlane.f32.xlu0 %v1424
        %v1436 = vpop.xlane.xlu0 %1435
        %1437 = vadd.xlane.f32.xlu0 %v1425
        %v1438 = vpop.xlane.xlu0 %1437
        %1439 = vadd.xlane.f32.xlu0 %v1426
        %v1440 = vpop.xlane.xlu0 %1439
        %1441 = vadd.xlane.f32.xlu0 %v1427
        %v1442 = vpop.xlane.xlu0 %1441
        %1443 = vadd.xlane.f32.xlu0 %v1428
        %v1444 = vpop.xlane.xlu0 %1443
        %v1445 = vmul.f32 %v1430, %v1404
        %v1446 = vmul.f32 %v1432, %v1404
        %v1447 = vmul.f32 %v1434, %v1404
        %v1448 = vmul.f32 %v1436, %v1404
        %v1449 = vmul.f32 %v1438, %v1404
        %v1450 = vmul.f32 %v1440, %v1404
        %v1451 = vmul.f32 %v1442, %v1404
        %v1452 = vmul.f32 %v1444, %v1404
        %v1453 = vadd.f32 %v1445, 1e-05
        %v1454 = vadd.f32 %v1446, 1e-05
        %v1455 = vadd.f32 %v1447, 1e-05
        %v1456 = vadd.f32 %v1448, 1e-05
        %v1457 = vadd.f32 %v1449, 1e-05
        %v1458 = vadd.f32 %v1450, 1e-05
        %v1459 = vadd.f32 %v1451, 1e-05
        %v1460 = vadd.f32 %v1452, 1e-05
        %v1461 = vrsqrt.pop %v1453
        %v1462 = vmul.f32 %v1461, %v1453
        %v1463 = vmul.f32 %v1462, %v1461
        %v1464 = vmul.f32 0.5, %v1463
        %v1465 = vsub.f32 1.5, %v1464
        %v1466 = vmul.f32 %v1461, %v1465
        %vm1467 = vweird.f32 %v1453
        %vm1468 = vweird.f32 %v1461
        %vm1469 = vmor %vm1467, %vm1468
        %v1470 = vsel %vm1469, %v1461, %v1466
        %v1471 = vrsqrt.pop %v1454
        %v1472 = vmul.f32 %v1471, %v1454
        %v1473 = vmul.f32 %v1472, %v1471
        %v1474 = vmul.f32 0.5, %v1473
        %v1475 = vsub.f32 1.5, %v1474
        %v1476 = vmul.f32 %v1471, %v1475
        %vm1477 = vweird.f32 %v1454
        %vm1478 = vweird.f32 %v1471
        %vm1479 = vmor %vm1477, %vm1478
        %v1480 = vsel %vm1479, %v1471, %v1476
        %v1481 = vrsqrt.pop %v1455
        %v1482 = vmul.f32 %v1481, %v1455
        %v1483 = vmul.f32 %v1482, %v1481
        %v1484 = vmul.f32 0.5, %v1483
        %v1485 = vsub.f32 1.5, %v1484
        %v1486 = vmul.f32 %v1481, %v1485
        %vm1487 = vweird.f32 %v1455
        %vm1488 = vweird.f32 %v1481
        %vm1489 = vmor %vm1487, %vm1488
        %v1490 = vsel %vm1489, %v1481, %v1486
        %v1491 = vrsqrt.pop %v1456
        %v1492 = vmul.f32 %v1491, %v1456
        %v1493 = vmul.f32 %v1492, %v1491
        %v1494 = vmul.f32 0.5, %v1493
        %v1495 = vsub.f32 1.5, %v1494
        %v1496 = vmul.f32 %v1491, %v1495
        %vm1497 = vweird.f32 %v1456
        %vm1498 = vweird.f32 %v1491
        %vm1499 = vmor %vm1497, %vm1498
        %v1500 = vsel %vm1499, %v1491, %v1496
        %v1501 = vrsqrt.pop %v1457
        %v1502 = vmul.f32 %v1501, %v1457
        %v1503 = vmul.f32 %v1502, %v1501
        %v1504 = vmul.f32 0.5, %v1503
        %v1505 = vsub.f32 1.5, %v1504
        %v1506 = vmul.f32 %v1501, %v1505
        %vm1507 = vweird.f32 %v1457
        %vm1508 = vweird.f32 %v1501
        %vm1509 = vmor %vm1507, %vm1508
        %v1510 = vsel %vm1509, %v1501, %v1506
        %v1511 = vrsqrt.pop %v1458
        %v1512 = vmul.f32 %v1511, %v1458
        %v1513 = vmul.f32 %v1512, %v1511
        %v1514 = vmul.f32 0.5, %v1513
        %v1515 = vsub.f32 1.5, %v1514
        %v1516 = vmul.f32 %v1511, %v1515
        %vm1517 = vweird.f32 %v1458
        %vm1518 = vweird.f32 %v1511
        %vm1519 = vmor %vm1517, %vm1518
        %v1520 = vsel %vm1519, %v1511, %v1516
        %v1521 = vrsqrt.pop %v1459
        %v1522 = vmul.f32 %v1521, %v1459
        %v1523 = vmul.f32 %v1522, %v1521
        %v1524 = vmul.f32 0.5, %v1523
        %v1525 = vsub.f32 1.5, %v1524
        %v1526 = vmul.f32 %v1521, %v1525
        %vm1527 = vweird.f32 %v1459
        %vm1528 = vweird.f32 %v1521
        %vm1529 = vmor %vm1527, %vm1528
        %v1530 = vsel %vm1529, %v1521, %v1526
        %v1531 = vrsqrt.pop %v1460
        %v1532 = vmul.f32 %v1531, %v1460
        %v1533 = vmul.f32 %v1532, %v1531
        %v1534 = vmul.f32 0.5, %v1533
        %v1535 = vsub.f32 1.5, %v1534
        %v1536 = vmul.f32 %v1531, %v1535
        %vm1537 = vweird.f32 %v1460
        %vm1538 = vweird.f32 %v1531
        %vm1539 = vmor %vm1537, %vm1538
        %v1540 = vsel %vm1539, %v1531, %v1536
        %v1541 = vmul.f32 %v1413, %v1470
        %v1542 = vmul.f32 %v1414, %v1480
        %v1543 = vmul.f32 %v1415, %v1490
        %v1544 = vmul.f32 %v1416, %v1500
        %v1545 = vmul.f32 %v1417, %v1510
        %v1546 = vmul.f32 %v1418, %v1520
        %v1547 = vmul.f32 %v1419, %v1530
        %v1548 = vmul.f32 %v1420, %v1540
        %v1549 = vmul.f32 %v1541, 0.5
        %v1550 = vmul.f32 %v1542, 0.5
        %v1551 = vmul.f32 %v1543, 0.5
        %v1552 = vmul.f32 %v1544, 0.5
        %v1553 = vmul.f32 %v1545, 0.5
        %v1554 = vmul.f32 %v1546, 0.5
        %v1555 = vmul.f32 %v1547, 0.5
        %v1556 = vmul.f32 %v1548, 0.5
        %v1557 = vmul.f32 %v1541, 0.70710677
        %v1558 = vmul.f32 %v1542, 0.70710677
        %v1559 = vmul.f32 %v1543, 0.70710677
        %v1560 = vmul.f32 %v1544, 0.70710677
        %v1561 = vmul.f32 %v1545, 0.70710677
        %v1562 = vmul.f32 %v1546, 0.70710677
        %v1563 = vmul.f32 %v1547, 0.70710677
        %v1564 = vmul.f32 %v1548, 0.70710677
        %v1565 = vmul.f32 %v1557, %v1557
        %v1566 = vmin.f32 16.0, %v1565
        %v1567 = vmul.f32 %v1566, 2.1237322e-06
        %v1568 = vadd.f32 %v1567, 0.00028619796
        %v1569 = vmul.f32 %v1566, %v1568
        %v1570 = vadd.f32 %v1569, 0.0036580483
        %v1571 = vmul.f32 %v1566, %v1570
        %v1572 = vadd.f32 %v1571, 0.05243302
        %v1573 = vmul.f32 %v1566, %v1572
        %v1574 = vadd.f32 %v1573, 0.18741608
        %v1575 = vmul.f32 %v1566, %v1574
        %v1576 = vadd.f32 %v1575, 1.1283791
        %v1577 = vmul.f32 %v1557, %v1576
        %v1578 = vmul.f32 %v1566, 3.8918573e-05
        %v1579 = vadd.f32 %v1578, 0.001143296
        %v1580 = vmul.f32 %v1566, %v1579
        %v1581 = vadd.f32 %v1580, 0.014752088
        %v1582 = vmul.f32 %v1566, %v1581
        %v1583 = vadd.f32 %v1582, 0.112945676
        %v1584 = vmul.f32 %v1566, %v1583
        %v1585 = vadd.f32 %v1584, 0.4994258
        %v1586 = vmul.f32 %v1566, %v1585
        %v1587 = vadd.f32 %v1586, 1.0
        %v1588 = vrcp.pop %v1587
        %v1589 = vmul.f32 %v1587, %v1588
        %v1590 = vsub.f32 1.0, %v1589
        %v1591 = vmul.f32 %v1588, %v1590
        %v1592 = vadd.f32 %v1588, %v1591
        %vm1593 = vweird.f32 %v1587
        %vm1594 = vweird.f32 %v1588
        %vm1595 = vmor %vm1593, %vm1594
        %v1596 = vsel %vm1595, %v1588, %v1592
        %v1597 = vand.u32 2147483647, %v1587
        %vm1598 = vcmp.eq.f32.partialorder %v1597, 8.507059e+37
        %v1599 = vand.u32 %v1587, 2147483648
        %v1600 = vor.u32 1.1754944e-38, %v1599
        %v1601 = vsel %vm1598, %v1600, %v1596
        %v1602 = vmul.f32 %v1577, %v1601
        %v1603 = vmin.f32 %v1602, 1.0
        %v1604 = vmax.f32 %v1603, -1.0
        %v1605 = vmul.f32 %v1558, %v1558
        %v1606 = vmin.f32 16.0, %v1605
        %v1607 = vmul.f32 %v1606, 2.1237322e-06
        %v1608 = vadd.f32 %v1607, 0.00028619796
        %v1609 = vmul.f32 %v1606, %v1608
        %v1610 = vadd.f32 %v1609, 0.0036580483
        %v1611 = vmul.f32 %v1606, %v1610
        %v1612 = vadd.f32 %v1611, 0.05243302
        %v1613 = vmul.f32 %v1606, %v1612
        %v1614 = vadd.f32 %v1613, 0.18741608
        %v1615 = vmul.f32 %v1606, %v1614
        %v1616 = vadd.f32 %v1615, 1.1283791
        %v1617 = vmul.f32 %v1558, %v1616
        %v1618 = vmul.f32 %v1606, 3.8918573e-05
        %v1619 = vadd.f32 %v1618, 0.001143296
        %v1620 = vmul.f32 %v1606, %v1619
        %v1621 = vadd.f32 %v1620, 0.014752088
        %v1622 = vmul.f32 %v1606, %v1621
        %v1623 = vadd.f32 %v1622, 0.112945676
        %v1624 = vmul.f32 %v1606, %v1623
        %v1625 = vadd.f32 %v1624, 0.4994258
        %v1626 = vmul.f32 %v1606, %v1625
        %v1627 = vadd.f32 %v1626, 1.0
        %v1628 = vrcp.pop %v1627
        %v1629 = vmul.f32 %v1627, %v1628
        %v1630 = vsub.f32 1.0, %v1629
        %v1631 = vmul.f32 %v1628, %v1630
        %v1632 = vadd.f32 %v1628, %v1631
        %vm1633 = vweird.f32 %v1627
        %vm1634 = vweird.f32 %v1628
        %vm1635 = vmor %vm1633, %vm1634
        %v1636 = vsel %vm1635, %v1628, %v1632
        %v1637 = vand.u32 2147483647, %v1627
        %vm1638 = vcmp.eq.f32.partialorder %v1637, 8.507059e+37
        %v1639 = vand.u32 %v1627, 2147483648
        %v1640 = vor.u32 1.1754944e-38, %v1639
        %v1641 = vsel %vm1638, %v1640, %v1636
        %v1642 = vmul.f32 %v1617, %v1641
        %v1643 = vmin.f32 %v1642, 1.0
        %v1644 = vmax.f32 %v1643, -1.0
        %v1645 = vmul.f32 %v1559, %v1559
        %v1646 = vmin.f32 16.0, %v1645
        %v1647 = vmul.f32 %v1646, 2.1237322e-06
        %v1648 = vadd.f32 %v1647, 0.00028619796
        %v1649 = vmul.f32 %v1646, %v1648
        %v1650 = vadd.f32 %v1649, 0.0036580483
        %v1651 = vmul.f32 %v1646, %v1650
        %v1652 = vadd.f32 %v1651, 0.05243302
        %v1653 = vmul.f32 %v1646, %v1652
        %v1654 = vadd.f32 %v1653, 0.18741608
        %v1655 = vmul.f32 %v1646, %v1654
        %v1656 = vadd.f32 %v1655, 1.1283791
        %v1657 = vmul.f32 %v1559, %v1656
        %v1658 = vmul.f32 %v1646, 3.8918573e-05
        %v1659 = vadd.f32 %v1658, 0.001143296
        %v1660 = vmul.f32 %v1646, %v1659
        %v1661 = vadd.f32 %v1660, 0.014752088
        %v1662 = vmul.f32 %v1646, %v1661
        %v1663 = vadd.f32 %v1662, 0.112945676
        %v1664 = vmul.f32 %v1646, %v1663
        %v1665 = vadd.f32 %v1664, 0.4994258
        %v1666 = vmul.f32 %v1646, %v1665
        %v1667 = vadd.f32 %v1666, 1.0
        %v1668 = vrcp.pop %v1667
        %v1669 = vmul.f32 %v1667, %v1668
        %v1670 = vsub.f32 1.0, %v1669
        %v1671 = vmul.f32 %v1668, %v1670
        %v1672 = vadd.f32 %v1668, %v1671
        %vm1673 = vweird.f32 %v1667
        %vm1674 = vweird.f32 %v1668
        %vm1675 = vmor %vm1673, %vm1674
        %v1676 = vsel %vm1675, %v1668, %v1672
        %v1677 = vand.u32 2147483647, %v1667
        %vm1678 = vcmp.eq.f32.partialorder %v1677, 8.507059e+37
        %v1679 = vand.u32 %v1667, 2147483648
        %v1680 = vor.u32 1.1754944e-38, %v1679
        %v1681 = vsel %vm1678, %v1680, %v1676
        %v1682 = vmul.f32 %v1657, %v1681
        %v1683 = vmin.f32 %v1682, 1.0
        %v1684 = vmax.f32 %v1683, -1.0
        %v1685 = vmul.f32 %v1560, %v1560
        %v1686 = vmin.f32 16.0, %v1685
        %v1687 = vmul.f32 %v1686, 2.1237322e-06
        %v1688 = vadd.f32 %v1687, 0.00028619796
        %v1689 = vmul.f32 %v1686, %v1688
        %v1690 = vadd.f32 %v1689, 0.0036580483
        %v1691 = vmul.f32 %v1686, %v1690
        %v1692 = vadd.f32 %v1691, 0.05243302
        %v1693 = vmul.f32 %v1686, %v1692
        %v1694 = vadd.f32 %v1693, 0.18741608
        %v1695 = vmul.f32 %v1686, %v1694
        %v1696 = vadd.f32 %v1695, 1.1283791
        %v1697 = vmul.f32 %v1560, %v1696
        %v1698 = vmul.f32 %v1686, 3.8918573e-05
        %v1699 = vadd.f32 %v1698, 0.001143296
        %v1700 = vmul.f32 %v1686, %v1699
        %v1701 = vadd.f32 %v1700, 0.014752088
        %v1702 = vmul.f32 %v1686, %v1701
        %v1703 = vadd.f32 %v1702, 0.112945676
        %v1704 = vmul.f32 %v1686, %v1703
        %v1705 = vadd.f32 %v1704, 0.4994258
        %v1706 = vmul.f32 %v1686, %v1705
        %v1707 = vadd.f32 %v1706, 1.0
        %v1708 = vrcp.pop %v1707
        %v1709 = vmul.f32 %v1707, %v1708
        %v1710 = vsub.f32 1.0, %v1709
        %v1711 = vmul.f32 %v1708, %v1710
        %v1712 = vadd.f32 %v1708, %v1711
        %vm1713 = vweird.f32 %v1707
        %vm1714 = vweird.f32 %v1708
        %vm1715 = vmor %vm1713, %vm1714
        %v1716 = vsel %vm1715, %v1708, %v1712
        %v1717 = vand.u32 2147483647, %v1707
        %vm1718 = vcmp.eq.f32.partialorder %v1717, 8.507059e+37
        %v1719 = vand.u32 %v1707, 2147483648
        %v1720 = vor.u32 1.1754944e-38, %v1719
        %v1721 = vsel %vm1718, %v1720, %v1716
        %v1722 = vmul.f32 %v1697, %v1721
        %v1723 = vmin.f32 %v1722, 1.0
        %v1724 = vmax.f32 %v1723, -1.0
        %v1725 = vmul.f32 %v1561, %v1561
        %v1726 = vmin.f32 16.0, %v1725
        %v1727 = vmul.f32 %v1726, 2.1237322e-06
        %v1728 = vadd.f32 %v1727, 0.00028619796
        %v1729 = vmul.f32 %v1726, %v1728
        %v1730 = vadd.f32 %v1729, 0.0036580483
        %v1731 = vmul.f32 %v1726, %v1730
        %v1732 = vadd.f32 %v1731, 0.05243302
        %v1733 = vmul.f32 %v1726, %v1732
        %v1734 = vadd.f32 %v1733, 0.18741608
        %v1735 = vmul.f32 %v1726, %v1734
        %v1736 = vadd.f32 %v1735, 1.1283791
        %v1737 = vmul.f32 %v1561, %v1736
        %v1738 = vmul.f32 %v1726, 3.8918573e-05
        %v1739 = vadd.f32 %v1738, 0.001143296
        %v1740 = vmul.f32 %v1726, %v1739
        %v1741 = vadd.f32 %v1740, 0.014752088
        %v1742 = vmul.f32 %v1726, %v1741
        %v1743 = vadd.f32 %v1742, 0.112945676
        %v1744 = vmul.f32 %v1726, %v1743
        %v1745 = vadd.f32 %v1744, 0.4994258
        %v1746 = vmul.f32 %v1726, %v1745
        %v1747 = vadd.f32 %v1746, 1.0
        %v1748 = vrcp.pop %v1747
        %v1749 = vmul.f32 %v1747, %v1748
        %v1750 = vsub.f32 1.0, %v1749
        %v1751 = vmul.f32 %v1748, %v1750
        %v1752 = vadd.f32 %v1748, %v1751
        %vm1753 = vweird.f32 %v1747
        %vm1754 = vweird.f32 %v1748
        %vm1755 = vmor %vm1753, %vm1754
        %v1756 = vsel %vm1755, %v1748, %v1752
        %v1757 = vand.u32 2147483647, %v1747
        %vm1758 = vcmp.eq.f32.partialorder %v1757, 8.507059e+37
        %v1759 = vand.u32 %v1747, 2147483648
        %v1760 = vor.u32 1.1754944e-38, %v1759
        %v1761 = vsel %vm1758, %v1760, %v1756
        %v1762 = vmul.f32 %v1737, %v1761
        %v1763 = vmin.f32 %v1762, 1.0
        %v1764 = vmax.f32 %v1763, -1.0
        %v1765 = vmul.f32 %v1562, %v1562
        %v1766 = vmin.f32 16.0, %v1765
        %v1767 = vmul.f32 %v1766, 2.1237322e-06
        %v1768 = vadd.f32 %v1767, 0.00028619796
        %v1769 = vmul.f32 %v1766, %v1768
        %v1770 = vadd.f32 %v1769, 0.0036580483
        %v1771 = vmul.f32 %v1766, %v1770
        %v1772 = vadd.f32 %v1771, 0.05243302
        %v1773 = vmul.f32 %v1766, %v1772
        %v1774 = vadd.f32 %v1773, 0.18741608
        %v1775 = vmul.f32 %v1766, %v1774
        %v1776 = vadd.f32 %v1775, 1.1283791
        %v1777 = vmul.f32 %v1562, %v1776
        %v1778 = vmul.f32 %v1766, 3.8918573e-05
        %v1779 = vadd.f32 %v1778, 0.001143296
        %v1780 = vmul.f32 %v1766, %v1779
        %v1781 = vadd.f32 %v1780, 0.014752088
        %v1782 = vmul.f32 %v1766, %v1781
        %v1783 = vadd.f32 %v1782, 0.112945676
        %v1784 = vmul.f32 %v1766, %v1783
        %v1785 = vadd.f32 %v1784, 0.4994258
        %v1786 = vmul.f32 %v1766, %v1785
        %v1787 = vadd.f32 %v1786, 1.0
        %v1788 = vrcp.pop %v1787
        %v1789 = vmul.f32 %v1787, %v1788
        %v1790 = vsub.f32 1.0, %v1789
        %v1791 = vmul.f32 %v1788, %v1790
        %v1792 = vadd.f32 %v1788, %v1791
        %vm1793 = vweird.f32 %v1787
        %vm1794 = vweird.f32 %v1788
        %vm1795 = vmor %vm1793, %vm1794
        %v1796 = vsel %vm1795, %v1788, %v1792
        %v1797 = vand.u32 2147483647, %v1787
        %vm1798 = vcmp.eq.f32.partialorder %v1797, 8.507059e+37
        %v1799 = vand.u32 %v1787, 2147483648
        %v1800 = vor.u32 1.1754944e-38, %v1799
        %v1801 = vsel %vm1798, %v1800, %v1796
        %v1802 = vmul.f32 %v1777, %v1801
        %v1803 = vmin.f32 %v1802, 1.0
        %v1804 = vmax.f32 %v1803, -1.0
        %v1805 = vmul.f32 %v1563, %v1563
        %v1806 = vmin.f32 16.0, %v1805
        %v1807 = vmul.f32 %v1806, 2.1237322e-06
        %v1808 = vadd.f32 %v1807, 0.00028619796
        %v1809 = vmul.f32 %v1806, %v1808
        %v1810 = vadd.f32 %v1809, 0.0036580483
        %v1811 = vmul.f32 %v1806, %v1810
        %v1812 = vadd.f32 %v1811, 0.05243302
        %v1813 = vmul.f32 %v1806, %v1812
        %v1814 = vadd.f32 %v1813, 0.18741608
        %v1815 = vmul.f32 %v1806, %v1814
        %v1816 = vadd.f32 %v1815, 1.1283791
        %v1817 = vmul.f32 %v1563, %v1816
        %v1818 = vmul.f32 %v1806, 3.8918573e-05
        %v1819 = vadd.f32 %v1818, 0.001143296
        %v1820 = vmul.f32 %v1806, %v1819
        %v1821 = vadd.f32 %v1820, 0.014752088
        %v1822 = vmul.f32 %v1806, %v1821
        %v1823 = vadd.f32 %v1822, 0.112945676
        %v1824 = vmul.f32 %v1806, %v1823
        %v1825 = vadd.f32 %v1824, 0.4994258
        %v1826 = vmul.f32 %v1806, %v1825
        %v1827 = vadd.f32 %v1826, 1.0
        %v1828 = vrcp.pop %v1827
        %v1829 = vmul.f32 %v1827, %v1828
        %v1830 = vsub.f32 1.0, %v1829
        %v1831 = vmul.f32 %v1828, %v1830
        %v1832 = vadd.f32 %v1828, %v1831
        %vm1833 = vweird.f32 %v1827
        %vm1834 = vweird.f32 %v1828
        %vm1835 = vmor %vm1833, %vm1834
        %v1836 = vsel %vm1835, %v1828, %v1832
        %v1837 = vand.u32 2147483647, %v1827
        %vm1838 = vcmp.eq.f32.partialorder %v1837, 8.507059e+37
        %v1839 = vand.u32 %v1827, 2147483648
        %v1840 = vor.u32 1.1754944e-38, %v1839
        %v1841 = vsel %vm1838, %v1840, %v1836
        %v1842 = vmul.f32 %v1817, %v1841
        %v1843 = vmin.f32 %v1842, 1.0
        %v1844 = vmax.f32 %v1843, -1.0
        %v1845 = vmul.f32 %v1564, %v1564
        %v1846 = vmin.f32 16.0, %v1845
        %v1847 = vmul.f32 %v1846, 2.1237322e-06
        %v1848 = vadd.f32 %v1847, 0.00028619796
        %v1849 = vmul.f32 %v1846, %v1848
        %v1850 = vadd.f32 %v1849, 0.0036580483
        %v1851 = vmul.f32 %v1846, %v1850
        %v1852 = vadd.f32 %v1851, 0.05243302
        %v1853 = vmul.f32 %v1846, %v1852
        %v1854 = vadd.f32 %v1853, 0.18741608
        %v1855 = vmul.f32 %v1846, %v1854
        %v1856 = vadd.f32 %v1855, 1.1283791
        %v1857 = vmul.f32 %v1564, %v1856
        %v1858 = vmul.f32 %v1846, 3.8918573e-05
        %v1859 = vadd.f32 %v1858, 0.001143296
        %v1860 = vmul.f32 %v1846, %v1859
        %v1861 = vadd.f32 %v1860, 0.014752088
        %v1862 = vmul.f32 %v1846, %v1861
        %v1863 = vadd.f32 %v1862, 0.112945676
        %v1864 = vmul.f32 %v1846, %v1863
        %v1865 = vadd.f32 %v1864, 0.4994258
        %v1866 = vmul.f32 %v1846, %v1865
        %v1867 = vadd.f32 %v1866, 1.0
        %v1868 = vrcp.pop %v1867
        %v1869 = vmul.f32 %v1867, %v1868
        %v1870 = vsub.f32 1.0, %v1869
        %v1871 = vmul.f32 %v1868, %v1870
        %v1872 = vadd.f32 %v1868, %v1871
        %vm1873 = vweird.f32 %v1867
        %vm1874 = vweird.f32 %v1868
        %vm1875 = vmor %vm1873, %vm1874
        %v1876 = vsel %vm1875, %v1868, %v1872
        %v1877 = vand.u32 2147483647, %v1867
        %vm1878 = vcmp.eq.f32.partialorder %v1877, 8.507059e+37
        %v1879 = vand.u32 %v1867, 2147483648
        %v1880 = vor.u32 1.1754944e-38, %v1879
        %v1881 = vsel %vm1878, %v1880, %v1876
        %v1882 = vmul.f32 %v1857, %v1881
        %v1883 = vmin.f32 %v1882, 1.0
        %v1884 = vmax.f32 %v1883, -1.0
        %v1885 = vadd.f32 %v1604, 1.0
        %v1886 = vadd.f32 %v1644, 1.0
        %v1887 = vadd.f32 %v1684, 1.0
        %v1888 = vadd.f32 %v1724, 1.0
        %v1889 = vadd.f32 %v1764, 1.0
        %v1890 = vadd.f32 %v1804, 1.0
        %v1891 = vadd.f32 %v1844, 1.0
        %v1892 = vadd.f32 %v1884, 1.0
        %v1893 = vmul.f32 %v1549, %v1885
        %v1894 = vmul.f32 %v1550, %v1886
        %v1895 = vmul.f32 %v1551, %v1887
        %v1896 = vmul.f32 %v1552, %v1888
        %v1897 = vmul.f32 %v1553, %v1889
        %v1898 = vmul.f32 %v1554, %v1890
        %v1899 = vmul.f32 %v1555, %v1891
        %v1900 = vmul.f32 %v1556, %v1892
        %v1901 = vld [vmem:[%s9] sm:$0xff]
        %v1902 = vld [vmem:[%s9 + $0x8] sm:$0xff]
        %v1903 = vld [vmem:[%s9 + $0x10] sm:$0xff]
        %v1904 = vld [vmem:[%s9 + $0x18] sm:$0xff]
        %v1905 = vld [vmem:[%s9 + $0x20] sm:$0xff]
        %v1906 = vld [vmem:[%s9 + $0x28] sm:$0xff]
        %v1907 = vld [vmem:[%s9 + $0x30] sm:$0xff]
        %v1908 = vld [vmem:[%s9 + $0x38] sm:$0xff]
        %v1909 = vld [vmem:[%s9 + $0x40] sm:$0xff]
        %v1910 = vld [vmem:[%s9 + $0x48] sm:$0xff]
        %v1911 = vld [vmem:[%s9 + $0x50] sm:$0xff]
        %v1912 = vld [vmem:[%s9 + $0x58] sm:$0xff]
        %v1913 = vld [vmem:[%s9 + $0x60] sm:$0xff]
        %v1914 = vld [vmem:[%s9 + $0x68] sm:$0xff]
        %v1915 = vld [vmem:[%s9 + $0x70] sm:$0xff]
        %v1916 = vld [vmem:[%s9 + $0x78] sm:$0xff]
        %v1917 = vld [vmem:[#allocation16 + $0x1] sm:$0x1]
        %v1919 = vperm.slane %v1917, 0
        %1921 = vmatpush.msra.mxu0 %v1916
        %1922 = vmatpush.msra.mxu0 %v1915
        %1923 = vmatpush.msra.mxu0 %v1914
        %1924 = vmatpush.msra.mxu0 %v1913
        %1925 = vmatpush.msra.mxu0 %v1912
        %1926 = vmatpush.msra.mxu0 %v1911
        %1927 = vmatpush.msra.mxu0 %v1910
        %1928 = vmatpush.msra.mxu0 %v1909
        %1929 = vmatpush.msra.mxu0 %v1908
        %1930 = vmatpush.msra.mxu0 %v1907
        %1931 = vmatpush.msra.mxu0 %v1906
        %1932 = vmatpush.msra.mxu0 %v1905
        %1933 = vmatpush.msra.mxu0 %v1904
        %1934 = vmatpush.msra.mxu0 %v1903
        %1935 = vmatpush.msra.mxu0 %v1902
        %1936 = vmatpush.msra.mxu0 %v1901
        %1937 = vmatmul.f32.gmra.mxu0 %v1893
        %v1938 = vpop.f32.mrf.mxu0
        %v1939 = vadd.f32 %v1919, %v1938
        %1940 = vmatmul.f32.gmra.mxu0 %v1894
        %v1941 = vpop.f32.mrf.mxu0
        %v1942 = vadd.f32 %v1919, %v1941
        %1943 = vmatmul.f32.gmra.mxu0 %v1895
        %v1944 = vpop.f32.mrf.mxu0
        %v1945 = vadd.f32 %v1919, %v1944
        %1946 = vmatmul.f32.gmra.mxu0 %v1896
        %v1947 = vpop.f32.mrf.mxu0
        %v1948 = vadd.f32 %v1919, %v1947
        %1949 = vmatmul.f32.gmra.mxu0 %v1897
        %v1950 = vpop.f32.mrf.mxu0
        %v1951 = vadd.f32 %v1919, %v1950
        %1952 = vmatmul.f32.gmra.mxu0 %v1898
        %v1953 = vpop.f32.mrf.mxu0
        %v1954 = vadd.f32 %v1919, %v1953
        %1955 = vmatmul.f32.gmra.mxu0 %v1899
        %v1956 = vpop.f32.mrf.mxu0
        %v1957 = vadd.f32 %v1919, %v1956
        %1958 = vmatmul.f32.gmra.mxu0 %v1900
        %v1959 = vpop.f32.mrf.mxu0
        %v1960 = vadd.f32 %v1919, %v1959
        %1961 = vdwg.mxu0
        %vm1962 = vcmask 523264
        %v1963 = vsel %vm1962, %v1939, 0.0
        %1964 = vadd.xlane.f32.xlu0 %v1963
        %v1965 = vpop.xlane.xlu0 %1964
        %v1966 = vsel %vm1962, %v1942, 0.0
        %1967 = vadd.xlane.f32.xlu0 %v1966
        %v1968 = vpop.xlane.xlu0 %1967
        %v1969 = vsel %vm1962, %v1945, 0.0
        %1970 = vadd.xlane.f32.xlu0 %v1969
        %v1971 = vpop.xlane.xlu0 %1970
        %v1972 = vsel %vm1962, %v1948, 0.0
        %1973 = vadd.xlane.f32.xlu0 %v1972
        %v1974 = vpop.xlane.xlu0 %1973
        %v1975 = vsel %vm1962, %v1951, 0.0
        %1976 = vadd.xlane.f32.xlu0 %v1975
        %v1977 = vpop.xlane.xlu0 %1976
        %v1978 = vsel %vm1962, %v1954, 0.0
        %1979 = vadd.xlane.f32.xlu0 %v1978
        %v1980 = vpop.xlane.xlu0 %1979
        %v1981 = vsel %vm1962, %v1957, 0.0
        %1982 = vadd.xlane.f32.xlu0 %v1981
        %v1983 = vpop.xlane.xlu0 %1982
        %v1984 = vsel %vm1962, %v1960, 0.0
        %1985 = vadd.xlane.f32.xlu0 %v1984
        %v1986 = vpop.xlane.xlu0 %1985
        %v1987 = vrcp.pop 64.0
        %v1988 = vmul.f32 64.0, %v1987
        %v1989 = vsub.f32 1.0, %v1988
        %v1990 = vmul.f32 %v1987, %v1989
        %v1991 = vadd.f32 %v1987, %v1990
        %vm1992 = vweird.f32 %v1987
        %v1993 = vsel %vm1992, %v1987, %v1991
        %v1994 = vmul.f32 %v1965, %v1993
        %v1995 = vmul.f32 %v1968, %v1993
        %v1996 = vmul.f32 %v1971, %v1993
        %v1997 = vmul.f32 %v1974, %v1993
        %v1998 = vmul.f32 %v1977, %v1993
        %v1999 = vmul.f32 %v1980, %v1993
        %v2000 = vmul.f32 %v1983, %v1993
        %v2001 = vmul.f32 %v1986, %v1993
        %v2002 = vsub.f32 %v1939, %v1994
        %v2003 = vsub.f32 %v1942, %v1995
        %v2004 = vsub.f32 %v1945, %v1996
        %v2005 = vsub.f32 %v1948, %v1997
        %v2006 = vsub.f32 %v1951, %v1998
        %v2007 = vsub.f32 %v1954, %v1999
        %v2008 = vsub.f32 %v1957, %v2000
        %v2009 = vsub.f32 %v1960, %v2001
        %v2010 = vmul.f32 %v2002, %v2002
        %v2011 = vmul.f32 %v2003, %v2003
        %v2012 = vmul.f32 %v2004, %v2004
        %v2013 = vmul.f32 %v2005, %v2005
        %v2014 = vmul.f32 %v2006, %v2006
        %v2015 = vmul.f32 %v2007, %v2007
        %v2016 = vmul.f32 %v2008, %v2008
        %v2017 = vmul.f32 %v2009, %v2009
        %v2018 = vsel %vm1962, %v2010, 0.0
        %2019 = vadd.xlane.f32.xlu0 %v2018
        %v2020 = vpop.xlane.xlu0 %2019
        %v2021 = vsel %vm1962, %v2011, 0.0
        %2022 = vadd.xlane.f32.xlu0 %v2021
        %v2023 = vpop.xlane.xlu0 %2022
        %v2024 = vsel %vm1962, %v2012, 0.0
        %2025 = vadd.xlane.f32.xlu0 %v2024
        %v2026 = vpop.xlane.xlu0 %2025
        %v2027 = vsel %vm1962, %v2013, 0.0
        %2028 = vadd.xlane.f32.xlu0 %v2027
        %v2029 = vpop.xlane.xlu0 %2028
        %v2030 = vsel %vm1962, %v2014, 0.0
        %2031 = vadd.xlane.f32.xlu0 %v2030
        %v2032 = vpop.xlane.xlu0 %2031
        %v2033 = vsel %vm1962, %v2015, 0.0
        %2034 = vadd.xlane.f32.xlu0 %v2033
        %v2035 = vpop.xlane.xlu0 %2034
        %v2036 = vsel %vm1962, %v2016, 0.0
        %2037 = vadd.xlane.f32.xlu0 %v2036
        %v2038 = vpop.xlane.xlu0 %2037
        %v2039 = vsel %vm1962, %v2017, 0.0
        %2040 = vadd.xlane.f32.xlu0 %v2039
        %v2041 = vpop.xlane.xlu0 %2040
        %v2042 = vmul.f32 %v2020, %v1993
        %v2043 = vmul.f32 %v2023, %v1993
        %v2044 = vmul.f32 %v2026, %v1993
        %v2045 = vmul.f32 %v2029, %v1993
        %v2046 = vmul.f32 %v2032, %v1993
        %v2047 = vmul.f32 %v2035, %v1993
        %v2048 = vmul.f32 %v2038, %v1993
        %v2049 = vmul.f32 %v2041, %v1993
        %v2050 = vadd.f32 %v2042, 1e-05
        %v2051 = vadd.f32 %v2043, 1e-05
        %v2052 = vadd.f32 %v2044, 1e-05
        %v2053 = vadd.f32 %v2045, 1e-05
        %v2054 = vadd.f32 %v2046, 1e-05
        %v2055 = vadd.f32 %v2047, 1e-05
        %v2056 = vadd.f32 %v2048, 1e-05
        %v2057 = vadd.f32 %v2049, 1e-05
        %v2058 = vrsqrt.pop %v2050
        %v2059 = vmul.f32 %v2058, %v2050
        %v2060 = vmul.f32 %v2059, %v2058
        %v2061 = vmul.f32 0.5, %v2060
        %v2062 = vsub.f32 1.5, %v2061
        %v2063 = vmul.f32 %v2058, %v2062
        %vm2064 = vweird.f32 %v2050
        %vm2065 = vweird.f32 %v2058
        %vm2066 = vmor %vm2064, %vm2065
        %v2067 = vsel %vm2066, %v2058, %v2063
        %v2068 = vrsqrt.pop %v2051
        %v2069 = vmul.f32 %v2068, %v2051
        %v2070 = vmul.f32 %v2069, %v2068
        %v2071 = vmul.f32 0.5, %v2070
        %v2072 = vsub.f32 1.5, %v2071
        %v2073 = vmul.f32 %v2068, %v2072
        %vm2074 = vweird.f32 %v2051
        %vm2075 = vweird.f32 %v2068
        %vm2076 = vmor %vm2074, %vm2075
        %v2077 = vsel %vm2076, %v2068, %v2073
        %v2078 = vrsqrt.pop %v2052
        %v2079 = vmul.f32 %v2078, %v2052
        %v2080 = vmul.f32 %v2079, %v2078
        %v2081 = vmul.f32 0.5, %v2080
        %v2082 = vsub.f32 1.5, %v2081
        %v2083 = vmul.f32 %v2078, %v2082
        %vm2084 = vweird.f32 %v2052
        %vm2085 = vweird.f32 %v2078
        %vm2086 = vmor %vm2084, %vm2085
        %v2087 = vsel %vm2086, %v2078, %v2083
        %v2088 = vrsqrt.pop %v2053
        %v2089 = vmul.f32 %v2088, %v2053
        %v2090 = vmul.f32 %v2089, %v2088
        %v2091 = vmul.f32 0.5, %v2090
        %v2092 = vsub.f32 1.5, %v2091
        %v2093 = vmul.f32 %v2088, %v2092
        %vm2094 = vweird.f32 %v2053
        %vm2095 = vweird.f32 %v2088
        %vm2096 = vmor %vm2094, %vm2095
        %v2097 = vsel %vm2096, %v2088, %v2093
        %v2098 = vrsqrt.pop %v2054
        %v2099 = vmul.f32 %v2098, %v2054
        %v2100 = vmul.f32 %v2099, %v2098
        %v2101 = vmul.f32 0.5, %v2100
        %v2102 = vsub.f32 1.5, %v2101
        %v2103 = vmul.f32 %v2098, %v2102
        %vm2104 = vweird.f32 %v2054
        %vm2105 = vweird.f32 %v2098
        %vm2106 = vmor %vm2104, %vm2105
        %v2107 = vsel %vm2106, %v2098, %v2103
        %v2108 = vrsqrt.pop %v2055
        %v2109 = vmul.f32 %v2108, %v2055
        %v2110 = vmul.f32 %v2109, %v2108
        %v2111 = vmul.f32 0.5, %v2110
        %v2112 = vsub.f32 1.5, %v2111
        %v2113 = vmul.f32 %v2108, %v2112
        %vm2114 = vweird.f32 %v2055
        %vm2115 = vweird.f32 %v2108
        %vm2116 = vmor %vm2114, %vm2115
        %v2117 = vsel %vm2116, %v2108, %v2113
        %v2118 = vrsqrt.pop %v2056
        %v2119 = vmul.f32 %v2118, %v2056
        %v2120 = vmul.f32 %v2119, %v2118
        %v2121 = vmul.f32 0.5, %v2120
        %v2122 = vsub.f32 1.5, %v2121
        %v2123 = vmul.f32 %v2118, %v2122
        %vm2124 = vweird.f32 %v2056
        %vm2125 = vweird.f32 %v2118
        %vm2126 = vmor %vm2124, %vm2125
        %v2127 = vsel %vm2126, %v2118, %v2123
        %v2128 = vrsqrt.pop %v2057
        %v2129 = vmul.f32 %v2128, %v2057
        %v2130 = vmul.f32 %v2129, %v2128
        %v2131 = vmul.f32 0.5, %v2130
        %v2132 = vsub.f32 1.5, %v2131
        %v2133 = vmul.f32 %v2128, %v2132
        %vm2134 = vweird.f32 %v2057
        %vm2135 = vweird.f32 %v2128
        %vm2136 = vmor %vm2134, %vm2135
        %v2137 = vsel %vm2136, %v2128, %v2133
        %v2138 = vmul.f32 %v2002, %v2067
        %v2139 = vmul.f32 %v2003, %v2077
        %v2140 = vmul.f32 %v2004, %v2087
        %v2141 = vmul.f32 %v2005, %v2097
        %v2142 = vmul.f32 %v2006, %v2107
        %v2143 = vmul.f32 %v2007, %v2117
        %v2144 = vmul.f32 %v2008, %v2127
        %v2145 = vmul.f32 %v2009, %v2137
        %v2146 = vmul.f32 %v2138, 0.5
        %v2147 = vmul.f32 %v2139, 0.5
        %v2148 = vmul.f32 %v2140, 0.5
        %v2149 = vmul.f32 %v2141, 0.5
        %v2150 = vmul.f32 %v2142, 0.5
        %v2151 = vmul.f32 %v2143, 0.5
        %v2152 = vmul.f32 %v2144, 0.5
        %v2153 = vmul.f32 %v2145, 0.5
        %v2154 = vmul.f32 %v2138, 0.70710677
        %v2155 = vmul.f32 %v2139, 0.70710677
        %v2156 = vmul.f32 %v2140, 0.70710677
        %v2157 = vmul.f32 %v2141, 0.70710677
        %v2158 = vmul.f32 %v2142, 0.70710677
        %v2159 = vmul.f32 %v2143, 0.70710677
        %v2160 = vmul.f32 %v2144, 0.70710677
        %v2161 = vmul.f32 %v2145, 0.70710677
        %v2162 = vmul.f32 %v2154, %v2154
        %v2163 = vmin.f32 16.0, %v2162
        %v2164 = vmul.f32 %v2163, 2.1237322e-06
        %v2165 = vadd.f32 %v2164, 0.00028619796
        %v2166 = vmul.f32 %v2163, %v2165
        %v2167 = vadd.f32 %v2166, 0.0036580483
        %v2168 = vmul.f32 %v2163, %v2167
        %v2169 = vadd.f32 %v2168, 0.05243302
        %v2170 = vmul.f32 %v2163, %v2169
        %v2171 = vadd.f32 %v2170, 0.18741608
        %v2172 = vmul.f32 %v2163, %v2171
        %v2173 = vadd.f32 %v2172, 1.1283791
        %v2174 = vmul.f32 %v2154, %v2173
        %v2175 = vmul.f32 %v2163, 3.8918573e-05
        %v2176 = vadd.f32 %v2175, 0.001143296
        %v2177 = vmul.f32 %v2163, %v2176
        %v2178 = vadd.f32 %v2177, 0.014752088
        %v2179 = vmul.f32 %v2163, %v2178
        %v2180 = vadd.f32 %v2179, 0.112945676
        %v2181 = vmul.f32 %v2163, %v2180
        %v2182 = vadd.f32 %v2181, 0.4994258
        %v2183 = vmul.f32 %v2163, %v2182
        %v2184 = vadd.f32 %v2183, 1.0
        %v2185 = vrcp.pop %v2184
        %v2186 = vmul.f32 %v2184, %v2185
        %v2187 = vsub.f32 1.0, %v2186
        %v2188 = vmul.f32 %v2185, %v2187
        %v2189 = vadd.f32 %v2185, %v2188
        %vm2190 = vweird.f32 %v2184
        %vm2191 = vweird.f32 %v2185
        %vm2192 = vmor %vm2190, %vm2191
        %v2193 = vsel %vm2192, %v2185, %v2189
        %v2194 = vand.u32 2147483647, %v2184
        %vm2195 = vcmp.eq.f32.partialorder %v2194, 8.507059e+37
        %v2196 = vand.u32 %v2184, 2147483648
        %v2197 = vor.u32 1.1754944e-38, %v2196
        %v2198 = vsel %vm2195, %v2197, %v2193
        %v2199 = vmul.f32 %v2174, %v2198
        %v2200 = vmin.f32 %v2199, 1.0
        %v2201 = vmax.f32 %v2200, -1.0
        %v2202 = vmul.f32 %v2155, %v2155
        %v2203 = vmin.f32 16.0, %v2202
        %v2204 = vmul.f32 %v2203, 2.1237322e-06
        %v2205 = vadd.f32 %v2204, 0.00028619796
        %v2206 = vmul.f32 %v2203, %v2205
        %v2207 = vadd.f32 %v2206, 0.0036580483
        %v2208 = vmul.f32 %v2203, %v2207
        %v2209 = vadd.f32 %v2208, 0.05243302
        %v2210 = vmul.f32 %v2203, %v2209
        %v2211 = vadd.f32 %v2210, 0.18741608
        %v2212 = vmul.f32 %v2203, %v2211
        %v2213 = vadd.f32 %v2212, 1.1283791
        %v2214 = vmul.f32 %v2155, %v2213
        %v2215 = vmul.f32 %v2203, 3.8918573e-05
        %v2216 = vadd.f32 %v2215, 0.001143296
        %v2217 = vmul.f32 %v2203, %v2216
        %v2218 = vadd.f32 %v2217, 0.014752088
        %v2219 = vmul.f32 %v2203, %v2218
        %v2220 = vadd.f32 %v2219, 0.112945676
        %v2221 = vmul.f32 %v2203, %v2220
        %v2222 = vadd.f32 %v2221, 0.4994258
        %v2223 = vmul.f32 %v2203, %v2222
        %v2224 = vadd.f32 %v2223, 1.0
        %v2225 = vrcp.pop %v2224
        %v2226 = vmul.f32 %v2224, %v2225
        %v2227 = vsub.f32 1.0, %v2226
        %v2228 = vmul.f32 %v2225, %v2227
        %v2229 = vadd.f32 %v2225, %v2228
        %vm2230 = vweird.f32 %v2224
        %vm2231 = vweird.f32 %v2225
        %vm2232 = vmor %vm2230, %vm2231
        %v2233 = vsel %vm2232, %v2225, %v2229
        %v2234 = vand.u32 2147483647, %v2224
        %vm2235 = vcmp.eq.f32.partialorder %v2234, 8.507059e+37
        %v2236 = vand.u32 %v2224, 2147483648
        %v2237 = vor.u32 1.1754944e-38, %v2236
        %v2238 = vsel %vm2235, %v2237, %v2233
        %v2239 = vmul.f32 %v2214, %v2238
        %v2240 = vmin.f32 %v2239, 1.0
        %v2241 = vmax.f32 %v2240, -1.0
        %v2242 = vmul.f32 %v2156, %v2156
        %v2243 = vmin.f32 16.0, %v2242
        %v2244 = vmul.f32 %v2243, 2.1237322e-06
        %v2245 = vadd.f32 %v2244, 0.00028619796
        %v2246 = vmul.f32 %v2243, %v2245
        %v2247 = vadd.f32 %v2246, 0.0036580483
        %v2248 = vmul.f32 %v2243, %v2247
        %v2249 = vadd.f32 %v2248, 0.05243302
        %v2250 = vmul.f32 %v2243, %v2249
        %v2251 = vadd.f32 %v2250, 0.18741608
        %v2252 = vmul.f32 %v2243, %v2251
        %v2253 = vadd.f32 %v2252, 1.1283791
        %v2254 = vmul.f32 %v2156, %v2253
        %v2255 = vmul.f32 %v2243, 3.8918573e-05
        %v2256 = vadd.f32 %v2255, 0.001143296
        %v2257 = vmul.f32 %v2243, %v2256
        %v2258 = vadd.f32 %v2257, 0.014752088
        %v2259 = vmul.f32 %v2243, %v2258
        %v2260 = vadd.f32 %v2259, 0.112945676
        %v2261 = vmul.f32 %v2243, %v2260
        %v2262 = vadd.f32 %v2261, 0.4994258
        %v2263 = vmul.f32 %v2243, %v2262
        %v2264 = vadd.f32 %v2263, 1.0
        %v2265 = vrcp.pop %v2264
        %v2266 = vmul.f32 %v2264, %v2265
        %v2267 = vsub.f32 1.0, %v2266
        %v2268 = vmul.f32 %v2265, %v2267
        %v2269 = vadd.f32 %v2265, %v2268
        %vm2270 = vweird.f32 %v2264
        %vm2271 = vweird.f32 %v2265
        %vm2272 = vmor %vm2270, %vm2271
        %v2273 = vsel %vm2272, %v2265, %v2269
        %v2274 = vand.u32 2147483647, %v2264
        %vm2275 = vcmp.eq.f32.partialorder %v2274, 8.507059e+37
        %v2276 = vand.u32 %v2264, 2147483648
        %v2277 = vor.u32 1.1754944e-38, %v2276
        %v2278 = vsel %vm2275, %v2277, %v2273
        %v2279 = vmul.f32 %v2254, %v2278
        %v2280 = vmin.f32 %v2279, 1.0
        %v2281 = vmax.f32 %v2280, -1.0
        %v2282 = vmul.f32 %v2157, %v2157
        %v2283 = vmin.f32 16.0, %v2282
        %v2284 = vmul.f32 %v2283, 2.1237322e-06
        %v2285 = vadd.f32 %v2284, 0.00028619796
        %v2286 = vmul.f32 %v2283, %v2285
        %v2287 = vadd.f32 %v2286, 0.0036580483
        %v2288 = vmul.f32 %v2283, %v2287
        %v2289 = vadd.f32 %v2288, 0.05243302
        %v2290 = vmul.f32 %v2283, %v2289
        %v2291 = vadd.f32 %v2290, 0.18741608
        %v2292 = vmul.f32 %v2283, %v2291
        %v2293 = vadd.f32 %v2292, 1.1283791
        %v2294 = vmul.f32 %v2157, %v2293
        %v2295 = vmul.f32 %v2283, 3.8918573e-05
        %v2296 = vadd.f32 %v2295, 0.001143296
        %v2297 = vmul.f32 %v2283, %v2296
        %v2298 = vadd.f32 %v2297, 0.014752088
        %v2299 = vmul.f32 %v2283, %v2298
        %v2300 = vadd.f32 %v2299, 0.112945676
        %v2301 = vmul.f32 %v2283, %v2300
        %v2302 = vadd.f32 %v2301, 0.4994258
        %v2303 = vmul.f32 %v2283, %v2302
        %v2304 = vadd.f32 %v2303, 1.0
        %v2305 = vrcp.pop %v2304
        %v2306 = vmul.f32 %v2304, %v2305
        %v2307 = vsub.f32 1.0, %v2306
        %v2308 = vmul.f32 %v2305, %v2307
        %v2309 = vadd.f32 %v2305, %v2308
        %vm2310 = vweird.f32 %v2304
        %vm2311 = vweird.f32 %v2305
        %vm2312 = vmor %vm2310, %vm2311
        %v2313 = vsel %vm2312, %v2305, %v2309
        %v2314 = vand.u32 2147483647, %v2304
        %vm2315 = vcmp.eq.f32.partialorder %v2314, 8.507059e+37
        %v2316 = vand.u32 %v2304, 2147483648
        %v2317 = vor.u32 1.1754944e-38, %v2316
        %v2318 = vsel %vm2315, %v2317, %v2313
        %v2319 = vmul.f32 %v2294, %v2318
        %v2320 = vmin.f32 %v2319, 1.0
        %v2321 = vmax.f32 %v2320, -1.0
        %v2322 = vmul.f32 %v2158, %v2158
        %v2323 = vmin.f32 16.0, %v2322
        %v2324 = vmul.f32 %v2323, 2.1237322e-06
        %v2325 = vadd.f32 %v2324, 0.00028619796
        %v2326 = vmul.f32 %v2323, %v2325
        %v2327 = vadd.f32 %v2326, 0.0036580483
        %v2328 = vmul.f32 %v2323, %v2327
        %v2329 = vadd.f32 %v2328, 0.05243302
        %v2330 = vmul.f32 %v2323, %v2329
        %v2331 = vadd.f32 %v2330, 0.18741608
        %v2332 = vmul.f32 %v2323, %v2331
        %v2333 = vadd.f32 %v2332, 1.1283791
        %v2334 = vmul.f32 %v2158, %v2333
        %v2335 = vmul.f32 %v2323, 3.8918573e-05
        %v2336 = vadd.f32 %v2335, 0.001143296
        %v2337 = vmul.f32 %v2323, %v2336
        %v2338 = vadd.f32 %v2337, 0.014752088
        %v2339 = vmul.f32 %v2323, %v2338
        %v2340 = vadd.f32 %v2339, 0.112945676
        %v2341 = vmul.f32 %v2323, %v2340
        %v2342 = vadd.f32 %v2341, 0.4994258
        %v2343 = vmul.f32 %v2323, %v2342
        %v2344 = vadd.f32 %v2343, 1.0
        %v2345 = vrcp.pop %v2344
        %v2346 = vmul.f32 %v2344, %v2345
        %v2347 = vsub.f32 1.0, %v2346
        %v2348 = vmul.f32 %v2345, %v2347
        %v2349 = vadd.f32 %v2345, %v2348
        %vm2350 = vweird.f32 %v2344
        %vm2351 = vweird.f32 %v2345
        %vm2352 = vmor %vm2350, %vm2351
        %v2353 = vsel %vm2352, %v2345, %v2349
        %v2354 = vand.u32 2147483647, %v2344
        %vm2355 = vcmp.eq.f32.partialorder %v2354, 8.507059e+37
        %v2356 = vand.u32 %v2344, 2147483648
        %v2357 = vor.u32 1.1754944e-38, %v2356
        %v2358 = vsel %vm2355, %v2357, %v2353
        %v2359 = vmul.f32 %v2334, %v2358
        %v2360 = vmin.f32 %v2359, 1.0
        %v2361 = vmax.f32 %v2360, -1.0
        %v2362 = vmul.f32 %v2159, %v2159
        %v2363 = vmin.f32 16.0, %v2362
        %v2364 = vmul.f32 %v2363, 2.1237322e-06
        %v2365 = vadd.f32 %v2364, 0.00028619796
        %v2366 = vmul.f32 %v2363, %v2365
        %v2367 = vadd.f32 %v2366, 0.0036580483
        %v2368 = vmul.f32 %v2363, %v2367
        %v2369 = vadd.f32 %v2368, 0.05243302
        %v2370 = vmul.f32 %v2363, %v2369
        %v2371 = vadd.f32 %v2370, 0.18741608
        %v2372 = vmul.f32 %v2363, %v2371
        %v2373 = vadd.f32 %v2372, 1.1283791
        %v2374 = vmul.f32 %v2159, %v2373
        %v2375 = vmul.f32 %v2363, 3.8918573e-05
        %v2376 = vadd.f32 %v2375, 0.001143296
        %v2377 = vmul.f32 %v2363, %v2376
        %v2378 = vadd.f32 %v2377, 0.014752088
        %v2379 = vmul.f32 %v2363, %v2378
        %v2380 = vadd.f32 %v2379, 0.112945676
        %v2381 = vmul.f32 %v2363, %v2380
        %v2382 = vadd.f32 %v2381, 0.4994258
        %v2383 = vmul.f32 %v2363, %v2382
        %v2384 = vadd.f32 %v2383, 1.0
        %v2385 = vrcp.pop %v2384
        %v2386 = vmul.f32 %v2384, %v2385
        %v2387 = vsub.f32 1.0, %v2386
        %v2388 = vmul.f32 %v2385, %v2387
        %v2389 = vadd.f32 %v2385, %v2388
        %vm2390 = vweird.f32 %v2384
        %vm2391 = vweird.f32 %v2385
        %vm2392 = vmor %vm2390, %vm2391
        %v2393 = vsel %vm2392, %v2385, %v2389
        %v2394 = vand.u32 2147483647, %v2384
        %vm2395 = vcmp.eq.f32.partialorder %v2394, 8.507059e+37
        %v2396 = vand.u32 %v2384, 2147483648
        %v2397 = vor.u32 1.1754944e-38, %v2396
        %v2398 = vsel %vm2395, %v2397, %v2393
        %v2399 = vmul.f32 %v2374, %v2398
        %v2400 = vmin.f32 %v2399, 1.0
        %v2401 = vmax.f32 %v2400, -1.0
        %v2402 = vmul.f32 %v2160, %v2160
        %v2403 = vmin.f32 16.0, %v2402
        %v2404 = vmul.f32 %v2403, 2.1237322e-06
        %v2405 = vadd.f32 %v2404, 0.00028619796
        %v2406 = vmul.f32 %v2403, %v2405
        %v2407 = vadd.f32 %v2406, 0.0036580483
        %v2408 = vmul.f32 %v2403, %v2407
        %v2409 = vadd.f32 %v2408, 0.05243302
        %v2410 = vmul.f32 %v2403, %v2409
        %v2411 = vadd.f32 %v2410, 0.18741608
        %v2412 = vmul.f32 %v2403, %v2411
        %v2413 = vadd.f32 %v2412, 1.1283791
        %v2414 = vmul.f32 %v2160, %v2413
        %v2415 = vmul.f32 %v2403, 3.8918573e-05
        %v2416 = vadd.f32 %v2415, 0.001143296
        %v2417 = vmul.f32 %v2403, %v2416
        %v2418 = vadd.f32 %v2417, 0.014752088
        %v2419 = vmul.f32 %v2403, %v2418
        %v2420 = vadd.f32 %v2419, 0.112945676
        %v2421 = vmul.f32 %v2403, %v2420
        %v2422 = vadd.f32 %v2421, 0.4994258
        %v2423 = vmul.f32 %v2403, %v2422
        %v2424 = vadd.f32 %v2423, 1.0
        %v2425 = vrcp.pop %v2424
        %v2426 = vmul.f32 %v2424, %v2425
        %v2427 = vsub.f32 1.0, %v2426
        %v2428 = vmul.f32 %v2425, %v2427
        %v2429 = vadd.f32 %v2425, %v2428
        %vm2430 = vweird.f32 %v2424
        %vm2431 = vweird.f32 %v2425
        %vm2432 = vmor %vm2430, %vm2431
        %v2433 = vsel %vm2432, %v2425, %v2429
        %v2434 = vand.u32 2147483647, %v2424
        %vm2435 = vcmp.eq.f32.partialorder %v2434, 8.507059e+37
        %v2436 = vand.u32 %v2424, 2147483648
        %v2437 = vor.u32 1.1754944e-38, %v2436
        %v2438 = vsel %vm2435, %v2437, %v2433
        %v2439 = vmul.f32 %v2414, %v2438
        %v2440 = vmin.f32 %v2439, 1.0
        %v2441 = vmax.f32 %v2440, -1.0
        %v2442 = vmul.f32 %v2161, %v2161
        %v2443 = vmin.f32 16.0, %v2442
        %v2444 = vmul.f32 %v2443, 2.1237322e-06
        %v2445 = vadd.f32 %v2444, 0.00028619796
        %v2446 = vmul.f32 %v2443, %v2445
        %v2447 = vadd.f32 %v2446, 0.0036580483
        %v2448 = vmul.f32 %v2443, %v2447
        %v2449 = vadd.f32 %v2448, 0.05243302
        %v2450 = vmul.f32 %v2443, %v2449
        %v2451 = vadd.f32 %v2450, 0.18741608
        %v2452 = vmul.f32 %v2443, %v2451
        %v2453 = vadd.f32 %v2452, 1.1283791
        %v2454 = vmul.f32 %v2161, %v2453
        %v2455 = vmul.f32 %v2443, 3.8918573e-05
        %v2456 = vadd.f32 %v2455, 0.001143296
        %v2457 = vmul.f32 %v2443, %v2456
        %v2458 = vadd.f32 %v2457, 0.014752088
        %v2459 = vmul.f32 %v2443, %v2458
        %v2460 = vadd.f32 %v2459, 0.112945676
        %v2461 = vmul.f32 %v2443, %v2460
        %v2462 = vadd.f32 %v2461, 0.4994258
        %v2463 = vmul.f32 %v2443, %v2462
        %v2464 = vadd.f32 %v2463, 1.0
        %v2465 = vrcp.pop %v2464
        %v2466 = vmul.f32 %v2464, %v2465
        %v2467 = vsub.f32 1.0, %v2466
        %v2468 = vmul.f32 %v2465, %v2467
        %v2469 = vadd.f32 %v2465, %v2468
        %vm2470 = vweird.f32 %v2464
        %vm2471 = vweird.f32 %v2465
        %vm2472 = vmor %vm2470, %vm2471
        %v2473 = vsel %vm2472, %v2465, %v2469
        %v2474 = vand.u32 2147483647, %v2464
        %vm2475 = vcmp.eq.f32.partialorder %v2474, 8.507059e+37
        %v2476 = vand.u32 %v2464, 2147483648
        %v2477 = vor.u32 1.1754944e-38, %v2476
        %v2478 = vsel %vm2475, %v2477, %v2473
        %v2479 = vmul.f32 %v2454, %v2478
        %v2480 = vmin.f32 %v2479, 1.0
        %v2481 = vmax.f32 %v2480, -1.0
        %v2482 = vadd.f32 %v2201, 1.0
        %v2483 = vadd.f32 %v2241, 1.0
        %v2484 = vadd.f32 %v2281, 1.0
        %v2485 = vadd.f32 %v2321, 1.0
        %v2486 = vadd.f32 %v2361, 1.0
        %v2487 = vadd.f32 %v2401, 1.0
        %v2488 = vadd.f32 %v2441, 1.0
        %v2489 = vadd.f32 %v2481, 1.0
        %v2490 = vmul.f32 %v2146, %v2482
        %v2491 = vmul.f32 %v2147, %v2483
        %v2492 = vmul.f32 %v2148, %v2484
        %v2493 = vmul.f32 %v2149, %v2485
        %v2494 = vmul.f32 %v2150, %v2486
        %v2495 = vmul.f32 %v2151, %v2487
        %v2496 = vmul.f32 %v2152, %v2488
        %v2497 = vmul.f32 %v2153, %v2489
        %v2498 = vld [vmem:[%s10] sm:$0xff]
        %v2499 = vld [vmem:[%s10 + $0x8] sm:$0xff]
        %v2500 = vld [vmem:[%s10 + $0x10] sm:$0xff]
        %v2501 = vld [vmem:[%s10 + $0x18] sm:$0xff]
        %v2502 = vld [vmem:[%s10 + $0x20] sm:$0xff]
        %v2503 = vld [vmem:[%s10 + $0x28] sm:$0xff]
        %v2504 = vld [vmem:[%s10 + $0x30] sm:$0xff]
        %v2505 = vld [vmem:[%s10 + $0x38] sm:$0xff]
        %v2506 = vld [vmem:[%s10 + $0x40] sm:$0xff]
        %v2507 = vld [vmem:[%s10 + $0x48] sm:$0xff]
        %v2508 = vld [vmem:[%s10 + $0x50] sm:$0xff]
        %v2509 = vld [vmem:[%s10 + $0x58] sm:$0xff]
        %v2510 = vld [vmem:[%s10 + $0x60] sm:$0xff]
        %v2511 = vld [vmem:[%s10 + $0x68] sm:$0xff]
        %v2512 = vld [vmem:[%s10 + $0x70] sm:$0xff]
        %v2513 = vld [vmem:[%s10 + $0x78] sm:$0xff]
        %v2514 = vld [vmem:[#allocation16 + $0x2] sm:$0x3]
        %v2516 = vperm.slane %v2514, 0
        %v2517 = vperm.slane %v2514, 1
        %v2521 = vsel %vm1962, %v2490, 0
        %v2524 = vsel %vm1962, %v2491, 0
        %v2527 = vsel %vm1962, %v2492, 0
        %v2530 = vsel %vm1962, %v2493, 0
        %v2533 = vsel %vm1962, %v2494, 0
        %v2536 = vsel %vm1962, %v2495, 0
        %v2539 = vsel %vm1962, %v2496, 0
        %v2542 = vsel %vm1962, %v2497, 0
        %2544 = vmatpush.msra.mxu0 0.0
        %2545 = vmatpush.msra.mxu0 0.0
        %2546 = vmatpush.msra.mxu0 0.0
        %2547 = vmatpush.msra.mxu0 0.0
        %2548 = vmatpush.msra.mxu0 0.0
        %2549 = vmatpush.msra.mxu0 0.0
        %2550 = vmatpush.msra.mxu0 0.0
        %2551 = vmatpush.msra.mxu0 0.0
        %2552 = vmatpush.msra.mxu0 %v2512
        %2553 = vmatpush.msra.mxu0 %v2510
        %2554 = vmatpush.msra.mxu0 %v2508
        %2555 = vmatpush.msra.mxu0 %v2506
        %2556 = vmatpush.msra.mxu0 %v2504
        %2557 = vmatpush.msra.mxu0 %v2502
        %2558 = vmatpush.msra.mxu0 %v2500
        %2559 = vmatpush.msra.mxu0 %v2498
        %2560 = vmatmul.f32.gmra.mxu0 %v2521
        %v2561 = vpop.f32.mrf.mxu0
        %v2562 = vadd.f32 %v2516, %v2561
        %2563 = vmatmul.f32.gmra.mxu0 %v2524
        %v2564 = vpop.f32.mrf.mxu0
        %v2565 = vadd.f32 %v2516, %v2564
        %2566 = vmatmul.f32.gmra.mxu0 %v2527
        %v2567 = vpop.f32.mrf.mxu0
        %v2568 = vadd.f32 %v2516, %v2567
        %2569 = vmatmul.f32.gmra.mxu0 %v2530
        %v2570 = vpop.f32.mrf.mxu0
        %v2571 = vadd.f32 %v2516, %v2570
        %2572 = vmatmul.f32.gmra.mxu0 %v2533
        %v2573 = vpop.f32.mrf.mxu0
        %v2574 = vadd.f32 %v2516, %v2573
        %2575 = vmatmul.f32.gmra.mxu0 %v2536
        %v2576 = vpop.f32.mrf.mxu0
        %v2577 = vadd.f32 %v2516, %v2576
        %2578 = vmatmul.f32.gmra.mxu0 %v2539
        %v2579 = vpop.f32.mrf.mxu0
        %v2580 = vadd.f32 %v2516, %v2579
        %2581 = vmatmul.f32.gmra.mxu0 %v2542
        %v2582 = vpop.f32.mrf.mxu0
        %v2583 = vadd.f32 %v2516, %v2582
        %2584 = vdwg.mxu0
        %2585 = vmatpush.msra.mxu0 0.0
        %2586 = vmatpush.msra.mxu0 0.0
        %2587 = vmatpush.msra.mxu0 0.0
        %2588 = vmatpush.msra.mxu0 0.0
        %2589 = vmatpush.msra.mxu0 0.0
        %2590 = vmatpush.msra.mxu0 0.0
        %2591 = vmatpush.msra.mxu0 0.0
        %2592 = vmatpush.msra.mxu0 0.0
        %2593 = vmatpush.msra.mxu0 %v2513
        %2594 = vmatpush.msra.mxu0 %v2511
        %2595 = vmatpush.msra.mxu0 %v2509
        %2596 = vmatpush.msra.mxu0 %v2507
        %2597 = vmatpush.msra.mxu0 %v2505
        %2598 = vmatpush.msra.mxu0 %v2503
        %2599 = vmatpush.msra.mxu0 %v2501
        %2600 = vmatpush.msra.mxu0 %v2499
        %2601 = vmatmul.f32.gmra.mxu0 %v2521
        %v2602 = vpop.f32.mrf.mxu0
        %v2603 = vadd.f32 %v2517, %v2602
        %2604 = vmatmul.f32.gmra.mxu0 %v2524
        %v2605 = vpop.f32.mrf.mxu0
        %v2606 = vadd.f32 %v2517, %v2605
        %2607 = vmatmul.f32.gmra.mxu0 %v2527
        %v2608 = vpop.f32.mrf.mxu0
        %v2609 = vadd.f32 %v2517, %v2608
        %2610 = vmatmul.f32.gmra.mxu0 %v2530
        %v2611 = vpop.f32.mrf.mxu0
        %v2612 = vadd.f32 %v2517, %v2611
        %2613 = vmatmul.f32.gmra.mxu0 %v2533
        %v2614 = vpop.f32.mrf.mxu0
        %v2615 = vadd.f32 %v2517, %v2614
        %2616 = vmatmul.f32.gmra.mxu0 %v2536
        %v2617 = vpop.f32.mrf.mxu0
        %v2618 = vadd.f32 %v2517, %v2617
        %2619 = vmatmul.f32.gmra.mxu0 %v2539
        %v2620 = vpop.f32.mrf.mxu0
        %v2621 = vadd.f32 %v2517, %v2620
        %2622 = vmatmul.f32.gmra.mxu0 %v2542
        %v2623 = vpop.f32.mrf.mxu0
        %v2624 = vadd.f32 %v2517, %v2623
        %2625 = vdwg.mxu0
        %v2626 = vmul.f32 %v2562, 0.5
        %v2627 = vmul.f32 %v2603, 0.5
        %v2628 = vmul.f32 %v2565, 0.5
        %v2629 = vmul.f32 %v2606, 0.5
        %v2630 = vmul.f32 %v2568, 0.5
        %v2631 = vmul.f32 %v2609, 0.5
        %v2632 = vmul.f32 %v2571, 0.5
        %v2633 = vmul.f32 %v2612, 0.5
        %v2634 = vmul.f32 %v2574, 0.5
        %v2635 = vmul.f32 %v2615, 0.5
        %v2636 = vmul.f32 %v2577, 0.5
        %v2637 = vmul.f32 %v2618, 0.5
        %v2638 = vmul.f32 %v2580, 0.5
        %v2639 = vmul.f32 %v2621, 0.5
        %v2640 = vmul.f32 %v2583, 0.5
        %v2641 = vmul.f32 %v2624, 0.5
        %v2642 = vmul.f32 %v2562, 0.70710677
        %v2643 = vmul.f32 %v2603, 0.70710677
        %v2644 = vmul.f32 %v2565, 0.70710677
        %v2645 = vmul.f32 %v2606, 0.70710677
        %v2646 = vmul.f32 %v2568, 0.70710677
        %v2647 = vmul.f32 %v2609, 0.70710677
        %v2648 = vmul.f32 %v2571, 0.70710677
        %v2649 = vmul.f32 %v2612, 0.70710677
        %v2650 = vmul.f32 %v2574, 0.70710677
        %v2651 = vmul.f32 %v2615, 0.70710677
        %v2652 = vmul.f32 %v2577, 0.70710677
        %v2653 = vmul.f32 %v2618, 0.70710677
        %v2654 = vmul.f32 %v2580, 0.70710677
        %v2655 = vmul.f32 %v2621, 0.70710677
        %v2656 = vmul.f32 %v2583, 0.70710677
        %v2657 = vmul.f32 %v2624, 0.70710677
        %v2658 = vmul.f32 %v2642, %v2642
        %v2659 = vmin.f32 16.0, %v2658
        %v2660 = vmul.f32 %v2659, 2.1237322e-06
        %v2661 = vadd.f32 %v2660, 0.00028619796
        %v2662 = vmul.f32 %v2659, %v2661
        %v2663 = vadd.f32 %v2662, 0.0036580483
        %v2664 = vmul.f32 %v2659, %v2663
        %v2665 = vadd.f32 %v2664, 0.05243302
        %v2666 = vmul.f32 %v2659, %v2665
        %v2667 = vadd.f32 %v2666, 0.18741608
        %v2668 = vmul.f32 %v2659, %v2667
        %v2669 = vadd.f32 %v2668, 1.1283791
        %v2670 = vmul.f32 %v2642, %v2669
        %v2671 = vmul.f32 %v2659, 3.8918573e-05
        %v2672 = vadd.f32 %v2671, 0.001143296
        %v2673 = vmul.f32 %v2659, %v2672
        %v2674 = vadd.f32 %v2673, 0.014752088
        %v2675 = vmul.f32 %v2659, %v2674
        %v2676 = vadd.f32 %v2675, 0.112945676
        %v2677 = vmul.f32 %v2659, %v2676
        %v2678 = vadd.f32 %v2677, 0.4994258
        %v2679 = vmul.f32 %v2659, %v2678
        %v2680 = vadd.f32 %v2679, 1.0
        %v2681 = vrcp.pop %v2680
        %v2682 = vmul.f32 %v2680, %v2681
        %v2683 = vsub.f32 1.0, %v2682
        %v2684 = vmul.f32 %v2681, %v2683
        %v2685 = vadd.f32 %v2681, %v2684
        %vm2686 = vweird.f32 %v2680
        %vm2687 = vweird.f32 %v2681
        %vm2688 = vmor %vm2686, %vm2687
        %v2689 = vsel %vm2688, %v2681, %v2685
        %v2690 = vand.u32 2147483647, %v2680
        %vm2691 = vcmp.eq.f32.partialorder %v2690, 8.507059e+37
        %v2692 = vand.u32 %v2680, 2147483648
        %v2693 = vor.u32 1.1754944e-38, %v2692
        %v2694 = vsel %vm2691, %v2693, %v2689
        %v2695 = vmul.f32 %v2670, %v2694
        %v2696 = vmin.f32 %v2695, 1.0
        %v2697 = vmax.f32 %v2696, -1.0
        %v2698 = vmul.f32 %v2643, %v2643
        %v2699 = vmin.f32 16.0, %v2698
        %v2700 = vmul.f32 %v2699, 2.1237322e-06
        %v2701 = vadd.f32 %v2700, 0.00028619796
        %v2702 = vmul.f32 %v2699, %v2701
        %v2703 = vadd.f32 %v2702, 0.0036580483
        %v2704 = vmul.f32 %v2699, %v2703
        %v2705 = vadd.f32 %v2704, 0.05243302
        %v2706 = vmul.f32 %v2699, %v2705
        %v2707 = vadd.f32 %v2706, 0.18741608
        %v2708 = vmul.f32 %v2699, %v2707
        %v2709 = vadd.f32 %v2708, 1.1283791
        %v2710 = vmul.f32 %v2643, %v2709
        %v2711 = vmul.f32 %v2699, 3.8918573e-05
        %v2712 = vadd.f32 %v2711, 0.001143296
        %v2713 = vmul.f32 %v2699, %v2712
        %v2714 = vadd.f32 %v2713, 0.014752088
        %v2715 = vmul.f32 %v2699, %v2714
        %v2716 = vadd.f32 %v2715, 0.112945676
        %v2717 = vmul.f32 %v2699, %v2716
        %v2718 = vadd.f32 %v2717, 0.4994258
        %v2719 = vmul.f32 %v2699, %v2718
        %v2720 = vadd.f32 %v2719, 1.0
        %v2721 = vrcp.pop %v2720
        %v2722 = vmul.f32 %v2720, %v2721
        %v2723 = vsub.f32 1.0, %v2722
        %v2724 = vmul.f32 %v2721, %v2723
        %v2725 = vadd.f32 %v2721, %v2724
        %vm2726 = vweird.f32 %v2720
        %vm2727 = vweird.f32 %v2721
        %vm2728 = vmor %vm2726, %vm2727
        %v2729 = vsel %vm2728, %v2721, %v2725
        %v2730 = vand.u32 2147483647, %v2720
        %vm2731 = vcmp.eq.f32.partialorder %v2730, 8.507059e+37
        %v2732 = vand.u32 %v2720, 2147483648
        %v2733 = vor.u32 1.1754944e-38, %v2732
        %v2734 = vsel %vm2731, %v2733, %v2729
        %v2735 = vmul.f32 %v2710, %v2734
        %v2736 = vmin.f32 %v2735, 1.0
        %v2737 = vmax.f32 %v2736, -1.0
        %v2738 = vmul.f32 %v2644, %v2644
        %v2739 = vmin.f32 16.0, %v2738
        %v2740 = vmul.f32 %v2739, 2.1237322e-06
        %v2741 = vadd.f32 %v2740, 0.00028619796
        %v2742 = vmul.f32 %v2739, %v2741
        %v2743 = vadd.f32 %v2742, 0.0036580483
        %v2744 = vmul.f32 %v2739, %v2743
        %v2745 = vadd.f32 %v2744, 0.05243302
        %v2746 = vmul.f32 %v2739, %v2745
        %v2747 = vadd.f32 %v2746, 0.18741608
        %v2748 = vmul.f32 %v2739, %v2747
        %v2749 = vadd.f32 %v2748, 1.1283791
        %v2750 = vmul.f32 %v2644, %v2749
        %v2751 = vmul.f32 %v2739, 3.8918573e-05
        %v2752 = vadd.f32 %v2751, 0.001143296
        %v2753 = vmul.f32 %v2739, %v2752
        %v2754 = vadd.f32 %v2753, 0.014752088
        %v2755 = vmul.f32 %v2739, %v2754
        %v2756 = vadd.f32 %v2755, 0.112945676
        %v2757 = vmul.f32 %v2739, %v2756
        %v2758 = vadd.f32 %v2757, 0.4994258
        %v2759 = vmul.f32 %v2739, %v2758
        %v2760 = vadd.f32 %v2759, 1.0
        %v2761 = vrcp.pop %v2760
        %v2762 = vmul.f32 %v2760, %v2761
        %v2763 = vsub.f32 1.0, %v2762
        %v2764 = vmul.f32 %v2761, %v2763
        %v2765 = vadd.f32 %v2761, %v2764
        %vm2766 = vweird.f32 %v2760
        %vm2767 = vweird.f32 %v2761
        %vm2768 = vmor %vm2766, %vm2767
        %v2769 = vsel %vm2768, %v2761, %v2765
        %v2770 = vand.u32 2147483647, %v2760
        %vm2771 = vcmp.eq.f32.partialorder %v2770, 8.507059e+37
        %v2772 = vand.u32 %v2760, 2147483648
        %v2773 = vor.u32 1.1754944e-38, %v2772
        %v2774 = vsel %vm2771, %v2773, %v2769
        %v2775 = vmul.f32 %v2750, %v2774
        %v2776 = vmin.f32 %v2775, 1.0
        %v2777 = vmax.f32 %v2776, -1.0
        %v2778 = vmul.f32 %v2645, %v2645
        %v2779 = vmin.f32 16.0, %v2778
        %v2780 = vmul.f32 %v2779, 2.1237322e-06
        %v2781 = vadd.f32 %v2780, 0.00028619796
        %v2782 = vmul.f32 %v2779, %v2781
        %v2783 = vadd.f32 %v2782, 0.0036580483
        %v2784 = vmul.f32 %v2779, %v2783
        %v2785 = vadd.f32 %v2784, 0.05243302
        %v2786 = vmul.f32 %v2779, %v2785
        %v2787 = vadd.f32 %v2786, 0.18741608
        %v2788 = vmul.f32 %v2779, %v2787
        %v2789 = vadd.f32 %v2788, 1.1283791
        %v2790 = vmul.f32 %v2645, %v2789
        %v2791 = vmul.f32 %v2779, 3.8918573e-05
        %v2792 = vadd.f32 %v2791, 0.001143296
        %v2793 = vmul.f32 %v2779, %v2792
        %v2794 = vadd.f32 %v2793, 0.014752088
        %v2795 = vmul.f32 %v2779, %v2794
        %v2796 = vadd.f32 %v2795, 0.112945676
        %v2797 = vmul.f32 %v2779, %v2796
        %v2798 = vadd.f32 %v2797, 0.4994258
        %v2799 = vmul.f32 %v2779, %v2798
        %v2800 = vadd.f32 %v2799, 1.0
        %v2801 = vrcp.pop %v2800
        %v2802 = vmul.f32 %v2800, %v2801
        %v2803 = vsub.f32 1.0, %v2802
        %v2804 = vmul.f32 %v2801, %v2803
        %v2805 = vadd.f32 %v2801, %v2804
        %vm2806 = vweird.f32 %v2800
        %vm2807 = vweird.f32 %v2801
        %vm2808 = vmor %vm2806, %vm2807
        %v2809 = vsel %vm2808, %v2801, %v2805
        %v2810 = vand.u32 2147483647, %v2800
        %vm2811 = vcmp.eq.f32.partialorder %v2810, 8.507059e+37
        %v2812 = vand.u32 %v2800, 2147483648
        %v2813 = vor.u32 1.1754944e-38, %v2812
        %v2814 = vsel %vm2811, %v2813, %v2809
        %v2815 = vmul.f32 %v2790, %v2814
        %v2816 = vmin.f32 %v2815, 1.0
        %v2817 = vmax.f32 %v2816, -1.0
        %v2818 = vmul.f32 %v2646, %v2646
        %v2819 = vmin.f32 16.0, %v2818
        %v2820 = vmul.f32 %v2819, 2.1237322e-06
        %v2821 = vadd.f32 %v2820, 0.00028619796
        %v2822 = vmul.f32 %v2819, %v2821
        %v2823 = vadd.f32 %v2822, 0.0036580483
        %v2824 = vmul.f32 %v2819, %v2823
        %v2825 = vadd.f32 %v2824, 0.05243302
        %v2826 = vmul.f32 %v2819, %v2825
        %v2827 = vadd.f32 %v2826, 0.18741608
        %v2828 = vmul.f32 %v2819, %v2827
        %v2829 = vadd.f32 %v2828, 1.1283791
        %v2830 = vmul.f32 %v2646, %v2829
        %v2831 = vmul.f32 %v2819, 3.8918573e-05
        %v2832 = vadd.f32 %v2831, 0.001143296
        %v2833 = vmul.f32 %v2819, %v2832
        %v2834 = vadd.f32 %v2833, 0.014752088
        %v2835 = vmul.f32 %v2819, %v2834
        %v2836 = vadd.f32 %v2835, 0.112945676
        %v2837 = vmul.f32 %v2819, %v2836
        %v2838 = vadd.f32 %v2837, 0.4994258
        %v2839 = vmul.f32 %v2819, %v2838
        %v2840 = vadd.f32 %v2839, 1.0
        %v2841 = vrcp.pop %v2840
        %v2842 = vmul.f32 %v2840, %v2841
        %v2843 = vsub.f32 1.0, %v2842
        %v2844 = vmul.f32 %v2841, %v2843
        %v2845 = vadd.f32 %v2841, %v2844
        %vm2846 = vweird.f32 %v2840
        %vm2847 = vweird.f32 %v2841
        %vm2848 = vmor %vm2846, %vm2847
        %v2849 = vsel %vm2848, %v2841, %v2845
        %v2850 = vand.u32 2147483647, %v2840
        %vm2851 = vcmp.eq.f32.partialorder %v2850, 8.507059e+37
        %v2852 = vand.u32 %v2840, 2147483648
        %v2853 = vor.u32 1.1754944e-38, %v2852
        %v2854 = vsel %vm2851, %v2853, %v2849
        %v2855 = vmul.f32 %v2830, %v2854
        %v2856 = vmin.f32 %v2855, 1.0
        %v2857 = vmax.f32 %v2856, -1.0
        %v2858 = vmul.f32 %v2647, %v2647
        %v2859 = vmin.f32 16.0, %v2858
        %v2860 = vmul.f32 %v2859, 2.1237322e-06
        %v2861 = vadd.f32 %v2860, 0.00028619796
        %v2862 = vmul.f32 %v2859, %v2861
        %v2863 = vadd.f32 %v2862, 0.0036580483
        %v2864 = vmul.f32 %v2859, %v2863
        %v2865 = vadd.f32 %v2864, 0.05243302
        %v2866 = vmul.f32 %v2859, %v2865
        %v2867 = vadd.f32 %v2866, 0.18741608
        %v2868 = vmul.f32 %v2859, %v2867
        %v2869 = vadd.f32 %v2868, 1.1283791
        %v2870 = vmul.f32 %v2647, %v2869
        %v2871 = vmul.f32 %v2859, 3.8918573e-05
        %v2872 = vadd.f32 %v2871, 0.001143296
        %v2873 = vmul.f32 %v2859, %v2872
        %v2874 = vadd.f32 %v2873, 0.014752088
        %v2875 = vmul.f32 %v2859, %v2874
        %v2876 = vadd.f32 %v2875, 0.112945676
        %v2877 = vmul.f32 %v2859, %v2876
        %v2878 = vadd.f32 %v2877, 0.4994258
        %v2879 = vmul.f32 %v2859, %v2878
        %v2880 = vadd.f32 %v2879, 1.0
        %v2881 = vrcp.pop %v2880
        %v2882 = vmul.f32 %v2880, %v2881
        %v2883 = vsub.f32 1.0, %v2882
        %v2884 = vmul.f32 %v2881, %v2883
        %v2885 = vadd.f32 %v2881, %v2884
        %vm2886 = vweird.f32 %v2880
        %vm2887 = vweird.f32 %v2881
        %vm2888 = vmor %vm2886, %vm2887
        %v2889 = vsel %vm2888, %v2881, %v2885
        %v2890 = vand.u32 2147483647, %v2880
        %vm2891 = vcmp.eq.f32.partialorder %v2890, 8.507059e+37
        %v2892 = vand.u32 %v2880, 2147483648
        %v2893 = vor.u32 1.1754944e-38, %v2892
        %v2894 = vsel %vm2891, %v2893, %v2889
        %v2895 = vmul.f32 %v2870, %v2894
        %v2896 = vmin.f32 %v2895, 1.0
        %v2897 = vmax.f32 %v2896, -1.0
        %v2898 = vmul.f32 %v2648, %v2648
        %v2899 = vmin.f32 16.0, %v2898
        %v2900 = vmul.f32 %v2899, 2.1237322e-06
        %v2901 = vadd.f32 %v2900, 0.00028619796
        %v2902 = vmul.f32 %v2899, %v2901
        %v2903 = vadd.f32 %v2902, 0.0036580483
        %v2904 = vmul.f32 %v2899, %v2903
        %v2905 = vadd.f32 %v2904, 0.05243302
        %v2906 = vmul.f32 %v2899, %v2905
        %v2907 = vadd.f32 %v2906, 0.18741608
        %v2908 = vmul.f32 %v2899, %v2907
        %v2909 = vadd.f32 %v2908, 1.1283791
        %v2910 = vmul.f32 %v2648, %v2909
        %v2911 = vmul.f32 %v2899, 3.8918573e-05
        %v2912 = vadd.f32 %v2911, 0.001143296
        %v2913 = vmul.f32 %v2899, %v2912
        %v2914 = vadd.f32 %v2913, 0.014752088
        %v2915 = vmul.f32 %v2899, %v2914
        %v2916 = vadd.f32 %v2915, 0.112945676
        %v2917 = vmul.f32 %v2899, %v2916
        %v2918 = vadd.f32 %v2917, 0.4994258
        %v2919 = vmul.f32 %v2899, %v2918
        %v2920 = vadd.f32 %v2919, 1.0
        %v2921 = vrcp.pop %v2920
        %v2922 = vmul.f32 %v2920, %v2921
        %v2923 = vsub.f32 1.0, %v2922
        %v2924 = vmul.f32 %v2921, %v2923
        %v2925 = vadd.f32 %v2921, %v2924
        %vm2926 = vweird.f32 %v2920
        %vm2927 = vweird.f32 %v2921
        %vm2928 = vmor %vm2926, %vm2927
        %v2929 = vsel %vm2928, %v2921, %v2925
        %v2930 = vand.u32 2147483647, %v2920
        %vm2931 = vcmp.eq.f32.partialorder %v2930, 8.507059e+37
        %v2932 = vand.u32 %v2920, 2147483648
        %v2933 = vor.u32 1.1754944e-38, %v2932
        %v2934 = vsel %vm2931, %v2933, %v2929
        %v2935 = vmul.f32 %v2910, %v2934
        %v2936 = vmin.f32 %v2935, 1.0
        %v2937 = vmax.f32 %v2936, -1.0
        %v2938 = vmul.f32 %v2649, %v2649
        %v2939 = vmin.f32 16.0, %v2938
        %v2940 = vmul.f32 %v2939, 2.1237322e-06
        %v2941 = vadd.f32 %v2940, 0.00028619796
        %v2942 = vmul.f32 %v2939, %v2941
        %v2943 = vadd.f32 %v2942, 0.0036580483
        %v2944 = vmul.f32 %v2939, %v2943
        %v2945 = vadd.f32 %v2944, 0.05243302
        %v2946 = vmul.f32 %v2939, %v2945
        %v2947 = vadd.f32 %v2946, 0.18741608
        %v2948 = vmul.f32 %v2939, %v2947
        %v2949 = vadd.f32 %v2948, 1.1283791
        %v2950 = vmul.f32 %v2649, %v2949
        %v2951 = vmul.f32 %v2939, 3.8918573e-05
        %v2952 = vadd.f32 %v2951, 0.001143296
        %v2953 = vmul.f32 %v2939, %v2952
        %v2954 = vadd.f32 %v2953, 0.014752088
        %v2955 = vmul.f32 %v2939, %v2954
        %v2956 = vadd.f32 %v2955, 0.112945676
        %v2957 = vmul.f32 %v2939, %v2956
        %v2958 = vadd.f32 %v2957, 0.4994258
        %v2959 = vmul.f32 %v2939, %v2958
        %v2960 = vadd.f32 %v2959, 1.0
        %v2961 = vrcp.pop %v2960
        %v2962 = vmul.f32 %v2960, %v2961
        %v2963 = vsub.f32 1.0, %v2962
        %v2964 = vmul.f32 %v2961, %v2963
        %v2965 = vadd.f32 %v2961, %v2964
        %vm2966 = vweird.f32 %v2960
        %vm2967 = vweird.f32 %v2961
        %vm2968 = vmor %vm2966, %vm2967
        %v2969 = vsel %vm2968, %v2961, %v2965
        %v2970 = vand.u32 2147483647, %v2960
        %vm2971 = vcmp.eq.f32.partialorder %v2970, 8.507059e+37
        %v2972 = vand.u32 %v2960, 2147483648
        %v2973 = vor.u32 1.1754944e-38, %v2972
        %v2974 = vsel %vm2971, %v2973, %v2969
        %v2975 = vmul.f32 %v2950, %v2974
        %v2976 = vmin.f32 %v2975, 1.0
        %v2977 = vmax.f32 %v2976, -1.0
        %v2978 = vmul.f32 %v2650, %v2650
        %v2979 = vmin.f32 16.0, %v2978
        %v2980 = vmul.f32 %v2979, 2.1237322e-06
        %v2981 = vadd.f32 %v2980, 0.00028619796
        %v2982 = vmul.f32 %v2979, %v2981
        %v2983 = vadd.f32 %v2982, 0.0036580483
        %v2984 = vmul.f32 %v2979, %v2983
        %v2985 = vadd.f32 %v2984, 0.05243302
        %v2986 = vmul.f32 %v2979, %v2985
        %v2987 = vadd.f32 %v2986, 0.18741608
        %v2988 = vmul.f32 %v2979, %v2987
        %v2989 = vadd.f32 %v2988, 1.1283791
        %v2990 = vmul.f32 %v2650, %v2989
        %v2991 = vmul.f32 %v2979, 3.8918573e-05
        %v2992 = vadd.f32 %v2991, 0.001143296
        %v2993 = vmul.f32 %v2979, %v2992
        %v2994 = vadd.f32 %v2993, 0.014752088
        %v2995 = vmul.f32 %v2979, %v2994
        %v2996 = vadd.f32 %v2995, 0.112945676
        %v2997 = vmul.f32 %v2979, %v2996
        %v2998 = vadd.f32 %v2997, 0.4994258
        %v2999 = vmul.f32 %v2979, %v2998
        %v3000 = vadd.f32 %v2999, 1.0
        %v3001 = vrcp.pop %v3000
        %v3002 = vmul.f32 %v3000, %v3001
        %v3003 = vsub.f32 1.0, %v3002
        %v3004 = vmul.f32 %v3001, %v3003
        %v3005 = vadd.f32 %v3001, %v3004
        %vm3006 = vweird.f32 %v3000
        %vm3007 = vweird.f32 %v3001
        %vm3008 = vmor %vm3006, %vm3007
        %v3009 = vsel %vm3008, %v3001, %v3005
        %v3010 = vand.u32 2147483647, %v3000
        %vm3011 = vcmp.eq.f32.partialorder %v3010, 8.507059e+37
        %v3012 = vand.u32 %v3000, 2147483648
        %v3013 = vor.u32 1.1754944e-38, %v3012
        %v3014 = vsel %vm3011, %v3013, %v3009
        %v3015 = vmul.f32 %v2990, %v3014
        %v3016 = vmin.f32 %v3015, 1.0
        %v3017 = vmax.f32 %v3016, -1.0
        %v3018 = vmul.f32 %v2651, %v2651
        %v3019 = vmin.f32 16.0, %v3018
        %v3020 = vmul.f32 %v3019, 2.1237322e-06
        %v3021 = vadd.f32 %v3020, 0.00028619796
        %v3022 = vmul.f32 %v3019, %v3021
        %v3023 = vadd.f32 %v3022, 0.0036580483
        %v3024 = vmul.f32 %v3019, %v3023
        %v3025 = vadd.f32 %v3024, 0.05243302
        %v3026 = vmul.f32 %v3019, %v3025
        %v3027 = vadd.f32 %v3026, 0.18741608
        %v3028 = vmul.f32 %v3019, %v3027
        %v3029 = vadd.f32 %v3028, 1.1283791
        %v3030 = vmul.f32 %v2651, %v3029
        %v3031 = vmul.f32 %v3019, 3.8918573e-05
        %v3032 = vadd.f32 %v3031, 0.001143296
        %v3033 = vmul.f32 %v3019, %v3032
        %v3034 = vadd.f32 %v3033, 0.014752088
        %v3035 = vmul.f32 %v3019, %v3034
        %v3036 = vadd.f32 %v3035, 0.112945676
        %v3037 = vmul.f32 %v3019, %v3036
        %v3038 = vadd.f32 %v3037, 0.4994258
        %v3039 = vmul.f32 %v3019, %v3038
        %v3040 = vadd.f32 %v3039, 1.0
        %v3041 = vrcp.pop %v3040
        %v3042 = vmul.f32 %v3040, %v3041
        %v3043 = vsub.f32 1.0, %v3042
        %v3044 = vmul.f32 %v3041, %v3043
        %v3045 = vadd.f32 %v3041, %v3044
        %vm3046 = vweird.f32 %v3040
        %vm3047 = vweird.f32 %v3041
        %vm3048 = vmor %vm3046, %vm3047
        %v3049 = vsel %vm3048, %v3041, %v3045
        %v3050 = vand.u32 2147483647, %v3040
        %vm3051 = vcmp.eq.f32.partialorder %v3050, 8.507059e+37
        %v3052 = vand.u32 %v3040, 2147483648
        %v3053 = vor.u32 1.1754944e-38, %v3052
        %v3054 = vsel %vm3051, %v3053, %v3049
        %v3055 = vmul.f32 %v3030, %v3054
        %v3056 = vmin.f32 %v3055, 1.0
        %v3057 = vmax.f32 %v3056, -1.0
        %v3058 = vmul.f32 %v2652, %v2652
        %v3059 = vmin.f32 16.0, %v3058
        %v3060 = vmul.f32 %v3059, 2.1237322e-06
        %v3061 = vadd.f32 %v3060, 0.00028619796
        %v3062 = vmul.f32 %v3059, %v3061
        %v3063 = vadd.f32 %v3062, 0.0036580483
        %v3064 = vmul.f32 %v3059, %v3063
        %v3065 = vadd.f32 %v3064, 0.05243302
        %v3066 = vmul.f32 %v3059, %v3065
        %v3067 = vadd.f32 %v3066, 0.18741608
        %v3068 = vmul.f32 %v3059, %v3067
        %v3069 = vadd.f32 %v3068, 1.1283791
        %v3070 = vmul.f32 %v2652, %v3069
        %v3071 = vmul.f32 %v3059, 3.8918573e-05
        %v3072 = vadd.f32 %v3071, 0.001143296
        %v3073 = vmul.f32 %v3059, %v3072
        %v3074 = vadd.f32 %v3073, 0.014752088
        %v3075 = vmul.f32 %v3059, %v3074
        %v3076 = vadd.f32 %v3075, 0.112945676
        %v3077 = vmul.f32 %v3059, %v3076
        %v3078 = vadd.f32 %v3077, 0.4994258
        %v3079 = vmul.f32 %v3059, %v3078
        %v3080 = vadd.f32 %v3079, 1.0
        %v3081 = vrcp.pop %v3080
        %v3082 = vmul.f32 %v3080, %v3081
        %v3083 = vsub.f32 1.0, %v3082
        %v3084 = vmul.f32 %v3081, %v3083
        %v3085 = vadd.f32 %v3081, %v3084
        %vm3086 = vweird.f32 %v3080
        %vm3087 = vweird.f32 %v3081
        %vm3088 = vmor %vm3086, %vm3087
        %v3089 = vsel %vm3088, %v3081, %v3085
        %v3090 = vand.u32 2147483647, %v3080
        %vm3091 = vcmp.eq.f32.partialorder %v3090, 8.507059e+37
        %v3092 = vand.u32 %v3080, 2147483648
        %v3093 = vor.u32 1.1754944e-38, %v3092
        %v3094 = vsel %vm3091, %v3093, %v3089
        %v3095 = vmul.f32 %v3070, %v3094
        %v3096 = vmin.f32 %v3095, 1.0
        %v3097 = vmax.f32 %v3096, -1.0
        %v3098 = vmul.f32 %v2653, %v2653
        %v3099 = vmin.f32 16.0, %v3098
        %v3100 = vmul.f32 %v3099, 2.1237322e-06
        %v3101 = vadd.f32 %v3100, 0.00028619796
        %v3102 = vmul.f32 %v3099, %v3101
        %v3103 = vadd.f32 %v3102, 0.0036580483
        %v3104 = vmul.f32 %v3099, %v3103
        %v3105 = vadd.f32 %v3104, 0.05243302
        %v3106 = vmul.f32 %v3099, %v3105
        %v3107 = vadd.f32 %v3106, 0.18741608
        %v3108 = vmul.f32 %v3099, %v3107
        %v3109 = vadd.f32 %v3108, 1.1283791
        %v3110 = vmul.f32 %v2653, %v3109
        %v3111 = vmul.f32 %v3099, 3.8918573e-05
        %v3112 = vadd.f32 %v3111, 0.001143296
        %v3113 = vmul.f32 %v3099, %v3112
        %v3114 = vadd.f32 %v3113, 0.014752088
        %v3115 = vmul.f32 %v3099, %v3114
        %v3116 = vadd.f32 %v3115, 0.112945676
        %v3117 = vmul.f32 %v3099, %v3116
        %v3118 = vadd.f32 %v3117, 0.4994258
        %v3119 = vmul.f32 %v3099, %v3118
        %v3120 = vadd.f32 %v3119, 1.0
        %v3121 = vrcp.pop %v3120
        %v3122 = vmul.f32 %v3120, %v3121
        %v3123 = vsub.f32 1.0, %v3122
        %v3124 = vmul.f32 %v3121, %v3123
        %v3125 = vadd.f32 %v3121, %v3124
        %vm3126 = vweird.f32 %v3120
        %vm3127 = vweird.f32 %v3121
        %vm3128 = vmor %vm3126, %vm3127
        %v3129 = vsel %vm3128, %v3121, %v3125
        %v3130 = vand.u32 2147483647, %v3120
        %vm3131 = vcmp.eq.f32.partialorder %v3130, 8.507059e+37
        %v3132 = vand.u32 %v3120, 2147483648
        %v3133 = vor.u32 1.1754944e-38, %v3132
        %v3134 = vsel %vm3131, %v3133, %v3129
        %v3135 = vmul.f32 %v3110, %v3134
        %v3136 = vmin.f32 %v3135, 1.0
        %v3137 = vmax.f32 %v3136, -1.0
        %v3138 = vmul.f32 %v2654, %v2654
        %v3139 = vmin.f32 16.0, %v3138
        %v3140 = vmul.f32 %v3139, 2.1237322e-06
        %v3141 = vadd.f32 %v3140, 0.00028619796
        %v3142 = vmul.f32 %v3139, %v3141
        %v3143 = vadd.f32 %v3142, 0.0036580483
        %v3144 = vmul.f32 %v3139, %v3143
        %v3145 = vadd.f32 %v3144, 0.05243302
        %v3146 = vmul.f32 %v3139, %v3145
        %v3147 = vadd.f32 %v3146, 0.18741608
        %v3148 = vmul.f32 %v3139, %v3147
        %v3149 = vadd.f32 %v3148, 1.1283791
        %v3150 = vmul.f32 %v2654, %v3149
        %v3151 = vmul.f32 %v3139, 3.8918573e-05
        %v3152 = vadd.f32 %v3151, 0.001143296
        %v3153 = vmul.f32 %v3139, %v3152
        %v3154 = vadd.f32 %v3153, 0.014752088
        %v3155 = vmul.f32 %v3139, %v3154
        %v3156 = vadd.f32 %v3155, 0.112945676
        %v3157 = vmul.f32 %v3139, %v3156
        %v3158 = vadd.f32 %v3157, 0.4994258
        %v3159 = vmul.f32 %v3139, %v3158
        %v3160 = vadd.f32 %v3159, 1.0
        %v3161 = vrcp.pop %v3160
        %v3162 = vmul.f32 %v3160, %v3161
        %v3163 = vsub.f32 1.0, %v3162
        %v3164 = vmul.f32 %v3161, %v3163
        %v3165 = vadd.f32 %v3161, %v3164
        %vm3166 = vweird.f32 %v3160
        %vm3167 = vweird.f32 %v3161
        %vm3168 = vmor %vm3166, %vm3167
        %v3169 = vsel %vm3168, %v3161, %v3165
        %v3170 = vand.u32 2147483647, %v3160
        %vm3171 = vcmp.eq.f32.partialorder %v3170, 8.507059e+37
        %v3172 = vand.u32 %v3160, 2147483648
        %v3173 = vor.u32 1.1754944e-38, %v3172
        %v3174 = vsel %vm3171, %v3173, %v3169
        %v3175 = vmul.f32 %v3150, %v3174
        %v3176 = vmin.f32 %v3175, 1.0
        %v3177 = vmax.f32 %v3176, -1.0
        %v3178 = vmul.f32 %v2655, %v2655
        %v3179 = vmin.f32 16.0, %v3178
        %v3180 = vmul.f32 %v3179, 2.1237322e-06
        %v3181 = vadd.f32 %v3180, 0.00028619796
        %v3182 = vmul.f32 %v3179, %v3181
        %v3183 = vadd.f32 %v3182, 0.0036580483
        %v3184 = vmul.f32 %v3179, %v3183
        %v3185 = vadd.f32 %v3184, 0.05243302
        %v3186 = vmul.f32 %v3179, %v3185
        %v3187 = vadd.f32 %v3186, 0.18741608
        %v3188 = vmul.f32 %v3179, %v3187
        %v3189 = vadd.f32 %v3188, 1.1283791
        %v3190 = vmul.f32 %v2655, %v3189
        %v3191 = vmul.f32 %v3179, 3.8918573e-05
        %v3192 = vadd.f32 %v3191, 0.001143296
        %v3193 = vmul.f32 %v3179, %v3192
        %v3194 = vadd.f32 %v3193, 0.014752088
        %v3195 = vmul.f32 %v3179, %v3194
        %v3196 = vadd.f32 %v3195, 0.112945676
        %v3197 = vmul.f32 %v3179, %v3196
        %v3198 = vadd.f32 %v3197, 0.4994258
        %v3199 = vmul.f32 %v3179, %v3198
        %v3200 = vadd.f32 %v3199, 1.0
        %v3201 = vrcp.pop %v3200
        %v3202 = vmul.f32 %v3200, %v3201
        %v3203 = vsub.f32 1.0, %v3202
        %v3204 = vmul.f32 %v3201, %v3203
        %v3205 = vadd.f32 %v3201, %v3204
        %vm3206 = vweird.f32 %v3200
        %vm3207 = vweird.f32 %v3201
        %vm3208 = vmor %vm3206, %vm3207
        %v3209 = vsel %vm3208, %v3201, %v3205
        %v3210 = vand.u32 2147483647, %v3200
        %vm3211 = vcmp.eq.f32.partialorder %v3210, 8.507059e+37
        %v3212 = vand.u32 %v3200, 2147483648
        %v3213 = vor.u32 1.1754944e-38, %v3212
        %v3214 = vsel %vm3211, %v3213, %v3209
        %v3215 = vmul.f32 %v3190, %v3214
        %v3216 = vmin.f32 %v3215, 1.0
        %v3217 = vmax.f32 %v3216, -1.0
        %v3218 = vmul.f32 %v2656, %v2656
        %v3219 = vmin.f32 16.0, %v3218
        %v3220 = vmul.f32 %v3219, 2.1237322e-06
        %v3221 = vadd.f32 %v3220, 0.00028619796
        %v3222 = vmul.f32 %v3219, %v3221
        %v3223 = vadd.f32 %v3222, 0.0036580483
        %v3224 = vmul.f32 %v3219, %v3223
        %v3225 = vadd.f32 %v3224, 0.05243302
        %v3226 = vmul.f32 %v3219, %v3225
        %v3227 = vadd.f32 %v3226, 0.18741608
        %v3228 = vmul.f32 %v3219, %v3227
        %v3229 = vadd.f32 %v3228, 1.1283791
        %v3230 = vmul.f32 %v2656, %v3229
        %v3231 = vmul.f32 %v3219, 3.8918573e-05
        %v3232 = vadd.f32 %v3231, 0.001143296
        %v3233 = vmul.f32 %v3219, %v3232
        %v3234 = vadd.f32 %v3233, 0.014752088
        %v3235 = vmul.f32 %v3219, %v3234
        %v3236 = vadd.f32 %v3235, 0.112945676
        %v3237 = vmul.f32 %v3219, %v3236
        %v3238 = vadd.f32 %v3237, 0.4994258
        %v3239 = vmul.f32 %v3219, %v3238
        %v3240 = vadd.f32 %v3239, 1.0
        %v3241 = vrcp.pop %v3240
        %v3242 = vmul.f32 %v3240, %v3241
        %v3243 = vsub.f32 1.0, %v3242
        %v3244 = vmul.f32 %v3241, %v3243
        %v3245 = vadd.f32 %v3241, %v3244
        %vm3246 = vweird.f32 %v3240
        %vm3247 = vweird.f32 %v3241
        %vm3248 = vmor %vm3246, %vm3247
        %v3249 = vsel %vm3248, %v3241, %v3245
        %v3250 = vand.u32 2147483647, %v3240
        %vm3251 = vcmp.eq.f32.partialorder %v3250, 8.507059e+37
        %v3252 = vand.u32 %v3240, 2147483648
        %v3253 = vor.u32 1.1754944e-38, %v3252
        %v3254 = vsel %vm3251, %v3253, %v3249
        %v3255 = vmul.f32 %v3230, %v3254
        %v3256 = vmin.f32 %v3255, 1.0
        %v3257 = vmax.f32 %v3256, -1.0
        %v3258 = vmul.f32 %v2657, %v2657
        %v3259 = vmin.f32 16.0, %v3258
        %v3260 = vmul.f32 %v3259, 2.1237322e-06
        %v3261 = vadd.f32 %v3260, 0.00028619796
        %v3262 = vmul.f32 %v3259, %v3261
        %v3263 = vadd.f32 %v3262, 0.0036580483
        %v3264 = vmul.f32 %v3259, %v3263
        %v3265 = vadd.f32 %v3264, 0.05243302
        %v3266 = vmul.f32 %v3259, %v3265
        %v3267 = vadd.f32 %v3266, 0.18741608
        %v3268 = vmul.f32 %v3259, %v3267
        %v3269 = vadd.f32 %v3268, 1.1283791
        %v3270 = vmul.f32 %v2657, %v3269
        %v3271 = vmul.f32 %v3259, 3.8918573e-05
        %v3272 = vadd.f32 %v3271, 0.001143296
        %v3273 = vmul.f32 %v3259, %v3272
        %v3274 = vadd.f32 %v3273, 0.014752088
        %v3275 = vmul.f32 %v3259, %v3274
        %v3276 = vadd.f32 %v3275, 0.112945676
        %v3277 = vmul.f32 %v3259, %v3276
        %v3278 = vadd.f32 %v3277, 0.4994258
        %v3279 = vmul.f32 %v3259, %v3278
        %v3280 = vadd.f32 %v3279, 1.0
        %v3281 = vrcp.pop %v3280
        %v3282 = vmul.f32 %v3280, %v3281
        %v3283 = vsub.f32 1.0, %v3282
        %v3284 = vmul.f32 %v3281, %v3283
        %v3285 = vadd.f32 %v3281, %v3284
        %vm3286 = vweird.f32 %v3280
        %vm3287 = vweird.f32 %v3281
        %vm3288 = vmor %vm3286, %vm3287
        %v3289 = vsel %vm3288, %v3281, %v3285
        %v3290 = vand.u32 2147483647, %v3280
        %vm3291 = vcmp.eq.f32.partialorder %v3290, 8.507059e+37
        %v3292 = vand.u32 %v3280, 2147483648
        %v3293 = vor.u32 1.1754944e-38, %v3292
        %v3294 = vsel %vm3291, %v3293, %v3289
        %v3295 = vmul.f32 %v3270, %v3294
        %v3296 = vmin.f32 %v3295, 1.0
        %v3297 = vmax.f32 %v3296, -1.0
        %v3298 = vadd.f32 %v2697, 1.0
        %v3299 = vadd.f32 %v2737, 1.0
        %v3300 = vadd.f32 %v2777, 1.0
        %v3301 = vadd.f32 %v2817, 1.0
        %v3302 = vadd.f32 %v2857, 1.0
        %v3303 = vadd.f32 %v2897, 1.0
        %v3304 = vadd.f32 %v2937, 1.0
        %v3305 = vadd.f32 %v2977, 1.0
        %v3306 = vadd.f32 %v3017, 1.0
        %v3307 = vadd.f32 %v3057, 1.0
        %v3308 = vadd.f32 %v3097, 1.0
        %v3309 = vadd.f32 %v3137, 1.0
        %v3310 = vadd.f32 %v3177, 1.0
        %v3311 = vadd.f32 %v3217, 1.0
        %v3312 = vadd.f32 %v3257, 1.0
        %v3313 = vadd.f32 %v3297, 1.0
        %v3314 = vmul.f32 %v2626, %v3298
        %v3315 = vmul.f32 %v2627, %v3299
        %v3316 = vmul.f32 %v2628, %v3300
        %v3317 = vmul.f32 %v2629, %v3301
        %v3318 = vmul.f32 %v2630, %v3302
        %v3319 = vmul.f32 %v2631, %v3303
        %v3320 = vmul.f32 %v2632, %v3304
        %v3321 = vmul.f32 %v2633, %v3305
        %v3322 = vmul.f32 %v2634, %v3306
        %v3323 = vmul.f32 %v2635, %v3307
        %v3324 = vmul.f32 %v2636, %v3308
        %v3325 = vmul.f32 %v2637, %v3309
        %v3326 = vmul.f32 %v2638, %v3310
        %v3327 = vmul.f32 %v2639, %v3311
        %v3328 = vmul.f32 %v2640, %v3312
        %v3329 = vmul.f32 %v2641, %v3313
        %v3330 = vld [vmem:[%s760] sm:$0xff]
        %v3331 = vld [vmem:[%s760 + $0x8] sm:$0xff]
        %v3332 = vld [vmem:[%s760 + $0x10] sm:$0xff]
        %v3333 = vld [vmem:[%s760 + $0x18] sm:$0xff]
        %v3334 = vld [vmem:[%s760 + $0x20] sm:$0xff]
        %v3335 = vld [vmem:[%s760 + $0x28] sm:$0xff]
        %v3336 = vld [vmem:[%s760 + $0x30] sm:$0xff]
        %v3337 = vld [vmem:[%s760 + $0x38] sm:$0xff]
        %v3338 = vld [vmem:[%s760 + $0x40] sm:$0xff]
        %v3339 = vld [vmem:[%s760 + $0x48] sm:$0xff]
        %v3340 = vld [vmem:[%s760 + $0x50] sm:$0xff]
        %v3341 = vld [vmem:[%s760 + $0x58] sm:$0xff]
        %v3342 = vld [vmem:[%s760 + $0x60] sm:$0xff]
        %v3343 = vld [vmem:[%s760 + $0x68] sm:$0xff]
        %v3344 = vld [vmem:[%s760 + $0x70] sm:$0xff]
        %v3345 = vld [vmem:[%s760 + $0x78] sm:$0xff]
        %v3346 = vld [vmem:[%s760 + $0x80] sm:$0xff]
        %v3347 = vld [vmem:[%s760 + $0x88] sm:$0xff]
        %v3348 = vld [vmem:[%s760 + $0x90] sm:$0xff]
        %v3349 = vld [vmem:[%s760 + $0x98] sm:$0xff]
        %v3350 = vld [vmem:[%s760 + $0xa0] sm:$0xff]
        %v3351 = vld [vmem:[%s760 + $0xa8] sm:$0xff]
        %v3352 = vld [vmem:[%s760 + $0xb0] sm:$0xff]
        %v3353 = vld [vmem:[%s760 + $0xb8] sm:$0xff]
        %v3354 = vld [vmem:[%s11] sm:$0xff]
        %v3355 = vld [vmem:[%s11 + $0x8] sm:$0xff]
        %v3356 = vld [vmem:[%s11 + $0x10] sm:$0xff]
        %v3357 = vld [vmem:[%s11 + $0x18] sm:$0xff]
        %v3358 = vld [vmem:[%s11 + $0x20] sm:$0xff]
        %v3359 = vld [vmem:[%s11 + $0x28] sm:$0xff]
        %v3360 = vld [vmem:[%s11 + $0x30] sm:$0xff]
        %v3361 = vld [vmem:[%s11 + $0x38] sm:$0xff]
        %v3362 = vld [vmem:[%s11 + $0x40] sm:$0xff]
        %v3363 = vld [vmem:[%s11 + $0x48] sm:$0xff]
        %v3364 = vld [vmem:[%s11 + $0x50] sm:$0xff]
        %v3365 = vld [vmem:[%s11 + $0x58] sm:$0xff]
        %v3366 = vld [vmem:[%s11 + $0x60] sm:$0xff]
        %v3367 = vld [vmem:[%s11 + $0x68] sm:$0xff]
        %v3368 = vld [vmem:[%s11 + $0x70] sm:$0xff]
        %v3369 = vld [vmem:[%s11 + $0x78] sm:$0xff]
        %v3370 = vld [vmem:[%s11 + $0x80] sm:$0xff]
        %v3371 = vld [vmem:[%s11 + $0x88] sm:$0xff]
        %v3372 = vld [vmem:[%s11 + $0x90] sm:$0xff]
        %v3373 = vld [vmem:[%s11 + $0x98] sm:$0xff]
        %v3374 = vld [vmem:[%s11 + $0xa0] sm:$0xff]
        %v3375 = vld [vmem:[%s11 + $0xa8] sm:$0xff]
        %v3376 = vld [vmem:[%s11 + $0xb0] sm:$0xff]
        %v3377 = vld [vmem:[%s11 + $0xb8] sm:$0xff]
        %v3378 = vld [vmem:[%s11 + $0xc0] sm:$0xff]
        %v3379 = vld [vmem:[%s11 + $0xc8] sm:$0xff]
        %v3380 = vld [vmem:[%s11 + $0xd0] sm:$0xff]
        %v3381 = vld [vmem:[%s11 + $0xd8] sm:$0xff]
        %v3382 = vld [vmem:[%s11 + $0xe0] sm:$0xff]
        %v3383 = vld [vmem:[%s11 + $0xe8] sm:$0xff]
        %v3384 = vld [vmem:[%s11 + $0xf0] sm:$0xff]
        %v3385 = vld [vmem:[%s11 + $0xf8] sm:$0xff]
        %v3386 = vld [vmem:[%s11 + $0x100] sm:$0xff]
        %v3387 = vld [vmem:[%s11 + $0x108] sm:$0xff]
        %v3388 = vld [vmem:[%s11 + $0x110] sm:$0xff]
        %v3389 = vld [vmem:[%s11 + $0x118] sm:$0xff]
        %v3390 = vld [vmem:[%s11 + $0x120] sm:$0xff]
        %v3391 = vld [vmem:[%s11 + $0x128] sm:$0xff]
        %v3392 = vld [vmem:[%s11 + $0x130] sm:$0xff]
        %v3393 = vld [vmem:[%s11 + $0x138] sm:$0xff]
        %v3394 = vld [vmem:[%s11 + $0x140] sm:$0xff]
        %v3395 = vld [vmem:[%s11 + $0x148] sm:$0xff]
        %v3396 = vld [vmem:[%s11 + $0x150] sm:$0xff]
        %v3397 = vld [vmem:[%s11 + $0x158] sm:$0xff]
        %v3398 = vld [vmem:[%s11 + $0x160] sm:$0xff]
        %v3399 = vld [vmem:[%s11 + $0x168] sm:$0xff]
        %v3400 = vld [vmem:[%s11 + $0x170] sm:$0xff]
        %v3401 = vld [vmem:[%s11 + $0x178] sm:$0xff]
        %v3402 = vld [vmem:[#allocation16 + $0x4] sm:$0x1]
        %v3404 = vperm.slane %v3402, 0
        %3406 = vmatpush.msra.mxu0 %v3369
        %3407 = vmatpush.msra.mxu0 %v3368
        %3408 = vmatpush.msra.mxu0 %v3367
        %3409 = vmatpush.msra.mxu0 %v3366
        %3410 = vmatpush.msra.mxu0 %v3365
        %3411 = vmatpush.msra.mxu0 %v3364
        %3412 = vmatpush.msra.mxu0 %v3363
        %3413 = vmatpush.msra.mxu0 %v3362
        %3414 = vmatpush.msra.mxu0 %v3361
        %3415 = vmatpush.msra.mxu0 %v3360
        %3416 = vmatpush.msra.mxu0 %v3359
        %3417 = vmatpush.msra.mxu0 %v3358
        %3418 = vmatpush.msra.mxu0 %v3357
        %3419 = vmatpush.msra.mxu0 %v3356
        %3420 = vmatpush.msra.mxu0 %v3355
        %3421 = vmatpush.msra.mxu0 %v3354
        %3422 = vmatmul.f32.gmra.mxu0 %v3330
        %v3423 = vpop.f32.mrf.mxu0
        %v3424 = vadd.f32 %v3404, %v3423
        %3425 = vmatmul.f32.gmra.mxu0 %v3333
        %v3426 = vpop.f32.mrf.mxu0
        %v3427 = vadd.f32 %v3404, %v3426
        %3428 = vmatmul.f32.gmra.mxu0 %v3336
        %v3429 = vpop.f32.mrf.mxu0
        %v3430 = vadd.f32 %v3404, %v3429
        %3431 = vmatmul.f32.gmra.mxu0 %v3339
        %v3432 = vpop.f32.mrf.mxu0
        %v3433 = vadd.f32 %v3404, %v3432
        %3434 = vmatmul.f32.gmra.mxu0 %v3342
        %v3435 = vpop.f32.mrf.mxu0
        %v3436 = vadd.f32 %v3404, %v3435
        %3437 = vmatmul.f32.gmra.mxu0 %v3345
        %v3438 = vpop.f32.mrf.mxu0
        %v3439 = vadd.f32 %v3404, %v3438
        %3440 = vmatmul.f32.gmra.mxu0 %v3348
        %v3441 = vpop.f32.mrf.mxu0
        %v3442 = vadd.f32 %v3404, %v3441
        %3443 = vmatmul.f32.gmra.mxu0 %v3351
        %v3444 = vpop.f32.mrf.mxu0
        %v3445 = vadd.f32 %v3404, %v3444
        %3446 = vdwg.mxu0
        %3447 = vmatpush.msra.mxu0 %v3385
        %3448 = vmatpush.msra.mxu0 %v3384
        %3449 = vmatpush.msra.mxu0 %v3383
        %3450 = vmatpush.msra.mxu0 %v3382
        %3451 = vmatpush.msra.mxu0 %v3381
        %3452 = vmatpush.msra.mxu0 %v3380
        %3453 = vmatpush.msra.mxu0 %v3379
        %3454 = vmatpush.msra.mxu0 %v3378
        %3455 = vmatpush.msra.mxu0 %v3377
        %3456 = vmatpush.msra.mxu0 %v3376
        %3457 = vmatpush.msra.mxu0 %v3375
        %3458 = vmatpush.msra.mxu0 %v3374
        %3459 = vmatpush.msra.mxu0 %v3373
        %3460 = vmatpush.msra.mxu0 %v3372
        %3461 = vmatpush.msra.mxu0 %v3371
        %3462 = vmatpush.msra.mxu0 %v3370
        %3463 = vmatmul.f32.gmra.mxu0 %v3331
        %v3464 = vpop.f32.mrf.mxu0
        %v3465 = vadd.f32 %v3424, %v3464
        %3466 = vmatmul.f32.gmra.mxu0 %v3334
        %v3467 = vpop.f32.mrf.mxu0
        %v3468 = vadd.f32 %v3427, %v3467
        %3469 = vmatmul.f32.gmra.mxu0 %v3337
        %v3470 = vpop.f32.mrf.mxu0
        %v3471 = vadd.f32 %v3430, %v3470
        %3472 = vmatmul.f32.gmra.mxu0 %v3340
        %v3473 = vpop.f32.mrf.mxu0
        %v3474 = vadd.f32 %v3433, %v3473
        %3475 = vmatmul.f32.gmra.mxu0 %v3343
        %v3476 = vpop.f32.mrf.mxu0
        %v3477 = vadd.f32 %v3436, %v3476
        %3478 = vmatmul.f32.gmra.mxu0 %v3346
        %v3479 = vpop.f32.mrf.mxu0
        %v3480 = vadd.f32 %v3439, %v3479
        %3481 = vmatmul.f32.gmra.mxu0 %v3349
        %v3482 = vpop.f32.mrf.mxu0
        %v3483 = vadd.f32 %v3442, %v3482
        %3484 = vmatmul.f32.gmra.mxu0 %v3352
        %v3485 = vpop.f32.mrf.mxu0
        %v3486 = vadd.f32 %v3445, %v3485
        %3487 = vdwg.mxu0
        %3488 = vmatpush.msra.mxu0 %v3401
        %3489 = vmatpush.msra.mxu0 %v3400
        %3490 = vmatpush.msra.mxu0 %v3399
        %3491 = vmatpush.msra.mxu0 %v3398
        %3492 = vmatpush.msra.mxu0 %v3397
        %3493 = vmatpush.msra.mxu0 %v3396
        %3494 = vmatpush.msra.mxu0 %v3395
        %3495 = vmatpush.msra.mxu0 %v3394
        %3496 = vmatpush.msra.mxu0 %v3393
        %3497 = vmatpush.msra.mxu0 %v3392
        %3498 = vmatpush.msra.mxu0 %v3391
        %3499 = vmatpush.msra.mxu0 %v3390
        %3500 = vmatpush.msra.mxu0 %v3389
        %3501 = vmatpush.msra.mxu0 %v3388
        %3502 = vmatpush.msra.mxu0 %v3387
        %3503 = vmatpush.msra.mxu0 %v3386
        %3504 = vmatmul.f32.gmra.mxu0 %v3332
        %v3505 = vpop.f32.mrf.mxu0
        %v3506 = vadd.f32 %v3465, %v3505
        %3507 = vmatmul.f32.gmra.mxu0 %v3335
        %v3508 = vpop.f32.mrf.mxu0
        %v3509 = vadd.f32 %v3468, %v3508
        %3510 = vmatmul.f32.gmra.mxu0 %v3338
        %v3511 = vpop.f32.mrf.mxu0
        %v3512 = vadd.f32 %v3471, %v3511
        %3513 = vmatmul.f32.gmra.mxu0 %v3341
        %v3514 = vpop.f32.mrf.mxu0
        %v3515 = vadd.f32 %v3474, %v3514
        %3516 = vmatmul.f32.gmra.mxu0 %v3344
        %v3517 = vpop.f32.mrf.mxu0
        %v3518 = vadd.f32 %v3477, %v3517
        %3519 = vmatmul.f32.gmra.mxu0 %v3347
        %v3520 = vpop.f32.mrf.mxu0
        %v3521 = vadd.f32 %v3480, %v3520
        %3522 = vmatmul.f32.gmra.mxu0 %v3350
        %v3523 = vpop.f32.mrf.mxu0
        %v3524 = vadd.f32 %v3483, %v3523
        %3525 = vmatmul.f32.gmra.mxu0 %v3353
        %v3526 = vpop.f32.mrf.mxu0
        %v3527 = vadd.f32 %v3486, %v3526
        %3528 = vdwg.mxu0
        %v3529 = vmul.f32 %v3506, 0.5
        %v3530 = vmul.f32 %v3509, 0.5
        %v3531 = vmul.f32 %v3512, 0.5
        %v3532 = vmul.f32 %v3515, 0.5
        %v3533 = vmul.f32 %v3518, 0.5
        %v3534 = vmul.f32 %v3521, 0.5
        %v3535 = vmul.f32 %v3524, 0.5
        %v3536 = vmul.f32 %v3527, 0.5
        %v3537 = vmul.f32 %v3506, 0.70710677
        %v3538 = vmul.f32 %v3509, 0.70710677
        %v3539 = vmul.f32 %v3512, 0.70710677
        %v3540 = vmul.f32 %v3515, 0.70710677
        %v3541 = vmul.f32 %v3518, 0.70710677
        %v3542 = vmul.f32 %v3521, 0.70710677
        %v3543 = vmul.f32 %v3524, 0.70710677
        %v3544 = vmul.f32 %v3527, 0.70710677
        %v3545 = vmul.f32 %v3537, %v3537
        %v3546 = vmin.f32 16.0, %v3545
        %v3547 = vmul.f32 %v3546, 2.1237322e-06
        %v3548 = vadd.f32 %v3547, 0.00028619796
        %v3549 = vmul.f32 %v3546, %v3548
        %v3550 = vadd.f32 %v3549, 0.0036580483
        %v3551 = vmul.f32 %v3546, %v3550
        %v3552 = vadd.f32 %v3551, 0.05243302
        %v3553 = vmul.f32 %v3546, %v3552
        %v3554 = vadd.f32 %v3553, 0.18741608
        %v3555 = vmul.f32 %v3546, %v3554
        %v3556 = vadd.f32 %v3555, 1.1283791
        %v3557 = vmul.f32 %v3537, %v3556
        %v3558 = vmul.f32 %v3546, 3.8918573e-05
        %v3559 = vadd.f32 %v3558, 0.001143296
        %v3560 = vmul.f32 %v3546, %v3559
        %v3561 = vadd.f32 %v3560, 0.014752088
        %v3562 = vmul.f32 %v3546, %v3561
        %v3563 = vadd.f32 %v3562, 0.112945676
        %v3564 = vmul.f32 %v3546, %v3563
        %v3565 = vadd.f32 %v3564, 0.4994258
        %v3566 = vmul.f32 %v3546, %v3565
        %v3567 = vadd.f32 %v3566, 1.0
        %v3568 = vrcp.pop %v3567
        %v3569 = vmul.f32 %v3567, %v3568
        %v3570 = vsub.f32 1.0, %v3569
        %v3571 = vmul.f32 %v3568, %v3570
        %v3572 = vadd.f32 %v3568, %v3571
        %vm3573 = vweird.f32 %v3567
        %vm3574 = vweird.f32 %v3568
        %vm3575 = vmor %vm3573, %vm3574
        %v3576 = vsel %vm3575, %v3568, %v3572
        %v3577 = vand.u32 2147483647, %v3567
        %vm3578 = vcmp.eq.f32.partialorder %v3577, 8.507059e+37
        %v3579 = vand.u32 %v3567, 2147483648
        %v3580 = vor.u32 1.1754944e-38, %v3579
        %v3581 = vsel %vm3578, %v3580, %v3576
        %v3582 = vmul.f32 %v3557, %v3581
        %v3583 = vmin.f32 %v3582, 1.0
        %v3584 = vmax.f32 %v3583, -1.0
        %v3585 = vmul.f32 %v3538, %v3538
        %v3586 = vmin.f32 16.0, %v3585
        %v3587 = vmul.f32 %v3586, 2.1237322e-06
        %v3588 = vadd.f32 %v3587, 0.00028619796
        %v3589 = vmul.f32 %v3586, %v3588
        %v3590 = vadd.f32 %v3589, 0.0036580483
        %v3591 = vmul.f32 %v3586, %v3590
        %v3592 = vadd.f32 %v3591, 0.05243302
        %v3593 = vmul.f32 %v3586, %v3592
        %v3594 = vadd.f32 %v3593, 0.18741608
        %v3595 = vmul.f32 %v3586, %v3594
        %v3596 = vadd.f32 %v3595, 1.1283791
        %v3597 = vmul.f32 %v3538, %v3596
        %v3598 = vmul.f32 %v3586, 3.8918573e-05
        %v3599 = vadd.f32 %v3598, 0.001143296
        %v3600 = vmul.f32 %v3586, %v3599
        %v3601 = vadd.f32 %v3600, 0.014752088
        %v3602 = vmul.f32 %v3586, %v3601
        %v3603 = vadd.f32 %v3602, 0.112945676
        %v3604 = vmul.f32 %v3586, %v3603
        %v3605 = vadd.f32 %v3604, 0.4994258
        %v3606 = vmul.f32 %v3586, %v3605
        %v3607 = vadd.f32 %v3606, 1.0
        %v3608 = vrcp.pop %v3607
        %v3609 = vmul.f32 %v3607, %v3608
        %v3610 = vsub.f32 1.0, %v3609
        %v3611 = vmul.f32 %v3608, %v3610
        %v3612 = vadd.f32 %v3608, %v3611
        %vm3613 = vweird.f32 %v3607
        %vm3614 = vweird.f32 %v3608
        %vm3615 = vmor %vm3613, %vm3614
        %v3616 = vsel %vm3615, %v3608, %v3612
        %v3617 = vand.u32 2147483647, %v3607
        %vm3618 = vcmp.eq.f32.partialorder %v3617, 8.507059e+37
        %v3619 = vand.u32 %v3607, 2147483648
        %v3620 = vor.u32 1.1754944e-38, %v3619
        %v3621 = vsel %vm3618, %v3620, %v3616
        %v3622 = vmul.f32 %v3597, %v3621
        %v3623 = vmin.f32 %v3622, 1.0
        %v3624 = vmax.f32 %v3623, -1.0
        %v3625 = vmul.f32 %v3539, %v3539
        %v3626 = vmin.f32 16.0, %v3625
        %v3627 = vmul.f32 %v3626, 2.1237322e-06
        %v3628 = vadd.f32 %v3627, 0.00028619796
        %v3629 = vmul.f32 %v3626, %v3628
        %v3630 = vadd.f32 %v3629, 0.0036580483
        %v3631 = vmul.f32 %v3626, %v3630
        %v3632 = vadd.f32 %v3631, 0.05243302
        %v3633 = vmul.f32 %v3626, %v3632
        %v3634 = vadd.f32 %v3633, 0.18741608
        %v3635 = vmul.f32 %v3626, %v3634
        %v3636 = vadd.f32 %v3635, 1.1283791
        %v3637 = vmul.f32 %v3539, %v3636
        %v3638 = vmul.f32 %v3626, 3.8918573e-05
        %v3639 = vadd.f32 %v3638, 0.001143296
        %v3640 = vmul.f32 %v3626, %v3639
        %v3641 = vadd.f32 %v3640, 0.014752088
        %v3642 = vmul.f32 %v3626, %v3641
        %v3643 = vadd.f32 %v3642, 0.112945676
        %v3644 = vmul.f32 %v3626, %v3643
        %v3645 = vadd.f32 %v3644, 0.4994258
        %v3646 = vmul.f32 %v3626, %v3645
        %v3647 = vadd.f32 %v3646, 1.0
        %v3648 = vrcp.pop %v3647
        %v3649 = vmul.f32 %v3647, %v3648
        %v3650 = vsub.f32 1.0, %v3649
        %v3651 = vmul.f32 %v3648, %v3650
        %v3652 = vadd.f32 %v3648, %v3651
        %vm3653 = vweird.f32 %v3647
        %vm3654 = vweird.f32 %v3648
        %vm3655 = vmor %vm3653, %vm3654
        %v3656 = vsel %vm3655, %v3648, %v3652
        %v3657 = vand.u32 2147483647, %v3647
        %vm3658 = vcmp.eq.f32.partialorder %v3657, 8.507059e+37
        %v3659 = vand.u32 %v3647, 2147483648
        %v3660 = vor.u32 1.1754944e-38, %v3659
        %v3661 = vsel %vm3658, %v3660, %v3656
        %v3662 = vmul.f32 %v3637, %v3661
        %v3663 = vmin.f32 %v3662, 1.0
        %v3664 = vmax.f32 %v3663, -1.0
        %v3665 = vmul.f32 %v3540, %v3540
        %v3666 = vmin.f32 16.0, %v3665
        %v3667 = vmul.f32 %v3666, 2.1237322e-06
        %v3668 = vadd.f32 %v3667, 0.00028619796
        %v3669 = vmul.f32 %v3666, %v3668
        %v3670 = vadd.f32 %v3669, 0.0036580483
        %v3671 = vmul.f32 %v3666, %v3670
        %v3672 = vadd.f32 %v3671, 0.05243302
        %v3673 = vmul.f32 %v3666, %v3672
        %v3674 = vadd.f32 %v3673, 0.18741608
        %v3675 = vmul.f32 %v3666, %v3674
        %v3676 = vadd.f32 %v3675, 1.1283791
        %v3677 = vmul.f32 %v3540, %v3676
        %v3678 = vmul.f32 %v3666, 3.8918573e-05
        %v3679 = vadd.f32 %v3678, 0.001143296
        %v3680 = vmul.f32 %v3666, %v3679
        %v3681 = vadd.f32 %v3680, 0.014752088
        %v3682 = vmul.f32 %v3666, %v3681
        %v3683 = vadd.f32 %v3682, 0.112945676
        %v3684 = vmul.f32 %v3666, %v3683
        %v3685 = vadd.f32 %v3684, 0.4994258
        %v3686 = vmul.f32 %v3666, %v3685
        %v3687 = vadd.f32 %v3686, 1.0
        %v3688 = vrcp.pop %v3687
        %v3689 = vmul.f32 %v3687, %v3688
        %v3690 = vsub.f32 1.0, %v3689
        %v3691 = vmul.f32 %v3688, %v3690
        %v3692 = vadd.f32 %v3688, %v3691
        %vm3693 = vweird.f32 %v3687
        %vm3694 = vweird.f32 %v3688
        %vm3695 = vmor %vm3693, %vm3694
        %v3696 = vsel %vm3695, %v3688, %v3692
        %v3697 = vand.u32 2147483647, %v3687
        %vm3698 = vcmp.eq.f32.partialorder %v3697, 8.507059e+37
        %v3699 = vand.u32 %v3687, 2147483648
        %v3700 = vor.u32 1.1754944e-38, %v3699
        %v3701 = vsel %vm3698, %v3700, %v3696
        %v3702 = vmul.f32 %v3677, %v3701
        %v3703 = vmin.f32 %v3702, 1.0
        %v3704 = vmax.f32 %v3703, -1.0
        %v3705 = vmul.f32 %v3541, %v3541
        %v3706 = vmin.f32 16.0, %v3705
        %v3707 = vmul.f32 %v3706, 2.1237322e-06
        %v3708 = vadd.f32 %v3707, 0.00028619796
        %v3709 = vmul.f32 %v3706, %v3708
        %v3710 = vadd.f32 %v3709, 0.0036580483
        %v3711 = vmul.f32 %v3706, %v3710
        %v3712 = vadd.f32 %v3711, 0.05243302
        %v3713 = vmul.f32 %v3706, %v3712
        %v3714 = vadd.f32 %v3713, 0.18741608
        %v3715 = vmul.f32 %v3706, %v3714
        %v3716 = vadd.f32 %v3715, 1.1283791
        %v3717 = vmul.f32 %v3541, %v3716
        %v3718 = vmul.f32 %v3706, 3.8918573e-05
        %v3719 = vadd.f32 %v3718, 0.001143296
        %v3720 = vmul.f32 %v3706, %v3719
        %v3721 = vadd.f32 %v3720, 0.014752088
        %v3722 = vmul.f32 %v3706, %v3721
        %v3723 = vadd.f32 %v3722, 0.112945676
        %v3724 = vmul.f32 %v3706, %v3723
        %v3725 = vadd.f32 %v3724, 0.4994258
        %v3726 = vmul.f32 %v3706, %v3725
        %v3727 = vadd.f32 %v3726, 1.0
        %v3728 = vrcp.pop %v3727
        %v3729 = vmul.f32 %v3727, %v3728
        %v3730 = vsub.f32 1.0, %v3729
        %v3731 = vmul.f32 %v3728, %v3730
        %v3732 = vadd.f32 %v3728, %v3731
        %vm3733 = vweird.f32 %v3727
        %vm3734 = vweird.f32 %v3728
        %vm3735 = vmor %vm3733, %vm3734
        %v3736 = vsel %vm3735, %v3728, %v3732
        %v3737 = vand.u32 2147483647, %v3727
        %vm3738 = vcmp.eq.f32.partialorder %v3737, 8.507059e+37
        %v3739 = vand.u32 %v3727, 2147483648
        %v3740 = vor.u32 1.1754944e-38, %v3739
        %v3741 = vsel %vm3738, %v3740, %v3736
        %v3742 = vmul.f32 %v3717, %v3741
        %v3743 = vmin.f32 %v3742, 1.0
        %v3744 = vmax.f32 %v3743, -1.0
        %v3745 = vmul.f32 %v3542, %v3542
        %v3746 = vmin.f32 16.0, %v3745
        %v3747 = vmul.f32 %v3746, 2.1237322e-06
        %v3748 = vadd.f32 %v3747, 0.00028619796
        %v3749 = vmul.f32 %v3746, %v3748
        %v3750 = vadd.f32 %v3749, 0.0036580483
        %v3751 = vmul.f32 %v3746, %v3750
        %v3752 = vadd.f32 %v3751, 0.05243302
        %v3753 = vmul.f32 %v3746, %v3752
        %v3754 = vadd.f32 %v3753, 0.18741608
        %v3755 = vmul.f32 %v3746, %v3754
        %v3756 = vadd.f32 %v3755, 1.1283791
        %v3757 = vmul.f32 %v3542, %v3756
        %v3758 = vmul.f32 %v3746, 3.8918573e-05
        %v3759 = vadd.f32 %v3758, 0.001143296
        %v3760 = vmul.f32 %v3746, %v3759
        %v3761 = vadd.f32 %v3760, 0.014752088
        %v3762 = vmul.f32 %v3746, %v3761
        %v3763 = vadd.f32 %v3762, 0.112945676
        %v3764 = vmul.f32 %v3746, %v3763
        %v3765 = vadd.f32 %v3764, 0.4994258
        %v3766 = vmul.f32 %v3746, %v3765
        %v3767 = vadd.f32 %v3766, 1.0
        %v3768 = vrcp.pop %v3767
        %v3769 = vmul.f32 %v3767, %v3768
        %v3770 = vsub.f32 1.0, %v3769
        %v3771 = vmul.f32 %v3768, %v3770
        %v3772 = vadd.f32 %v3768, %v3771
        %vm3773 = vweird.f32 %v3767
        %vm3774 = vweird.f32 %v3768
        %vm3775 = vmor %vm3773, %vm3774
        %v3776 = vsel %vm3775, %v3768, %v3772
        %v3777 = vand.u32 2147483647, %v3767
        %vm3778 = vcmp.eq.f32.partialorder %v3777, 8.507059e+37
        %v3779 = vand.u32 %v3767, 2147483648
        %v3780 = vor.u32 1.1754944e-38, %v3779
        %v3781 = vsel %vm3778, %v3780, %v3776
        %v3782 = vmul.f32 %v3757, %v3781
        %v3783 = vmin.f32 %v3782, 1.0
        %v3784 = vmax.f32 %v3783, -1.0
        %v3785 = vmul.f32 %v3543, %v3543
        %v3786 = vmin.f32 16.0, %v3785
        %v3787 = vmul.f32 %v3786, 2.1237322e-06
        %v3788 = vadd.f32 %v3787, 0.00028619796
        %v3789 = vmul.f32 %v3786, %v3788
        %v3790 = vadd.f32 %v3789, 0.0036580483
        %v3791 = vmul.f32 %v3786, %v3790
        %v3792 = vadd.f32 %v3791, 0.05243302
        %v3793 = vmul.f32 %v3786, %v3792
        %v3794 = vadd.f32 %v3793, 0.18741608
        %v3795 = vmul.f32 %v3786, %v3794
        %v3796 = vadd.f32 %v3795, 1.1283791
        %v3797 = vmul.f32 %v3543, %v3796
        %v3798 = vmul.f32 %v3786, 3.8918573e-05
        %v3799 = vadd.f32 %v3798, 0.001143296
        %v3800 = vmul.f32 %v3786, %v3799
        %v3801 = vadd.f32 %v3800, 0.014752088
        %v3802 = vmul.f32 %v3786, %v3801
        %v3803 = vadd.f32 %v3802, 0.112945676
        %v3804 = vmul.f32 %v3786, %v3803
        %v3805 = vadd.f32 %v3804, 0.4994258
        %v3806 = vmul.f32 %v3786, %v3805
        %v3807 = vadd.f32 %v3806, 1.0
        %v3808 = vrcp.pop %v3807
        %v3809 = vmul.f32 %v3807, %v3808
        %v3810 = vsub.f32 1.0, %v3809
        %v3811 = vmul.f32 %v3808, %v3810
        %v3812 = vadd.f32 %v3808, %v3811
        %vm3813 = vweird.f32 %v3807
        %vm3814 = vweird.f32 %v3808
        %vm3815 = vmor %vm3813, %vm3814
        %v3816 = vsel %vm3815, %v3808, %v3812
        %v3817 = vand.u32 2147483647, %v3807
        %vm3818 = vcmp.eq.f32.partialorder %v3817, 8.507059e+37
        %v3819 = vand.u32 %v3807, 2147483648
        %v3820 = vor.u32 1.1754944e-38, %v3819
        %v3821 = vsel %vm3818, %v3820, %v3816
        %v3822 = vmul.f32 %v3797, %v3821
        %v3823 = vmin.f32 %v3822, 1.0
        %v3824 = vmax.f32 %v3823, -1.0
        %v3825 = vmul.f32 %v3544, %v3544
        %v3826 = vmin.f32 16.0, %v3825
        %v3827 = vmul.f32 %v3826, 2.1237322e-06
        %v3828 = vadd.f32 %v3827, 0.00028619796
        %v3829 = vmul.f32 %v3826, %v3828
        %v3830 = vadd.f32 %v3829, 0.0036580483
        %v3831 = vmul.f32 %v3826, %v3830
        %v3832 = vadd.f32 %v3831, 0.05243302
        %v3833 = vmul.f32 %v3826, %v3832
        %v3834 = vadd.f32 %v3833, 0.18741608
        %v3835 = vmul.f32 %v3826, %v3834
        %v3836 = vadd.f32 %v3835, 1.1283791
        %v3837 = vmul.f32 %v3544, %v3836
        %v3838 = vmul.f32 %v3826, 3.8918573e-05
        %v3839 = vadd.f32 %v3838, 0.001143296
        %v3840 = vmul.f32 %v3826, %v3839
        %v3841 = vadd.f32 %v3840, 0.014752088
        %v3842 = vmul.f32 %v3826, %v3841
        %v3843 = vadd.f32 %v3842, 0.112945676
        %v3844 = vmul.f32 %v3826, %v3843
        %v3845 = vadd.f32 %v3844, 0.4994258
        %v3846 = vmul.f32 %v3826, %v3845
        %v3847 = vadd.f32 %v3846, 1.0
        %v3848 = vrcp.pop %v3847
        %v3849 = vmul.f32 %v3847, %v3848
        %v3850 = vsub.f32 1.0, %v3849
        %v3851 = vmul.f32 %v3848, %v3850
        %v3852 = vadd.f32 %v3848, %v3851
        %vm3853 = vweird.f32 %v3847
        %vm3854 = vweird.f32 %v3848
        %vm3855 = vmor %vm3853, %vm3854
        %v3856 = vsel %vm3855, %v3848, %v3852
        %v3857 = vand.u32 2147483647, %v3847
        %vm3858 = vcmp.eq.f32.partialorder %v3857, 8.507059e+37
        %v3859 = vand.u32 %v3847, 2147483648
        %v3860 = vor.u32 1.1754944e-38, %v3859
        %v3861 = vsel %vm3858, %v3860, %v3856
        %v3862 = vmul.f32 %v3837, %v3861
        %v3863 = vmin.f32 %v3862, 1.0
        %v3864 = vmax.f32 %v3863, -1.0
        %v3865 = vadd.f32 %v3584, 1.0
        %v3866 = vadd.f32 %v3624, 1.0
        %v3867 = vadd.f32 %v3664, 1.0
        %v3868 = vadd.f32 %v3704, 1.0
        %v3869 = vadd.f32 %v3744, 1.0
        %v3870 = vadd.f32 %v3784, 1.0
        %v3871 = vadd.f32 %v3824, 1.0
        %v3872 = vadd.f32 %v3864, 1.0
        %v3873 = vmul.f32 %v3529, %v3865
        %v3874 = vmul.f32 %v3530, %v3866
        %v3875 = vmul.f32 %v3531, %v3867
        %v3876 = vmul.f32 %v3532, %v3868
        %v3877 = vmul.f32 %v3533, %v3869
        %v3878 = vmul.f32 %v3534, %v3870
        %v3879 = vmul.f32 %v3535, %v3871
        %v3880 = vmul.f32 %v3536, %v3872
        %3881 = vset.pattern.permute.xlu0 3
        %3882 = vperm.xlu0 %3881, %v768
        %v3883 = vpop.permute.xlu0 %3882
        %3884 = vset.pattern.permute.xlu0 3
        %3885 = vperm.xlu0 %3884, %v769
        %v3886 = vpop.permute.xlu0 %3885
        %3887 = vset.pattern.permute.xlu0 3
        %3888 = vperm.xlu0 %3887, %v770
        %v3889 = vpop.permute.xlu0 %3888
        %3890 = vset.pattern.permute.xlu0 3
        %3891 = vperm.xlu0 %3890, %v771
        %v3892 = vpop.permute.xlu0 %3891
        %3893 = vset.pattern.permute.xlu0 3
        %3894 = vperm.xlu0 %3893, %v772
        %v3895 = vpop.permute.xlu0 %3894
        %3896 = vset.pattern.permute.xlu0 3
        %3897 = vperm.xlu0 %3896, %v773
        %v3898 = vpop.permute.xlu0 %3897
        %3899 = vset.pattern.permute.xlu0 3
        %3900 = vperm.xlu0 %3899, %v774
        %v3901 = vpop.permute.xlu0 %3900
        %3902 = vset.pattern.permute.xlu0 3
        %3903 = vperm.xlu0 %3902, %v775
        %v3904 = vpop.permute.xlu0 %3903
        %vm3905 = vcmp.eq.s32.totalorder %v777, %v3883
        %vm3906 = vcmp.eq.s32.totalorder %v777, %v3886
        %vm3907 = vcmp.eq.s32.totalorder %v777, %v3889
        %vm3908 = vcmp.eq.s32.totalorder %v777, %v3892
        %vm3909 = vcmp.eq.s32.totalorder %v777, %v3895
        %vm3910 = vcmp.eq.s32.totalorder %v777, %v3898
        %vm3911 = vcmp.eq.s32.totalorder %v777, %v3901
        %vm3912 = vcmp.eq.s32.totalorder %v777, %v3904
        %v3913 = vsel %vm3905, 1, 0
        %v3914 = vsel %vm3906, 1, 0
        %v3915 = vsel %vm3907, 1, 0
        %v3916 = vsel %vm3908, 1, 0
        %v3917 = vsel %vm3909, 1, 0
        %v3918 = vsel %vm3910, 1, 0
        %v3919 = vsel %vm3911, 1, 0
        %v3920 = vsel %vm3912, 1, 0
        %v3921 = vcvt.s32.f32 %v3913
        %v3922 = vcvt.s32.f32 %v3914
        %v3923 = vcvt.s32.f32 %v3915
        %v3924 = vcvt.s32.f32 %v3916
        %v3925 = vcvt.s32.f32 %v3917
        %v3926 = vcvt.s32.f32 %v3918
        %v3927 = vcvt.s32.f32 %v3919
        %v3928 = vcvt.s32.f32 %v3920
        %v3929 = vld [vmem:[#allocation7] sm:$0xff]
        %v3930 = vld [vmem:[#allocation7 + $0x8] sm:$0xff]
        %v3931 = vld [vmem:[#allocation7 + $0x10] sm:$0xff]
        %v3932 = vld [vmem:[#allocation7 + $0x18] sm:$0xff]
        %v3933 = vld [vmem:[#allocation7 + $0x20] sm:$0xff]
        %v3934 = vld [vmem:[#allocation7 + $0x28] sm:$0xff]
        %v3935 = vld [vmem:[#allocation7 + $0x30] sm:$0xff]
        %vm3936 = vcmask 457728
        %v3938 = vsel %vm3936, %v3921, 0
        %v3941 = vsel %vm3936, %v3922, 0
        %v3944 = vsel %vm3936, %v3923, 0
        %v3947 = vsel %vm3936, %v3924, 0
        %v3950 = vsel %vm3936, %v3925, 0
        %v3953 = vsel %vm3936, %v3926, 0
        %v3956 = vsel %vm3936, %v3927, 0
        %v3959 = vsel %vm3936, %v3928, 0
        %3961 = vmatpush.msra.mxu0 0.0
        %3962 = vmatpush.msra.mxu0 0.0
        %3963 = vmatpush.msra.mxu0 0.0
        %3964 = vmatpush.msra.mxu0 0.0
        %3965 = vmatpush.msra.mxu0 0.0
        %3966 = vmatpush.msra.mxu0 0.0
        %3967 = vmatpush.msra.mxu0 0.0
        %3968 = vmatpush.msra.mxu0 0.0
        %3969 = vmatpush.msra.mxu0 0.0
        %3970 = vmatpush.msra.mxu0 %v3935
        %3971 = vmatpush.msra.mxu0 %v3934
        %3972 = vmatpush.msra.mxu0 %v3933
        %3973 = vmatpush.msra.mxu0 %v3932
        %3974 = vmatpush.msra.mxu0 %v3931
        %3975 = vmatpush.msra.mxu0 %v3930
        %3976 = vmatpush.msra.mxu0 %v3929
        %3977 = vmatmul.f32.gmra.mxu0 %v3938
        %v3978 = vpop.f32.mrf.mxu0
        %v3979 = vadd.f32 0.0, %v3978
        %3980 = vmatmul.f32.gmra.mxu0 %v3941
        %v3981 = vpop.f32.mrf.mxu0
        %v3982 = vadd.f32 0.0, %v3981
        %3983 = vmatmul.f32.gmra.mxu0 %v3944
        %v3984 = vpop.f32.mrf.mxu0
        %v3985 = vadd.f32 0.0, %v3984
        %3986 = vmatmul.f32.gmra.mxu0 %v3947
        %v3987 = vpop.f32.mrf.mxu0
        %v3988 = vadd.f32 0.0, %v3987
        %3989 = vmatmul.f32.gmra.mxu0 %v3950
        %v3990 = vpop.f32.mrf.mxu0
        %v3991 = vadd.f32 0.0, %v3990
        %3992 = vmatmul.f32.gmra.mxu0 %v3953
        %v3993 = vpop.f32.mrf.mxu0
        %v3994 = vadd.f32 0.0, %v3993
        %3995 = vmatmul.f32.gmra.mxu0 %v3956
        %v3996 = vpop.f32.mrf.mxu0
        %v3997 = vadd.f32 0.0, %v3996
        %3998 = vmatmul.f32.gmra.mxu0 %v3959
        %v3999 = vpop.f32.mrf.mxu0
        %v4000 = vadd.f32 0.0, %v3999
        %4001 = vdwg.mxu0
        %4002 = vset.pattern.permute.xlu0 4
        %4003 = vperm.xlu0 %4002, %v768
        %v4004 = vpop.permute.xlu0 %4003
        %4005 = vset.pattern.permute.xlu0 4
        %4006 = vperm.xlu0 %4005, %v769
        %v4007 = vpop.permute.xlu0 %4006
        %4008 = vset.pattern.permute.xlu0 4
        %4009 = vperm.xlu0 %4008, %v770
        %v4010 = vpop.permute.xlu0 %4009
        %4011 = vset.pattern.permute.xlu0 4
        %4012 = vperm.xlu0 %4011, %v771
        %v4013 = vpop.permute.xlu0 %4012
        %4014 = vset.pattern.permute.xlu0 4
        %4015 = vperm.xlu0 %4014, %v772
        %v4016 = vpop.permute.xlu0 %4015
        %4017 = vset.pattern.permute.xlu0 4
        %4018 = vperm.xlu0 %4017, %v773
        %v4019 = vpop.permute.xlu0 %4018
        %4020 = vset.pattern.permute.xlu0 4
        %4021 = vperm.xlu0 %4020, %v774
        %v4022 = vpop.permute.xlu0 %4021
        %4023 = vset.pattern.permute.xlu0 4
        %4024 = vperm.xlu0 %4023, %v775
        %v4025 = vpop.permute.xlu0 %4024
        %vm4026 = vcmp.eq.s32.totalorder %v777, %v4004
        %vm4027 = vcmp.eq.s32.totalorder %v777, %v4007
        %vm4028 = vcmp.eq.s32.totalorder %v777, %v4010
        %vm4029 = vcmp.eq.s32.totalorder %v777, %v4013
        %vm4030 = vcmp.eq.s32.totalorder %v777, %v4016
        %vm4031 = vcmp.eq.s32.totalorder %v777, %v4019
        %vm4032 = vcmp.eq.s32.totalorder %v777, %v4022
        %vm4033 = vcmp.eq.s32.totalorder %v777, %v4025
        %v4034 = vsel %vm4026, 1, 0
        %v4035 = vsel %vm4027, 1, 0
        %v4036 = vsel %vm4028, 1, 0
        %v4037 = vsel %vm4029, 1, 0
        %v4038 = vsel %vm4030, 1, 0
        %v4039 = vsel %vm4031, 1, 0
        %v4040 = vsel %vm4032, 1, 0
        %v4041 = vsel %vm4033, 1, 0
        %v4042 = vcvt.s32.f32 %v4034
        %v4043 = vcvt.s32.f32 %v4035
        %v4044 = vcvt.s32.f32 %v4036
        %v4045 = vcvt.s32.f32 %v4037
        %v4046 = vcvt.s32.f32 %v4038
        %v4047 = vcvt.s32.f32 %v4039
        %v4048 = vcvt.s32.f32 %v4040
        %v4049 = vcvt.s32.f32 %v4041
        %v4050 = vld [vmem:[#allocation9] sm:$0xff]
        %v4051 = vld [vmem:[#allocation9 + $0x8] sm:$0xff]
        %v4052 = vld [vmem:[#allocation9 + $0x10] sm:$0xff]
        %v4054 = vsel %vm1064, %v4042, 0
        %v4057 = vsel %vm1064, %v4043, 0
        %v4060 = vsel %vm1064, %v4044, 0
        %v4063 = vsel %vm1064, %v4045, 0
        %v4066 = vsel %vm1064, %v4046, 0
        %v4069 = vsel %vm1064, %v4047, 0
        %v4072 = vsel %vm1064, %v4048, 0
        %v4075 = vsel %vm1064, %v4049, 0
        %4077 = vmatpush.msra.mxu0 0.0
        %4078 = vmatpush.msra.mxu0 0.0
        %4079 = vmatpush.msra.mxu0 0.0
        %4080 = vmatpush.msra.mxu0 0.0
        %4081 = vmatpush.msra.mxu0 0.0
        %4082 = vmatpush.msra.mxu0 0.0
        %4083 = vmatpush.msra.mxu0 0.0
        %4084 = vmatpush.msra.mxu0 0.0
        %4085 = vmatpush.msra.mxu0 0.0
        %4086 = vmatpush.msra.mxu0 0.0
        %4087 = vmatpush.msra.mxu0 0.0
        %4088 = vmatpush.msra.mxu0 0.0
        %4089 = vmatpush.msra.mxu0 0.0
        %4090 = vmatpush.msra.mxu0 %v4052
        %4091 = vmatpush.msra.mxu0 %v4051
        %4092 = vmatpush.msra.mxu0 %v4050
        %4093 = vmatmul.f32.gmra.mxu0 %v4054
        %v4094 = vpop.f32.mrf.mxu0
        %v4095 = vadd.f32 0.0, %v4094
        %4096 = vmatmul.f32.gmra.mxu0 %v4057
        %v4097 = vpop.f32.mrf.mxu0
        %v4098 = vadd.f32 0.0, %v4097
        %4099 = vmatmul.f32.gmra.mxu0 %v4060
        %v4100 = vpop.f32.mrf.mxu0
        %v4101 = vadd.f32 0.0, %v4100
        %4102 = vmatmul.f32.gmra.mxu0 %v4063
        %v4103 = vpop.f32.mrf.mxu0
        %v4104 = vadd.f32 0.0, %v4103
        %4105 = vmatmul.f32.gmra.mxu0 %v4066
        %v4106 = vpop.f32.mrf.mxu0
        %v4107 = vadd.f32 0.0, %v4106
        %4108 = vmatmul.f32.gmra.mxu0 %v4069
        %v4109 = vpop.f32.mrf.mxu0
        %v4110 = vadd.f32 0.0, %v4109
        %4111 = vmatmul.f32.gmra.mxu0 %v4072
        %v4112 = vpop.f32.mrf.mxu0
        %v4113 = vadd.f32 0.0, %v4112
        %4114 = vmatmul.f32.gmra.mxu0 %v4075
        %v4115 = vpop.f32.mrf.mxu0
        %v4116 = vadd.f32 0.0, %v4115
        %4117 = vdwg.mxu0
        %4118 = vset.pattern.permute.xlu0 5
        %4119 = vperm.xlu0 %4118, %v768
        %v4120 = vpop.permute.xlu0 %4119
        %4121 = vset.pattern.permute.xlu0 5
        %4122 = vperm.xlu0 %4121, %v769
        %v4123 = vpop.permute.xlu0 %4122
        %4124 = vset.pattern.permute.xlu0 5
        %4125 = vperm.xlu0 %4124, %v770
        %v4126 = vpop.permute.xlu0 %4125
        %4127 = vset.pattern.permute.xlu0 5
        %4128 = vperm.xlu0 %4127, %v771
        %v4129 = vpop.permute.xlu0 %4128
        %4130 = vset.pattern.permute.xlu0 5
        %4131 = vperm.xlu0 %4130, %v772
        %v4132 = vpop.permute.xlu0 %4131
        %4133 = vset.pattern.permute.xlu0 5
        %4134 = vperm.xlu0 %4133, %v773
        %v4135 = vpop.permute.xlu0 %4134
        %4136 = vset.pattern.permute.xlu0 5
        %4137 = vperm.xlu0 %4136, %v774
        %v4138 = vpop.permute.xlu0 %4137
        %4139 = vset.pattern.permute.xlu0 5
        %4140 = vperm.xlu0 %4139, %v775
        %v4141 = vpop.permute.xlu0 %4140
        %vm4142 = vcmp.eq.s32.totalorder %v777, %v4120
        %vm4143 = vcmp.eq.s32.totalorder %v777, %v4123
        %vm4144 = vcmp.eq.s32.totalorder %v777, %v4126
        %vm4145 = vcmp.eq.s32.totalorder %v777, %v4129
        %vm4146 = vcmp.eq.s32.totalorder %v777, %v4132
        %vm4147 = vcmp.eq.s32.totalorder %v777, %v4135
        %vm4148 = vcmp.eq.s32.totalorder %v777, %v4138
        %vm4149 = vcmp.eq.s32.totalorder %v777, %v4141
        %v4150 = vsel %vm4142, 1, 0
        %v4151 = vsel %vm4143, 1, 0
        %v4152 = vsel %vm4144, 1, 0
        %v4153 = vsel %vm4145, 1, 0
        %v4154 = vsel %vm4146, 1, 0
        %v4155 = vsel %vm4147, 1, 0
        %v4156 = vsel %vm4148, 1, 0
        %v4157 = vsel %vm4149, 1, 0
        %v4158 = vcvt.s32.f32 %v4150
        %v4159 = vcvt.s32.f32 %v4151
        %v4160 = vcvt.s32.f32 %v4152
        %v4161 = vcvt.s32.f32 %v4153
        %v4162 = vcvt.s32.f32 %v4154
        %v4163 = vcvt.s32.f32 %v4155
        %v4164 = vcvt.s32.f32 %v4156
        %v4165 = vcvt.s32.f32 %v4157
        %v4166 = vld [vmem:[#allocation10] sm:$0xff]
        %v4167 = vld [vmem:[#allocation10 + $0x8] sm:$0xff]
        %v4168 = vld [vmem:[#allocation10 + $0x10] sm:$0xff]
        %v4169 = vld [vmem:[#allocation10 + $0x18] sm:$0xff]
        %vm4170 = vcmask 261120
        %v4172 = vsel %vm4170, %v4158, 0
        %v4175 = vsel %vm4170, %v4159, 0
        %v4178 = vsel %vm4170, %v4160, 0
        %v4181 = vsel %vm4170, %v4161, 0
        %v4184 = vsel %vm4170, %v4162, 0
        %v4187 = vsel %vm4170, %v4163, 0
        %v4190 = vsel %vm4170, %v4164, 0
        %v4193 = vsel %vm4170, %v4165, 0
        %4195 = vmatpush.msra.mxu0 0.0
        %4196 = vmatpush.msra.mxu0 0.0
        %4197 = vmatpush.msra.mxu0 0.0
        %4198 = vmatpush.msra.mxu0 0.0
        %4199 = vmatpush.msra.mxu0 0.0
        %4200 = vmatpush.msra.mxu0 0.0
        %4201 = vmatpush.msra.mxu0 0.0
        %4202 = vmatpush.msra.mxu0 0.0
        %4203 = vmatpush.msra.mxu0 0.0
        %4204 = vmatpush.msra.mxu0 0.0
        %4205 = vmatpush.msra.mxu0 0.0
        %4206 = vmatpush.msra.mxu0 0.0
        %4207 = vmatpush.msra.mxu0 %v4169
        %4208 = vmatpush.msra.mxu0 %v4168
        %4209 = vmatpush.msra.mxu0 %v4167
        %4210 = vmatpush.msra.mxu0 %v4166
        %4211 = vmatmul.f32.gmra.mxu0 %v4172
        %v4212 = vpop.f32.mrf.mxu0
        %v4213 = vadd.f32 0.0, %v4212
        %4214 = vmatmul.f32.gmra.mxu0 %v4175
        %v4215 = vpop.f32.mrf.mxu0
        %v4216 = vadd.f32 0.0, %v4215
        %4217 = vmatmul.f32.gmra.mxu0 %v4178
        %v4218 = vpop.f32.mrf.mxu0
        %v4219 = vadd.f32 0.0, %v4218
        %4220 = vmatmul.f32.gmra.mxu0 %v4181
        %v4221 = vpop.f32.mrf.mxu0
        %v4222 = vadd.f32 0.0, %v4221
        %4223 = vmatmul.f32.gmra.mxu0 %v4184
        %v4224 = vpop.f32.mrf.mxu0
        %v4225 = vadd.f32 0.0, %v4224
        %4226 = vmatmul.f32.gmra.mxu0 %v4187
        %v4227 = vpop.f32.mrf.mxu0
        %v4228 = vadd.f32 0.0, %v4227
        %4229 = vmatmul.f32.gmra.mxu0 %v4190
        %v4230 = vpop.f32.mrf.mxu0
        %v4231 = vadd.f32 0.0, %v4230
        %4232 = vmatmul.f32.gmra.mxu0 %v4193
        %v4233 = vpop.f32.mrf.mxu0
        %v4234 = vadd.f32 0.0, %v4233
        %4235 = vdwg.mxu0
        %v4236 = vld [vmem:[#allocation13] sm:$0xff]
        %v4237 = vld [vmem:[#allocation13 + $0x8] sm:$0xff]
        %v4238 = vld [vmem:[#allocation13 + $0x10] sm:$0xff]
        %v4239 = vld [vmem:[#allocation13 + $0x18] sm:$0xff]
        %v4240 = vld [vmem:[#allocation13 + $0x20] sm:$0xff]
        %v4241 = vld [vmem:[#allocation13 + $0x28] sm:$0xff]
        %v4242 = vld [vmem:[#allocation13 + $0x30] sm:$0xff]
        %v4243 = vld [vmem:[#allocation13 + $0x38] sm:$0xff]
        %v4244 = vld [vmem:[#allocation13 + $0x40] sm:$0xff]
        %v4245 = vld [vmem:[#allocation13 + $0x48] sm:$0xff]
        %v4246 = vld [vmem:[#allocation13 + $0x50] sm:$0xff]
        %v4247 = vld [vmem:[#allocation13 + $0x58] sm:$0xff]
        %v4248 = vld [vmem:[#allocation13 + $0x60] sm:$0xff]
        %v4249 = vld [vmem:[#allocation13 + $0x68] sm:$0xff]
        %v4250 = vld [vmem:[#allocation13 + $0x70] sm:$0xff]
        %v4251 = vld [vmem:[#allocation13 + $0x78] sm:$0xff]
        %v4252 = vld [vmem:[#allocation13 + $0x80] sm:$0xff]
        %v4253 = vld [vmem:[#allocation13 + $0x88] sm:$0xff]
        %v4254 = vld [vmem:[#allocation13 + $0x90] sm:$0xff]
        %v4255 = vld [vmem:[#allocation13 + $0x98] sm:$0xff]
        %v4256 = vld [vmem:[#allocation13 + $0xa0] sm:$0xff]
        %v4257 = vld [vmem:[#allocation13 + $0xa8] sm:$0xff]
        %v4258 = vld [vmem:[#allocation13 + $0xb0] sm:$0xff]
        %v4259 = vld [vmem:[#allocation13 + $0xb8] sm:$0xff]
        %v4261 = vsel %vm1154, %v4095, 0
        %v4264 = vsel %vm1154, %v4098, 0
        %v4267 = vsel %vm1154, %v4101, 0
        %v4270 = vsel %vm1154, %v4104, 0
        %v4273 = vsel %vm1154, %v4107, 0
        %v4276 = vsel %vm1154, %v4110, 0
        %v4279 = vsel %vm1154, %v4113, 0
        %v4282 = vsel %vm1154, %v4116, 0
        %4284 = vmatpush.msra.mxu0 0.0
        %4285 = vmatpush.msra.mxu0 0.0
        %4286 = vmatpush.msra.mxu0 0.0
        %4287 = vmatpush.msra.mxu0 0.0
        %4288 = vmatpush.msra.mxu0 %v4259
        %4289 = vmatpush.msra.mxu0 %v4258
        %4290 = vmatpush.msra.mxu0 %v4257
        %4291 = vmatpush.msra.mxu0 %v4256
        %4292 = vmatpush.msra.mxu0 %v4255
        %4293 = vmatpush.msra.mxu0 %v4254
        %4294 = vmatpush.msra.mxu0 %v4253
        %4295 = vmatpush.msra.mxu0 %v4252
        %4296 = vmatpush.msra.mxu0 %v4251
        %4297 = vmatpush.msra.mxu0 %v4250
        %4298 = vmatpush.msra.mxu0 %v4249
        %4299 = vmatpush.msra.mxu0 %v4248
        %4300 = vmatmul.f32.gmra.mxu0 %v4261
        %v4301 = vpop.f32.mrf.mxu0
        %v4302 = vadd.f32 0.0, %v4301
        %4303 = vmatmul.f32.gmra.mxu0 %v4264
        %v4304 = vpop.f32.mrf.mxu0
        %v4305 = vadd.f32 0.0, %v4304
        %4306 = vmatmul.f32.gmra.mxu0 %v4267
        %v4307 = vpop.f32.mrf.mxu0
        %v4308 = vadd.f32 0.0, %v4307
        %4309 = vmatmul.f32.gmra.mxu0 %v4270
        %v4310 = vpop.f32.mrf.mxu0
        %v4311 = vadd.f32 0.0, %v4310
        %4312 = vmatmul.f32.gmra.mxu0 %v4273
        %v4313 = vpop.f32.mrf.mxu0
        %v4314 = vadd.f32 0.0, %v4313
        %4315 = vmatmul.f32.gmra.mxu0 %v4276
        %v4316 = vpop.f32.mrf.mxu0
        %v4317 = vadd.f32 0.0, %v4316
        %4318 = vmatmul.f32.gmra.mxu0 %v4279
        %v4319 = vpop.f32.mrf.mxu0
        %v4320 = vadd.f32 0.0, %v4319
        %4321 = vmatmul.f32.gmra.mxu0 %v4282
        %v4322 = vpop.f32.mrf.mxu0
        %v4323 = vadd.f32 0.0, %v4322
        %4324 = vdwg.mxu0
        %v4326 = vsel %vm1154, %v3979, 0
        %v4329 = vsel %vm1154, %v3982, 0
        %v4332 = vsel %vm1154, %v3985, 0
        %v4335 = vsel %vm1154, %v3988, 0
        %v4338 = vsel %vm1154, %v3991, 0
        %v4341 = vsel %vm1154, %v3994, 0
        %v4344 = vsel %vm1154, %v3997, 0
        %v4347 = vsel %vm1154, %v4000, 0
        %4349 = vmatpush.msra.mxu0 0.0
        %4350 = vmatpush.msra.mxu0 0.0
        %4351 = vmatpush.msra.mxu0 0.0
        %4352 = vmatpush.msra.mxu0 0.0
        %4353 = vmatpush.msra.mxu0 %v4247
        %4354 = vmatpush.msra.mxu0 %v4246
        %4355 = vmatpush.msra.mxu0 %v4245
        %4356 = vmatpush.msra.mxu0 %v4244
        %4357 = vmatpush.msra.mxu0 %v4243
        %4358 = vmatpush.msra.mxu0 %v4242
        %4359 = vmatpush.msra.mxu0 %v4241
        %4360 = vmatpush.msra.mxu0 %v4240
        %4361 = vmatpush.msra.mxu0 %v4239
        %4362 = vmatpush.msra.mxu0 %v4238
        %4363 = vmatpush.msra.mxu0 %v4237
        %4364 = vmatpush.msra.mxu0 %v4236
        %4365 = vmatmul.f32.gmra.mxu0 %v4326
        %v4366 = vpop.f32.mrf.mxu0
        %v4367 = vadd.f32 %v4302, %v4366
        %4368 = vmatmul.f32.gmra.mxu0 %v4329
        %v4369 = vpop.f32.mrf.mxu0
        %v4370 = vadd.f32 %v4305, %v4369
        %4371 = vmatmul.f32.gmra.mxu0 %v4332
        %v4372 = vpop.f32.mrf.mxu0
        %v4373 = vadd.f32 %v4308, %v4372
        %4374 = vmatmul.f32.gmra.mxu0 %v4335
        %v4375 = vpop.f32.mrf.mxu0
        %v4376 = vadd.f32 %v4311, %v4375
        %4377 = vmatmul.f32.gmra.mxu0 %v4338
        %v4378 = vpop.f32.mrf.mxu0
        %v4379 = vadd.f32 %v4314, %v4378
        %4380 = vmatmul.f32.gmra.mxu0 %v4341
        %v4381 = vpop.f32.mrf.mxu0
        %v4382 = vadd.f32 %v4317, %v4381
        %4383 = vmatmul.f32.gmra.mxu0 %v4344
        %v4384 = vpop.f32.mrf.mxu0
        %v4385 = vadd.f32 %v4320, %v4384
        %4386 = vmatmul.f32.gmra.mxu0 %v4347
        %v4387 = vpop.f32.mrf.mxu0
        %v4388 = vadd.f32 %v4323, %v4387
        %4389 = vdwg.mxu0
        %v4390 = vld [vmem:[#allocation13 + $0xc0] sm:$0xff]
        %v4391 = vld [vmem:[#allocation13 + $0xc8] sm:$0xff]
        %v4392 = vld [vmem:[#allocation13 + $0xd0] sm:$0xff]
        %v4393 = vld [vmem:[#allocation13 + $0xd8] sm:$0xff]
        %v4394 = vld [vmem:[#allocation13 + $0xe0] sm:$0xff]
        %v4395 = vld [vmem:[#allocation13 + $0xe8] sm:$0xff]
        %v4396 = vld [vmem:[#allocation13 + $0xf0] sm:$0xff]
        %v4397 = vld [vmem:[#allocation13 + $0xf8] sm:$0xff]
        %v4398 = vld [vmem:[#allocation13 + $0x100] sm:$0xff]
        %v4399 = vld [vmem:[#allocation13 + $0x108] sm:$0xff]
        %v4400 = vld [vmem:[#allocation13 + $0x110] sm:$0xff]
        %v4401 = vld [vmem:[#allocation13 + $0x118] sm:$0xff]
        %v4403 = vsel %vm1154, %v4213, 0
        %v4406 = vsel %vm1154, %v4216, 0
        %v4409 = vsel %vm1154, %v4219, 0
        %v4412 = vsel %vm1154, %v4222, 0
        %v4415 = vsel %vm1154, %v4225, 0
        %v4418 = vsel %vm1154, %v4228, 0
        %v4421 = vsel %vm1154, %v4231, 0
        %v4424 = vsel %vm1154, %v4234, 0
        %4426 = vmatpush.msra.mxu0 0.0
        %4427 = vmatpush.msra.mxu0 0.0
        %4428 = vmatpush.msra.mxu0 0.0
        %4429 = vmatpush.msra.mxu0 0.0
        %4430 = vmatpush.msra.mxu0 %v4401
        %4431 = vmatpush.msra.mxu0 %v4400
        %4432 = vmatpush.msra.mxu0 %v4399
        %4433 = vmatpush.msra.mxu0 %v4398
        %4434 = vmatpush.msra.mxu0 %v4397
        %4435 = vmatpush.msra.mxu0 %v4396
        %4436 = vmatpush.msra.mxu0 %v4395
        %4437 = vmatpush.msra.mxu0 %v4394
        %4438 = vmatpush.msra.mxu0 %v4393
        %4439 = vmatpush.msra.mxu0 %v4392
        %4440 = vmatpush.msra.mxu0 %v4391
        %4441 = vmatpush.msra.mxu0 %v4390
        %4442 = vmatmul.f32.gmra.mxu0 %v4403
        %v4443 = vpop.f32.mrf.mxu0
        %v4444 = vadd.f32 0.0, %v4443
        %4445 = vmatmul.f32.gmra.mxu0 %v4406
        %v4446 = vpop.f32.mrf.mxu0
        %v4447 = vadd.f32 0.0, %v4446
        %4448 = vmatmul.f32.gmra.mxu0 %v4409
        %v4449 = vpop.f32.mrf.mxu0
        %v4450 = vadd.f32 0.0, %v4449
        %4451 = vmatmul.f32.gmra.mxu0 %v4412
        %v4452 = vpop.f32.mrf.mxu0
        %v4453 = vadd.f32 0.0, %v4452
        %4454 = vmatmul.f32.gmra.mxu0 %v4415
        %v4455 = vpop.f32.mrf.mxu0
        %v4456 = vadd.f32 0.0, %v4455
        %4457 = vmatmul.f32.gmra.mxu0 %v4418
        %v4458 = vpop.f32.mrf.mxu0
        %v4459 = vadd.f32 0.0, %v4458
        %4460 = vmatmul.f32.gmra.mxu0 %v4421
        %v4461 = vpop.f32.mrf.mxu0
        %v4462 = vadd.f32 0.0, %v4461
        %4463 = vmatmul.f32.gmra.mxu0 %v4424
        %v4464 = vpop.f32.mrf.mxu0
        %v4465 = vadd.f32 0.0, %v4464
        %4466 = vdwg.mxu0
        %v4467 = vadd.f32 %v4367, %v4444
        %v4468 = vadd.f32 %v4370, %v4447
        %v4469 = vadd.f32 %v4373, %v4450
        %v4470 = vadd.f32 %v4376, %v4453
        %v4471 = vadd.f32 %v4379, %v4456
        %v4472 = vadd.f32 %v4382, %v4459
        %v4473 = vadd.f32 %v4385, %v4462
        %v4474 = vadd.f32 %v4388, %v4465
        %v4475 = vld [vmem:[#allocation13 + $0x120] sm:$0xff]
        %v4476 = vld [vmem:[#allocation13 + $0x128] sm:$0xff]
        %v4477 = vld [vmem:[#allocation13 + $0x130] sm:$0xff]
        %v4478 = vld [vmem:[#allocation13 + $0x138] sm:$0xff]
        %v4479 = vld [vmem:[#allocation13 + $0x140] sm:$0xff]
        %v4480 = vld [vmem:[#allocation13 + $0x148] sm:$0xff]
        %v4481 = vld [vmem:[#allocation13 + $0x150] sm:$0xff]
        %v4482 = vld [vmem:[#allocation13 + $0x158] sm:$0xff]
        %v4483 = vld [vmem:[#allocation13 + $0x160] sm:$0xff]
        %v4484 = vld [vmem:[#allocation13 + $0x168] sm:$0xff]
        %v4485 = vld [vmem:[#allocation13 + $0x170] sm:$0xff]
        %v4486 = vld [vmem:[#allocation13 + $0x178] sm:$0xff]
        %v4488 = vsel %vm1154, %v3873, 0
        %v4491 = vsel %vm1154, %v3874, 0
        %v4494 = vsel %vm1154, %v3875, 0
        %v4497 = vsel %vm1154, %v3876, 0
        %v4500 = vsel %vm1154, %v3877, 0
        %v4503 = vsel %vm1154, %v3878, 0
        %v4506 = vsel %vm1154, %v3879, 0
        %v4509 = vsel %vm1154, %v3880, 0
        %4511 = vmatpush.msra.mxu0 0.0
        %4512 = vmatpush.msra.mxu0 0.0
        %4513 = vmatpush.msra.mxu0 0.0
        %4514 = vmatpush.msra.mxu0 0.0
        %4515 = vmatpush.msra.mxu0 %v4486
        %4516 = vmatpush.msra.mxu0 %v4485
        %4517 = vmatpush.msra.mxu0 %v4484
        %4518 = vmatpush.msra.mxu0 %v4483
        %4519 = vmatpush.msra.mxu0 %v4482
        %4520 = vmatpush.msra.mxu0 %v4481
        %4521 = vmatpush.msra.mxu0 %v4480
        %4522 = vmatpush.msra.mxu0 %v4479
        %4523 = vmatpush.msra.mxu0 %v4478
        %4524 = vmatpush.msra.mxu0 %v4477
        %4525 = vmatpush.msra.mxu0 %v4476
        %4526 = vmatpush.msra.mxu0 %v4475
        %4527 = vmatmul.f32.gmra.mxu0 %v4488
        %v4528 = vpop.f32.mrf.mxu0
        %v4529 = vadd.f32 0.0, %v4528
        %4530 = vmatmul.f32.gmra.mxu0 %v4491
        %v4531 = vpop.f32.mrf.mxu0
        %v4532 = vadd.f32 0.0, %v4531
        %4533 = vmatmul.f32.gmra.mxu0 %v4494
        %v4534 = vpop.f32.mrf.mxu0
        %v4535 = vadd.f32 0.0, %v4534
        %4536 = vmatmul.f32.gmra.mxu0 %v4497
        %v4537 = vpop.f32.mrf.mxu0
        %v4538 = vadd.f32 0.0, %v4537
        %4539 = vmatmul.f32.gmra.mxu0 %v4500
        %v4540 = vpop.f32.mrf.mxu0
        %v4541 = vadd.f32 0.0, %v4540
        %4542 = vmatmul.f32.gmra.mxu0 %v4503
        %v4543 = vpop.f32.mrf.mxu0
        %v4544 = vadd.f32 0.0, %v4543
        %4545 = vmatmul.f32.gmra.mxu0 %v4506
        %v4546 = vpop.f32.mrf.mxu0
        %v4547 = vadd.f32 0.0, %v4546
        %4548 = vmatmul.f32.gmra.mxu0 %v4509
        %v4549 = vpop.f32.mrf.mxu0
        %v4550 = vadd.f32 0.0, %v4549
        %4551 = vdwg.mxu0
        %v4552 = vadd.f32 %v4467, %v4529
        %v4553 = vadd.f32 %v4468, %v4532
        %v4554 = vadd.f32 %v4469, %v4535
        %v4555 = vadd.f32 %v4470, %v4538
        %v4556 = vadd.f32 %v4471, %v4541
        %v4557 = vadd.f32 %v4472, %v4544
        %v4558 = vadd.f32 %v4473, %v4547
        %v4559 = vadd.f32 %v4474, %v4550
        %v4560 = vld [vmem:[#allocation16 + $0x5] sm:$0x1]
        %v4562 = vperm.slane %v4560, 0
        %v4564 = vadd.f32 %v4552, %v4562
        %v4565 = vadd.f32 %v4553, %v4562
        %v4566 = vadd.f32 %v4554, %v4562
        %v4567 = vadd.f32 %v4555, %v4562
        %v4568 = vadd.f32 %v4556, %v4562
        %v4569 = vadd.f32 %v4557, %v4562
        %v4570 = vadd.f32 %v4558, %v4562
        %v4571 = vadd.f32 %v4559, %v4562
        %4572 = vadd.xlane.f32.xlu0 %v4564
        %v4573 = vpop.xlane.xlu0 %4572
        %4574 = vadd.xlane.f32.xlu0 %v4565
        %v4575 = vpop.xlane.xlu0 %4574
        %4576 = vadd.xlane.f32.xlu0 %v4566
        %v4577 = vpop.xlane.xlu0 %4576
        %4578 = vadd.xlane.f32.xlu0 %v4567
        %v4579 = vpop.xlane.xlu0 %4578
        %4580 = vadd.xlane.f32.xlu0 %v4568
        %v4581 = vpop.xlane.xlu0 %4580
        %4582 = vadd.xlane.f32.xlu0 %v4569
        %v4583 = vpop.xlane.xlu0 %4582
        %4584 = vadd.xlane.f32.xlu0 %v4570
        %v4585 = vpop.xlane.xlu0 %4584
        %4586 = vadd.xlane.f32.xlu0 %v4571
        %v4587 = vpop.xlane.xlu0 %4586
        %v4588 = vmul.f32 %v4573, %v1404
        %v4589 = vmul.f32 %v4575, %v1404
        %v4590 = vmul.f32 %v4577, %v1404
        %v4591 = vmul.f32 %v4579, %v1404
        %v4592 = vmul.f32 %v4581, %v1404
        %v4593 = vmul.f32 %v4583, %v1404
        %v4594 = vmul.f32 %v4585, %v1404
        %v4595 = vmul.f32 %v4587, %v1404
        %v4596 = vsub.f32 %v4564, %v4588
        %v4597 = vsub.f32 %v4565, %v4589
        %v4598 = vsub.f32 %v4566, %v4590
        %v4599 = vsub.f32 %v4567, %v4591
        %v4600 = vsub.f32 %v4568, %v4592
        %v4601 = vsub.f32 %v4569, %v4593
        %v4602 = vsub.f32 %v4570, %v4594
        %v4603 = vsub.f32 %v4571, %v4595
        %v4604 = vmul.f32 %v4596, %v4596
        %v4605 = vmul.f32 %v4597, %v4597
        %v4606 = vmul.f32 %v4598, %v4598
        %v4607 = vmul.f32 %v4599, %v4599
        %v4608 = vmul.f32 %v4600, %v4600
        %v4609 = vmul.f32 %v4601, %v4601
        %v4610 = vmul.f32 %v4602, %v4602
        %v4611 = vmul.f32 %v4603, %v4603
        %4612 = vadd.xlane.f32.xlu0 %v4604
        %v4613 = vpop.xlane.xlu0 %4612
        %4614 = vadd.xlane.f32.xlu0 %v4605
        %v4615 = vpop.xlane.xlu0 %4614
        %4616 = vadd.xlane.f32.xlu0 %v4606
        %v4617 = vpop.xlane.xlu0 %4616
        %4618 = vadd.xlane.f32.xlu0 %v4607
        %v4619 = vpop.xlane.xlu0 %4618
        %4620 = vadd.xlane.f32.xlu0 %v4608
        %v4621 = vpop.xlane.xlu0 %4620
        %4622 = vadd.xlane.f32.xlu0 %v4609
        %v4623 = vpop.xlane.xlu0 %4622
        %4624 = vadd.xlane.f32.xlu0 %v4610
        %v4625 = vpop.xlane.xlu0 %4624
        %4626 = vadd.xlane.f32.xlu0 %v4611
        %v4627 = vpop.xlane.xlu0 %4626
        %v4628 = vmul.f32 %v4613, %v1404
        %v4629 = vmul.f32 %v4615, %v1404
        %v4630 = vmul.f32 %v4617, %v1404
        %v4631 = vmul.f32 %v4619, %v1404
        %v4632 = vmul.f32 %v4621, %v1404
        %v4633 = vmul.f32 %v4623, %v1404
        %v4634 = vmul.f32 %v4625, %v1404
        %v4635 = vmul.f32 %v4627, %v1404
        %v4636 = vadd.f32 %v4628, 1e-05
        %v4637 = vadd.f32 %v4629, 1e-05
        %v4638 = vadd.f32 %v4630, 1e-05
        %v4639 = vadd.f32 %v4631, 1e-05
        %v4640 = vadd.f32 %v4632, 1e-05
        %v4641 = vadd.f32 %v4633, 1e-05
        %v4642 = vadd.f32 %v4634, 1e-05
        %v4643 = vadd.f32 %v4635, 1e-05
        %v4644 = vrsqrt.pop %v4636
        %v4645 = vmul.f32 %v4644, %v4636
        %v4646 = vmul.f32 %v4645, %v4644
        %v4647 = vmul.f32 0.5, %v4646
        %v4648 = vsub.f32 1.5, %v4647
        %v4649 = vmul.f32 %v4644, %v4648
        %vm4650 = vweird.f32 %v4636
        %vm4651 = vweird.f32 %v4644
        %vm4652 = vmor %vm4650, %vm4651
        %v4653 = vsel %vm4652, %v4644, %v4649
        %v4654 = vrsqrt.pop %v4637
        %v4655 = vmul.f32 %v4654, %v4637
        %v4656 = vmul.f32 %v4655, %v4654
        %v4657 = vmul.f32 0.5, %v4656
        %v4658 = vsub.f32 1.5, %v4657
        %v4659 = vmul.f32 %v4654, %v4658
        %vm4660 = vweird.f32 %v4637
        %vm4661 = vweird.f32 %v4654
        %vm4662 = vmor %vm4660, %vm4661
        %v4663 = vsel %vm4662, %v4654, %v4659
        %v4664 = vrsqrt.pop %v4638
        %v4665 = vmul.f32 %v4664, %v4638
        %v4666 = vmul.f32 %v4665, %v4664
        %v4667 = vmul.f32 0.5, %v4666
        %v4668 = vsub.f32 1.5, %v4667
        %v4669 = vmul.f32 %v4664, %v4668
        %vm4670 = vweird.f32 %v4638
        %vm4671 = vweird.f32 %v4664
        %vm4672 = vmor %vm4670, %vm4671
        %v4673 = vsel %vm4672, %v4664, %v4669
        %v4674 = vrsqrt.pop %v4639
        %v4675 = vmul.f32 %v4674, %v4639
        %v4676 = vmul.f32 %v4675, %v4674
        %v4677 = vmul.f32 0.5, %v4676
        %v4678 = vsub.f32 1.5, %v4677
        %v4679 = vmul.f32 %v4674, %v4678
        %vm4680 = vweird.f32 %v4639
        %vm4681 = vweird.f32 %v4674
        %vm4682 = vmor %vm4680, %vm4681
        %v4683 = vsel %vm4682, %v4674, %v4679
        %v4684 = vrsqrt.pop %v4640
        %v4685 = vmul.f32 %v4684, %v4640
        %v4686 = vmul.f32 %v4685, %v4684
        %v4687 = vmul.f32 0.5, %v4686
        %v4688 = vsub.f32 1.5, %v4687
        %v4689 = vmul.f32 %v4684, %v4688
        %vm4690 = vweird.f32 %v4640
        %vm4691 = vweird.f32 %v4684
        %vm4692 = vmor %vm4690, %vm4691
        %v4693 = vsel %vm4692, %v4684, %v4689
        %v4694 = vrsqrt.pop %v4641
        %v4695 = vmul.f32 %v4694, %v4641
        %v4696 = vmul.f32 %v4695, %v4694
        %v4697 = vmul.f32 0.5, %v4696
        %v4698 = vsub.f32 1.5, %v4697
        %v4699 = vmul.f32 %v4694, %v4698
        %vm4700 = vweird.f32 %v4641
        %vm4701 = vweird.f32 %v4694
        %vm4702 = vmor %vm4700, %vm4701
        %v4703 = vsel %vm4702, %v4694, %v4699
        %v4704 = vrsqrt.pop %v4642
        %v4705 = vmul.f32 %v4704, %v4642
        %v4706 = vmul.f32 %v4705, %v4704
        %v4707 = vmul.f32 0.5, %v4706
        %v4708 = vsub.f32 1.5, %v4707
        %v4709 = vmul.f32 %v4704, %v4708
        %vm4710 = vweird.f32 %v4642
        %vm4711 = vweird.f32 %v4704
        %vm4712 = vmor %vm4710, %vm4711
        %v4713 = vsel %vm4712, %v4704, %v4709
        %v4714 = vrsqrt.pop %v4643
        %v4715 = vmul.f32 %v4714, %v4643
        %v4716 = vmul.f32 %v4715, %v4714
        %v4717 = vmul.f32 0.5, %v4716
        %v4718 = vsub.f32 1.5, %v4717
        %v4719 = vmul.f32 %v4714, %v4718
        %vm4720 = vweird.f32 %v4643
        %vm4721 = vweird.f32 %v4714
        %vm4722 = vmor %vm4720, %vm4721
        %v4723 = vsel %vm4722, %v4714, %v4719
        %v4724 = vmul.f32 %v4596, %v4653
        %v4725 = vmul.f32 %v4597, %v4663
        %v4726 = vmul.f32 %v4598, %v4673
        %v4727 = vmul.f32 %v4599, %v4683
        %v4728 = vmul.f32 %v4600, %v4693
        %v4729 = vmul.f32 %v4601, %v4703
        %v4730 = vmul.f32 %v4602, %v4713
        %v4731 = vmul.f32 %v4603, %v4723
        %v4732 = vmul.f32 %v4724, 0.5
        %v4733 = vmul.f32 %v4725, 0.5
        %v4734 = vmul.f32 %v4726, 0.5
        %v4735 = vmul.f32 %v4727, 0.5
        %v4736 = vmul.f32 %v4728, 0.5
        %v4737 = vmul.f32 %v4729, 0.5
        %v4738 = vmul.f32 %v4730, 0.5
        %v4739 = vmul.f32 %v4731, 0.5
        %v4740 = vmul.f32 %v4724, 0.70710677
        %v4741 = vmul.f32 %v4725, 0.70710677
        %v4742 = vmul.f32 %v4726, 0.70710677
        %v4743 = vmul.f32 %v4727, 0.70710677
        %v4744 = vmul.f32 %v4728, 0.70710677
        %v4745 = vmul.f32 %v4729, 0.70710677
        %v4746 = vmul.f32 %v4730, 0.70710677
        %v4747 = vmul.f32 %v4731, 0.70710677
        %v4748 = vmul.f32 %v4740, %v4740
        %v4749 = vmin.f32 16.0, %v4748
        %v4750 = vmul.f32 %v4749, 2.1237322e-06
        %v4751 = vadd.f32 %v4750, 0.00028619796
        %v4752 = vmul.f32 %v4749, %v4751
        %v4753 = vadd.f32 %v4752, 0.0036580483
        %v4754 = vmul.f32 %v4749, %v4753
        %v4755 = vadd.f32 %v4754, 0.05243302
        %v4756 = vmul.f32 %v4749, %v4755
        %v4757 = vadd.f32 %v4756, 0.18741608
        %v4758 = vmul.f32 %v4749, %v4757
        %v4759 = vadd.f32 %v4758, 1.1283791
        %v4760 = vmul.f32 %v4740, %v4759
        %v4761 = vmul.f32 %v4749, 3.8918573e-05
        %v4762 = vadd.f32 %v4761, 0.001143296
        %v4763 = vmul.f32 %v4749, %v4762
        %v4764 = vadd.f32 %v4763, 0.014752088
        %v4765 = vmul.f32 %v4749, %v4764
        %v4766 = vadd.f32 %v4765, 0.112945676
        %v4767 = vmul.f32 %v4749, %v4766
        %v4768 = vadd.f32 %v4767, 0.4994258
        %v4769 = vmul.f32 %v4749, %v4768
        %v4770 = vadd.f32 %v4769, 1.0
        %v4771 = vrcp.pop %v4770
        %v4772 = vmul.f32 %v4770, %v4771
        %v4773 = vsub.f32 1.0, %v4772
        %v4774 = vmul.f32 %v4771, %v4773
        %v4775 = vadd.f32 %v4771, %v4774
        %vm4776 = vweird.f32 %v4770
        %vm4777 = vweird.f32 %v4771
        %vm4778 = vmor %vm4776, %vm4777
        %v4779 = vsel %vm4778, %v4771, %v4775
        %v4780 = vand.u32 2147483647, %v4770
        %vm4781 = vcmp.eq.f32.partialorder %v4780, 8.507059e+37
        %v4782 = vand.u32 %v4770, 2147483648
        %v4783 = vor.u32 1.1754944e-38, %v4782
        %v4784 = vsel %vm4781, %v4783, %v4779
        %v4785 = vmul.f32 %v4760, %v4784
        %v4786 = vmin.f32 %v4785, 1.0
        %v4787 = vmax.f32 %v4786, -1.0
        %v4788 = vmul.f32 %v4741, %v4741
        %v4789 = vmin.f32 16.0, %v4788
        %v4790 = vmul.f32 %v4789, 2.1237322e-06
        %v4791 = vadd.f32 %v4790, 0.00028619796
        %v4792 = vmul.f32 %v4789, %v4791
        %v4793 = vadd.f32 %v4792, 0.0036580483
        %v4794 = vmul.f32 %v4789, %v4793
        %v4795 = vadd.f32 %v4794, 0.05243302
        %v4796 = vmul.f32 %v4789, %v4795
        %v4797 = vadd.f32 %v4796, 0.18741608
        %v4798 = vmul.f32 %v4789, %v4797
        %v4799 = vadd.f32 %v4798, 1.1283791
        %v4800 = vmul.f32 %v4741, %v4799
        %v4801 = vmul.f32 %v4789, 3.8918573e-05
        %v4802 = vadd.f32 %v4801, 0.001143296
        %v4803 = vmul.f32 %v4789, %v4802
        %v4804 = vadd.f32 %v4803, 0.014752088
        %v4805 = vmul.f32 %v4789, %v4804
        %v4806 = vadd.f32 %v4805, 0.112945676
        %v4807 = vmul.f32 %v4789, %v4806
        %v4808 = vadd.f32 %v4807, 0.4994258
        %v4809 = vmul.f32 %v4789, %v4808
        %v4810 = vadd.f32 %v4809, 1.0
        %v4811 = vrcp.pop %v4810
        %v4812 = vmul.f32 %v4810, %v4811
        %v4813 = vsub.f32 1.0, %v4812
        %v4814 = vmul.f32 %v4811, %v4813
        %v4815 = vadd.f32 %v4811, %v4814
        %vm4816 = vweird.f32 %v4810
        %vm4817 = vweird.f32 %v4811
        %vm4818 = vmor %vm4816, %vm4817
        %v4819 = vsel %vm4818, %v4811, %v4815
        %v4820 = vand.u32 2147483647, %v4810
        %vm4821 = vcmp.eq.f32.partialorder %v4820, 8.507059e+37
        %v4822 = vand.u32 %v4810, 2147483648
        %v4823 = vor.u32 1.1754944e-38, %v4822
        %v4824 = vsel %vm4821, %v4823, %v4819
        %v4825 = vmul.f32 %v4800, %v4824
        %v4826 = vmin.f32 %v4825, 1.0
        %v4827 = vmax.f32 %v4826, -1.0
        %v4828 = vmul.f32 %v4742, %v4742
        %v4829 = vmin.f32 16.0, %v4828
        %v4830 = vmul.f32 %v4829, 2.1237322e-06
        %v4831 = vadd.f32 %v4830, 0.00028619796
        %v4832 = vmul.f32 %v4829, %v4831
        %v4833 = vadd.f32 %v4832, 0.0036580483
        %v4834 = vmul.f32 %v4829, %v4833
        %v4835 = vadd.f32 %v4834, 0.05243302
        %v4836 = vmul.f32 %v4829, %v4835
        %v4837 = vadd.f32 %v4836, 0.18741608
        %v4838 = vmul.f32 %v4829, %v4837
        %v4839 = vadd.f32 %v4838, 1.1283791
        %v4840 = vmul.f32 %v4742, %v4839
        %v4841 = vmul.f32 %v4829, 3.8918573e-05
        %v4842 = vadd.f32 %v4841, 0.001143296
        %v4843 = vmul.f32 %v4829, %v4842
        %v4844 = vadd.f32 %v4843, 0.014752088
        %v4845 = vmul.f32 %v4829, %v4844
        %v4846 = vadd.f32 %v4845, 0.112945676
        %v4847 = vmul.f32 %v4829, %v4846
        %v4848 = vadd.f32 %v4847, 0.4994258
        %v4849 = vmul.f32 %v4829, %v4848
        %v4850 = vadd.f32 %v4849, 1.0
        %v4851 = vrcp.pop %v4850
        %v4852 = vmul.f32 %v4850, %v4851
        %v4853 = vsub.f32 1.0, %v4852
        %v4854 = vmul.f32 %v4851, %v4853
        %v4855 = vadd.f32 %v4851, %v4854
        %vm4856 = vweird.f32 %v4850
        %vm4857 = vweird.f32 %v4851
        %vm4858 = vmor %vm4856, %vm4857
        %v4859 = vsel %vm4858, %v4851, %v4855
        %v4860 = vand.u32 2147483647, %v4850
        %vm4861 = vcmp.eq.f32.partialorder %v4860, 8.507059e+37
        %v4862 = vand.u32 %v4850, 2147483648
        %v4863 = vor.u32 1.1754944e-38, %v4862
        %v4864 = vsel %vm4861, %v4863, %v4859
        %v4865 = vmul.f32 %v4840, %v4864
        %v4866 = vmin.f32 %v4865, 1.0
        %v4867 = vmax.f32 %v4866, -1.0
        %v4868 = vmul.f32 %v4743, %v4743
        %v4869 = vmin.f32 16.0, %v4868
        %v4870 = vmul.f32 %v4869, 2.1237322e-06
        %v4871 = vadd.f32 %v4870, 0.00028619796
        %v4872 = vmul.f32 %v4869, %v4871
        %v4873 = vadd.f32 %v4872, 0.0036580483
        %v4874 = vmul.f32 %v4869, %v4873
        %v4875 = vadd.f32 %v4874, 0.05243302
        %v4876 = vmul.f32 %v4869, %v4875
        %v4877 = vadd.f32 %v4876, 0.18741608
        %v4878 = vmul.f32 %v4869, %v4877
        %v4879 = vadd.f32 %v4878, 1.1283791
        %v4880 = vmul.f32 %v4743, %v4879
        %v4881 = vmul.f32 %v4869, 3.8918573e-05
        %v4882 = vadd.f32 %v4881, 0.001143296
        %v4883 = vmul.f32 %v4869, %v4882
        %v4884 = vadd.f32 %v4883, 0.014752088
        %v4885 = vmul.f32 %v4869, %v4884
        %v4886 = vadd.f32 %v4885, 0.112945676
        %v4887 = vmul.f32 %v4869, %v4886
        %v4888 = vadd.f32 %v4887, 0.4994258
        %v4889 = vmul.f32 %v4869, %v4888
        %v4890 = vadd.f32 %v4889, 1.0
        %v4891 = vrcp.pop %v4890
        %v4892 = vmul.f32 %v4890, %v4891
        %v4893 = vsub.f32 1.0, %v4892
        %v4894 = vmul.f32 %v4891, %v4893
        %v4895 = vadd.f32 %v4891, %v4894
        %vm4896 = vweird.f32 %v4890
        %vm4897 = vweird.f32 %v4891
        %vm4898 = vmor %vm4896, %vm4897
        %v4899 = vsel %vm4898, %v4891, %v4895
        %v4900 = vand.u32 2147483647, %v4890
        %vm4901 = vcmp.eq.f32.partialorder %v4900, 8.507059e+37
        %v4902 = vand.u32 %v4890, 2147483648
        %v4903 = vor.u32 1.1754944e-38, %v4902
        %v4904 = vsel %vm4901, %v4903, %v4899
        %v4905 = vmul.f32 %v4880, %v4904
        %v4906 = vmin.f32 %v4905, 1.0
        %v4907 = vmax.f32 %v4906, -1.0
        %v4908 = vmul.f32 %v4744, %v4744
        %v4909 = vmin.f32 16.0, %v4908
        %v4910 = vmul.f32 %v4909, 2.1237322e-06
        %v4911 = vadd.f32 %v4910, 0.00028619796
        %v4912 = vmul.f32 %v4909, %v4911
        %v4913 = vadd.f32 %v4912, 0.0036580483
        %v4914 = vmul.f32 %v4909, %v4913
        %v4915 = vadd.f32 %v4914, 0.05243302
        %v4916 = vmul.f32 %v4909, %v4915
        %v4917 = vadd.f32 %v4916, 0.18741608
        %v4918 = vmul.f32 %v4909, %v4917
        %v4919 = vadd.f32 %v4918, 1.1283791
        %v4920 = vmul.f32 %v4744, %v4919
        %v4921 = vmul.f32 %v4909, 3.8918573e-05
        %v4922 = vadd.f32 %v4921, 0.001143296
        %v4923 = vmul.f32 %v4909, %v4922
        %v4924 = vadd.f32 %v4923, 0.014752088
        %v4925 = vmul.f32 %v4909, %v4924
        %v4926 = vadd.f32 %v4925, 0.112945676
        %v4927 = vmul.f32 %v4909, %v4926
        %v4928 = vadd.f32 %v4927, 0.4994258
        %v4929 = vmul.f32 %v4909, %v4928
        %v4930 = vadd.f32 %v4929, 1.0
        %v4931 = vrcp.pop %v4930
        %v4932 = vmul.f32 %v4930, %v4931
        %v4933 = vsub.f32 1.0, %v4932
        %v4934 = vmul.f32 %v4931, %v4933
        %v4935 = vadd.f32 %v4931, %v4934
        %vm4936 = vweird.f32 %v4930
        %vm4937 = vweird.f32 %v4931
        %vm4938 = vmor %vm4936, %vm4937
        %v4939 = vsel %vm4938, %v4931, %v4935
        %v4940 = vand.u32 2147483647, %v4930
        %vm4941 = vcmp.eq.f32.partialorder %v4940, 8.507059e+37
        %v4942 = vand.u32 %v4930, 2147483648
        %v4943 = vor.u32 1.1754944e-38, %v4942
        %v4944 = vsel %vm4941, %v4943, %v4939
        %v4945 = vmul.f32 %v4920, %v4944
        %v4946 = vmin.f32 %v4945, 1.0
        %v4947 = vmax.f32 %v4946, -1.0
        %v4948 = vmul.f32 %v4745, %v4745
        %v4949 = vmin.f32 16.0, %v4948
        %v4950 = vmul.f32 %v4949, 2.1237322e-06
        %v4951 = vadd.f32 %v4950, 0.00028619796
        %v4952 = vmul.f32 %v4949, %v4951
        %v4953 = vadd.f32 %v4952, 0.0036580483
        %v4954 = vmul.f32 %v4949, %v4953
        %v4955 = vadd.f32 %v4954, 0.05243302
        %v4956 = vmul.f32 %v4949, %v4955
        %v4957 = vadd.f32 %v4956, 0.18741608
        %v4958 = vmul.f32 %v4949, %v4957
        %v4959 = vadd.f32 %v4958, 1.1283791
        %v4960 = vmul.f32 %v4745, %v4959
        %v4961 = vmul.f32 %v4949, 3.8918573e-05
        %v4962 = vadd.f32 %v4961, 0.001143296
        %v4963 = vmul.f32 %v4949, %v4962
        %v4964 = vadd.f32 %v4963, 0.014752088
        %v4965 = vmul.f32 %v4949, %v4964
        %v4966 = vadd.f32 %v4965, 0.112945676
        %v4967 = vmul.f32 %v4949, %v4966
        %v4968 = vadd.f32 %v4967, 0.4994258
        %v4969 = vmul.f32 %v4949, %v4968
        %v4970 = vadd.f32 %v4969, 1.0
        %v4971 = vrcp.pop %v4970
        %v4972 = vmul.f32 %v4970, %v4971
        %v4973 = vsub.f32 1.0, %v4972
        %v4974 = vmul.f32 %v4971, %v4973
        %v4975 = vadd.f32 %v4971, %v4974
        %vm4976 = vweird.f32 %v4970
        %vm4977 = vweird.f32 %v4971
        %vm4978 = vmor %vm4976, %vm4977
        %v4979 = vsel %vm4978, %v4971, %v4975
        %v4980 = vand.u32 2147483647, %v4970
        %vm4981 = vcmp.eq.f32.partialorder %v4980, 8.507059e+37
        %v4982 = vand.u32 %v4970, 2147483648
        %v4983 = vor.u32 1.1754944e-38, %v4982
        %v4984 = vsel %vm4981, %v4983, %v4979
        %v4985 = vmul.f32 %v4960, %v4984
        %v4986 = vmin.f32 %v4985, 1.0
        %v4987 = vmax.f32 %v4986, -1.0
        %v4988 = vmul.f32 %v4746, %v4746
        %v4989 = vmin.f32 16.0, %v4988
        %v4990 = vmul.f32 %v4989, 2.1237322e-06
        %v4991 = vadd.f32 %v4990, 0.00028619796
        %v4992 = vmul.f32 %v4989, %v4991
        %v4993 = vadd.f32 %v4992, 0.0036580483
        %v4994 = vmul.f32 %v4989, %v4993
        %v4995 = vadd.f32 %v4994, 0.05243302
        %v4996 = vmul.f32 %v4989, %v4995
        %v4997 = vadd.f32 %v4996, 0.18741608
        %v4998 = vmul.f32 %v4989, %v4997
        %v4999 = vadd.f32 %v4998, 1.1283791
        %v5000 = vmul.f32 %v4746, %v4999
        %v5001 = vmul.f32 %v4989, 3.8918573e-05
        %v5002 = vadd.f32 %v5001, 0.001143296
        %v5003 = vmul.f32 %v4989, %v5002
        %v5004 = vadd.f32 %v5003, 0.014752088
        %v5005 = vmul.f32 %v4989, %v5004
        %v5006 = vadd.f32 %v5005, 0.112945676
        %v5007 = vmul.f32 %v4989, %v5006
        %v5008 = vadd.f32 %v5007, 0.4994258
        %v5009 = vmul.f32 %v4989, %v5008
        %v5010 = vadd.f32 %v5009, 1.0
        %v5011 = vrcp.pop %v5010
        %v5012 = vmul.f32 %v5010, %v5011
        %v5013 = vsub.f32 1.0, %v5012
        %v5014 = vmul.f32 %v5011, %v5013
        %v5015 = vadd.f32 %v5011, %v5014
        %vm5016 = vweird.f32 %v5010
        %vm5017 = vweird.f32 %v5011
        %vm5018 = vmor %vm5016, %vm5017
        %v5019 = vsel %vm5018, %v5011, %v5015
        %v5020 = vand.u32 2147483647, %v5010
        %vm5021 = vcmp.eq.f32.partialorder %v5020, 8.507059e+37
        %v5022 = vand.u32 %v5010, 2147483648
        %v5023 = vor.u32 1.1754944e-38, %v5022
        %v5024 = vsel %vm5021, %v5023, %v5019
        %v5025 = vmul.f32 %v5000, %v5024
        %v5026 = vmin.f32 %v5025, 1.0
        %v5027 = vmax.f32 %v5026, -1.0
        %v5028 = vmul.f32 %v4747, %v4747
        %v5029 = vmin.f32 16.0, %v5028
        %v5030 = vmul.f32 %v5029, 2.1237322e-06
        %v5031 = vadd.f32 %v5030, 0.00028619796
        %v5032 = vmul.f32 %v5029, %v5031
        %v5033 = vadd.f32 %v5032, 0.0036580483
        %v5034 = vmul.f32 %v5029, %v5033
        %v5035 = vadd.f32 %v5034, 0.05243302
        %v5036 = vmul.f32 %v5029, %v5035
        %v5037 = vadd.f32 %v5036, 0.18741608
        %v5038 = vmul.f32 %v5029, %v5037
        %v5039 = vadd.f32 %v5038, 1.1283791
        %v5040 = vmul.f32 %v4747, %v5039
        %v5041 = vmul.f32 %v5029, 3.8918573e-05
        %v5042 = vadd.f32 %v5041, 0.001143296
        %v5043 = vmul.f32 %v5029, %v5042
        %v5044 = vadd.f32 %v5043, 0.014752088
        %v5045 = vmul.f32 %v5029, %v5044
        %v5046 = vadd.f32 %v5045, 0.112945676
        %v5047 = vmul.f32 %v5029, %v5046
        %v5048 = vadd.f32 %v5047, 0.4994258
        %v5049 = vmul.f32 %v5029, %v5048
        %v5050 = vadd.f32 %v5049, 1.0
        %v5051 = vrcp.pop %v5050
        %v5052 = vmul.f32 %v5050, %v5051
        %v5053 = vsub.f32 1.0, %v5052
        %v5054 = vmul.f32 %v5051, %v5053
        %v5055 = vadd.f32 %v5051, %v5054
        %vm5056 = vweird.f32 %v5050
        %vm5057 = vweird.f32 %v5051
        %vm5058 = vmor %vm5056, %vm5057
        %v5059 = vsel %vm5058, %v5051, %v5055
        %v5060 = vand.u32 2147483647, %v5050
        %vm5061 = vcmp.eq.f32.partialorder %v5060, 8.507059e+37
        %v5062 = vand.u32 %v5050, 2147483648
        %v5063 = vor.u32 1.1754944e-38, %v5062
        %v5064 = vsel %vm5061, %v5063, %v5059
        %v5065 = vmul.f32 %v5040, %v5064
        %v5066 = vmin.f32 %v5065, 1.0
        %v5067 = vmax.f32 %v5066, -1.0
        %v5068 = vadd.f32 %v4787, 1.0
        %v5069 = vadd.f32 %v4827, 1.0
        %v5070 = vadd.f32 %v4867, 1.0
        %v5071 = vadd.f32 %v4907, 1.0
        %v5072 = vadd.f32 %v4947, 1.0
        %v5073 = vadd.f32 %v4987, 1.0
        %v5074 = vadd.f32 %v5027, 1.0
        %v5075 = vadd.f32 %v5067, 1.0
        %v5076 = vmul.f32 %v4732, %v5068
        %v5077 = vmul.f32 %v4733, %v5069
        %v5078 = vmul.f32 %v4734, %v5070
        %v5079 = vmul.f32 %v4735, %v5071
        %v5080 = vmul.f32 %v4736, %v5072
        %v5081 = vmul.f32 %v4737, %v5073
        %v5082 = vmul.f32 %v4738, %v5074
        %v5083 = vmul.f32 %v4739, %v5075
        %v5084 = vld [vmem:[%s13] sm:$0xff]
        %v5085 = vld [vmem:[%s13 + $0x8] sm:$0xff]
        %v5086 = vld [vmem:[%s13 + $0x10] sm:$0xff]
        %v5087 = vld [vmem:[%s13 + $0x18] sm:$0xff]
        %v5088 = vld [vmem:[%s13 + $0x20] sm:$0xff]
        %v5089 = vld [vmem:[%s13 + $0x28] sm:$0xff]
        %v5090 = vld [vmem:[%s13 + $0x30] sm:$0xff]
        %v5091 = vld [vmem:[%s13 + $0x38] sm:$0xff]
        %v5092 = vld [vmem:[%s13 + $0x40] sm:$0xff]
        %v5093 = vld [vmem:[%s13 + $0x48] sm:$0xff]
        %v5094 = vld [vmem:[%s13 + $0x50] sm:$0xff]
        %v5095 = vld [vmem:[%s13 + $0x58] sm:$0xff]
        %v5096 = vld [vmem:[%s13 + $0x60] sm:$0xff]
        %v5097 = vld [vmem:[%s13 + $0x68] sm:$0xff]
        %v5098 = vld [vmem:[%s13 + $0x70] sm:$0xff]
        %v5099 = vld [vmem:[%s13 + $0x78] sm:$0xff]
        %v5100 = vld [vmem:[#allocation16 + $0x6] sm:$0x1]
        %v5102 = vperm.slane %v5100, 0
        %5104 = vmatpush.msra.mxu0 %v5099
        %5105 = vmatpush.msra.mxu0 %v5098
        %5106 = vmatpush.msra.mxu0 %v5097
        %5107 = vmatpush.msra.mxu0 %v5096
        %5108 = vmatpush.msra.mxu0 %v5095
        %5109 = vmatpush.msra.mxu0 %v5094
        %5110 = vmatpush.msra.mxu0 %v5093
        %5111 = vmatpush.msra.mxu0 %v5092
        %5112 = vmatpush.msra.mxu0 %v5091
        %5113 = vmatpush.msra.mxu0 %v5090
        %5114 = vmatpush.msra.mxu0 %v5089
        %5115 = vmatpush.msra.mxu0 %v5088
        %5116 = vmatpush.msra.mxu0 %v5087
        %5117 = vmatpush.msra.mxu0 %v5086
        %5118 = vmatpush.msra.mxu0 %v5085
        %5119 = vmatpush.msra.mxu0 %v5084
        %5120 = vmatmul.f32.gmra.mxu0 %v5076
        %v5121 = vpop.f32.mrf.mxu0
        %v5122 = vadd.f32 %v5102, %v5121
        %5123 = vmatmul.f32.gmra.mxu0 %v5077
        %v5124 = vpop.f32.mrf.mxu0
        %v5125 = vadd.f32 %v5102, %v5124
        %5126 = vmatmul.f32.gmra.mxu0 %v5078
        %v5127 = vpop.f32.mrf.mxu0
        %v5128 = vadd.f32 %v5102, %v5127
        %5129 = vmatmul.f32.gmra.mxu0 %v5079
        %v5130 = vpop.f32.mrf.mxu0
        %v5131 = vadd.f32 %v5102, %v5130
        %5132 = vmatmul.f32.gmra.mxu0 %v5080
        %v5133 = vpop.f32.mrf.mxu0
        %v5134 = vadd.f32 %v5102, %v5133
        %5135 = vmatmul.f32.gmra.mxu0 %v5081
        %v5136 = vpop.f32.mrf.mxu0
        %v5137 = vadd.f32 %v5102, %v5136
        %5138 = vmatmul.f32.gmra.mxu0 %v5082
        %v5139 = vpop.f32.mrf.mxu0
        %v5140 = vadd.f32 %v5102, %v5139
        %5141 = vmatmul.f32.gmra.mxu0 %v5083
        %v5142 = vpop.f32.mrf.mxu0
        %v5143 = vadd.f32 %v5102, %v5142
        %5144 = vdwg.mxu0
        %v5145 = vsel %vm1962, %v5122, 0.0
        %5146 = vadd.xlane.f32.xlu0 %v5145
        %v5147 = vpop.xlane.xlu0 %5146
        %v5148 = vsel %vm1962, %v5125, 0.0
        %5149 = vadd.xlane.f32.xlu0 %v5148
        %v5150 = vpop.xlane.xlu0 %5149
        %v5151 = vsel %vm1962, %v5128, 0.0
        %5152 = vadd.xlane.f32.xlu0 %v5151
        %v5153 = vpop.xlane.xlu0 %5152
        %v5154 = vsel %vm1962, %v5131, 0.0
        %5155 = vadd.xlane.f32.xlu0 %v5154
        %v5156 = vpop.xlane.xlu0 %5155
        %v5157 = vsel %vm1962, %v5134, 0.0
        %5158 = vadd.xlane.f32.xlu0 %v5157
        %v5159 = vpop.xlane.xlu0 %5158
        %v5160 = vsel %vm1962, %v5137, 0.0
        %5161 = vadd.xlane.f32.xlu0 %v5160
        %v5162 = vpop.xlane.xlu0 %5161
        %v5163 = vsel %vm1962, %v5140, 0.0
        %5164 = vadd.xlane.f32.xlu0 %v5163
        %v5165 = vpop.xlane.xlu0 %5164
        %v5166 = vsel %vm1962, %v5143, 0.0
        %5167 = vadd.xlane.f32.xlu0 %v5166
        %v5168 = vpop.xlane.xlu0 %5167
        %v5169 = vmul.f32 %v5147, %v1993
        %v5170 = vmul.f32 %v5150, %v1993
        %v5171 = vmul.f32 %v5153, %v1993
        %v5172 = vmul.f32 %v5156, %v1993
        %v5173 = vmul.f32 %v5159, %v1993
        %v5174 = vmul.f32 %v5162, %v1993
        %v5175 = vmul.f32 %v5165, %v1993
        %v5176 = vmul.f32 %v5168, %v1993
        %v5177 = vsub.f32 %v5122, %v5169
        %v5178 = vsub.f32 %v5125, %v5170
        %v5179 = vsub.f32 %v5128, %v5171
        %v5180 = vsub.f32 %v5131, %v5172
        %v5181 = vsub.f32 %v5134, %v5173
        %v5182 = vsub.f32 %v5137, %v5174
        %v5183 = vsub.f32 %v5140, %v5175
        %v5184 = vsub.f32 %v5143, %v5176
        %v5185 = vmul.f32 %v5177, %v5177
        %v5186 = vmul.f32 %v5178, %v5178
        %v5187 = vmul.f32 %v5179, %v5179
        %v5188 = vmul.f32 %v5180, %v5180
        %v5189 = vmul.f32 %v5181, %v5181
        %v5190 = vmul.f32 %v5182, %v5182
        %v5191 = vmul.f32 %v5183, %v5183
        %v5192 = vmul.f32 %v5184, %v5184
        %v5193 = vsel %vm1962, %v5185, 0.0
        %5194 = vadd.xlane.f32.xlu0 %v5193
        %v5195 = vpop.xlane.xlu0 %5194
        %v5196 = vsel %vm1962, %v5186, 0.0
        %5197 = vadd.xlane.f32.xlu0 %v5196
        %v5198 = vpop.xlane.xlu0 %5197
        %v5199 = vsel %vm1962, %v5187, 0.0
        %5200 = vadd.xlane.f32.xlu0 %v5199
        %v5201 = vpop.xlane.xlu0 %5200
        %v5202 = vsel %vm1962, %v5188, 0.0
        %5203 = vadd.xlane.f32.xlu0 %v5202
        %v5204 = vpop.xlane.xlu0 %5203
        %v5205 = vsel %vm1962, %v5189, 0.0
        %5206 = vadd.xlane.f32.xlu0 %v5205
        %v5207 = vpop.xlane.xlu0 %5206
        %v5208 = vsel %vm1962, %v5190, 0.0
        %5209 = vadd.xlane.f32.xlu0 %v5208
        %v5210 = vpop.xlane.xlu0 %5209
        %v5211 = vsel %vm1962, %v5191, 0.0
        %5212 = vadd.xlane.f32.xlu0 %v5211
        %v5213 = vpop.xlane.xlu0 %5212
        %v5214 = vsel %vm1962, %v5192, 0.0
        %5215 = vadd.xlane.f32.xlu0 %v5214
        %v5216 = vpop.xlane.xlu0 %5215
        %v5217 = vmul.f32 %v5195, %v1993
        %v5218 = vmul.f32 %v5198, %v1993
        %v5219 = vmul.f32 %v5201, %v1993
        %v5220 = vmul.f32 %v5204, %v1993
        %v5221 = vmul.f32 %v5207, %v1993
        %v5222 = vmul.f32 %v5210, %v1993
        %v5223 = vmul.f32 %v5213, %v1993
        %v5224 = vmul.f32 %v5216, %v1993
        %v5225 = vadd.f32 %v5217, 1e-05
        %v5226 = vadd.f32 %v5218, 1e-05
        %v5227 = vadd.f32 %v5219, 1e-05
        %v5228 = vadd.f32 %v5220, 1e-05
        %v5229 = vadd.f32 %v5221, 1e-05
        %v5230 = vadd.f32 %v5222, 1e-05
        %v5231 = vadd.f32 %v5223, 1e-05
        %v5232 = vadd.f32 %v5224, 1e-05
        %v5233 = vrsqrt.pop %v5225
        %v5234 = vmul.f32 %v5233, %v5225
        %v5235 = vmul.f32 %v5234, %v5233
        %v5236 = vmul.f32 0.5, %v5235
        %v5237 = vsub.f32 1.5, %v5236
        %v5238 = vmul.f32 %v5233, %v5237
        %vm5239 = vweird.f32 %v5225
        %vm5240 = vweird.f32 %v5233
        %vm5241 = vmor %vm5239, %vm5240
        %v5242 = vsel %vm5241, %v5233, %v5238
        %v5243 = vrsqrt.pop %v5226
        %v5244 = vmul.f32 %v5243, %v5226
        %v5245 = vmul.f32 %v5244, %v5243
        %v5246 = vmul.f32 0.5, %v5245
        %v5247 = vsub.f32 1.5, %v5246
        %v5248 = vmul.f32 %v5243, %v5247
        %vm5249 = vweird.f32 %v5226
        %vm5250 = vweird.f32 %v5243
        %vm5251 = vmor %vm5249, %vm5250
        %v5252 = vsel %vm5251, %v5243, %v5248
        %v5253 = vrsqrt.pop %v5227
        %v5254 = vmul.f32 %v5253, %v5227
        %v5255 = vmul.f32 %v5254, %v5253
        %v5256 = vmul.f32 0.5, %v5255
        %v5257 = vsub.f32 1.5, %v5256
        %v5258 = vmul.f32 %v5253, %v5257
        %vm5259 = vweird.f32 %v5227
        %vm5260 = vweird.f32 %v5253
        %vm5261 = vmor %vm5259, %vm5260
        %v5262 = vsel %vm5261, %v5253, %v5258
        %v5263 = vrsqrt.pop %v5228
        %v5264 = vmul.f32 %v5263, %v5228
        %v5265 = vmul.f32 %v5264, %v5263
        %v5266 = vmul.f32 0.5, %v5265
        %v5267 = vsub.f32 1.5, %v5266
        %v5268 = vmul.f32 %v5263, %v5267
        %vm5269 = vweird.f32 %v5228
        %vm5270 = vweird.f32 %v5263
        %vm5271 = vmor %vm5269, %vm5270
        %v5272 = vsel %vm5271, %v5263, %v5268
        %v5273 = vrsqrt.pop %v5229
        %v5274 = vmul.f32 %v5273, %v5229
        %v5275 = vmul.f32 %v5274, %v5273
        %v5276 = vmul.f32 0.5, %v5275
        %v5277 = vsub.f32 1.5, %v5276
        %v5278 = vmul.f32 %v5273, %v5277
        %vm5279 = vweird.f32 %v5229
        %vm5280 = vweird.f32 %v5273
        %vm5281 = vmor %vm5279, %vm5280
        %v5282 = vsel %vm5281, %v5273, %v5278
        %v5283 = vrsqrt.pop %v5230
        %v5284 = vmul.f32 %v5283, %v5230
        %v5285 = vmul.f32 %v5284, %v5283
        %v5286 = vmul.f32 0.5, %v5285
        %v5287 = vsub.f32 1.5, %v5286
        %v5288 = vmul.f32 %v5283, %v5287
        %vm5289 = vweird.f32 %v5230
        %vm5290 = vweird.f32 %v5283
        %vm5291 = vmor %vm5289, %vm5290
        %v5292 = vsel %vm5291, %v5283, %v5288
        %v5293 = vrsqrt.pop %v5231
        %v5294 = vmul.f32 %v5293, %v5231
        %v5295 = vmul.f32 %v5294, %v5293
        %v5296 = vmul.f32 0.5, %v5295
        %v5297 = vsub.f32 1.5, %v5296
        %v5298 = vmul.f32 %v5293, %v5297
        %vm5299 = vweird.f32 %v5231
        %vm5300 = vweird.f32 %v5293
        %vm5301 = vmor %vm5299, %vm5300
        %v5302 = vsel %vm5301, %v5293, %v5298
        %v5303 = vrsqrt.pop %v5232
        %v5304 = vmul.f32 %v5303, %v5232
        %v5305 = vmul.f32 %v5304, %v5303
        %v5306 = vmul.f32 0.5, %v5305
        %v5307 = vsub.f32 1.5, %v5306
        %v5308 = vmul.f32 %v5303, %v5307
        %vm5309 = vweird.f32 %v5232
        %vm5310 = vweird.f32 %v5303
        %vm5311 = vmor %vm5309, %vm5310
        %v5312 = vsel %vm5311, %v5303, %v5308
        %v5313 = vmul.f32 %v5177, %v5242
        %v5314 = vmul.f32 %v5178, %v5252
        %v5315 = vmul.f32 %v5179, %v5262
        %v5316 = vmul.f32 %v5180, %v5272
        %v5317 = vmul.f32 %v5181, %v5282
        %v5318 = vmul.f32 %v5182, %v5292
        %v5319 = vmul.f32 %v5183, %v5302
        %v5320 = vmul.f32 %v5184, %v5312
        %v5321 = vmul.f32 %v5313, 0.5
        %v5322 = vmul.f32 %v5314, 0.5
        %v5323 = vmul.f32 %v5315, 0.5
        %v5324 = vmul.f32 %v5316, 0.5
        %v5325 = vmul.f32 %v5317, 0.5
        %v5326 = vmul.f32 %v5318, 0.5
        %v5327 = vmul.f32 %v5319, 0.5
        %v5328 = vmul.f32 %v5320, 0.5
        %v5329 = vmul.f32 %v5313, 0.70710677
        %v5330 = vmul.f32 %v5314, 0.70710677
        %v5331 = vmul.f32 %v5315, 0.70710677
        %v5332 = vmul.f32 %v5316, 0.70710677
        %v5333 = vmul.f32 %v5317, 0.70710677
        %v5334 = vmul.f32 %v5318, 0.70710677
        %v5335 = vmul.f32 %v5319, 0.70710677
        %v5336 = vmul.f32 %v5320, 0.70710677
        %v5337 = vmul.f32 %v5329, %v5329
        %v5338 = vmin.f32 16.0, %v5337
        %v5339 = vmul.f32 %v5338, 2.1237322e-06
        %v5340 = vadd.f32 %v5339, 0.00028619796
        %v5341 = vmul.f32 %v5338, %v5340
        %v5342 = vadd.f32 %v5341, 0.0036580483
        %v5343 = vmul.f32 %v5338, %v5342
        %v5344 = vadd.f32 %v5343, 0.05243302
        %v5345 = vmul.f32 %v5338, %v5344
        %v5346 = vadd.f32 %v5345, 0.18741608
        %v5347 = vmul.f32 %v5338, %v5346
        %v5348 = vadd.f32 %v5347, 1.1283791
        %v5349 = vmul.f32 %v5329, %v5348
        %v5350 = vmul.f32 %v5338, 3.8918573e-05
        %v5351 = vadd.f32 %v5350, 0.001143296
        %v5352 = vmul.f32 %v5338, %v5351
        %v5353 = vadd.f32 %v5352, 0.014752088
        %v5354 = vmul.f32 %v5338, %v5353
        %v5355 = vadd.f32 %v5354, 0.112945676
        %v5356 = vmul.f32 %v5338, %v5355
        %v5357 = vadd.f32 %v5356, 0.4994258
        %v5358 = vmul.f32 %v5338, %v5357
        %v5359 = vadd.f32 %v5358, 1.0
        %v5360 = vrcp.pop %v5359
        %v5361 = vmul.f32 %v5359, %v5360
        %v5362 = vsub.f32 1.0, %v5361
        %v5363 = vmul.f32 %v5360, %v5362
        %v5364 = vadd.f32 %v5360, %v5363
        %vm5365 = vweird.f32 %v5359
        %vm5366 = vweird.f32 %v5360
        %vm5367 = vmor %vm5365, %vm5366
        %v5368 = vsel %vm5367, %v5360, %v5364
        %v5369 = vand.u32 2147483647, %v5359
        %vm5370 = vcmp.eq.f32.partialorder %v5369, 8.507059e+37
        %v5371 = vand.u32 %v5359, 2147483648
        %v5372 = vor.u32 1.1754944e-38, %v5371
        %v5373 = vsel %vm5370, %v5372, %v5368
        %v5374 = vmul.f32 %v5349, %v5373
        %v5375 = vmin.f32 %v5374, 1.0
        %v5376 = vmax.f32 %v5375, -1.0
        %v5377 = vmul.f32 %v5330, %v5330
        %v5378 = vmin.f32 16.0, %v5377
        %v5379 = vmul.f32 %v5378, 2.1237322e-06
        %v5380 = vadd.f32 %v5379, 0.00028619796
        %v5381 = vmul.f32 %v5378, %v5380
        %v5382 = vadd.f32 %v5381, 0.0036580483
        %v5383 = vmul.f32 %v5378, %v5382
        %v5384 = vadd.f32 %v5383, 0.05243302
        %v5385 = vmul.f32 %v5378, %v5384
        %v5386 = vadd.f32 %v5385, 0.18741608
        %v5387 = vmul.f32 %v5378, %v5386
        %v5388 = vadd.f32 %v5387, 1.1283791
        %v5389 = vmul.f32 %v5330, %v5388
        %v5390 = vmul.f32 %v5378, 3.8918573e-05
        %v5391 = vadd.f32 %v5390, 0.001143296
        %v5392 = vmul.f32 %v5378, %v5391
        %v5393 = vadd.f32 %v5392, 0.014752088
        %v5394 = vmul.f32 %v5378, %v5393
        %v5395 = vadd.f32 %v5394, 0.112945676
        %v5396 = vmul.f32 %v5378, %v5395
        %v5397 = vadd.f32 %v5396, 0.4994258
        %v5398 = vmul.f32 %v5378, %v5397
        %v5399 = vadd.f32 %v5398, 1.0
        %v5400 = vrcp.pop %v5399
        %v5401 = vmul.f32 %v5399, %v5400
        %v5402 = vsub.f32 1.0, %v5401
        %v5403 = vmul.f32 %v5400, %v5402
        %v5404 = vadd.f32 %v5400, %v5403
        %vm5405 = vweird.f32 %v5399
        %vm5406 = vweird.f32 %v5400
        %vm5407 = vmor %vm5405, %vm5406
        %v5408 = vsel %vm5407, %v5400, %v5404
        %v5409 = vand.u32 2147483647, %v5399
        %vm5410 = vcmp.eq.f32.partialorder %v5409, 8.507059e+37
        %v5411 = vand.u32 %v5399, 2147483648
        %v5412 = vor.u32 1.1754944e-38, %v5411
        %v5413 = vsel %vm5410, %v5412, %v5408
        %v5414 = vmul.f32 %v5389, %v5413
        %v5415 = vmin.f32 %v5414, 1.0
        %v5416 = vmax.f32 %v5415, -1.0
        %v5417 = vmul.f32 %v5331, %v5331
        %v5418 = vmin.f32 16.0, %v5417
        %v5419 = vmul.f32 %v5418, 2.1237322e-06
        %v5420 = vadd.f32 %v5419, 0.00028619796
        %v5421 = vmul.f32 %v5418, %v5420
        %v5422 = vadd.f32 %v5421, 0.0036580483
        %v5423 = vmul.f32 %v5418, %v5422
        %v5424 = vadd.f32 %v5423, 0.05243302
        %v5425 = vmul.f32 %v5418, %v5424
        %v5426 = vadd.f32 %v5425, 0.18741608
        %v5427 = vmul.f32 %v5418, %v5426
        %v5428 = vadd.f32 %v5427, 1.1283791
        %v5429 = vmul.f32 %v5331, %v5428
        %v5430 = vmul.f32 %v5418, 3.8918573e-05
        %v5431 = vadd.f32 %v5430, 0.001143296
        %v5432 = vmul.f32 %v5418, %v5431
        %v5433 = vadd.f32 %v5432, 0.014752088
        %v5434 = vmul.f32 %v5418, %v5433
        %v5435 = vadd.f32 %v5434, 0.112945676
        %v5436 = vmul.f32 %v5418, %v5435
        %v5437 = vadd.f32 %v5436, 0.4994258
        %v5438 = vmul.f32 %v5418, %v5437
        %v5439 = vadd.f32 %v5438, 1.0
        %v5440 = vrcp.pop %v5439
        %v5441 = vmul.f32 %v5439, %v5440
        %v5442 = vsub.f32 1.0, %v5441
        %v5443 = vmul.f32 %v5440, %v5442
        %v5444 = vadd.f32 %v5440, %v5443
        %vm5445 = vweird.f32 %v5439
        %vm5446 = vweird.f32 %v5440
        %vm5447 = vmor %vm5445, %vm5446
        %v5448 = vsel %vm5447, %v5440, %v5444
        %v5449 = vand.u32 2147483647, %v5439
        %vm5450 = vcmp.eq.f32.partialorder %v5449, 8.507059e+37
        %v5451 = vand.u32 %v5439, 2147483648
        %v5452 = vor.u32 1.1754944e-38, %v5451
        %v5453 = vsel %vm5450, %v5452, %v5448
        %v5454 = vmul.f32 %v5429, %v5453
        %v5455 = vmin.f32 %v5454, 1.0
        %v5456 = vmax.f32 %v5455, -1.0
        %v5457 = vmul.f32 %v5332, %v5332
        %v5458 = vmin.f32 16.0, %v5457
        %v5459 = vmul.f32 %v5458, 2.1237322e-06
        %v5460 = vadd.f32 %v5459, 0.00028619796
        %v5461 = vmul.f32 %v5458, %v5460
        %v5462 = vadd.f32 %v5461, 0.0036580483
        %v5463 = vmul.f32 %v5458, %v5462
        %v5464 = vadd.f32 %v5463, 0.05243302
        %v5465 = vmul.f32 %v5458, %v5464
        %v5466 = vadd.f32 %v5465, 0.18741608
        %v5467 = vmul.f32 %v5458, %v5466
        %v5468 = vadd.f32 %v5467, 1.1283791
        %v5469 = vmul.f32 %v5332, %v5468
        %v5470 = vmul.f32 %v5458, 3.8918573e-05
        %v5471 = vadd.f32 %v5470, 0.001143296
        %v5472 = vmul.f32 %v5458, %v5471
        %v5473 = vadd.f32 %v5472, 0.014752088
        %v5474 = vmul.f32 %v5458, %v5473
        %v5475 = vadd.f32 %v5474, 0.112945676
        %v5476 = vmul.f32 %v5458, %v5475
        %v5477 = vadd.f32 %v5476, 0.4994258
        %v5478 = vmul.f32 %v5458, %v5477
        %v5479 = vadd.f32 %v5478, 1.0
        %v5480 = vrcp.pop %v5479
        %v5481 = vmul.f32 %v5479, %v5480
        %v5482 = vsub.f32 1.0, %v5481
        %v5483 = vmul.f32 %v5480, %v5482
        %v5484 = vadd.f32 %v5480, %v5483
        %vm5485 = vweird.f32 %v5479
        %vm5486 = vweird.f32 %v5480
        %vm5487 = vmor %vm5485, %vm5486
        %v5488 = vsel %vm5487, %v5480, %v5484
        %v5489 = vand.u32 2147483647, %v5479
        %vm5490 = vcmp.eq.f32.partialorder %v5489, 8.507059e+37
        %v5491 = vand.u32 %v5479, 2147483648
        %v5492 = vor.u32 1.1754944e-38, %v5491
        %v5493 = vsel %vm5490, %v5492, %v5488
        %v5494 = vmul.f32 %v5469, %v5493
        %v5495 = vmin.f32 %v5494, 1.0
        %v5496 = vmax.f32 %v5495, -1.0
        %v5497 = vmul.f32 %v5333, %v5333
        %v5498 = vmin.f32 16.0, %v5497
        %v5499 = vmul.f32 %v5498, 2.1237322e-06
        %v5500 = vadd.f32 %v5499, 0.00028619796
        %v5501 = vmul.f32 %v5498, %v5500
        %v5502 = vadd.f32 %v5501, 0.0036580483
        %v5503 = vmul.f32 %v5498, %v5502
        %v5504 = vadd.f32 %v5503, 0.05243302
        %v5505 = vmul.f32 %v5498, %v5504
        %v5506 = vadd.f32 %v5505, 0.18741608
        %v5507 = vmul.f32 %v5498, %v5506
        %v5508 = vadd.f32 %v5507, 1.1283791
        %v5509 = vmul.f32 %v5333, %v5508
        %v5510 = vmul.f32 %v5498, 3.8918573e-05
        %v5511 = vadd.f32 %v5510, 0.001143296
        %v5512 = vmul.f32 %v5498, %v5511
        %v5513 = vadd.f32 %v5512, 0.014752088
        %v5514 = vmul.f32 %v5498, %v5513
        %v5515 = vadd.f32 %v5514, 0.112945676
        %v5516 = vmul.f32 %v5498, %v5515
        %v5517 = vadd.f32 %v5516, 0.4994258
        %v5518 = vmul.f32 %v5498, %v5517
        %v5519 = vadd.f32 %v5518, 1.0
        %v5520 = vrcp.pop %v5519
        %v5521 = vmul.f32 %v5519, %v5520
        %v5522 = vsub.f32 1.0, %v5521
        %v5523 = vmul.f32 %v5520, %v5522
        %v5524 = vadd.f32 %v5520, %v5523
        %vm5525 = vweird.f32 %v5519
        %vm5526 = vweird.f32 %v5520
        %vm5527 = vmor %vm5525, %vm5526
        %v5528 = vsel %vm5527, %v5520, %v5524
        %v5529 = vand.u32 2147483647, %v5519
        %vm5530 = vcmp.eq.f32.partialorder %v5529, 8.507059e+37
        %v5531 = vand.u32 %v5519, 2147483648
        %v5532 = vor.u32 1.1754944e-38, %v5531
        %v5533 = vsel %vm5530, %v5532, %v5528
        %v5534 = vmul.f32 %v5509, %v5533
        %v5535 = vmin.f32 %v5534, 1.0
        %v5536 = vmax.f32 %v5535, -1.0
        %v5537 = vmul.f32 %v5334, %v5334
        %v5538 = vmin.f32 16.0, %v5537
        %v5539 = vmul.f32 %v5538, 2.1237322e-06
        %v5540 = vadd.f32 %v5539, 0.00028619796
        %v5541 = vmul.f32 %v5538, %v5540
        %v5542 = vadd.f32 %v5541, 0.0036580483
        %v5543 = vmul.f32 %v5538, %v5542
        %v5544 = vadd.f32 %v5543, 0.05243302
        %v5545 = vmul.f32 %v5538, %v5544
        %v5546 = vadd.f32 %v5545, 0.18741608
        %v5547 = vmul.f32 %v5538, %v5546
        %v5548 = vadd.f32 %v5547, 1.1283791
        %v5549 = vmul.f32 %v5334, %v5548
        %v5550 = vmul.f32 %v5538, 3.8918573e-05
        %v5551 = vadd.f32 %v5550, 0.001143296
        %v5552 = vmul.f32 %v5538, %v5551
        %v5553 = vadd.f32 %v5552, 0.014752088
        %v5554 = vmul.f32 %v5538, %v5553
        %v5555 = vadd.f32 %v5554, 0.112945676
        %v5556 = vmul.f32 %v5538, %v5555
        %v5557 = vadd.f32 %v5556, 0.4994258
        %v5558 = vmul.f32 %v5538, %v5557
        %v5559 = vadd.f32 %v5558, 1.0
        %v5560 = vrcp.pop %v5559
        %v5561 = vmul.f32 %v5559, %v5560
        %v5562 = vsub.f32 1.0, %v5561
        %v5563 = vmul.f32 %v5560, %v5562
        %v5564 = vadd.f32 %v5560, %v5563
        %vm5565 = vweird.f32 %v5559
        %vm5566 = vweird.f32 %v5560
        %vm5567 = vmor %vm5565, %vm5566
        %v5568 = vsel %vm5567, %v5560, %v5564
        %v5569 = vand.u32 2147483647, %v5559
        %vm5570 = vcmp.eq.f32.partialorder %v5569, 8.507059e+37
        %v5571 = vand.u32 %v5559, 2147483648
        %v5572 = vor.u32 1.1754944e-38, %v5571
        %v5573 = vsel %vm5570, %v5572, %v5568
        %v5574 = vmul.f32 %v5549, %v5573
        %v5575 = vmin.f32 %v5574, 1.0
        %v5576 = vmax.f32 %v5575, -1.0
        %v5577 = vmul.f32 %v5335, %v5335
        %v5578 = vmin.f32 16.0, %v5577
        %v5579 = vmul.f32 %v5578, 2.1237322e-06
        %v5580 = vadd.f32 %v5579, 0.00028619796
        %v5581 = vmul.f32 %v5578, %v5580
        %v5582 = vadd.f32 %v5581, 0.0036580483
        %v5583 = vmul.f32 %v5578, %v5582
        %v5584 = vadd.f32 %v5583, 0.05243302
        %v5585 = vmul.f32 %v5578, %v5584
        %v5586 = vadd.f32 %v5585, 0.18741608
        %v5587 = vmul.f32 %v5578, %v5586
        %v5588 = vadd.f32 %v5587, 1.1283791
        %v5589 = vmul.f32 %v5335, %v5588
        %v5590 = vmul.f32 %v5578, 3.8918573e-05
        %v5591 = vadd.f32 %v5590, 0.001143296
        %v5592 = vmul.f32 %v5578, %v5591
        %v5593 = vadd.f32 %v5592, 0.014752088
        %v5594 = vmul.f32 %v5578, %v5593
        %v5595 = vadd.f32 %v5594, 0.112945676
        %v5596 = vmul.f32 %v5578, %v5595
        %v5597 = vadd.f32 %v5596, 0.4994258
        %v5598 = vmul.f32 %v5578, %v5597
        %v5599 = vadd.f32 %v5598, 1.0
        %v5600 = vrcp.pop %v5599
        %v5601 = vmul.f32 %v5599, %v5600
        %v5602 = vsub.f32 1.0, %v5601
        %v5603 = vmul.f32 %v5600, %v5602
        %v5604 = vadd.f32 %v5600, %v5603
        %vm5605 = vweird.f32 %v5599
        %vm5606 = vweird.f32 %v5600
        %vm5607 = vmor %vm5605, %vm5606
        %v5608 = vsel %vm5607, %v5600, %v5604
        %v5609 = vand.u32 2147483647, %v5599
        %vm5610 = vcmp.eq.f32.partialorder %v5609, 8.507059e+37
        %v5611 = vand.u32 %v5599, 2147483648
        %v5612 = vor.u32 1.1754944e-38, %v5611
        %v5613 = vsel %vm5610, %v5612, %v5608
        %v5614 = vmul.f32 %v5589, %v5613
        %v5615 = vmin.f32 %v5614, 1.0
        %v5616 = vmax.f32 %v5615, -1.0
        %v5617 = vmul.f32 %v5336, %v5336
        %v5618 = vmin.f32 16.0, %v5617
        %v5619 = vmul.f32 %v5618, 2.1237322e-06
        %v5620 = vadd.f32 %v5619, 0.00028619796
        %v5621 = vmul.f32 %v5618, %v5620
        %v5622 = vadd.f32 %v5621, 0.0036580483
        %v5623 = vmul.f32 %v5618, %v5622
        %v5624 = vadd.f32 %v5623, 0.05243302
        %v5625 = vmul.f32 %v5618, %v5624
        %v5626 = vadd.f32 %v5625, 0.18741608
        %v5627 = vmul.f32 %v5618, %v5626
        %v5628 = vadd.f32 %v5627, 1.1283791
        %v5629 = vmul.f32 %v5336, %v5628
        %v5630 = vmul.f32 %v5618, 3.8918573e-05
        %v5631 = vadd.f32 %v5630, 0.001143296
        %v5632 = vmul.f32 %v5618, %v5631
        %v5633 = vadd.f32 %v5632, 0.014752088
        %v5634 = vmul.f32 %v5618, %v5633
        %v5635 = vadd.f32 %v5634, 0.112945676
        %v5636 = vmul.f32 %v5618, %v5635
        %v5637 = vadd.f32 %v5636, 0.4994258
        %v5638 = vmul.f32 %v5618, %v5637
        %v5639 = vadd.f32 %v5638, 1.0
        %v5640 = vrcp.pop %v5639
        %v5641 = vmul.f32 %v5639, %v5640
        %v5642 = vsub.f32 1.0, %v5641
        %v5643 = vmul.f32 %v5640, %v5642
        %v5644 = vadd.f32 %v5640, %v5643
        %vm5645 = vweird.f32 %v5639
        %vm5646 = vweird.f32 %v5640
        %vm5647 = vmor %vm5645, %vm5646
        %v5648 = vsel %vm5647, %v5640, %v5644
        %v5649 = vand.u32 2147483647, %v5639
        %vm5650 = vcmp.eq.f32.partialorder %v5649, 8.507059e+37
        %v5651 = vand.u32 %v5639, 2147483648
        %v5652 = vor.u32 1.1754944e-38, %v5651
        %v5653 = vsel %vm5650, %v5652, %v5648
        %v5654 = vmul.f32 %v5629, %v5653
        %v5655 = vmin.f32 %v5654, 1.0
        %v5656 = vmax.f32 %v5655, -1.0
        %v5657 = vadd.f32 %v5376, 1.0
        %v5658 = vadd.f32 %v5416, 1.0
        %v5659 = vadd.f32 %v5456, 1.0
        %v5660 = vadd.f32 %v5496, 1.0
        %v5661 = vadd.f32 %v5536, 1.0
        %v5662 = vadd.f32 %v5576, 1.0
        %v5663 = vadd.f32 %v5616, 1.0
        %v5664 = vadd.f32 %v5656, 1.0
        %v5665 = vmul.f32 %v5321, %v5657
        %v5666 = vmul.f32 %v5322, %v5658
        %v5667 = vmul.f32 %v5323, %v5659
        %v5668 = vmul.f32 %v5324, %v5660
        %v5669 = vmul.f32 %v5325, %v5661
        %v5670 = vmul.f32 %v5326, %v5662
        %v5671 = vmul.f32 %v5327, %v5663
        %v5672 = vmul.f32 %v5328, %v5664
        %v5673 = vld [vmem:[#allocation15] sm:$0xff]
        %v5674 = vld [vmem:[#allocation15 + $0x8] sm:$0xff]
        %v5675 = vld [vmem:[#allocation15 + $0x10] sm:$0xff]
        %v5676 = vld [vmem:[#allocation15 + $0x18] sm:$0xff]
        %v5677 = vld [vmem:[#allocation15 + $0x20] sm:$0xff]
        %v5678 = vld [vmem:[#allocation15 + $0x28] sm:$0xff]
        %v5679 = vld [vmem:[#allocation15 + $0x30] sm:$0xff]
        %v5680 = vld [vmem:[#allocation15 + $0x38] sm:$0xff]
        %v5681 = vld [vmem:[#allocation15 + $0x40] sm:$0xff]
        %v5682 = vld [vmem:[#allocation15 + $0x48] sm:$0xff]
        %v5683 = vld [vmem:[#allocation15 + $0x50] sm:$0xff]
        %v5684 = vld [vmem:[#allocation15 + $0x58] sm:$0xff]
        %v5685 = vld [vmem:[#allocation15 + $0x60] sm:$0xff]
        %v5686 = vld [vmem:[#allocation15 + $0x68] sm:$0xff]
        %v5687 = vld [vmem:[#allocation15 + $0x70] sm:$0xff]
        %v5688 = vld [vmem:[#allocation15 + $0x78] sm:$0xff]
        %v5689 = vld [vmem:[#allocation16 + $0x7] sm:$0x3]
        %v5691 = vperm.slane %v5689, 0
        %v5692 = vperm.slane %v5689, 1
        %v5696 = vsel %vm1962, %v5665, 0
        %v5699 = vsel %vm1962, %v5666, 0
        %v5702 = vsel %vm1962, %v5667, 0
        %v5705 = vsel %vm1962, %v5668, 0
        %v5708 = vsel %vm1962, %v5669, 0
        %v5711 = vsel %vm1962, %v5670, 0
        %v5714 = vsel %vm1962, %v5671, 0
        %v5717 = vsel %vm1962, %v5672, 0
        %5719 = vmatpush.msra.mxu0 0.0
        %5720 = vmatpush.msra.mxu0 0.0
        %5721 = vmatpush.msra.mxu0 0.0
        %5722 = vmatpush.msra.mxu0 0.0
        %5723 = vmatpush.msra.mxu0 0.0
        %5724 = vmatpush.msra.mxu0 0.0
        %5725 = vmatpush.msra.mxu0 0.0
        %5726 = vmatpush.msra.mxu0 0.0
        %5727 = vmatpush.msra.mxu0 %v5687
        %5728 = vmatpush.msra.mxu0 %v5685
        %5729 = vmatpush.msra.mxu0 %v5683
        %5730 = vmatpush.msra.mxu0 %v5681
        %5731 = vmatpush.msra.mxu0 %v5679
        %5732 = vmatpush.msra.mxu0 %v5677
        %5733 = vmatpush.msra.mxu0 %v5675
        %5734 = vmatpush.msra.mxu0 %v5673
        %5735 = vmatmul.f32.gmra.mxu0 %v5696
        %v5736 = vpop.f32.mrf.mxu0
        %v5737 = vadd.f32 %v5691, %v5736
        %5738 = vmatmul.f32.gmra.mxu0 %v5699
        %v5739 = vpop.f32.mrf.mxu0
        %v5740 = vadd.f32 %v5691, %v5739
        %5741 = vmatmul.f32.gmra.mxu0 %v5702
        %v5742 = vpop.f32.mrf.mxu0
        %v5743 = vadd.f32 %v5691, %v5742
        %5744 = vmatmul.f32.gmra.mxu0 %v5705
        %v5745 = vpop.f32.mrf.mxu0
        %v5746 = vadd.f32 %v5691, %v5745
        %5747 = vmatmul.f32.gmra.mxu0 %v5708
        %v5748 = vpop.f32.mrf.mxu0
        %v5749 = vadd.f32 %v5691, %v5748
        %5750 = vmatmul.f32.gmra.mxu0 %v5711
        %v5751 = vpop.f32.mrf.mxu0
        %v5752 = vadd.f32 %v5691, %v5751
        %5753 = vmatmul.f32.gmra.mxu0 %v5714
        %v5754 = vpop.f32.mrf.mxu0
        %v5755 = vadd.f32 %v5691, %v5754
        %5756 = vmatmul.f32.gmra.mxu0 %v5717
        %v5757 = vpop.f32.mrf.mxu0
        %v5758 = vadd.f32 %v5691, %v5757
        %5759 = vdwg.mxu0
        %5760 = vmatpush.msra.mxu0 0.0
        %5761 = vmatpush.msra.mxu0 0.0
        %5762 = vmatpush.msra.mxu0 0.0
        %5763 = vmatpush.msra.mxu0 0.0
        %5764 = vmatpush.msra.mxu0 0.0
        %5765 = vmatpush.msra.mxu0 0.0
        %5766 = vmatpush.msra.mxu0 0.0
        %5767 = vmatpush.msra.mxu0 0.0
        %5768 = vmatpush.msra.mxu0 %v5688
        %5769 = vmatpush.msra.mxu0 %v5686
        %5770 = vmatpush.msra.mxu0 %v5684
        %5771 = vmatpush.msra.mxu0 %v5682
        %5772 = vmatpush.msra.mxu0 %v5680
        %5773 = vmatpush.msra.mxu0 %v5678
        %5774 = vmatpush.msra.mxu0 %v5676
        %5775 = vmatpush.msra.mxu0 %v5674
        %5776 = vmatmul.f32.gmra.mxu0 %v5696
        %v5777 = vpop.f32.mrf.mxu0
        %v5778 = vadd.f32 %v5692, %v5777
        %5779 = vmatmul.f32.gmra.mxu0 %v5699
        %v5780 = vpop.f32.mrf.mxu0
        %v5781 = vadd.f32 %v5692, %v5780
        %5782 = vmatmul.f32.gmra.mxu0 %v5702
        %v5783 = vpop.f32.mrf.mxu0
        %v5784 = vadd.f32 %v5692, %v5783
        %5785 = vmatmul.f32.gmra.mxu0 %v5705
        %v5786 = vpop.f32.mrf.mxu0
        %v5787 = vadd.f32 %v5692, %v5786
        %5788 = vmatmul.f32.gmra.mxu0 %v5708
        %v5789 = vpop.f32.mrf.mxu0
        %v5790 = vadd.f32 %v5692, %v5789
        %5791 = vmatmul.f32.gmra.mxu0 %v5711
        %v5792 = vpop.f32.mrf.mxu0
        %v5793 = vadd.f32 %v5692, %v5792
        %5794 = vmatmul.f32.gmra.mxu0 %v5714
        %v5795 = vpop.f32.mrf.mxu0
        %v5796 = vadd.f32 %v5692, %v5795
        %5797 = vmatmul.f32.gmra.mxu0 %v5717
        %v5798 = vpop.f32.mrf.mxu0
        %v5799 = vadd.f32 %v5692, %v5798
        %5800 = vdwg.mxu0
        %v5801 = vmul.f32 %v5737, 0.5
        %v5802 = vmul.f32 %v5778, 0.5
        %v5803 = vmul.f32 %v5740, 0.5
        %v5804 = vmul.f32 %v5781, 0.5
        %v5805 = vmul.f32 %v5743, 0.5
        %v5806 = vmul.f32 %v5784, 0.5
        %v5807 = vmul.f32 %v5746, 0.5
        %v5808 = vmul.f32 %v5787, 0.5
        %v5809 = vmul.f32 %v5749, 0.5
        %v5810 = vmul.f32 %v5790, 0.5
        %v5811 = vmul.f32 %v5752, 0.5
        %v5812 = vmul.f32 %v5793, 0.5
        %v5813 = vmul.f32 %v5755, 0.5
        %v5814 = vmul.f32 %v5796, 0.5
        %v5815 = vmul.f32 %v5758, 0.5
        %v5816 = vmul.f32 %v5799, 0.5
        %v5817 = vmul.f32 %v5737, 0.70710677
        %v5818 = vmul.f32 %v5778, 0.70710677
        %v5819 = vmul.f32 %v5740, 0.70710677
        %v5820 = vmul.f32 %v5781, 0.70710677
        %v5821 = vmul.f32 %v5743, 0.70710677
        %v5822 = vmul.f32 %v5784, 0.70710677
        %v5823 = vmul.f32 %v5746, 0.70710677
        %v5824 = vmul.f32 %v5787, 0.70710677
        %v5825 = vmul.f32 %v5749, 0.70710677
        %v5826 = vmul.f32 %v5790, 0.70710677
        %v5827 = vmul.f32 %v5752, 0.70710677
        %v5828 = vmul.f32 %v5793, 0.70710677
        %v5829 = vmul.f32 %v5755, 0.70710677
        %v5830 = vmul.f32 %v5796, 0.70710677
        %v5831 = vmul.f32 %v5758, 0.70710677
        %v5832 = vmul.f32 %v5799, 0.70710677
        %v5833 = vmul.f32 %v5817, %v5817
        %v5834 = vmin.f32 16.0, %v5833
        %v5835 = vmul.f32 %v5834, 2.1237322e-06
        %v5836 = vadd.f32 %v5835, 0.00028619796
        %v5837 = vmul.f32 %v5834, %v5836
        %v5838 = vadd.f32 %v5837, 0.0036580483
        %v5839 = vmul.f32 %v5834, %v5838
        %v5840 = vadd.f32 %v5839, 0.05243302
        %v5841 = vmul.f32 %v5834, %v5840
        %v5842 = vadd.f32 %v5841, 0.18741608
        %v5843 = vmul.f32 %v5834, %v5842
        %v5844 = vadd.f32 %v5843, 1.1283791
        %v5845 = vmul.f32 %v5817, %v5844
        %v5846 = vmul.f32 %v5834, 3.8918573e-05
        %v5847 = vadd.f32 %v5846, 0.001143296
        %v5848 = vmul.f32 %v5834, %v5847
        %v5849 = vadd.f32 %v5848, 0.014752088
        %v5850 = vmul.f32 %v5834, %v5849
        %v5851 = vadd.f32 %v5850, 0.112945676
        %v5852 = vmul.f32 %v5834, %v5851
        %v5853 = vadd.f32 %v5852, 0.4994258
        %v5854 = vmul.f32 %v5834, %v5853
        %v5855 = vadd.f32 %v5854, 1.0
        %v5856 = vrcp.pop %v5855
        %v5857 = vmul.f32 %v5855, %v5856
        %v5858 = vsub.f32 1.0, %v5857
        %v5859 = vmul.f32 %v5856, %v5858
        %v5860 = vadd.f32 %v5856, %v5859
        %vm5861 = vweird.f32 %v5855
        %vm5862 = vweird.f32 %v5856
        %vm5863 = vmor %vm5861, %vm5862
        %v5864 = vsel %vm5863, %v5856, %v5860
        %v5865 = vand.u32 2147483647, %v5855
        %vm5866 = vcmp.eq.f32.partialorder %v5865, 8.507059e+37
        %v5867 = vand.u32 %v5855, 2147483648
        %v5868 = vor.u32 1.1754944e-38, %v5867
        %v5869 = vsel %vm5866, %v5868, %v5864
        %v5870 = vmul.f32 %v5845, %v5869
        %v5871 = vmin.f32 %v5870, 1.0
        %v5872 = vmax.f32 %v5871, -1.0
        %v5873 = vmul.f32 %v5818, %v5818
        %v5874 = vmin.f32 16.0, %v5873
        %v5875 = vmul.f32 %v5874, 2.1237322e-06
        %v5876 = vadd.f32 %v5875, 0.00028619796
        %v5877 = vmul.f32 %v5874, %v5876
        %v5878 = vadd.f32 %v5877, 0.0036580483
        %v5879 = vmul.f32 %v5874, %v5878
        %v5880 = vadd.f32 %v5879, 0.05243302
        %v5881 = vmul.f32 %v5874, %v5880
        %v5882 = vadd.f32 %v5881, 0.18741608
        %v5883 = vmul.f32 %v5874, %v5882
        %v5884 = vadd.f32 %v5883, 1.1283791
        %v5885 = vmul.f32 %v5818, %v5884
        %v5886 = vmul.f32 %v5874, 3.8918573e-05
        %v5887 = vadd.f32 %v5886, 0.001143296
        %v5888 = vmul.f32 %v5874, %v5887
        %v5889 = vadd.f32 %v5888, 0.014752088
        %v5890 = vmul.f32 %v5874, %v5889
        %v5891 = vadd.f32 %v5890, 0.112945676
        %v5892 = vmul.f32 %v5874, %v5891
        %v5893 = vadd.f32 %v5892, 0.4994258
        %v5894 = vmul.f32 %v5874, %v5893
        %v5895 = vadd.f32 %v5894, 1.0
        %v5896 = vrcp.pop %v5895
        %v5897 = vmul.f32 %v5895, %v5896
        %v5898 = vsub.f32 1.0, %v5897
        %v5899 = vmul.f32 %v5896, %v5898
        %v5900 = vadd.f32 %v5896, %v5899
        %vm5901 = vweird.f32 %v5895
        %vm5902 = vweird.f32 %v5896
        %vm5903 = vmor %vm5901, %vm5902
        %v5904 = vsel %vm5903, %v5896, %v5900
        %v5905 = vand.u32 2147483647, %v5895
        %vm5906 = vcmp.eq.f32.partialorder %v5905, 8.507059e+37
        %v5907 = vand.u32 %v5895, 2147483648
        %v5908 = vor.u32 1.1754944e-38, %v5907
        %v5909 = vsel %vm5906, %v5908, %v5904
        %v5910 = vmul.f32 %v5885, %v5909
        %v5911 = vmin.f32 %v5910, 1.0
        %v5912 = vmax.f32 %v5911, -1.0
        %v5913 = vmul.f32 %v5819, %v5819
        %v5914 = vmin.f32 16.0, %v5913
        %v5915 = vmul.f32 %v5914, 2.1237322e-06
        %v5916 = vadd.f32 %v5915, 0.00028619796
        %v5917 = vmul.f32 %v5914, %v5916
        %v5918 = vadd.f32 %v5917, 0.0036580483
        %v5919 = vmul.f32 %v5914, %v5918
        %v5920 = vadd.f32 %v5919, 0.05243302
        %v5921 = vmul.f32 %v5914, %v5920
        %v5922 = vadd.f32 %v5921, 0.18741608
        %v5923 = vmul.f32 %v5914, %v5922
        %v5924 = vadd.f32 %v5923, 1.1283791
        %v5925 = vmul.f32 %v5819, %v5924
        %v5926 = vmul.f32 %v5914, 3.8918573e-05
        %v5927 = vadd.f32 %v5926, 0.001143296
        %v5928 = vmul.f32 %v5914, %v5927
        %v5929 = vadd.f32 %v5928, 0.014752088
        %v5930 = vmul.f32 %v5914, %v5929
        %v5931 = vadd.f32 %v5930, 0.112945676
        %v5932 = vmul.f32 %v5914, %v5931
        %v5933 = vadd.f32 %v5932, 0.4994258
        %v5934 = vmul.f32 %v5914, %v5933
        %v5935 = vadd.f32 %v5934, 1.0
        %v5936 = vrcp.pop %v5935
        %v5937 = vmul.f32 %v5935, %v5936
        %v5938 = vsub.f32 1.0, %v5937
        %v5939 = vmul.f32 %v5936, %v5938
        %v5940 = vadd.f32 %v5936, %v5939
        %vm5941 = vweird.f32 %v5935
        %vm5942 = vweird.f32 %v5936
        %vm5943 = vmor %vm5941, %vm5942
        %v5944 = vsel %vm5943, %v5936, %v5940
        %v5945 = vand.u32 2147483647, %v5935
        %vm5946 = vcmp.eq.f32.partialorder %v5945, 8.507059e+37
        %v5947 = vand.u32 %v5935, 2147483648
        %v5948 = vor.u32 1.1754944e-38, %v5947
        %v5949 = vsel %vm5946, %v5948, %v5944
        %v5950 = vmul.f32 %v5925, %v5949
        %v5951 = vmin.f32 %v5950, 1.0
        %v5952 = vmax.f32 %v5951, -1.0
        %v5953 = vmul.f32 %v5820, %v5820
        %v5954 = vmin.f32 16.0, %v5953
        %v5955 = vmul.f32 %v5954, 2.1237322e-06
        %v5956 = vadd.f32 %v5955, 0.00028619796
        %v5957 = vmul.f32 %v5954, %v5956
        %v5958 = vadd.f32 %v5957, 0.0036580483
        %v5959 = vmul.f32 %v5954, %v5958
        %v5960 = vadd.f32 %v5959, 0.05243302
        %v5961 = vmul.f32 %v5954, %v5960
        %v5962 = vadd.f32 %v5961, 0.18741608
        %v5963 = vmul.f32 %v5954, %v5962
        %v5964 = vadd.f32 %v5963, 1.1283791
        %v5965 = vmul.f32 %v5820, %v5964
        %v5966 = vmul.f32 %v5954, 3.8918573e-05
        %v5967 = vadd.f32 %v5966, 0.001143296
        %v5968 = vmul.f32 %v5954, %v5967
        %v5969 = vadd.f32 %v5968, 0.014752088
        %v5970 = vmul.f32 %v5954, %v5969
        %v5971 = vadd.f32 %v5970, 0.112945676
        %v5972 = vmul.f32 %v5954, %v5971
        %v5973 = vadd.f32 %v5972, 0.4994258
        %v5974 = vmul.f32 %v5954, %v5973
        %v5975 = vadd.f32 %v5974, 1.0
        %v5976 = vrcp.pop %v5975
        %v5977 = vmul.f32 %v5975, %v5976
        %v5978 = vsub.f32 1.0, %v5977
        %v5979 = vmul.f32 %v5976, %v5978
        %v5980 = vadd.f32 %v5976, %v5979
        %vm5981 = vweird.f32 %v5975
        %vm5982 = vweird.f32 %v5976
        %vm5983 = vmor %vm5981, %vm5982
        %v5984 = vsel %vm5983, %v5976, %v5980
        %v5985 = vand.u32 2147483647, %v5975
        %vm5986 = vcmp.eq.f32.partialorder %v5985, 8.507059e+37
        %v5987 = vand.u32 %v5975, 2147483648
        %v5988 = vor.u32 1.1754944e-38, %v5987
        %v5989 = vsel %vm5986, %v5988, %v5984
        %v5990 = vmul.f32 %v5965, %v5989
        %v5991 = vmin.f32 %v5990, 1.0
        %v5992 = vmax.f32 %v5991, -1.0
        %v5993 = vmul.f32 %v5821, %v5821
        %v5994 = vmin.f32 16.0, %v5993
        %v5995 = vmul.f32 %v5994, 2.1237322e-06
        %v5996 = vadd.f32 %v5995, 0.00028619796
        %v5997 = vmul.f32 %v5994, %v5996
        %v5998 = vadd.f32 %v5997, 0.0036580483
        %v5999 = vmul.f32 %v5994, %v5998
        %v6000 = vadd.f32 %v5999, 0.05243302
        %v6001 = vmul.f32 %v5994, %v6000
        %v6002 = vadd.f32 %v6001, 0.18741608
        %v6003 = vmul.f32 %v5994, %v6002
        %v6004 = vadd.f32 %v6003, 1.1283791
        %v6005 = vmul.f32 %v5821, %v6004
        %v6006 = vmul.f32 %v5994, 3.8918573e-05
        %v6007 = vadd.f32 %v6006, 0.001143296
        %v6008 = vmul.f32 %v5994, %v6007
        %v6009 = vadd.f32 %v6008, 0.014752088
        %v6010 = vmul.f32 %v5994, %v6009
        %v6011 = vadd.f32 %v6010, 0.112945676
        %v6012 = vmul.f32 %v5994, %v6011
        %v6013 = vadd.f32 %v6012, 0.4994258
        %v6014 = vmul.f32 %v5994, %v6013
        %v6015 = vadd.f32 %v6014, 1.0
        %v6016 = vrcp.pop %v6015
        %v6017 = vmul.f32 %v6015, %v6016
        %v6018 = vsub.f32 1.0, %v6017
        %v6019 = vmul.f32 %v6016, %v6018
        %v6020 = vadd.f32 %v6016, %v6019
        %vm6021 = vweird.f32 %v6015
        %vm6022 = vweird.f32 %v6016
        %vm6023 = vmor %vm6021, %vm6022
        %v6024 = vsel %vm6023, %v6016, %v6020
        %v6025 = vand.u32 2147483647, %v6015
        %vm6026 = vcmp.eq.f32.partialorder %v6025, 8.507059e+37
        %v6027 = vand.u32 %v6015, 2147483648
        %v6028 = vor.u32 1.1754944e-38, %v6027
        %v6029 = vsel %vm6026, %v6028, %v6024
        %v6030 = vmul.f32 %v6005, %v6029
        %v6031 = vmin.f32 %v6030, 1.0
        %v6032 = vmax.f32 %v6031, -1.0
        %v6033 = vmul.f32 %v5822, %v5822
        %v6034 = vmin.f32 16.0, %v6033
        %v6035 = vmul.f32 %v6034, 2.1237322e-06
        %v6036 = vadd.f32 %v6035, 0.00028619796
        %v6037 = vmul.f32 %v6034, %v6036
        %v6038 = vadd.f32 %v6037, 0.0036580483
        %v6039 = vmul.f32 %v6034, %v6038
        %v6040 = vadd.f32 %v6039, 0.05243302
        %v6041 = vmul.f32 %v6034, %v6040
        %v6042 = vadd.f32 %v6041, 0.18741608
        %v6043 = vmul.f32 %v6034, %v6042
        %v6044 = vadd.f32 %v6043, 1.1283791
        %v6045 = vmul.f32 %v5822, %v6044
        %v6046 = vmul.f32 %v6034, 3.8918573e-05
        %v6047 = vadd.f32 %v6046, 0.001143296
        %v6048 = vmul.f32 %v6034, %v6047
        %v6049 = vadd.f32 %v6048, 0.014752088
        %v6050 = vmul.f32 %v6034, %v6049
        %v6051 = vadd.f32 %v6050, 0.112945676
        %v6052 = vmul.f32 %v6034, %v6051
        %v6053 = vadd.f32 %v6052, 0.4994258
        %v6054 = vmul.f32 %v6034, %v6053
        %v6055 = vadd.f32 %v6054, 1.0
        %v6056 = vrcp.pop %v6055
        %v6057 = vmul.f32 %v6055, %v6056
        %v6058 = vsub.f32 1.0, %v6057
        %v6059 = vmul.f32 %v6056, %v6058
        %v6060 = vadd.f32 %v6056, %v6059
        %vm6061 = vweird.f32 %v6055
        %vm6062 = vweird.f32 %v6056
        %vm6063 = vmor %vm6061, %vm6062
        %v6064 = vsel %vm6063, %v6056, %v6060
        %v6065 = vand.u32 2147483647, %v6055
        %vm6066 = vcmp.eq.f32.partialorder %v6065, 8.507059e+37
        %v6067 = vand.u32 %v6055, 2147483648
        %v6068 = vor.u32 1.1754944e-38, %v6067
        %v6069 = vsel %vm6066, %v6068, %v6064
        %v6070 = vmul.f32 %v6045, %v6069
        %v6071 = vmin.f32 %v6070, 1.0
        %v6072 = vmax.f32 %v6071, -1.0
        %v6073 = vmul.f32 %v5823, %v5823
        %v6074 = vmin.f32 16.0, %v6073
        %v6075 = vmul.f32 %v6074, 2.1237322e-06
        %v6076 = vadd.f32 %v6075, 0.00028619796
        %v6077 = vmul.f32 %v6074, %v6076
        %v6078 = vadd.f32 %v6077, 0.0036580483
        %v6079 = vmul.f32 %v6074, %v6078
        %v6080 = vadd.f32 %v6079, 0.05243302
        %v6081 = vmul.f32 %v6074, %v6080
        %v6082 = vadd.f32 %v6081, 0.18741608
        %v6083 = vmul.f32 %v6074, %v6082
        %v6084 = vadd.f32 %v6083, 1.1283791
        %v6085 = vmul.f32 %v5823, %v6084
        %v6086 = vmul.f32 %v6074, 3.8918573e-05
        %v6087 = vadd.f32 %v6086, 0.001143296
        %v6088 = vmul.f32 %v6074, %v6087
        %v6089 = vadd.f32 %v6088, 0.014752088
        %v6090 = vmul.f32 %v6074, %v6089
        %v6091 = vadd.f32 %v6090, 0.112945676
        %v6092 = vmul.f32 %v6074, %v6091
        %v6093 = vadd.f32 %v6092, 0.4994258
        %v6094 = vmul.f32 %v6074, %v6093
        %v6095 = vadd.f32 %v6094, 1.0
        %v6096 = vrcp.pop %v6095
        %v6097 = vmul.f32 %v6095, %v6096
        %v6098 = vsub.f32 1.0, %v6097
        %v6099 = vmul.f32 %v6096, %v6098
        %v6100 = vadd.f32 %v6096, %v6099
        %vm6101 = vweird.f32 %v6095
        %vm6102 = vweird.f32 %v6096
        %vm6103 = vmor %vm6101, %vm6102
        %v6104 = vsel %vm6103, %v6096, %v6100
        %v6105 = vand.u32 2147483647, %v6095
        %vm6106 = vcmp.eq.f32.partialorder %v6105, 8.507059e+37
        %v6107 = vand.u32 %v6095, 2147483648
        %v6108 = vor.u32 1.1754944e-38, %v6107
        %v6109 = vsel %vm6106, %v6108, %v6104
        %v6110 = vmul.f32 %v6085, %v6109
        %v6111 = vmin.f32 %v6110, 1.0
        %v6112 = vmax.f32 %v6111, -1.0
        %v6113 = vmul.f32 %v5824, %v5824
        %v6114 = vmin.f32 16.0, %v6113
        %v6115 = vmul.f32 %v6114, 2.1237322e-06
        %v6116 = vadd.f32 %v6115, 0.00028619796
        %v6117 = vmul.f32 %v6114, %v6116
        %v6118 = vadd.f32 %v6117, 0.0036580483
        %v6119 = vmul.f32 %v6114, %v6118
        %v6120 = vadd.f32 %v6119, 0.05243302
        %v6121 = vmul.f32 %v6114, %v6120
        %v6122 = vadd.f32 %v6121, 0.18741608
        %v6123 = vmul.f32 %v6114, %v6122
        %v6124 = vadd.f32 %v6123, 1.1283791
        %v6125 = vmul.f32 %v5824, %v6124
        %v6126 = vmul.f32 %v6114, 3.8918573e-05
        %v6127 = vadd.f32 %v6126, 0.001143296
        %v6128 = vmul.f32 %v6114, %v6127
        %v6129 = vadd.f32 %v6128, 0.014752088
        %v6130 = vmul.f32 %v6114, %v6129
        %v6131 = vadd.f32 %v6130, 0.112945676
        %v6132 = vmul.f32 %v6114, %v6131
        %v6133 = vadd.f32 %v6132, 0.4994258
        %v6134 = vmul.f32 %v6114, %v6133
        %v6135 = vadd.f32 %v6134, 1.0
        %v6136 = vrcp.pop %v6135
        %v6137 = vmul.f32 %v6135, %v6136
        %v6138 = vsub.f32 1.0, %v6137
        %v6139 = vmul.f32 %v6136, %v6138
        %v6140 = vadd.f32 %v6136, %v6139
        %vm6141 = vweird.f32 %v6135
        %vm6142 = vweird.f32 %v6136
        %vm6143 = vmor %vm6141, %vm6142
        %v6144 = vsel %vm6143, %v6136, %v6140
        %v6145 = vand.u32 2147483647, %v6135
        %vm6146 = vcmp.eq.f32.partialorder %v6145, 8.507059e+37
        %v6147 = vand.u32 %v6135, 2147483648
        %v6148 = vor.u32 1.1754944e-38, %v6147
        %v6149 = vsel %vm6146, %v6148, %v6144
        %v6150 = vmul.f32 %v6125, %v6149
        %v6151 = vmin.f32 %v6150, 1.0
        %v6152 = vmax.f32 %v6151, -1.0
        %v6153 = vmul.f32 %v5825, %v5825
        %v6154 = vmin.f32 16.0, %v6153
        %v6155 = vmul.f32 %v6154, 2.1237322e-06
        %v6156 = vadd.f32 %v6155, 0.00028619796
        %v6157 = vmul.f32 %v6154, %v6156
        %v6158 = vadd.f32 %v6157, 0.0036580483
        %v6159 = vmul.f32 %v6154, %v6158
        %v6160 = vadd.f32 %v6159, 0.05243302
        %v6161 = vmul.f32 %v6154, %v6160
        %v6162 = vadd.f32 %v6161, 0.18741608
        %v6163 = vmul.f32 %v6154, %v6162
        %v6164 = vadd.f32 %v6163, 1.1283791
        %v6165 = vmul.f32 %v5825, %v6164
        %v6166 = vmul.f32 %v6154, 3.8918573e-05
        %v6167 = vadd.f32 %v6166, 0.001143296
        %v6168 = vmul.f32 %v6154, %v6167
        %v6169 = vadd.f32 %v6168, 0.014752088
        %v6170 = vmul.f32 %v6154, %v6169
        %v6171 = vadd.f32 %v6170, 0.112945676
        %v6172 = vmul.f32 %v6154, %v6171
        %v6173 = vadd.f32 %v6172, 0.4994258
        %v6174 = vmul.f32 %v6154, %v6173
        %v6175 = vadd.f32 %v6174, 1.0
        %v6176 = vrcp.pop %v6175
        %v6177 = vmul.f32 %v6175, %v6176
        %v6178 = vsub.f32 1.0, %v6177
        %v6179 = vmul.f32 %v6176, %v6178
        %v6180 = vadd.f32 %v6176, %v6179
        %vm6181 = vweird.f32 %v6175
        %vm6182 = vweird.f32 %v6176
        %vm6183 = vmor %vm6181, %vm6182
        %v6184 = vsel %vm6183, %v6176, %v6180
        %v6185 = vand.u32 2147483647, %v6175
        %vm6186 = vcmp.eq.f32.partialorder %v6185, 8.507059e+37
        %v6187 = vand.u32 %v6175, 2147483648
        %v6188 = vor.u32 1.1754944e-38, %v6187
        %v6189 = vsel %vm6186, %v6188, %v6184
        %v6190 = vmul.f32 %v6165, %v6189
        %v6191 = vmin.f32 %v6190, 1.0
        %v6192 = vmax.f32 %v6191, -1.0
        %v6193 = vmul.f32 %v5826, %v5826
        %v6194 = vmin.f32 16.0, %v6193
        %v6195 = vmul.f32 %v6194, 2.1237322e-06
        %v6196 = vadd.f32 %v6195, 0.00028619796
        %v6197 = vmul.f32 %v6194, %v6196
        %v6198 = vadd.f32 %v6197, 0.0036580483
        %v6199 = vmul.f32 %v6194, %v6198
        %v6200 = vadd.f32 %v6199, 0.05243302
        %v6201 = vmul.f32 %v6194, %v6200
        %v6202 = vadd.f32 %v6201, 0.18741608
        %v6203 = vmul.f32 %v6194, %v6202
        %v6204 = vadd.f32 %v6203, 1.1283791
        %v6205 = vmul.f32 %v5826, %v6204
        %v6206 = vmul.f32 %v6194, 3.8918573e-05
        %v6207 = vadd.f32 %v6206, 0.001143296
        %v6208 = vmul.f32 %v6194, %v6207
        %v6209 = vadd.f32 %v6208, 0.014752088
        %v6210 = vmul.f32 %v6194, %v6209
        %v6211 = vadd.f32 %v6210, 0.112945676
        %v6212 = vmul.f32 %v6194, %v6211
        %v6213 = vadd.f32 %v6212, 0.4994258
        %v6214 = vmul.f32 %v6194, %v6213
        %v6215 = vadd.f32 %v6214, 1.0
        %v6216 = vrcp.pop %v6215
        %v6217 = vmul.f32 %v6215, %v6216
        %v6218 = vsub.f32 1.0, %v6217
        %v6219 = vmul.f32 %v6216, %v6218
        %v6220 = vadd.f32 %v6216, %v6219
        %vm6221 = vweird.f32 %v6215
        %vm6222 = vweird.f32 %v6216
        %vm6223 = vmor %vm6221, %vm6222
        %v6224 = vsel %vm6223, %v6216, %v6220
        %v6225 = vand.u32 2147483647, %v6215
        %vm6226 = vcmp.eq.f32.partialorder %v6225, 8.507059e+37
        %v6227 = vand.u32 %v6215, 2147483648
        %v6228 = vor.u32 1.1754944e-38, %v6227
        %v6229 = vsel %vm6226, %v6228, %v6224
        %v6230 = vmul.f32 %v6205, %v6229
        %v6231 = vmin.f32 %v6230, 1.0
        %v6232 = vmax.f32 %v6231, -1.0
        %v6233 = vmul.f32 %v5827, %v5827
        %v6234 = vmin.f32 16.0, %v6233
        %v6235 = vmul.f32 %v6234, 2.1237322e-06
        %v6236 = vadd.f32 %v6235, 0.00028619796
        %v6237 = vmul.f32 %v6234, %v6236
        %v6238 = vadd.f32 %v6237, 0.0036580483
        %v6239 = vmul.f32 %v6234, %v6238
        %v6240 = vadd.f32 %v6239, 0.05243302
        %v6241 = vmul.f32 %v6234, %v6240
        %v6242 = vadd.f32 %v6241, 0.18741608
        %v6243 = vmul.f32 %v6234, %v6242
        %v6244 = vadd.f32 %v6243, 1.1283791
        %v6245 = vmul.f32 %v5827, %v6244
        %v6246 = vmul.f32 %v6234, 3.8918573e-05
        %v6247 = vadd.f32 %v6246, 0.001143296
        %v6248 = vmul.f32 %v6234, %v6247
        %v6249 = vadd.f32 %v6248, 0.014752088
        %v6250 = vmul.f32 %v6234, %v6249
        %v6251 = vadd.f32 %v6250, 0.112945676
        %v6252 = vmul.f32 %v6234, %v6251
        %v6253 = vadd.f32 %v6252, 0.4994258
        %v6254 = vmul.f32 %v6234, %v6253
        %v6255 = vadd.f32 %v6254, 1.0
        %v6256 = vrcp.pop %v6255
        %v6257 = vmul.f32 %v6255, %v6256
        %v6258 = vsub.f32 1.0, %v6257
        %v6259 = vmul.f32 %v6256, %v6258
        %v6260 = vadd.f32 %v6256, %v6259
        %vm6261 = vweird.f32 %v6255
        %vm6262 = vweird.f32 %v6256
        %vm6263 = vmor %vm6261, %vm6262
        %v6264 = vsel %vm6263, %v6256, %v6260
        %v6265 = vand.u32 2147483647, %v6255
        %vm6266 = vcmp.eq.f32.partialorder %v6265, 8.507059e+37
        %v6267 = vand.u32 %v6255, 2147483648
        %v6268 = vor.u32 1.1754944e-38, %v6267
        %v6269 = vsel %vm6266, %v6268, %v6264
        %v6270 = vmul.f32 %v6245, %v6269
        %v6271 = vmin.f32 %v6270, 1.0
        %v6272 = vmax.f32 %v6271, -1.0
        %v6273 = vmul.f32 %v5828, %v5828
        %v6274 = vmin.f32 16.0, %v6273
        %v6275 = vmul.f32 %v6274, 2.1237322e-06
        %v6276 = vadd.f32 %v6275, 0.00028619796
        %v6277 = vmul.f32 %v6274, %v6276
        %v6278 = vadd.f32 %v6277, 0.0036580483
        %v6279 = vmul.f32 %v6274, %v6278
        %v6280 = vadd.f32 %v6279, 0.05243302
        %v6281 = vmul.f32 %v6274, %v6280
        %v6282 = vadd.f32 %v6281, 0.18741608
        %v6283 = vmul.f32 %v6274, %v6282
        %v6284 = vadd.f32 %v6283, 1.1283791
        %v6285 = vmul.f32 %v5828, %v6284
        %v6286 = vmul.f32 %v6274, 3.8918573e-05
        %v6287 = vadd.f32 %v6286, 0.001143296
        %v6288 = vmul.f32 %v6274, %v6287
        %v6289 = vadd.f32 %v6288, 0.014752088
        %v6290 = vmul.f32 %v6274, %v6289
        %v6291 = vadd.f32 %v6290, 0.112945676
        %v6292 = vmul.f32 %v6274, %v6291
        %v6293 = vadd.f32 %v6292, 0.4994258
        %v6294 = vmul.f32 %v6274, %v6293
        %v6295 = vadd.f32 %v6294, 1.0
        %v6296 = vrcp.pop %v6295
        %v6297 = vmul.f32 %v6295, %v6296
        %v6298 = vsub.f32 1.0, %v6297
        %v6299 = vmul.f32 %v6296, %v6298
        %v6300 = vadd.f32 %v6296, %v6299
        %vm6301 = vweird.f32 %v6295
        %vm6302 = vweird.f32 %v6296
        %vm6303 = vmor %vm6301, %vm6302
        %v6304 = vsel %vm6303, %v6296, %v6300
        %v6305 = vand.u32 2147483647, %v6295
        %vm6306 = vcmp.eq.f32.partialorder %v6305, 8.507059e+37
        %v6307 = vand.u32 %v6295, 2147483648
        %v6308 = vor.u32 1.1754944e-38, %v6307
        %v6309 = vsel %vm6306, %v6308, %v6304
        %v6310 = vmul.f32 %v6285, %v6309
        %v6311 = vmin.f32 %v6310, 1.0
        %v6312 = vmax.f32 %v6311, -1.0
        %v6313 = vmul.f32 %v5829, %v5829
        %v6314 = vmin.f32 16.0, %v6313
        %v6315 = vmul.f32 %v6314, 2.1237322e-06
        %v6316 = vadd.f32 %v6315, 0.00028619796
        %v6317 = vmul.f32 %v6314, %v6316
        %v6318 = vadd.f32 %v6317, 0.0036580483
        %v6319 = vmul.f32 %v6314, %v6318
        %v6320 = vadd.f32 %v6319, 0.05243302
        %v6321 = vmul.f32 %v6314, %v6320
        %v6322 = vadd.f32 %v6321, 0.18741608
        %v6323 = vmul.f32 %v6314, %v6322
        %v6324 = vadd.f32 %v6323, 1.1283791
        %v6325 = vmul.f32 %v5829, %v6324
        %v6326 = vmul.f32 %v6314, 3.8918573e-05
        %v6327 = vadd.f32 %v6326, 0.001143296
        %v6328 = vmul.f32 %v6314, %v6327
        %v6329 = vadd.f32 %v6328, 0.014752088
        %v6330 = vmul.f32 %v6314, %v6329
        %v6331 = vadd.f32 %v6330, 0.112945676
        %v6332 = vmul.f32 %v6314, %v6331
        %v6333 = vadd.f32 %v6332, 0.4994258
        %v6334 = vmul.f32 %v6314, %v6333
        %v6335 = vadd.f32 %v6334, 1.0
        %v6336 = vrcp.pop %v6335
        %v6337 = vmul.f32 %v6335, %v6336
        %v6338 = vsub.f32 1.0, %v6337
        %v6339 = vmul.f32 %v6336, %v6338
        %v6340 = vadd.f32 %v6336, %v6339
        %vm6341 = vweird.f32 %v6335
        %vm6342 = vweird.f32 %v6336
        %vm6343 = vmor %vm6341, %vm6342
        %v6344 = vsel %vm6343, %v6336, %v6340
        %v6345 = vand.u32 2147483647, %v6335
        %vm6346 = vcmp.eq.f32.partialorder %v6345, 8.507059e+37
        %v6347 = vand.u32 %v6335, 2147483648
        %v6348 = vor.u32 1.1754944e-38, %v6347
        %v6349 = vsel %vm6346, %v6348, %v6344
        %v6350 = vmul.f32 %v6325, %v6349
        %v6351 = vmin.f32 %v6350, 1.0
        %v6352 = vmax.f32 %v6351, -1.0
        %v6353 = vmul.f32 %v5830, %v5830
        %v6354 = vmin.f32 16.0, %v6353
        %v6355 = vmul.f32 %v6354, 2.1237322e-06
        %v6356 = vadd.f32 %v6355, 0.00028619796
        %v6357 = vmul.f32 %v6354, %v6356
        %v6358 = vadd.f32 %v6357, 0.0036580483
        %v6359 = vmul.f32 %v6354, %v6358
        %v6360 = vadd.f32 %v6359, 0.05243302
        %v6361 = vmul.f32 %v6354, %v6360
        %v6362 = vadd.f32 %v6361, 0.18741608
        %v6363 = vmul.f32 %v6354, %v6362
        %v6364 = vadd.f32 %v6363, 1.1283791
        %v6365 = vmul.f32 %v5830, %v6364
        %v6366 = vmul.f32 %v6354, 3.8918573e-05
        %v6367 = vadd.f32 %v6366, 0.001143296
        %v6368 = vmul.f32 %v6354, %v6367
        %v6369 = vadd.f32 %v6368, 0.014752088
        %v6370 = vmul.f32 %v6354, %v6369
        %v6371 = vadd.f32 %v6370, 0.112945676
        %v6372 = vmul.f32 %v6354, %v6371
        %v6373 = vadd.f32 %v6372, 0.4994258
        %v6374 = vmul.f32 %v6354, %v6373
        %v6375 = vadd.f32 %v6374, 1.0
        %v6376 = vrcp.pop %v6375
        %v6377 = vmul.f32 %v6375, %v6376
        %v6378 = vsub.f32 1.0, %v6377
        %v6379 = vmul.f32 %v6376, %v6378
        %v6380 = vadd.f32 %v6376, %v6379
        %vm6381 = vweird.f32 %v6375
        %vm6382 = vweird.f32 %v6376
        %vm6383 = vmor %vm6381, %vm6382
        %v6384 = vsel %vm6383, %v6376, %v6380
        %v6385 = vand.u32 2147483647, %v6375
        %vm6386 = vcmp.eq.f32.partialorder %v6385, 8.507059e+37
        %v6387 = vand.u32 %v6375, 2147483648
        %v6388 = vor.u32 1.1754944e-38, %v6387
        %v6389 = vsel %vm6386, %v6388, %v6384
        %v6390 = vmul.f32 %v6365, %v6389
        %v6391 = vmin.f32 %v6390, 1.0
        %v6392 = vmax.f32 %v6391, -1.0
        %v6393 = vmul.f32 %v5831, %v5831
        %v6394 = vmin.f32 16.0, %v6393
        %v6395 = vmul.f32 %v6394, 2.1237322e-06
        %v6396 = vadd.f32 %v6395, 0.00028619796
        %v6397 = vmul.f32 %v6394, %v6396
        %v6398 = vadd.f32 %v6397, 0.0036580483
        %v6399 = vmul.f32 %v6394, %v6398
        %v6400 = vadd.f32 %v6399, 0.05243302
        %v6401 = vmul.f32 %v6394, %v6400
        %v6402 = vadd.f32 %v6401, 0.18741608
        %v6403 = vmul.f32 %v6394, %v6402
        %v6404 = vadd.f32 %v6403, 1.1283791
        %v6405 = vmul.f32 %v5831, %v6404
        %v6406 = vmul.f32 %v6394, 3.8918573e-05
        %v6407 = vadd.f32 %v6406, 0.001143296
        %v6408 = vmul.f32 %v6394, %v6407
        %v6409 = vadd.f32 %v6408, 0.014752088
        %v6410 = vmul.f32 %v6394, %v6409
        %v6411 = vadd.f32 %v6410, 0.112945676
        %v6412 = vmul.f32 %v6394, %v6411
        %v6413 = vadd.f32 %v6412, 0.4994258
        %v6414 = vmul.f32 %v6394, %v6413
        %v6415 = vadd.f32 %v6414, 1.0
        %v6416 = vrcp.pop %v6415
        %v6417 = vmul.f32 %v6415, %v6416
        %v6418 = vsub.f32 1.0, %v6417
        %v6419 = vmul.f32 %v6416, %v6418
        %v6420 = vadd.f32 %v6416, %v6419
        %vm6421 = vweird.f32 %v6415
        %vm6422 = vweird.f32 %v6416
        %vm6423 = vmor %vm6421, %vm6422
        %v6424 = vsel %vm6423, %v6416, %v6420
        %v6425 = vand.u32 2147483647, %v6415
        %vm6426 = vcmp.eq.f32.partialorder %v6425, 8.507059e+37
        %v6427 = vand.u32 %v6415, 2147483648
        %v6428 = vor.u32 1.1754944e-38, %v6427
        %v6429 = vsel %vm6426, %v6428, %v6424
        %v6430 = vmul.f32 %v6405, %v6429
        %v6431 = vmin.f32 %v6430, 1.0
        %v6432 = vmax.f32 %v6431, -1.0
        %v6433 = vmul.f32 %v5832, %v5832
        %v6434 = vmin.f32 16.0, %v6433
        %v6435 = vmul.f32 %v6434, 2.1237322e-06
        %v6436 = vadd.f32 %v6435, 0.00028619796
        %v6437 = vmul.f32 %v6434, %v6436
        %v6438 = vadd.f32 %v6437, 0.0036580483
        %v6439 = vmul.f32 %v6434, %v6438
        %v6440 = vadd.f32 %v6439, 0.05243302
        %v6441 = vmul.f32 %v6434, %v6440
        %v6442 = vadd.f32 %v6441, 0.18741608
        %v6443 = vmul.f32 %v6434, %v6442
        %v6444 = vadd.f32 %v6443, 1.1283791
        %v6445 = vmul.f32 %v5832, %v6444
        %v6446 = vmul.f32 %v6434, 3.8918573e-05
        %v6447 = vadd.f32 %v6446, 0.001143296
        %v6448 = vmul.f32 %v6434, %v6447
        %v6449 = vadd.f32 %v6448, 0.014752088
        %v6450 = vmul.f32 %v6434, %v6449
        %v6451 = vadd.f32 %v6450, 0.112945676
        %v6452 = vmul.f32 %v6434, %v6451
        %v6453 = vadd.f32 %v6452, 0.4994258
        %v6454 = vmul.f32 %v6434, %v6453
        %v6455 = vadd.f32 %v6454, 1.0
        %v6456 = vrcp.pop %v6455
        %v6457 = vmul.f32 %v6455, %v6456
        %v6458 = vsub.f32 1.0, %v6457
        %v6459 = vmul.f32 %v6456, %v6458
        %v6460 = vadd.f32 %v6456, %v6459
        %vm6461 = vweird.f32 %v6455
        %vm6462 = vweird.f32 %v6456
        %vm6463 = vmor %vm6461, %vm6462
        %v6464 = vsel %vm6463, %v6456, %v6460
        %v6465 = vand.u32 2147483647, %v6455
        %vm6466 = vcmp.eq.f32.partialorder %v6465, 8.507059e+37
        %v6467 = vand.u32 %v6455, 2147483648
        %v6468 = vor.u32 1.1754944e-38, %v6467
        %v6469 = vsel %vm6466, %v6468, %v6464
        %v6470 = vmul.f32 %v6445, %v6469
        %v6471 = vmin.f32 %v6470, 1.0
        %v6472 = vmax.f32 %v6471, -1.0
        %v6473 = vadd.f32 %v5872, 1.0
        %v6474 = vadd.f32 %v5912, 1.0
        %v6475 = vadd.f32 %v5952, 1.0
        %v6476 = vadd.f32 %v5992, 1.0
        %v6477 = vadd.f32 %v6032, 1.0
        %v6478 = vadd.f32 %v6072, 1.0
        %v6479 = vadd.f32 %v6112, 1.0
        %v6480 = vadd.f32 %v6152, 1.0
        %v6481 = vadd.f32 %v6192, 1.0
        %v6482 = vadd.f32 %v6232, 1.0
        %v6483 = vadd.f32 %v6272, 1.0
        %v6484 = vadd.f32 %v6312, 1.0
        %v6485 = vadd.f32 %v6352, 1.0
        %v6486 = vadd.f32 %v6392, 1.0
        %v6487 = vadd.f32 %v6432, 1.0
        %v6488 = vadd.f32 %v6472, 1.0
        %v6489 = vmul.f32 %v5801, %v6473
        %v6490 = vmul.f32 %v5802, %v6474
        %v6491 = vmul.f32 %v5803, %v6475
        %v6492 = vmul.f32 %v5804, %v6476
        %v6493 = vmul.f32 %v5805, %v6477
        %v6494 = vmul.f32 %v5806, %v6478
        %v6495 = vmul.f32 %v5807, %v6479
        %v6496 = vmul.f32 %v5808, %v6480
        %v6497 = vmul.f32 %v5809, %v6481
        %v6498 = vmul.f32 %v5810, %v6482
        %v6499 = vmul.f32 %v5811, %v6483
        %v6500 = vmul.f32 %v5812, %v6484
        %v6501 = vmul.f32 %v5813, %v6485
        %v6502 = vmul.f32 %v5814, %v6486
        %v6503 = vmul.f32 %v5815, %v6487
        %v6504 = vmul.f32 %v5816, %v6488
        %v6505 = vmul.f32 %v3314, %v3314
        %v6506 = vmul.f32 %v3315, %v3315
        %v6507 = vmul.f32 %v3316, %v3316
        %v6508 = vmul.f32 %v3317, %v3317
        %v6509 = vmul.f32 %v3318, %v3318
        %v6510 = vmul.f32 %v3319, %v3319
        %v6511 = vmul.f32 %v3320, %v3320
        %v6512 = vmul.f32 %v3321, %v3321
        %v6513 = vmul.f32 %v3322, %v3322
        %v6514 = vmul.f32 %v3323, %v3323
        %v6515 = vmul.f32 %v3324, %v3324
        %v6516 = vmul.f32 %v3325, %v3325
        %v6517 = vmul.f32 %v3326, %v3326
        %v6518 = vmul.f32 %v3327, %v3327
        %v6519 = vmul.f32 %v3328, %v3328
        %v6520 = vmul.f32 %v3329, %v3329
        %v6521 = vsel %vm1962, %v6506, 0.0
        %v6522 = vadd.f32 %v6505, %v6521
        %6523 = vadd.xlane.f32.xlu0 %v6522
        %v6524 = vpop.xlane.xlu0 %6523
        %v6525 = vsel %vm1962, %v6508, 0.0
        %v6526 = vadd.f32 %v6507, %v6525
        %6527 = vadd.xlane.f32.xlu0 %v6526
        %v6528 = vpop.xlane.xlu0 %6527
        %v6529 = vsel %vm1962, %v6510, 0.0
        %v6530 = vadd.f32 %v6509, %v6529
        %6531 = vadd.xlane.f32.xlu0 %v6530
        %v6532 = vpop.xlane.xlu0 %6531
        %v6533 = vsel %vm1962, %v6512, 0.0
        %v6534 = vadd.f32 %v6511, %v6533
        %6535 = vadd.xlane.f32.xlu0 %v6534
        %v6536 = vpop.xlane.xlu0 %6535
        %v6537 = vsel %vm1962, %v6514, 0.0
        %v6538 = vadd.f32 %v6513, %v6537
        %6539 = vadd.xlane.f32.xlu0 %v6538
        %v6540 = vpop.xlane.xlu0 %6539
        %v6541 = vsel %vm1962, %v6516, 0.0
        %v6542 = vadd.f32 %v6515, %v6541
        %6543 = vadd.xlane.f32.xlu0 %v6542
        %v6544 = vpop.xlane.xlu0 %6543
        %v6545 = vsel %vm1962, %v6518, 0.0
        %v6546 = vadd.f32 %v6517, %v6545
        %6547 = vadd.xlane.f32.xlu0 %v6546
        %v6548 = vpop.xlane.xlu0 %6547
        %v6549 = vsel %vm1962, %v6520, 0.0
        %v6550 = vadd.f32 %v6519, %v6549
        %6551 = vadd.xlane.f32.xlu0 %v6550
        %v6552 = vpop.xlane.xlu0 %6551
        %v6553 = vmul.f32 %v3314, %v6489
        %v6554 = vmul.f32 %v3315, %v6490
        %v6555 = vmul.f32 %v3316, %v6491
        %v6556 = vmul.f32 %v3317, %v6492
        %v6557 = vmul.f32 %v3318, %v6493
        %v6558 = vmul.f32 %v3319, %v6494
        %v6559 = vmul.f32 %v3320, %v6495
        %v6560 = vmul.f32 %v3321, %v6496
        %v6561 = vmul.f32 %v3322, %v6497
        %v6562 = vmul.f32 %v3323, %v6498
        %v6563 = vmul.f32 %v3324, %v6499
        %v6564 = vmul.f32 %v3325, %v6500
        %v6565 = vmul.f32 %v3326, %v6501
        %v6566 = vmul.f32 %v3327, %v6502
        %v6567 = vmul.f32 %v3328, %v6503
        %v6568 = vmul.f32 %v3329, %v6504
        %v6569 = vsel %vm1962, %v6554, 0.0
        %v6570 = vadd.f32 %v6553, %v6569
        %6571 = vadd.xlane.f32.xlu0 %v6570
        %v6572 = vpop.xlane.xlu0 %6571
        %v6573 = vsel %vm1962, %v6556, 0.0
        %v6574 = vadd.f32 %v6555, %v6573
        %6575 = vadd.xlane.f32.xlu0 %v6574
        %v6576 = vpop.xlane.xlu0 %6575
        %v6577 = vsel %vm1962, %v6558, 0.0
        %v6578 = vadd.f32 %v6557, %v6577
        %6579 = vadd.xlane.f32.xlu0 %v6578
        %v6580 = vpop.xlane.xlu0 %6579
        %v6581 = vsel %vm1962, %v6560, 0.0
        %v6582 = vadd.f32 %v6559, %v6581
        %6583 = vadd.xlane.f32.xlu0 %v6582
        %v6584 = vpop.xlane.xlu0 %6583
        %v6585 = vsel %vm1962, %v6562, 0.0
        %v6586 = vadd.f32 %v6561, %v6585
        %6587 = vadd.xlane.f32.xlu0 %v6586
        %v6588 = vpop.xlane.xlu0 %6587
        %v6589 = vsel %vm1962, %v6564, 0.0
        %v6590 = vadd.f32 %v6563, %v6589
        %6591 = vadd.xlane.f32.xlu0 %v6590
        %v6592 = vpop.xlane.xlu0 %6591
        %v6593 = vsel %vm1962, %v6566, 0.0
        %v6594 = vadd.f32 %v6565, %v6593
        %6595 = vadd.xlane.f32.xlu0 %v6594
        %v6596 = vpop.xlane.xlu0 %6595
        %v6597 = vsel %vm1962, %v6568, 0.0
        %v6598 = vadd.f32 %v6567, %v6597
        %6599 = vadd.xlane.f32.xlu0 %v6598
        %v6600 = vpop.xlane.xlu0 %6599
        %v6601 = vmul.f32 %v6489, %v6489
        %v6602 = vmul.f32 %v6490, %v6490
        %v6603 = vmul.f32 %v6491, %v6491
        %v6604 = vmul.f32 %v6492, %v6492
        %v6605 = vmul.f32 %v6493, %v6493
        %v6606 = vmul.f32 %v6494, %v6494
        %v6607 = vmul.f32 %v6495, %v6495
        %v6608 = vmul.f32 %v6496, %v6496
        %v6609 = vmul.f32 %v6497, %v6497
        %v6610 = vmul.f32 %v6498, %v6498
        %v6611 = vmul.f32 %v6499, %v6499
        %v6612 = vmul.f32 %v6500, %v6500
        %v6613 = vmul.f32 %v6501, %v6501
        %v6614 = vmul.f32 %v6502, %v6502
        %v6615 = vmul.f32 %v6503, %v6503
        %v6616 = vmul.f32 %v6504, %v6504
        %v6617 = vsel %vm1962, %v6602, 0.0
        %v6618 = vadd.f32 %v6601, %v6617
        %6619 = vadd.xlane.f32.xlu0 %v6618
        %v6620 = vpop.xlane.xlu0 %6619
        %v6621 = vsel %vm1962, %v6604, 0.0
        %v6622 = vadd.f32 %v6603, %v6621
        %6623 = vadd.xlane.f32.xlu0 %v6622
        %v6624 = vpop.xlane.xlu0 %6623
        %v6625 = vsel %vm1962, %v6606, 0.0
        %v6626 = vadd.f32 %v6605, %v6625
        %6627 = vadd.xlane.f32.xlu0 %v6626
        %v6628 = vpop.xlane.xlu0 %6627
        %v6629 = vsel %vm1962, %v6608, 0.0
        %v6630 = vadd.f32 %v6607, %v6629
        %6631 = vadd.xlane.f32.xlu0 %v6630
        %v6632 = vpop.xlane.xlu0 %6631
        %v6633 = vsel %vm1962, %v6610, 0.0
        %v6634 = vadd.f32 %v6609, %v6633
        %6635 = vadd.xlane.f32.xlu0 %v6634
        %v6636 = vpop.xlane.xlu0 %6635
        %v6637 = vsel %vm1962, %v6612, 0.0
        %v6638 = vadd.f32 %v6611, %v6637
        %6639 = vadd.xlane.f32.xlu0 %v6638
        %v6640 = vpop.xlane.xlu0 %6639
        %v6641 = vsel %vm1962, %v6614, 0.0
        %v6642 = vadd.f32 %v6613, %v6641
        %6643 = vadd.xlane.f32.xlu0 %v6642
        %v6644 = vpop.xlane.xlu0 %6643
        %v6645 = vsel %vm1962, %v6616, 0.0
        %v6646 = vadd.f32 %v6615, %v6645
        %6647 = vadd.xlane.f32.xlu0 %v6646
        %v6648 = vpop.xlane.xlu0 %6647
        %v6649 = vsel %vm1962, %v3315, 0.0
        %v6650 = vadd.f32 %v3314, %v6649
        %6651 = vadd.xlane.f32.xlu0 %v6650
        %v6652 = vpop.xlane.xlu0 %6651
        %v6653 = vsel %vm1962, %v3317, 0.0
        %v6654 = vadd.f32 %v3316, %v6653
        %6655 = vadd.xlane.f32.xlu0 %v6654
        %v6656 = vpop.xlane.xlu0 %6655
        %v6657 = vsel %vm1962, %v3319, 0.0
        %v6658 = vadd.f32 %v3318, %v6657
        %6659 = vadd.xlane.f32.xlu0 %v6658
        %v6660 = vpop.xlane.xlu0 %6659
        %v6661 = vsel %vm1962, %v3321, 0.0
        %v6662 = vadd.f32 %v3320, %v6661
        %6663 = vadd.xlane.f32.xlu0 %v6662
        %v6664 = vpop.xlane.xlu0 %6663
        %v6665 = vsel %vm1962, %v3323, 0.0
        %v6666 = vadd.f32 %v3322, %v6665
        %6667 = vadd.xlane.f32.xlu0 %v6666
        %v6668 = vpop.xlane.xlu0 %6667
        %v6669 = vsel %vm1962, %v3325, 0.0
        %v6670 = vadd.f32 %v3324, %v6669
        %6671 = vadd.xlane.f32.xlu0 %v6670
        %v6672 = vpop.xlane.xlu0 %6671
        %v6673 = vsel %vm1962, %v3327, 0.0
        %v6674 = vadd.f32 %v3326, %v6673
        %6675 = vadd.xlane.f32.xlu0 %v6674
        %v6676 = vpop.xlane.xlu0 %6675
        %v6677 = vsel %vm1962, %v3329, 0.0
        %v6678 = vadd.f32 %v3328, %v6677
        %6679 = vadd.xlane.f32.xlu0 %v6678
        %v6680 = vpop.xlane.xlu0 %6679
        %v6681 = vsel %vm1962, %v6490, 0.0
        %v6682 = vadd.f32 %v6489, %v6681
        %6683 = vadd.xlane.f32.xlu0 %v6682
        %v6684 = vpop.xlane.xlu0 %6683
        %v6685 = vsel %vm1962, %v6492, 0.0
        %v6686 = vadd.f32 %v6491, %v6685
        %6687 = vadd.xlane.f32.xlu0 %v6686
        %v6688 = vpop.xlane.xlu0 %6687
        %v6689 = vsel %vm1962, %v6494, 0.0
        %v6690 = vadd.f32 %v6493, %v6689
        %6691 = vadd.xlane.f32.xlu0 %v6690
        %v6692 = vpop.xlane.xlu0 %6691
        %v6693 = vsel %vm1962, %v6496, 0.0
        %v6694 = vadd.f32 %v6495, %v6693
        %6695 = vadd.xlane.f32.xlu0 %v6694
        %v6696 = vpop.xlane.xlu0 %6695
        %v6697 = vsel %vm1962, %v6498, 0.0
        %v6698 = vadd.f32 %v6497, %v6697
        %6699 = vadd.xlane.f32.xlu0 %v6698
        %v6700 = vpop.xlane.xlu0 %6699
        %v6701 = vsel %vm1962, %v6500, 0.0
        %v6702 = vadd.f32 %v6499, %v6701
        %6703 = vadd.xlane.f32.xlu0 %v6702
        %v6704 = vpop.xlane.xlu0 %6703
        %v6705 = vsel %vm1962, %v6502, 0.0
        %v6706 = vadd.f32 %v6501, %v6705
        %6707 = vadd.xlane.f32.xlu0 %v6706
        %v6708 = vpop.xlane.xlu0 %6707
        %v6709 = vsel %vm1962, %v6504, 0.0
        %v6710 = vadd.f32 %v6503, %v6709
        %6711 = vadd.xlane.f32.xlu0 %v6710
        %v6712 = vpop.xlane.xlu0 %6711
        %v6713 = vld [vmem:[#allocation16 + $0x9] sm:$0x3]
        %v6715 = vperm.slane %v6713, 0
        %v6716 = vperm.slane %v6713, 1
        %v6719 = vmul.f32 %v6524, %v6715
        %v6720 = vmul.f32 %v6524, %v6716
        %v6721 = vmul.f32 %v6528, %v6715
        %v6722 = vmul.f32 %v6528, %v6716
        %v6723 = vmul.f32 %v6532, %v6715
        %v6724 = vmul.f32 %v6532, %v6716
        %v6725 = vmul.f32 %v6536, %v6715
        %v6726 = vmul.f32 %v6536, %v6716
        %v6727 = vmul.f32 %v6540, %v6715
        %v6728 = vmul.f32 %v6540, %v6716
        %v6729 = vmul.f32 %v6544, %v6715
        %v6730 = vmul.f32 %v6544, %v6716
        %v6731 = vmul.f32 %v6548, %v6715
        %v6732 = vmul.f32 %v6548, %v6716
        %v6733 = vmul.f32 %v6552, %v6715
        %v6734 = vmul.f32 %v6552, %v6716
        %v6735 = vld [vmem:[#allocation16 + $0xb] sm:$0x3]
        %v6737 = vperm.slane %v6735, 0
        %v6738 = vperm.slane %v6735, 1
        %v6741 = vmul.f32 %v6572, %v6737
        %v6742 = vmul.f32 %v6572, %v6738
        %v6743 = vmul.f32 %v6576, %v6737
        %v6744 = vmul.f32 %v6576, %v6738
        %v6745 = vmul.f32 %v6580, %v6737
        %v6746 = vmul.f32 %v6580, %v6738
        %v6747 = vmul.f32 %v6584, %v6737
        %v6748 = vmul.f32 %v6584, %v6738
        %v6749 = vmul.f32 %v6588, %v6737
        %v6750 = vmul.f32 %v6588, %v6738
        %v6751 = vmul.f32 %v6592, %v6737
        %v6752 = vmul.f32 %v6592, %v6738
        %v6753 = vmul.f32 %v6596, %v6737
        %v6754 = vmul.f32 %v6596, %v6738
        %v6755 = vmul.f32 %v6600, %v6737
        %v6756 = vmul.f32 %v6600, %v6738
        %v6757 = vadd.f32 %v6719, %v6741
        %v6758 = vadd.f32 %v6720, %v6742
        %v6759 = vadd.f32 %v6721, %v6743
        %v6760 = vadd.f32 %v6722, %v6744
        %v6761 = vadd.f32 %v6723, %v6745
        %v6762 = vadd.f32 %v6724, %v6746
        %v6763 = vadd.f32 %v6725, %v6747
        %v6764 = vadd.f32 %v6726, %v6748
        %v6765 = vadd.f32 %v6727, %v6749
        %v6766 = vadd.f32 %v6728, %v6750
        %v6767 = vadd.f32 %v6729, %v6751
        %v6768 = vadd.f32 %v6730, %v6752
        %v6769 = vadd.f32 %v6731, %v6753
        %v6770 = vadd.f32 %v6732, %v6754
        %v6771 = vadd.f32 %v6733, %v6755
        %v6772 = vadd.f32 %v6734, %v6756
        %v6773 = vld [vmem:[#allocation16 + $0xd] sm:$0x3]
        %v6775 = vperm.slane %v6773, 0
        %v6776 = vperm.slane %v6773, 1
        %v6779 = vmul.f32 %v6620, %v6775
        %v6780 = vmul.f32 %v6620, %v6776
        %v6781 = vmul.f32 %v6624, %v6775
        %v6782 = vmul.f32 %v6624, %v6776
        %v6783 = vmul.f32 %v6628, %v6775
        %v6784 = vmul.f32 %v6628, %v6776
        %v6785 = vmul.f32 %v6632, %v6775
        %v6786 = vmul.f32 %v6632, %v6776
        %v6787 = vmul.f32 %v6636, %v6775
        %v6788 = vmul.f32 %v6636, %v6776
        %v6789 = vmul.f32 %v6640, %v6775
        %v6790 = vmul.f32 %v6640, %v6776
        %v6791 = vmul.f32 %v6644, %v6775
        %v6792 = vmul.f32 %v6644, %v6776
        %v6793 = vmul.f32 %v6648, %v6775
        %v6794 = vmul.f32 %v6648, %v6776
        %v6795 = vadd.f32 %v6757, %v6779
        %v6796 = vadd.f32 %v6758, %v6780
        %v6797 = vadd.f32 %v6759, %v6781
        %v6798 = vadd.f32 %v6760, %v6782
        %v6799 = vadd.f32 %v6761, %v6783
        %v6800 = vadd.f32 %v6762, %v6784
        %v6801 = vadd.f32 %v6763, %v6785
        %v6802 = vadd.f32 %v6764, %v6786
        %v6803 = vadd.f32 %v6765, %v6787
        %v6804 = vadd.f32 %v6766, %v6788
        %v6805 = vadd.f32 %v6767, %v6789
        %v6806 = vadd.f32 %v6768, %v6790
        %v6807 = vadd.f32 %v6769, %v6791
        %v6808 = vadd.f32 %v6770, %v6792
        %v6809 = vadd.f32 %v6771, %v6793
        %v6810 = vadd.f32 %v6772, %v6794
        %v6811 = vld [vmem:[#allocation16 + $0xf] sm:$0x3]
        %v6813 = vperm.slane %v6811, 0
        %v6814 = vperm.slane %v6811, 1
        %v6817 = vmul.f32 %v6652, %v6813
        %v6818 = vmul.f32 %v6652, %v6814
        %v6819 = vmul.f32 %v6656, %v6813
        %v6820 = vmul.f32 %v6656, %v6814
        %v6821 = vmul.f32 %v6660, %v6813
        %v6822 = vmul.f32 %v6660, %v6814
        %v6823 = vmul.f32 %v6664, %v6813
        %v6824 = vmul.f32 %v6664, %v6814
        %v6825 = vmul.f32 %v6668, %v6813
        %v6826 = vmul.f32 %v6668, %v6814
        %v6827 = vmul.f32 %v6672, %v6813
        %v6828 = vmul.f32 %v6672, %v6814
        %v6829 = vmul.f32 %v6676, %v6813
        %v6830 = vmul.f32 %v6676, %v6814
        %v6831 = vmul.f32 %v6680, %v6813
        %v6832 = vmul.f32 %v6680, %v6814
        %v6833 = vadd.f32 %v6795, %v6817
        %v6834 = vadd.f32 %v6796, %v6818
        %v6835 = vadd.f32 %v6797, %v6819
        %v6836 = vadd.f32 %v6798, %v6820
        %v6837 = vadd.f32 %v6799, %v6821
        %v6838 = vadd.f32 %v6800, %v6822
        %v6839 = vadd.f32 %v6801, %v6823
        %v6840 = vadd.f32 %v6802, %v6824
        %v6841 = vadd.f32 %v6803, %v6825
        %v6842 = vadd.f32 %v6804, %v6826
        %v6843 = vadd.f32 %v6805, %v6827
        %v6844 = vadd.f32 %v6806, %v6828
        %v6845 = vadd.f32 %v6807, %v6829
        %v6846 = vadd.f32 %v6808, %v6830
        %v6847 = vadd.f32 %v6809, %v6831
        %v6848 = vadd.f32 %v6810, %v6832
        %v6849 = vld [vmem:[#allocation16 + $0x11] sm:$0x3]
        %v6851 = vperm.slane %v6849, 0
        %v6852 = vperm.slane %v6849, 1
        %v6855 = vmul.f32 %v6684, %v6851
        %v6856 = vmul.f32 %v6684, %v6852
        %v6857 = vmul.f32 %v6688, %v6851
        %v6858 = vmul.f32 %v6688, %v6852
        %v6859 = vmul.f32 %v6692, %v6851
        %v6860 = vmul.f32 %v6692, %v6852
        %v6861 = vmul.f32 %v6696, %v6851
        %v6862 = vmul.f32 %v6696, %v6852
        %v6863 = vmul.f32 %v6700, %v6851
        %v6864 = vmul.f32 %v6700, %v6852
        %v6865 = vmul.f32 %v6704, %v6851
        %v6866 = vmul.f32 %v6704, %v6852
        %v6867 = vmul.f32 %v6708, %v6851
        %v6868 = vmul.f32 %v6708, %v6852
        %v6869 = vmul.f32 %v6712, %v6851
        %v6870 = vmul.f32 %v6712, %v6852
        %v6871 = vadd.f32 %v6833, %v6855
        %v6872 = vadd.f32 %v6834, %v6856
        %v6873 = vadd.f32 %v6835, %v6857
        %v6874 = vadd.f32 %v6836, %v6858
        %v6875 = vadd.f32 %v6837, %v6859
        %v6876 = vadd.f32 %v6838, %v6860
        %v6877 = vadd.f32 %v6839, %v6861
        %v6878 = vadd.f32 %v6840, %v6862
        %v6879 = vadd.f32 %v6841, %v6863
        %v6880 = vadd.f32 %v6842, %v6864
        %v6881 = vadd.f32 %v6843, %v6865
        %v6882 = vadd.f32 %v6844, %v6866
        %v6883 = vadd.f32 %v6845, %v6867
        %v6884 = vadd.f32 %v6846, %v6868
        %v6885 = vadd.f32 %v6847, %v6869
        %v6886 = vadd.f32 %v6848, %v6870
        %v6887 = vld [vmem:[%s15] sm:$0xff]
        %v6888 = vld [vmem:[%s15 + $0x8] sm:$0xff]
        %v6889 = vld [vmem:[%s15 + $0x10] sm:$0xff]
        %v6890 = vld [vmem:[%s15 + $0x18] sm:$0xff]
        %v6891 = vld [vmem:[%s15 + $0x20] sm:$0xff]
        %v6892 = vld [vmem:[%s15 + $0x28] sm:$0xff]
        %v6893 = vld [vmem:[%s15 + $0x30] sm:$0xff]
        %v6894 = vld [vmem:[%s15 + $0x38] sm:$0xff]
        %v6895 = vld [vmem:[%s15 + $0x40] sm:$0xff]
        %v6896 = vld [vmem:[%s15 + $0x48] sm:$0xff]
        %v6897 = vld [vmem:[%s15 + $0x50] sm:$0xff]
        %v6898 = vld [vmem:[%s15 + $0x58] sm:$0xff]
        %v6899 = vld [vmem:[%s15 + $0x60] sm:$0xff]
        %v6900 = vld [vmem:[%s15 + $0x68] sm:$0xff]
        %v6901 = vld [vmem:[%s15 + $0x70] sm:$0xff]
        %v6902 = vld [vmem:[%s15 + $0x78] sm:$0xff]
        %v6903 = vld [vmem:[%s15 + $0x80] sm:$0xff]
        %v6904 = vld [vmem:[%s15 + $0x88] sm:$0xff]
        %v6905 = vld [vmem:[%s15 + $0x90] sm:$0xff]
        %v6906 = vld [vmem:[%s15 + $0x98] sm:$0xff]
        %v6907 = vld [vmem:[%s15 + $0xa0] sm:$0xff]
        %v6908 = vld [vmem:[%s15 + $0xa8] sm:$0xff]
        %v6909 = vld [vmem:[%s15 + $0xb0] sm:$0xff]
        %v6910 = vld [vmem:[%s15 + $0xb8] sm:$0xff]
        %v6911 = vld [vmem:[#allocation16 + $0x13] sm:$0x1]
        %v6913 = vperm.slane %v6911, 0
        %v6916 = vsel %vm1962, %v6872, 0
        %v6919 = vsel %vm1962, %v6874, 0
        %v6922 = vsel %vm1962, %v6876, 0
        %v6925 = vsel %vm1962, %v6878, 0
        %v6928 = vsel %vm1962, %v6880, 0
        %v6931 = vsel %vm1962, %v6882, 0
        %v6934 = vsel %vm1962, %v6884, 0
        %v6937 = vsel %vm1962, %v6886, 0
        %6939 = vmatpush.msra.mxu0 %v6902
        %6940 = vmatpush.msra.mxu0 %v6901
        %6941 = vmatpush.msra.mxu0 %v6900
        %6942 = vmatpush.msra.mxu0 %v6899
        %6943 = vmatpush.msra.mxu0 %v6898
        %6944 = vmatpush.msra.mxu0 %v6897
        %6945 = vmatpush.msra.mxu0 %v6896
        %6946 = vmatpush.msra.mxu0 %v6895
        %6947 = vmatpush.msra.mxu0 %v6894
        %6948 = vmatpush.msra.mxu0 %v6893
        %6949 = vmatpush.msra.mxu0 %v6892
        %6950 = vmatpush.msra.mxu0 %v6891
        %6951 = vmatpush.msra.mxu0 %v6890
        %6952 = vmatpush.msra.mxu0 %v6889
        %6953 = vmatpush.msra.mxu0 %v6888
        %6954 = vmatpush.msra.mxu0 %v6887
        %6955 = vmatmul.f32.gmra.mxu0 %v6871
        %v6956 = vpop.f32.mrf.mxu0
        %v6957 = vadd.f32 %v6913, %v6956
        %6958 = vmatmul.f32.gmra.mxu0 %v6873
        %v6959 = vpop.f32.mrf.mxu0
        %v6960 = vadd.f32 %v6913, %v6959
        %6961 = vmatmul.f32.gmra.mxu0 %v6875
        %v6962 = vpop.f32.mrf.mxu0
        %v6963 = vadd.f32 %v6913, %v6962
        %6964 = vmatmul.f32.gmra.mxu0 %v6877
        %v6965 = vpop.f32.mrf.mxu0
        %v6966 = vadd.f32 %v6913, %v6965
        %6967 = vmatmul.f32.gmra.mxu0 %v6879
        %v6968 = vpop.f32.mrf.mxu0
        %v6969 = vadd.f32 %v6913, %v6968
        %6970 = vmatmul.f32.gmra.mxu0 %v6881
        %v6971 = vpop.f32.mrf.mxu0
        %v6972 = vadd.f32 %v6913, %v6971
        %6973 = vmatmul.f32.gmra.mxu0 %v6883
        %v6974 = vpop.f32.mrf.mxu0
        %v6975 = vadd.f32 %v6913, %v6974
        %6976 = vmatmul.f32.gmra.mxu0 %v6885
        %v6977 = vpop.f32.mrf.mxu0
        %v6978 = vadd.f32 %v6913, %v6977
        %6979 = vdwg.mxu0
        %6980 = vmatpush.msra.mxu0 0.0
        %6981 = vmatpush.msra.mxu0 0.0
        %6982 = vmatpush.msra.mxu0 0.0
        %6983 = vmatpush.msra.mxu0 0.0
        %6984 = vmatpush.msra.mxu0 0.0
        %6985 = vmatpush.msra.mxu0 0.0
        %6986 = vmatpush.msra.mxu0 0.0
        %6987 = vmatpush.msra.mxu0 0.0
        %6988 = vmatpush.msra.mxu0 %v6910
        %6989 = vmatpush.msra.mxu0 %v6909
        %6990 = vmatpush.msra.mxu0 %v6908
        %6991 = vmatpush.msra.mxu0 %v6907
        %6992 = vmatpush.msra.mxu0 %v6906
        %6993 = vmatpush.msra.mxu0 %v6905
        %6994 = vmatpush.msra.mxu0 %v6904
        %6995 = vmatpush.msra.mxu0 %v6903
        %6996 = vmatmul.f32.gmra.mxu0 %v6916
        %v6997 = vpop.f32.mrf.mxu0
        %v6998 = vadd.f32 %v6957, %v6997
        %6999 = vmatmul.f32.gmra.mxu0 %v6919
        %v7000 = vpop.f32.mrf.mxu0
        %v7001 = vadd.f32 %v6960, %v7000
        %7002 = vmatmul.f32.gmra.mxu0 %v6922
        %v7003 = vpop.f32.mrf.mxu0
        %v7004 = vadd.f32 %v6963, %v7003
        %7005 = vmatmul.f32.gmra.mxu0 %v6925
        %v7006 = vpop.f32.mrf.mxu0
        %v7007 = vadd.f32 %v6966, %v7006
        %7008 = vmatmul.f32.gmra.mxu0 %v6928
        %v7009 = vpop.f32.mrf.mxu0
        %v7010 = vadd.f32 %v6969, %v7009
        %7011 = vmatmul.f32.gmra.mxu0 %v6931
        %v7012 = vpop.f32.mrf.mxu0
        %v7013 = vadd.f32 %v6972, %v7012
        %7014 = vmatmul.f32.gmra.mxu0 %v6934
        %v7015 = vpop.f32.mrf.mxu0
        %v7016 = vadd.f32 %v6975, %v7015
        %7017 = vmatmul.f32.gmra.mxu0 %v6937
        %v7018 = vpop.f32.mrf.mxu0
        %v7019 = vadd.f32 %v6978, %v7018
        %7020 = vdwg.mxu0
        %7021 = vadd.xlane.f32.xlu0 %v6998
        %v7022 = vpop.xlane.xlu0 %7021
        %7023 = vadd.xlane.f32.xlu0 %v7001
        %v7024 = vpop.xlane.xlu0 %7023
        %7025 = vadd.xlane.f32.xlu0 %v7004
        %v7026 = vpop.xlane.xlu0 %7025
        %7027 = vadd.xlane.f32.xlu0 %v7007
        %v7028 = vpop.xlane.xlu0 %7027
        %7029 = vadd.xlane.f32.xlu0 %v7010
        %v7030 = vpop.xlane.xlu0 %7029
        %7031 = vadd.xlane.f32.xlu0 %v7013
        %v7032 = vpop.xlane.xlu0 %7031
        %7033 = vadd.xlane.f32.xlu0 %v7016
        %v7034 = vpop.xlane.xlu0 %7033
        %7035 = vadd.xlane.f32.xlu0 %v7019
        %v7036 = vpop.xlane.xlu0 %7035
        %v7037 = vmul.f32 %v7022, %v1404
        %v7038 = vmul.f32 %v7024, %v1404
        %v7039 = vmul.f32 %v7026, %v1404
        %v7040 = vmul.f32 %v7028, %v1404
        %v7041 = vmul.f32 %v7030, %v1404
        %v7042 = vmul.f32 %v7032, %v1404
        %v7043 = vmul.f32 %v7034, %v1404
        %v7044 = vmul.f32 %v7036, %v1404
        %v7045 = vsub.f32 %v6998, %v7037
        %v7046 = vsub.f32 %v7001, %v7038
        %v7047 = vsub.f32 %v7004, %v7039
        %v7048 = vsub.f32 %v7007, %v7040
        %v7049 = vsub.f32 %v7010, %v7041
        %v7050 = vsub.f32 %v7013, %v7042
        %v7051 = vsub.f32 %v7016, %v7043
        %v7052 = vsub.f32 %v7019, %v7044
        %v7053 = vmul.f32 %v7045, %v7045
        %v7054 = vmul.f32 %v7046, %v7046
        %v7055 = vmul.f32 %v7047, %v7047
        %v7056 = vmul.f32 %v7048, %v7048
        %v7057 = vmul.f32 %v7049, %v7049
        %v7058 = vmul.f32 %v7050, %v7050
        %v7059 = vmul.f32 %v7051, %v7051
        %v7060 = vmul.f32 %v7052, %v7052
        %7061 = vadd.xlane.f32.xlu0 %v7053
        %v7062 = vpop.xlane.xlu0 %7061
        %7063 = vadd.xlane.f32.xlu0 %v7054
        %v7064 = vpop.xlane.xlu0 %7063
        %7065 = vadd.xlane.f32.xlu0 %v7055
        %v7066 = vpop.xlane.xlu0 %7065
        %7067 = vadd.xlane.f32.xlu0 %v7056
        %v7068 = vpop.xlane.xlu0 %7067
        %7069 = vadd.xlane.f32.xlu0 %v7057
        %v7070 = vpop.xlane.xlu0 %7069
        %7071 = vadd.xlane.f32.xlu0 %v7058
        %v7072 = vpop.xlane.xlu0 %7071
        %7073 = vadd.xlane.f32.xlu0 %v7059
        %v7074 = vpop.xlane.xlu0 %7073
        %7075 = vadd.xlane.f32.xlu0 %v7060
        %v7076 = vpop.xlane.xlu0 %7075
        %v7077 = vmul.f32 %v7062, %v1404
        %v7078 = vmul.f32 %v7064, %v1404
        %v7079 = vmul.f32 %v7066, %v1404
        %v7080 = vmul.f32 %v7068, %v1404
        %v7081 = vmul.f32 %v7070, %v1404
        %v7082 = vmul.f32 %v7072, %v1404
        %v7083 = vmul.f32 %v7074, %v1404
        %v7084 = vmul.f32 %v7076, %v1404
        %v7085 = vadd.f32 %v7077, 1e-05
        %v7086 = vadd.f32 %v7078, 1e-05
        %v7087 = vadd.f32 %v7079, 1e-05
        %v7088 = vadd.f32 %v7080, 1e-05
        %v7089 = vadd.f32 %v7081, 1e-05
        %v7090 = vadd.f32 %v7082, 1e-05
        %v7091 = vadd.f32 %v7083, 1e-05
        %v7092 = vadd.f32 %v7084, 1e-05
        %v7093 = vrsqrt.pop %v7085
        %v7094 = vmul.f32 %v7093, %v7085
        %v7095 = vmul.f32 %v7094, %v7093
        %v7096 = vmul.f32 0.5, %v7095
        %v7097 = vsub.f32 1.5, %v7096
        %v7098 = vmul.f32 %v7093, %v7097
        %vm7099 = vweird.f32 %v7085
        %vm7100 = vweird.f32 %v7093
        %vm7101 = vmor %vm7099, %vm7100
        %v7102 = vsel %vm7101, %v7093, %v7098
        %v7103 = vrsqrt.pop %v7086
        %v7104 = vmul.f32 %v7103, %v7086
        %v7105 = vmul.f32 %v7104, %v7103
        %v7106 = vmul.f32 0.5, %v7105
        %v7107 = vsub.f32 1.5, %v7106
        %v7108 = vmul.f32 %v7103, %v7107
        %vm7109 = vweird.f32 %v7086
        %vm7110 = vweird.f32 %v7103
        %vm7111 = vmor %vm7109, %vm7110
        %v7112 = vsel %vm7111, %v7103, %v7108
        %v7113 = vrsqrt.pop %v7087
        %v7114 = vmul.f32 %v7113, %v7087
        %v7115 = vmul.f32 %v7114, %v7113
        %v7116 = vmul.f32 0.5, %v7115
        %v7117 = vsub.f32 1.5, %v7116
        %v7118 = vmul.f32 %v7113, %v7117
        %vm7119 = vweird.f32 %v7087
        %vm7120 = vweird.f32 %v7113
        %vm7121 = vmor %vm7119, %vm7120
        %v7122 = vsel %vm7121, %v7113, %v7118
        %v7123 = vrsqrt.pop %v7088
        %v7124 = vmul.f32 %v7123, %v7088
        %v7125 = vmul.f32 %v7124, %v7123
        %v7126 = vmul.f32 0.5, %v7125
        %v7127 = vsub.f32 1.5, %v7126
        %v7128 = vmul.f32 %v7123, %v7127
        %vm7129 = vweird.f32 %v7088
        %vm7130 = vweird.f32 %v7123
        %vm7131 = vmor %vm7129, %vm7130
        %v7132 = vsel %vm7131, %v7123, %v7128
        %v7133 = vrsqrt.pop %v7089
        %v7134 = vmul.f32 %v7133, %v7089
        %v7135 = vmul.f32 %v7134, %v7133
        %v7136 = vmul.f32 0.5, %v7135
        %v7137 = vsub.f32 1.5, %v7136
        %v7138 = vmul.f32 %v7133, %v7137
        %vm7139 = vweird.f32 %v7089
        %vm7140 = vweird.f32 %v7133
        %vm7141 = vmor %vm7139, %vm7140
        %v7142 = vsel %vm7141, %v7133, %v7138
        %v7143 = vrsqrt.pop %v7090
        %v7144 = vmul.f32 %v7143, %v7090
        %v7145 = vmul.f32 %v7144, %v7143
        %v7146 = vmul.f32 0.5, %v7145
        %v7147 = vsub.f32 1.5, %v7146
        %v7148 = vmul.f32 %v7143, %v7147
        %vm7149 = vweird.f32 %v7090
        %vm7150 = vweird.f32 %v7143
        %vm7151 = vmor %vm7149, %vm7150
        %v7152 = vsel %vm7151, %v7143, %v7148
        %v7153 = vrsqrt.pop %v7091
        %v7154 = vmul.f32 %v7153, %v7091
        %v7155 = vmul.f32 %v7154, %v7153
        %v7156 = vmul.f32 0.5, %v7155
        %v7157 = vsub.f32 1.5, %v7156
        %v7158 = vmul.f32 %v7153, %v7157
        %vm7159 = vweird.f32 %v7091
        %vm7160 = vweird.f32 %v7153
        %vm7161 = vmor %vm7159, %vm7160
        %v7162 = vsel %vm7161, %v7153, %v7158
        %v7163 = vrsqrt.pop %v7092
        %v7164 = vmul.f32 %v7163, %v7092
        %v7165 = vmul.f32 %v7164, %v7163
        %v7166 = vmul.f32 0.5, %v7165
        %v7167 = vsub.f32 1.5, %v7166
        %v7168 = vmul.f32 %v7163, %v7167
        %vm7169 = vweird.f32 %v7092
        %vm7170 = vweird.f32 %v7163
        %vm7171 = vmor %vm7169, %vm7170
        %v7172 = vsel %vm7171, %v7163, %v7168
        %v7173 = vmul.f32 %v7045, %v7102
        %v7174 = vmul.f32 %v7046, %v7112
        %v7175 = vmul.f32 %v7047, %v7122
        %v7176 = vmul.f32 %v7048, %v7132
        %v7177 = vmul.f32 %v7049, %v7142
        %v7178 = vmul.f32 %v7050, %v7152
        %v7179 = vmul.f32 %v7051, %v7162
        %v7180 = vmul.f32 %v7052, %v7172
        %v7181 = vld [vmem:[#allocation16 + $0x14] sm:$0x1]
        %v7183 = vperm.slane %v7181, 0
        %v7185 = vmul.f32 %v7173, %v7183
        %v7186 = vmul.f32 %v7174, %v7183
        %v7187 = vmul.f32 %v7175, %v7183
        %v7188 = vmul.f32 %v7176, %v7183
        %v7189 = vmul.f32 %v7177, %v7183
        %v7190 = vmul.f32 %v7178, %v7183
        %v7191 = vmul.f32 %v7179, %v7183
        %v7192 = vmul.f32 %v7180, %v7183
        %v7193 = vld [vmem:[#allocation16 + $0x15] sm:$0x1]
        %v7195 = vperm.slane %v7193, 0
        %v7197 = vadd.f32 %v7185, %v7195
        %v7198 = vadd.f32 %v7186, %v7195
        %v7199 = vadd.f32 %v7187, %v7195
        %v7200 = vadd.f32 %v7188, %v7195
        %v7201 = vadd.f32 %v7189, %v7195
        %v7202 = vadd.f32 %v7190, %v7195
        %v7203 = vadd.f32 %v7191, %v7195
        %v7204 = vadd.f32 %v7192, %v7195
        %v7205 = vmul.f32 %v7197, 0.5
        %v7206 = vmul.f32 %v7198, 0.5
        %v7207 = vmul.f32 %v7199, 0.5
        %v7208 = vmul.f32 %v7200, 0.5
        %v7209 = vmul.f32 %v7201, 0.5
        %v7210 = vmul.f32 %v7202, 0.5
        %v7211 = vmul.f32 %v7203, 0.5
        %v7212 = vmul.f32 %v7204, 0.5
        %v7213 = vmul.f32 %v7197, 0.70710677
        %v7214 = vmul.f32 %v7198, 0.70710677
        %v7215 = vmul.f32 %v7199, 0.70710677
        %v7216 = vmul.f32 %v7200, 0.70710677
        %v7217 = vmul.f32 %v7201, 0.70710677
        %v7218 = vmul.f32 %v7202, 0.70710677
        %v7219 = vmul.f32 %v7203, 0.70710677
        %v7220 = vmul.f32 %v7204, 0.70710677
        %v7221 = vmul.f32 %v7213, %v7213
        %v7222 = vmin.f32 16.0, %v7221
        %v7223 = vmul.f32 %v7222, 2.1237322e-06
        %v7224 = vadd.f32 %v7223, 0.00028619796
        %v7225 = vmul.f32 %v7222, %v7224
        %v7226 = vadd.f32 %v7225, 0.0036580483
        %v7227 = vmul.f32 %v7222, %v7226
        %v7228 = vadd.f32 %v7227, 0.05243302
        %v7229 = vmul.f32 %v7222, %v7228
        %v7230 = vadd.f32 %v7229, 0.18741608
        %v7231 = vmul.f32 %v7222, %v7230
        %v7232 = vadd.f32 %v7231, 1.1283791
        %v7233 = vmul.f32 %v7213, %v7232
        %v7234 = vmul.f32 %v7222, 3.8918573e-05
        %v7235 = vadd.f32 %v7234, 0.001143296
        %v7236 = vmul.f32 %v7222, %v7235
        %v7237 = vadd.f32 %v7236, 0.014752088
        %v7238 = vmul.f32 %v7222, %v7237
        %v7239 = vadd.f32 %v7238, 0.112945676
        %v7240 = vmul.f32 %v7222, %v7239
        %v7241 = vadd.f32 %v7240, 0.4994258
        %v7242 = vmul.f32 %v7222, %v7241
        %v7243 = vadd.f32 %v7242, 1.0
        %v7244 = vrcp.pop %v7243
        %v7245 = vmul.f32 %v7243, %v7244
        %v7246 = vsub.f32 1.0, %v7245
        %v7247 = vmul.f32 %v7244, %v7246
        %v7248 = vadd.f32 %v7244, %v7247
        %vm7249 = vweird.f32 %v7243
        %vm7250 = vweird.f32 %v7244
        %vm7251 = vmor %vm7249, %vm7250
        %v7252 = vsel %vm7251, %v7244, %v7248
        %v7253 = vand.u32 2147483647, %v7243
        %vm7254 = vcmp.eq.f32.partialorder %v7253, 8.507059e+37
        %v7255 = vand.u32 %v7243, 2147483648
        %v7256 = vor.u32 1.1754944e-38, %v7255
        %v7257 = vsel %vm7254, %v7256, %v7252
        %v7258 = vmul.f32 %v7233, %v7257
        %v7259 = vmin.f32 %v7258, 1.0
        %v7260 = vmax.f32 %v7259, -1.0
        %v7261 = vmul.f32 %v7214, %v7214
        %v7262 = vmin.f32 16.0, %v7261
        %v7263 = vmul.f32 %v7262, 2.1237322e-06
        %v7264 = vadd.f32 %v7263, 0.00028619796
        %v7265 = vmul.f32 %v7262, %v7264
        %v7266 = vadd.f32 %v7265, 0.0036580483
        %v7267 = vmul.f32 %v7262, %v7266
        %v7268 = vadd.f32 %v7267, 0.05243302
        %v7269 = vmul.f32 %v7262, %v7268
        %v7270 = vadd.f32 %v7269, 0.18741608
        %v7271 = vmul.f32 %v7262, %v7270
        %v7272 = vadd.f32 %v7271, 1.1283791
        %v7273 = vmul.f32 %v7214, %v7272
        %v7274 = vmul.f32 %v7262, 3.8918573e-05
        %v7275 = vadd.f32 %v7274, 0.001143296
        %v7276 = vmul.f32 %v7262, %v7275
        %v7277 = vadd.f32 %v7276, 0.014752088
        %v7278 = vmul.f32 %v7262, %v7277
        %v7279 = vadd.f32 %v7278, 0.112945676
        %v7280 = vmul.f32 %v7262, %v7279
        %v7281 = vadd.f32 %v7280, 0.4994258
        %v7282 = vmul.f32 %v7262, %v7281
        %v7283 = vadd.f32 %v7282, 1.0
        %v7284 = vrcp.pop %v7283
        %v7285 = vmul.f32 %v7283, %v7284
        %v7286 = vsub.f32 1.0, %v7285
        %v7287 = vmul.f32 %v7284, %v7286
        %v7288 = vadd.f32 %v7284, %v7287
        %vm7289 = vweird.f32 %v7283
        %vm7290 = vweird.f32 %v7284
        %vm7291 = vmor %vm7289, %vm7290
        %v7292 = vsel %vm7291, %v7284, %v7288
        %v7293 = vand.u32 2147483647, %v7283
        %vm7294 = vcmp.eq.f32.partialorder %v7293, 8.507059e+37
        %v7295 = vand.u32 %v7283, 2147483648
        %v7296 = vor.u32 1.1754944e-38, %v7295
        %v7297 = vsel %vm7294, %v7296, %v7292
        %v7298 = vmul.f32 %v7273, %v7297
        %v7299 = vmin.f32 %v7298, 1.0
        %v7300 = vmax.f32 %v7299, -1.0
        %v7301 = vmul.f32 %v7215, %v7215
        %v7302 = vmin.f32 16.0, %v7301
        %v7303 = vmul.f32 %v7302, 2.1237322e-06
        %v7304 = vadd.f32 %v7303, 0.00028619796
        %v7305 = vmul.f32 %v7302, %v7304
        %v7306 = vadd.f32 %v7305, 0.0036580483
        %v7307 = vmul.f32 %v7302, %v7306
        %v7308 = vadd.f32 %v7307, 0.05243302
        %v7309 = vmul.f32 %v7302, %v7308
        %v7310 = vadd.f32 %v7309, 0.18741608
        %v7311 = vmul.f32 %v7302, %v7310
        %v7312 = vadd.f32 %v7311, 1.1283791
        %v7313 = vmul.f32 %v7215, %v7312
        %v7314 = vmul.f32 %v7302, 3.8918573e-05
        %v7315 = vadd.f32 %v7314, 0.001143296
        %v7316 = vmul.f32 %v7302, %v7315
        %v7317 = vadd.f32 %v7316, 0.014752088
        %v7318 = vmul.f32 %v7302, %v7317
        %v7319 = vadd.f32 %v7318, 0.112945676
        %v7320 = vmul.f32 %v7302, %v7319
        %v7321 = vadd.f32 %v7320, 0.4994258
        %v7322 = vmul.f32 %v7302, %v7321
        %v7323 = vadd.f32 %v7322, 1.0
        %v7324 = vrcp.pop %v7323
        %v7325 = vmul.f32 %v7323, %v7324
        %v7326 = vsub.f32 1.0, %v7325
        %v7327 = vmul.f32 %v7324, %v7326
        %v7328 = vadd.f32 %v7324, %v7327
        %vm7329 = vweird.f32 %v7323
        %vm7330 = vweird.f32 %v7324
        %vm7331 = vmor %vm7329, %vm7330
        %v7332 = vsel %vm7331, %v7324, %v7328
        %v7333 = vand.u32 2147483647, %v7323
        %vm7334 = vcmp.eq.f32.partialorder %v7333, 8.507059e+37
        %v7335 = vand.u32 %v7323, 2147483648
        %v7336 = vor.u32 1.1754944e-38, %v7335
        %v7337 = vsel %vm7334, %v7336, %v7332
        %v7338 = vmul.f32 %v7313, %v7337
        %v7339 = vmin.f32 %v7338, 1.0
        %v7340 = vmax.f32 %v7339, -1.0
        %v7341 = vmul.f32 %v7216, %v7216
        %v7342 = vmin.f32 16.0, %v7341
        %v7343 = vmul.f32 %v7342, 2.1237322e-06
        %v7344 = vadd.f32 %v7343, 0.00028619796
        %v7345 = vmul.f32 %v7342, %v7344
        %v7346 = vadd.f32 %v7345, 0.0036580483
        %v7347 = vmul.f32 %v7342, %v7346
        %v7348 = vadd.f32 %v7347, 0.05243302
        %v7349 = vmul.f32 %v7342, %v7348
        %v7350 = vadd.f32 %v7349, 0.18741608
        %v7351 = vmul.f32 %v7342, %v7350
        %v7352 = vadd.f32 %v7351, 1.1283791
        %v7353 = vmul.f32 %v7216, %v7352
        %v7354 = vmul.f32 %v7342, 3.8918573e-05
        %v7355 = vadd.f32 %v7354, 0.001143296
        %v7356 = vmul.f32 %v7342, %v7355
        %v7357 = vadd.f32 %v7356, 0.014752088
        %v7358 = vmul.f32 %v7342, %v7357
        %v7359 = vadd.f32 %v7358, 0.112945676
        %v7360 = vmul.f32 %v7342, %v7359
        %v7361 = vadd.f32 %v7360, 0.4994258
        %v7362 = vmul.f32 %v7342, %v7361
        %v7363 = vadd.f32 %v7362, 1.0
        %v7364 = vrcp.pop %v7363
        %v7365 = vmul.f32 %v7363, %v7364
        %v7366 = vsub.f32 1.0, %v7365
        %v7367 = vmul.f32 %v7364, %v7366
        %v7368 = vadd.f32 %v7364, %v7367
        %vm7369 = vweird.f32 %v7363
        %vm7370 = vweird.f32 %v7364
        %vm7371 = vmor %vm7369, %vm7370
        %v7372 = vsel %vm7371, %v7364, %v7368
        %v7373 = vand.u32 2147483647, %v7363
        %vm7374 = vcmp.eq.f32.partialorder %v7373, 8.507059e+37
        %v7375 = vand.u32 %v7363, 2147483648
        %v7376 = vor.u32 1.1754944e-38, %v7375
        %v7377 = vsel %vm7374, %v7376, %v7372
        %v7378 = vmul.f32 %v7353, %v7377
        %v7379 = vmin.f32 %v7378, 1.0
        %v7380 = vmax.f32 %v7379, -1.0
        %v7381 = vmul.f32 %v7217, %v7217
        %v7382 = vmin.f32 16.0, %v7381
        %v7383 = vmul.f32 %v7382, 2.1237322e-06
        %v7384 = vadd.f32 %v7383, 0.00028619796
        %v7385 = vmul.f32 %v7382, %v7384
        %v7386 = vadd.f32 %v7385, 0.0036580483
        %v7387 = vmul.f32 %v7382, %v7386
        %v7388 = vadd.f32 %v7387, 0.05243302
        %v7389 = vmul.f32 %v7382, %v7388
        %v7390 = vadd.f32 %v7389, 0.18741608
        %v7391 = vmul.f32 %v7382, %v7390
        %v7392 = vadd.f32 %v7391, 1.1283791
        %v7393 = vmul.f32 %v7217, %v7392
        %v7394 = vmul.f32 %v7382, 3.8918573e-05
        %v7395 = vadd.f32 %v7394, 0.001143296
        %v7396 = vmul.f32 %v7382, %v7395
        %v7397 = vadd.f32 %v7396, 0.014752088
        %v7398 = vmul.f32 %v7382, %v7397
        %v7399 = vadd.f32 %v7398, 0.112945676
        %v7400 = vmul.f32 %v7382, %v7399
        %v7401 = vadd.f32 %v7400, 0.4994258
        %v7402 = vmul.f32 %v7382, %v7401
        %v7403 = vadd.f32 %v7402, 1.0
        %v7404 = vrcp.pop %v7403
        %v7405 = vmul.f32 %v7403, %v7404
        %v7406 = vsub.f32 1.0, %v7405
        %v7407 = vmul.f32 %v7404, %v7406
        %v7408 = vadd.f32 %v7404, %v7407
        %vm7409 = vweird.f32 %v7403
        %vm7410 = vweird.f32 %v7404
        %vm7411 = vmor %vm7409, %vm7410
        %v7412 = vsel %vm7411, %v7404, %v7408
        %v7413 = vand.u32 2147483647, %v7403
        %vm7414 = vcmp.eq.f32.partialorder %v7413, 8.507059e+37
        %v7415 = vand.u32 %v7403, 2147483648
        %v7416 = vor.u32 1.1754944e-38, %v7415
        %v7417 = vsel %vm7414, %v7416, %v7412
        %v7418 = vmul.f32 %v7393, %v7417
        %v7419 = vmin.f32 %v7418, 1.0
        %v7420 = vmax.f32 %v7419, -1.0
        %v7421 = vmul.f32 %v7218, %v7218
        %v7422 = vmin.f32 16.0, %v7421
        %v7423 = vmul.f32 %v7422, 2.1237322e-06
        %v7424 = vadd.f32 %v7423, 0.00028619796
        %v7425 = vmul.f32 %v7422, %v7424
        %v7426 = vadd.f32 %v7425, 0.0036580483
        %v7427 = vmul.f32 %v7422, %v7426
        %v7428 = vadd.f32 %v7427, 0.05243302
        %v7429 = vmul.f32 %v7422, %v7428
        %v7430 = vadd.f32 %v7429, 0.18741608
        %v7431 = vmul.f32 %v7422, %v7430
        %v7432 = vadd.f32 %v7431, 1.1283791
        %v7433 = vmul.f32 %v7218, %v7432
        %v7434 = vmul.f32 %v7422, 3.8918573e-05
        %v7435 = vadd.f32 %v7434, 0.001143296
        %v7436 = vmul.f32 %v7422, %v7435
        %v7437 = vadd.f32 %v7436, 0.014752088
        %v7438 = vmul.f32 %v7422, %v7437
        %v7439 = vadd.f32 %v7438, 0.112945676
        %v7440 = vmul.f32 %v7422, %v7439
        %v7441 = vadd.f32 %v7440, 0.4994258
        %v7442 = vmul.f32 %v7422, %v7441
        %v7443 = vadd.f32 %v7442, 1.0
        %v7444 = vrcp.pop %v7443
        %v7445 = vmul.f32 %v7443, %v7444
        %v7446 = vsub.f32 1.0, %v7445
        %v7447 = vmul.f32 %v7444, %v7446
        %v7448 = vadd.f32 %v7444, %v7447
        %vm7449 = vweird.f32 %v7443
        %vm7450 = vweird.f32 %v7444
        %vm7451 = vmor %vm7449, %vm7450
        %v7452 = vsel %vm7451, %v7444, %v7448
        %v7453 = vand.u32 2147483647, %v7443
        %vm7454 = vcmp.eq.f32.partialorder %v7453, 8.507059e+37
        %v7455 = vand.u32 %v7443, 2147483648
        %v7456 = vor.u32 1.1754944e-38, %v7455
        %v7457 = vsel %vm7454, %v7456, %v7452
        %v7458 = vmul.f32 %v7433, %v7457
        %v7459 = vmin.f32 %v7458, 1.0
        %v7460 = vmax.f32 %v7459, -1.0
        %v7461 = vmul.f32 %v7219, %v7219
        %v7462 = vmin.f32 16.0, %v7461
        %v7463 = vmul.f32 %v7462, 2.1237322e-06
        %v7464 = vadd.f32 %v7463, 0.00028619796
        %v7465 = vmul.f32 %v7462, %v7464
        %v7466 = vadd.f32 %v7465, 0.0036580483
        %v7467 = vmul.f32 %v7462, %v7466
        %v7468 = vadd.f32 %v7467, 0.05243302
        %v7469 = vmul.f32 %v7462, %v7468
        %v7470 = vadd.f32 %v7469, 0.18741608
        %v7471 = vmul.f32 %v7462, %v7470
        %v7472 = vadd.f32 %v7471, 1.1283791
        %v7473 = vmul.f32 %v7219, %v7472
        %v7474 = vmul.f32 %v7462, 3.8918573e-05
        %v7475 = vadd.f32 %v7474, 0.001143296
        %v7476 = vmul.f32 %v7462, %v7475
        %v7477 = vadd.f32 %v7476, 0.014752088
        %v7478 = vmul.f32 %v7462, %v7477
        %v7479 = vadd.f32 %v7478, 0.112945676
        %v7480 = vmul.f32 %v7462, %v7479
        %v7481 = vadd.f32 %v7480, 0.4994258
        %v7482 = vmul.f32 %v7462, %v7481
        %v7483 = vadd.f32 %v7482, 1.0
        %v7484 = vrcp.pop %v7483
        %v7485 = vmul.f32 %v7483, %v7484
        %v7486 = vsub.f32 1.0, %v7485
        %v7487 = vmul.f32 %v7484, %v7486
        %v7488 = vadd.f32 %v7484, %v7487
        %vm7489 = vweird.f32 %v7483
        %vm7490 = vweird.f32 %v7484
        %vm7491 = vmor %vm7489, %vm7490
        %v7492 = vsel %vm7491, %v7484, %v7488
        %v7493 = vand.u32 2147483647, %v7483
        %vm7494 = vcmp.eq.f32.partialorder %v7493, 8.507059e+37
        %v7495 = vand.u32 %v7483, 2147483648
        %v7496 = vor.u32 1.1754944e-38, %v7495
        %v7497 = vsel %vm7494, %v7496, %v7492
        %v7498 = vmul.f32 %v7473, %v7497
        %v7499 = vmin.f32 %v7498, 1.0
        %v7500 = vmax.f32 %v7499, -1.0
        %v7501 = vmul.f32 %v7220, %v7220
        %v7502 = vmin.f32 16.0, %v7501
        %v7503 = vmul.f32 %v7502, 2.1237322e-06
        %v7504 = vadd.f32 %v7503, 0.00028619796
        %v7505 = vmul.f32 %v7502, %v7504
        %v7506 = vadd.f32 %v7505, 0.0036580483
        %v7507 = vmul.f32 %v7502, %v7506
        %v7508 = vadd.f32 %v7507, 0.05243302
        %v7509 = vmul.f32 %v7502, %v7508
        %v7510 = vadd.f32 %v7509, 0.18741608
        %v7511 = vmul.f32 %v7502, %v7510
        %v7512 = vadd.f32 %v7511, 1.1283791
        %v7513 = vmul.f32 %v7220, %v7512
        %v7514 = vmul.f32 %v7502, 3.8918573e-05
        %v7515 = vadd.f32 %v7514, 0.001143296
        %v7516 = vmul.f32 %v7502, %v7515
        %v7517 = vadd.f32 %v7516, 0.014752088
        %v7518 = vmul.f32 %v7502, %v7517
        %v7519 = vadd.f32 %v7518, 0.112945676
        %v7520 = vmul.f32 %v7502, %v7519
        %v7521 = vadd.f32 %v7520, 0.4994258
        %v7522 = vmul.f32 %v7502, %v7521
        %v7523 = vadd.f32 %v7522, 1.0
        %v7524 = vrcp.pop %v7523
        %v7525 = vmul.f32 %v7523, %v7524
        %v7526 = vsub.f32 1.0, %v7525
        %v7527 = vmul.f32 %v7524, %v7526
        %v7528 = vadd.f32 %v7524, %v7527
        %vm7529 = vweird.f32 %v7523
        %vm7530 = vweird.f32 %v7524
        %vm7531 = vmor %vm7529, %vm7530
        %v7532 = vsel %vm7531, %v7524, %v7528
        %v7533 = vand.u32 2147483647, %v7523
        %vm7534 = vcmp.eq.f32.partialorder %v7533, 8.507059e+37
        %v7535 = vand.u32 %v7523, 2147483648
        %v7536 = vor.u32 1.1754944e-38, %v7535
        %v7537 = vsel %vm7534, %v7536, %v7532
        %v7538 = vmul.f32 %v7513, %v7537
        %v7539 = vmin.f32 %v7538, 1.0
        %v7540 = vmax.f32 %v7539, -1.0
        %v7541 = vadd.f32 %v7260, 1.0
        %v7542 = vadd.f32 %v7300, 1.0
        %v7543 = vadd.f32 %v7340, 1.0
        %v7544 = vadd.f32 %v7380, 1.0
        %v7545 = vadd.f32 %v7420, 1.0
        %v7546 = vadd.f32 %v7460, 1.0
        %v7547 = vadd.f32 %v7500, 1.0
        %v7548 = vadd.f32 %v7540, 1.0
        %v7549 = vmul.f32 %v7205, %v7541
        %v7550 = vmul.f32 %v7206, %v7542
        %v7551 = vmul.f32 %v7207, %v7543
        %v7552 = vmul.f32 %v7208, %v7544
        %v7553 = vmul.f32 %v7209, %v7545
        %v7554 = vmul.f32 %v7210, %v7546
        %v7555 = vmul.f32 %v7211, %v7547
        %v7556 = vmul.f32 %v7212, %v7548
        %v7557 = vld [vmem:[%s16] sm:$0xff]
        %v7558 = vld [vmem:[%s16 + $0x8] sm:$0xff]
        %v7559 = vld [vmem:[%s16 + $0x10] sm:$0xff]
        %v7560 = vld [vmem:[%s16 + $0x18] sm:$0xff]
        %v7561 = vld [vmem:[%s16 + $0x20] sm:$0xff]
        %v7562 = vld [vmem:[%s16 + $0x28] sm:$0xff]
        %v7563 = vld [vmem:[%s16 + $0x30] sm:$0xff]
        %v7564 = vld [vmem:[%s16 + $0x38] sm:$0xff]
        %v7565 = vld [vmem:[%s16 + $0x40] sm:$0xff]
        %v7566 = vld [vmem:[%s16 + $0x48] sm:$0xff]
        %v7567 = vld [vmem:[%s16 + $0x50] sm:$0xff]
        %v7568 = vld [vmem:[%s16 + $0x58] sm:$0xff]
        %v7569 = vld [vmem:[%s16 + $0x60] sm:$0xff]
        %v7570 = vld [vmem:[%s16 + $0x68] sm:$0xff]
        %v7571 = vld [vmem:[%s16 + $0x70] sm:$0xff]
        %v7572 = vld [vmem:[%s16 + $0x78] sm:$0xff]
        %v7573 = vld [vmem:[#allocation16 + $0x16] sm:$0x1]
        %v7575 = vperm.slane %v7573, 0
        %7577 = vmatpush.msra.mxu0 %v7572
        %7578 = vmatpush.msra.mxu0 %v7571
        %7579 = vmatpush.msra.mxu0 %v7570
        %7580 = vmatpush.msra.mxu0 %v7569
        %7581 = vmatpush.msra.mxu0 %v7568
        %7582 = vmatpush.msra.mxu0 %v7567
        %7583 = vmatpush.msra.mxu0 %v7566
        %7584 = vmatpush.msra.mxu0 %v7565
        %7585 = vmatpush.msra.mxu0 %v7564
        %7586 = vmatpush.msra.mxu0 %v7563
        %7587 = vmatpush.msra.mxu0 %v7562
        %7588 = vmatpush.msra.mxu0 %v7561
        %7589 = vmatpush.msra.mxu0 %v7560
        %7590 = vmatpush.msra.mxu0 %v7559
        %7591 = vmatpush.msra.mxu0 %v7558
        %7592 = vmatpush.msra.mxu0 %v7557
        %7593 = vmatmul.f32.gmra.mxu0 %v7549
        %v7594 = vpop.f32.mrf.mxu0
        %v7595 = vadd.f32 %v7575, %v7594
        %7596 = vmatmul.f32.gmra.mxu0 %v7550
        %v7597 = vpop.f32.mrf.mxu0
        %v7598 = vadd.f32 %v7575, %v7597
        %7599 = vmatmul.f32.gmra.mxu0 %v7551
        %v7600 = vpop.f32.mrf.mxu0
        %v7601 = vadd.f32 %v7575, %v7600
        %7602 = vmatmul.f32.gmra.mxu0 %v7552
        %v7603 = vpop.f32.mrf.mxu0
        %v7604 = vadd.f32 %v7575, %v7603
        %7605 = vmatmul.f32.gmra.mxu0 %v7553
        %v7606 = vpop.f32.mrf.mxu0
        %v7607 = vadd.f32 %v7575, %v7606
        %7608 = vmatmul.f32.gmra.mxu0 %v7554
        %v7609 = vpop.f32.mrf.mxu0
        %v7610 = vadd.f32 %v7575, %v7609
        %7611 = vmatmul.f32.gmra.mxu0 %v7555
        %v7612 = vpop.f32.mrf.mxu0
        %v7613 = vadd.f32 %v7575, %v7612
        %7614 = vmatmul.f32.gmra.mxu0 %v7556
        %v7615 = vpop.f32.mrf.mxu0
        %v7616 = vadd.f32 %v7575, %v7615
        %7617 = vdwg.mxu0
        %v7618 = vsel %vm1962, %v7595, 0.0
        %7619 = vadd.xlane.f32.xlu0 %v7618
        %v7620 = vpop.xlane.xlu0 %7619
        %v7621 = vsel %vm1962, %v7598, 0.0
        %7622 = vadd.xlane.f32.xlu0 %v7621
        %v7623 = vpop.xlane.xlu0 %7622
        %v7624 = vsel %vm1962, %v7601, 0.0
        %7625 = vadd.xlane.f32.xlu0 %v7624
        %v7626 = vpop.xlane.xlu0 %7625
        %v7627 = vsel %vm1962, %v7604, 0.0
        %7628 = vadd.xlane.f32.xlu0 %v7627
        %v7629 = vpop.xlane.xlu0 %7628
        %v7630 = vsel %vm1962, %v7607, 0.0
        %7631 = vadd.xlane.f32.xlu0 %v7630
        %v7632 = vpop.xlane.xlu0 %7631
        %v7633 = vsel %vm1962, %v7610, 0.0
        %7634 = vadd.xlane.f32.xlu0 %v7633
        %v7635 = vpop.xlane.xlu0 %7634
        %v7636 = vsel %vm1962, %v7613, 0.0
        %7637 = vadd.xlane.f32.xlu0 %v7636
        %v7638 = vpop.xlane.xlu0 %7637
        %v7639 = vsel %vm1962, %v7616, 0.0
        %7640 = vadd.xlane.f32.xlu0 %v7639
        %v7641 = vpop.xlane.xlu0 %7640
        %v7642 = vmul.f32 %v7620, %v1993
        %v7643 = vmul.f32 %v7623, %v1993
        %v7644 = vmul.f32 %v7626, %v1993
        %v7645 = vmul.f32 %v7629, %v1993
        %v7646 = vmul.f32 %v7632, %v1993
        %v7647 = vmul.f32 %v7635, %v1993
        %v7648 = vmul.f32 %v7638, %v1993
        %v7649 = vmul.f32 %v7641, %v1993
        %v7650 = vsub.f32 %v7595, %v7642
        %v7651 = vsub.f32 %v7598, %v7643
        %v7652 = vsub.f32 %v7601, %v7644
        %v7653 = vsub.f32 %v7604, %v7645
        %v7654 = vsub.f32 %v7607, %v7646
        %v7655 = vsub.f32 %v7610, %v7647
        %v7656 = vsub.f32 %v7613, %v7648
        %v7657 = vsub.f32 %v7616, %v7649
        %v7658 = vmul.f32 %v7650, %v7650
        %v7659 = vmul.f32 %v7651, %v7651
        %v7660 = vmul.f32 %v7652, %v7652
        %v7661 = vmul.f32 %v7653, %v7653
        %v7662 = vmul.f32 %v7654, %v7654
        %v7663 = vmul.f32 %v7655, %v7655
        %v7664 = vmul.f32 %v7656, %v7656
        %v7665 = vmul.f32 %v7657, %v7657
        %v7666 = vsel %vm1962, %v7658, 0.0
        %7667 = vadd.xlane.f32.xlu0 %v7666
        %v7668 = vpop.xlane.xlu0 %7667
        %v7669 = vsel %vm1962, %v7659, 0.0
        %7670 = vadd.xlane.f32.xlu0 %v7669
        %v7671 = vpop.xlane.xlu0 %7670
        %v7672 = vsel %vm1962, %v7660, 0.0
        %7673 = vadd.xlane.f32.xlu0 %v7672
        %v7674 = vpop.xlane.xlu0 %7673
        %v7675 = vsel %vm1962, %v7661, 0.0
        %7676 = vadd.xlane.f32.xlu0 %v7675
        %v7677 = vpop.xlane.xlu0 %7676
        %v7678 = vsel %vm1962, %v7662, 0.0
        %7679 = vadd.xlane.f32.xlu0 %v7678
        %v7680 = vpop.xlane.xlu0 %7679
        %v7681 = vsel %vm1962, %v7663, 0.0
        %7682 = vadd.xlane.f32.xlu0 %v7681
        %v7683 = vpop.xlane.xlu0 %7682
        %v7684 = vsel %vm1962, %v7664, 0.0
        %7685 = vadd.xlane.f32.xlu0 %v7684
        %v7686 = vpop.xlane.xlu0 %7685
        %v7687 = vsel %vm1962, %v7665, 0.0
        %7688 = vadd.xlane.f32.xlu0 %v7687
        %v7689 = vpop.xlane.xlu0 %7688
        %v7690 = vmul.f32 %v7668, %v1993
        %v7691 = vmul.f32 %v7671, %v1993
        %v7692 = vmul.f32 %v7674, %v1993
        %v7693 = vmul.f32 %v7677, %v1993
        %v7694 = vmul.f32 %v7680, %v1993
        %v7695 = vmul.f32 %v7683, %v1993
        %v7696 = vmul.f32 %v7686, %v1993
        %v7697 = vmul.f32 %v7689, %v1993
        %v7698 = vadd.f32 %v7690, 1e-05
        %v7699 = vadd.f32 %v7691, 1e-05
        %v7700 = vadd.f32 %v7692, 1e-05
        %v7701 = vadd.f32 %v7693, 1e-05
        %v7702 = vadd.f32 %v7694, 1e-05
        %v7703 = vadd.f32 %v7695, 1e-05
        %v7704 = vadd.f32 %v7696, 1e-05
        %v7705 = vadd.f32 %v7697, 1e-05
        %v7706 = vrsqrt.pop %v7698
        %v7707 = vmul.f32 %v7706, %v7698
        %v7708 = vmul.f32 %v7707, %v7706
        %v7709 = vmul.f32 0.5, %v7708
        %v7710 = vsub.f32 1.5, %v7709
        %v7711 = vmul.f32 %v7706, %v7710
        %vm7712 = vweird.f32 %v7698
        %vm7713 = vweird.f32 %v7706
        %vm7714 = vmor %vm7712, %vm7713
        %v7715 = vsel %vm7714, %v7706, %v7711
        %v7716 = vrsqrt.pop %v7699
        %v7717 = vmul.f32 %v7716, %v7699
        %v7718 = vmul.f32 %v7717, %v7716
        %v7719 = vmul.f32 0.5, %v7718
        %v7720 = vsub.f32 1.5, %v7719
        %v7721 = vmul.f32 %v7716, %v7720
        %vm7722 = vweird.f32 %v7699
        %vm7723 = vweird.f32 %v7716
        %vm7724 = vmor %vm7722, %vm7723
        %v7725 = vsel %vm7724, %v7716, %v7721
        %v7726 = vrsqrt.pop %v7700
        %v7727 = vmul.f32 %v7726, %v7700
        %v7728 = vmul.f32 %v7727, %v7726
        %v7729 = vmul.f32 0.5, %v7728
        %v7730 = vsub.f32 1.5, %v7729
        %v7731 = vmul.f32 %v7726, %v7730
        %vm7732 = vweird.f32 %v7700
        %vm7733 = vweird.f32 %v7726
        %vm7734 = vmor %vm7732, %vm7733
        %v7735 = vsel %vm7734, %v7726, %v7731
        %v7736 = vrsqrt.pop %v7701
        %v7737 = vmul.f32 %v7736, %v7701
        %v7738 = vmul.f32 %v7737, %v7736
        %v7739 = vmul.f32 0.5, %v7738
        %v7740 = vsub.f32 1.5, %v7739
        %v7741 = vmul.f32 %v7736, %v7740
        %vm7742 = vweird.f32 %v7701
        %vm7743 = vweird.f32 %v7736
        %vm7744 = vmor %vm7742, %vm7743
        %v7745 = vsel %vm7744, %v7736, %v7741
        %v7746 = vrsqrt.pop %v7702
        %v7747 = vmul.f32 %v7746, %v7702
        %v7748 = vmul.f32 %v7747, %v7746
        %v7749 = vmul.f32 0.5, %v7748
        %v7750 = vsub.f32 1.5, %v7749
        %v7751 = vmul.f32 %v7746, %v7750
        %vm7752 = vweird.f32 %v7702
        %vm7753 = vweird.f32 %v7746
        %vm7754 = vmor %vm7752, %vm7753
        %v7755 = vsel %vm7754, %v7746, %v7751
        %v7756 = vrsqrt.pop %v7703
        %v7757 = vmul.f32 %v7756, %v7703
        %v7758 = vmul.f32 %v7757, %v7756
        %v7759 = vmul.f32 0.5, %v7758
        %v7760 = vsub.f32 1.5, %v7759
        %v7761 = vmul.f32 %v7756, %v7760
        %vm7762 = vweird.f32 %v7703
        %vm7763 = vweird.f32 %v7756
        %vm7764 = vmor %vm7762, %vm7763
        %v7765 = vsel %vm7764, %v7756, %v7761
        %v7766 = vrsqrt.pop %v7704
        %v7767 = vmul.f32 %v7766, %v7704
        %v7768 = vmul.f32 %v7767, %v7766
        %v7769 = vmul.f32 0.5, %v7768
        %v7770 = vsub.f32 1.5, %v7769
        %v7771 = vmul.f32 %v7766, %v7770
        %vm7772 = vweird.f32 %v7704
        %vm7773 = vweird.f32 %v7766
        %vm7774 = vmor %vm7772, %vm7773
        %v7775 = vsel %vm7774, %v7766, %v7771
        %v7776 = vrsqrt.pop %v7705
        %v7777 = vmul.f32 %v7776, %v7705
        %v7778 = vmul.f32 %v7777, %v7776
        %v7779 = vmul.f32 0.5, %v7778
        %v7780 = vsub.f32 1.5, %v7779
        %v7781 = vmul.f32 %v7776, %v7780
        %vm7782 = vweird.f32 %v7705
        %vm7783 = vweird.f32 %v7776
        %vm7784 = vmor %vm7782, %vm7783
        %v7785 = vsel %vm7784, %v7776, %v7781
        %v7786 = vmul.f32 %v7650, %v7715
        %v7787 = vmul.f32 %v7651, %v7725
        %v7788 = vmul.f32 %v7652, %v7735
        %v7789 = vmul.f32 %v7653, %v7745
        %v7790 = vmul.f32 %v7654, %v7755
        %v7791 = vmul.f32 %v7655, %v7765
        %v7792 = vmul.f32 %v7656, %v7775
        %v7793 = vmul.f32 %v7657, %v7785
        %v7794 = vld [vmem:[#allocation16 + $0x17] sm:$0x1]
        %v7796 = vperm.slane %v7794, 0
        %v7798 = vmul.f32 %v7786, %v7796
        %v7799 = vmul.f32 %v7787, %v7796
        %v7800 = vmul.f32 %v7788, %v7796
        %v7801 = vmul.f32 %v7789, %v7796
        %v7802 = vmul.f32 %v7790, %v7796
        %v7803 = vmul.f32 %v7791, %v7796
        %v7804 = vmul.f32 %v7792, %v7796
        %v7805 = vmul.f32 %v7793, %v7796
        %v7806 = vld [vmem:[#allocation16 + $0x18] sm:$0x1]
        %v7808 = vperm.slane %v7806, 0
        %v7810 = vadd.f32 %v7798, %v7808
        %v7811 = vadd.f32 %v7799, %v7808
        %v7812 = vadd.f32 %v7800, %v7808
        %v7813 = vadd.f32 %v7801, %v7808
        %v7814 = vadd.f32 %v7802, %v7808
        %v7815 = vadd.f32 %v7803, %v7808
        %v7816 = vadd.f32 %v7804, %v7808
        %v7817 = vadd.f32 %v7805, %v7808
        %v7818 = vmul.f32 %v7810, 0.5
        %v7819 = vmul.f32 %v7811, 0.5
        %v7820 = vmul.f32 %v7812, 0.5
        %v7821 = vmul.f32 %v7813, 0.5
        %v7822 = vmul.f32 %v7814, 0.5
        %v7823 = vmul.f32 %v7815, 0.5
        %v7824 = vmul.f32 %v7816, 0.5
        %v7825 = vmul.f32 %v7817, 0.5
        %v7826 = vmul.f32 %v7810, 0.70710677
        %v7827 = vmul.f32 %v7811, 0.70710677
        %v7828 = vmul.f32 %v7812, 0.70710677
        %v7829 = vmul.f32 %v7813, 0.70710677
        %v7830 = vmul.f32 %v7814, 0.70710677
        %v7831 = vmul.f32 %v7815, 0.70710677
        %v7832 = vmul.f32 %v7816, 0.70710677
        %v7833 = vmul.f32 %v7817, 0.70710677
        %v7834 = vmul.f32 %v7826, %v7826
        %v7835 = vmin.f32 16.0, %v7834
        %v7836 = vmul.f32 %v7835, 2.1237322e-06
        %v7837 = vadd.f32 %v7836, 0.00028619796
        %v7838 = vmul.f32 %v7835, %v7837
        %v7839 = vadd.f32 %v7838, 0.0036580483
        %v7840 = vmul.f32 %v7835, %v7839
        %v7841 = vadd.f32 %v7840, 0.05243302
        %v7842 = vmul.f32 %v7835, %v7841
        %v7843 = vadd.f32 %v7842, 0.18741608
        %v7844 = vmul.f32 %v7835, %v7843
        %v7845 = vadd.f32 %v7844, 1.1283791
        %v7846 = vmul.f32 %v7826, %v7845
        %v7847 = vmul.f32 %v7835, 3.8918573e-05
        %v7848 = vadd.f32 %v7847, 0.001143296
        %v7849 = vmul.f32 %v7835, %v7848
        %v7850 = vadd.f32 %v7849, 0.014752088
        %v7851 = vmul.f32 %v7835, %v7850
        %v7852 = vadd.f32 %v7851, 0.112945676
        %v7853 = vmul.f32 %v7835, %v7852
        %v7854 = vadd.f32 %v7853, 0.4994258
        %v7855 = vmul.f32 %v7835, %v7854
        %v7856 = vadd.f32 %v7855, 1.0
        %v7857 = vrcp.pop %v7856
        %v7858 = vmul.f32 %v7856, %v7857
        %v7859 = vsub.f32 1.0, %v7858
        %v7860 = vmul.f32 %v7857, %v7859
        %v7861 = vadd.f32 %v7857, %v7860
        %vm7862 = vweird.f32 %v7856
        %vm7863 = vweird.f32 %v7857
        %vm7864 = vmor %vm7862, %vm7863
        %v7865 = vsel %vm7864, %v7857, %v7861
        %v7866 = vand.u32 2147483647, %v7856
        %vm7867 = vcmp.eq.f32.partialorder %v7866, 8.507059e+37
        %v7868 = vand.u32 %v7856, 2147483648
        %v7869 = vor.u32 1.1754944e-38, %v7868
        %v7870 = vsel %vm7867, %v7869, %v7865
        %v7871 = vmul.f32 %v7846, %v7870
        %v7872 = vmin.f32 %v7871, 1.0
        %v7873 = vmax.f32 %v7872, -1.0
        %v7874 = vmul.f32 %v7827, %v7827
        %v7875 = vmin.f32 16.0, %v7874
        %v7876 = vmul.f32 %v7875, 2.1237322e-06
        %v7877 = vadd.f32 %v7876, 0.00028619796
        %v7878 = vmul.f32 %v7875, %v7877
        %v7879 = vadd.f32 %v7878, 0.0036580483
        %v7880 = vmul.f32 %v7875, %v7879
        %v7881 = vadd.f32 %v7880, 0.05243302
        %v7882 = vmul.f32 %v7875, %v7881
        %v7883 = vadd.f32 %v7882, 0.18741608
        %v7884 = vmul.f32 %v7875, %v7883
        %v7885 = vadd.f32 %v7884, 1.1283791
        %v7886 = vmul.f32 %v7827, %v7885
        %v7887 = vmul.f32 %v7875, 3.8918573e-05
        %v7888 = vadd.f32 %v7887, 0.001143296
        %v7889 = vmul.f32 %v7875, %v7888
        %v7890 = vadd.f32 %v7889, 0.014752088
        %v7891 = vmul.f32 %v7875, %v7890
        %v7892 = vadd.f32 %v7891, 0.112945676
        %v7893 = vmul.f32 %v7875, %v7892
        %v7894 = vadd.f32 %v7893, 0.4994258
        %v7895 = vmul.f32 %v7875, %v7894
        %v7896 = vadd.f32 %v7895, 1.0
        %v7897 = vrcp.pop %v7896
        %v7898 = vmul.f32 %v7896, %v7897
        %v7899 = vsub.f32 1.0, %v7898
        %v7900 = vmul.f32 %v7897, %v7899
        %v7901 = vadd.f32 %v7897, %v7900
        %vm7902 = vweird.f32 %v7896
        %vm7903 = vweird.f32 %v7897
        %vm7904 = vmor %vm7902, %vm7903
        %v7905 = vsel %vm7904, %v7897, %v7901
        %v7906 = vand.u32 2147483647, %v7896
        %vm7907 = vcmp.eq.f32.partialorder %v7906, 8.507059e+37
        %v7908 = vand.u32 %v7896, 2147483648
        %v7909 = vor.u32 1.1754944e-38, %v7908
        %v7910 = vsel %vm7907, %v7909, %v7905
        %v7911 = vmul.f32 %v7886, %v7910
        %v7912 = vmin.f32 %v7911, 1.0
        %v7913 = vmax.f32 %v7912, -1.0
        %v7914 = vmul.f32 %v7828, %v7828
        %v7915 = vmin.f32 16.0, %v7914
        %v7916 = vmul.f32 %v7915, 2.1237322e-06
        %v7917 = vadd.f32 %v7916, 0.00028619796
        %v7918 = vmul.f32 %v7915, %v7917
        %v7919 = vadd.f32 %v7918, 0.0036580483
        %v7920 = vmul.f32 %v7915, %v7919
        %v7921 = vadd.f32 %v7920, 0.05243302
        %v7922 = vmul.f32 %v7915, %v7921
        %v7923 = vadd.f32 %v7922, 0.18741608
        %v7924 = vmul.f32 %v7915, %v7923
        %v7925 = vadd.f32 %v7924, 1.1283791
        %v7926 = vmul.f32 %v7828, %v7925
        %v7927 = vmul.f32 %v7915, 3.8918573e-05
        %v7928 = vadd.f32 %v7927, 0.001143296
        %v7929 = vmul.f32 %v7915, %v7928
        %v7930 = vadd.f32 %v7929, 0.014752088
        %v7931 = vmul.f32 %v7915, %v7930
        %v7932 = vadd.f32 %v7931, 0.112945676
        %v7933 = vmul.f32 %v7915, %v7932
        %v7934 = vadd.f32 %v7933, 0.4994258
        %v7935 = vmul.f32 %v7915, %v7934
        %v7936 = vadd.f32 %v7935, 1.0
        %v7937 = vrcp.pop %v7936
        %v7938 = vmul.f32 %v7936, %v7937
        %v7939 = vsub.f32 1.0, %v7938
        %v7940 = vmul.f32 %v7937, %v7939
        %v7941 = vadd.f32 %v7937, %v7940
        %vm7942 = vweird.f32 %v7936
        %vm7943 = vweird.f32 %v7937
        %vm7944 = vmor %vm7942, %vm7943
        %v7945 = vsel %vm7944, %v7937, %v7941
        %v7946 = vand.u32 2147483647, %v7936
        %vm7947 = vcmp.eq.f32.partialorder %v7946, 8.507059e+37
        %v7948 = vand.u32 %v7936, 2147483648
        %v7949 = vor.u32 1.1754944e-38, %v7948
        %v7950 = vsel %vm7947, %v7949, %v7945
        %v7951 = vmul.f32 %v7926, %v7950
        %v7952 = vmin.f32 %v7951, 1.0
        %v7953 = vmax.f32 %v7952, -1.0
        %v7954 = vmul.f32 %v7829, %v7829
        %v7955 = vmin.f32 16.0, %v7954
        %v7956 = vmul.f32 %v7955, 2.1237322e-06
        %v7957 = vadd.f32 %v7956, 0.00028619796
        %v7958 = vmul.f32 %v7955, %v7957
        %v7959 = vadd.f32 %v7958, 0.0036580483
        %v7960 = vmul.f32 %v7955, %v7959
        %v7961 = vadd.f32 %v7960, 0.05243302
        %v7962 = vmul.f32 %v7955, %v7961
        %v7963 = vadd.f32 %v7962, 0.18741608
        %v7964 = vmul.f32 %v7955, %v7963
        %v7965 = vadd.f32 %v7964, 1.1283791
        %v7966 = vmul.f32 %v7829, %v7965
        %v7967 = vmul.f32 %v7955, 3.8918573e-05
        %v7968 = vadd.f32 %v7967, 0.001143296
        %v7969 = vmul.f32 %v7955, %v7968
        %v7970 = vadd.f32 %v7969, 0.014752088
        %v7971 = vmul.f32 %v7955, %v7970
        %v7972 = vadd.f32 %v7971, 0.112945676
        %v7973 = vmul.f32 %v7955, %v7972
        %v7974 = vadd.f32 %v7973, 0.4994258
        %v7975 = vmul.f32 %v7955, %v7974
        %v7976 = vadd.f32 %v7975, 1.0
        %v7977 = vrcp.pop %v7976
        %v7978 = vmul.f32 %v7976, %v7977
        %v7979 = vsub.f32 1.0, %v7978
        %v7980 = vmul.f32 %v7977, %v7979
        %v7981 = vadd.f32 %v7977, %v7980
        %vm7982 = vweird.f32 %v7976
        %vm7983 = vweird.f32 %v7977
        %vm7984 = vmor %vm7982, %vm7983
        %v7985 = vsel %vm7984, %v7977, %v7981
        %v7986 = vand.u32 2147483647, %v7976
        %vm7987 = vcmp.eq.f32.partialorder %v7986, 8.507059e+37
        %v7988 = vand.u32 %v7976, 2147483648
        %v7989 = vor.u32 1.1754944e-38, %v7988
        %v7990 = vsel %vm7987, %v7989, %v7985
        %v7991 = vmul.f32 %v7966, %v7990
        %v7992 = vmin.f32 %v7991, 1.0
        %v7993 = vmax.f32 %v7992, -1.0
        %v7994 = vmul.f32 %v7830, %v7830
        %v7995 = vmin.f32 16.0, %v7994
        %v7996 = vmul.f32 %v7995, 2.1237322e-06
        %v7997 = vadd.f32 %v7996, 0.00028619796
        %v7998 = vmul.f32 %v7995, %v7997
        %v7999 = vadd.f32 %v7998, 0.0036580483
        %v8000 = vmul.f32 %v7995, %v7999
        %v8001 = vadd.f32 %v8000, 0.05243302
        %v8002 = vmul.f32 %v7995, %v8001
        %v8003 = vadd.f32 %v8002, 0.18741608
        %v8004 = vmul.f32 %v7995, %v8003
        %v8005 = vadd.f32 %v8004, 1.1283791
        %v8006 = vmul.f32 %v7830, %v8005
        %v8007 = vmul.f32 %v7995, 3.8918573e-05
        %v8008 = vadd.f32 %v8007, 0.001143296
        %v8009 = vmul.f32 %v7995, %v8008
        %v8010 = vadd.f32 %v8009, 0.014752088
        %v8011 = vmul.f32 %v7995, %v8010
        %v8012 = vadd.f32 %v8011, 0.112945676
        %v8013 = vmul.f32 %v7995, %v8012
        %v8014 = vadd.f32 %v8013, 0.4994258
        %v8015 = vmul.f32 %v7995, %v8014
        %v8016 = vadd.f32 %v8015, 1.0
        %v8017 = vrcp.pop %v8016
        %v8018 = vmul.f32 %v8016, %v8017
        %v8019 = vsub.f32 1.0, %v8018
        %v8020 = vmul.f32 %v8017, %v8019
        %v8021 = vadd.f32 %v8017, %v8020
        %vm8022 = vweird.f32 %v8016
        %vm8023 = vweird.f32 %v8017
        %vm8024 = vmor %vm8022, %vm8023
        %v8025 = vsel %vm8024, %v8017, %v8021
        %v8026 = vand.u32 2147483647, %v8016
        %vm8027 = vcmp.eq.f32.partialorder %v8026, 8.507059e+37
        %v8028 = vand.u32 %v8016, 2147483648
        %v8029 = vor.u32 1.1754944e-38, %v8028
        %v8030 = vsel %vm8027, %v8029, %v8025
        %v8031 = vmul.f32 %v8006, %v8030
        %v8032 = vmin.f32 %v8031, 1.0
        %v8033 = vmax.f32 %v8032, -1.0
        %v8034 = vmul.f32 %v7831, %v7831
        %v8035 = vmin.f32 16.0, %v8034
        %v8036 = vmul.f32 %v8035, 2.1237322e-06
        %v8037 = vadd.f32 %v8036, 0.00028619796
        %v8038 = vmul.f32 %v8035, %v8037
        %v8039 = vadd.f32 %v8038, 0.0036580483
        %v8040 = vmul.f32 %v8035, %v8039
        %v8041 = vadd.f32 %v8040, 0.05243302
        %v8042 = vmul.f32 %v8035, %v8041
        %v8043 = vadd.f32 %v8042, 0.18741608
        %v8044 = vmul.f32 %v8035, %v8043
        %v8045 = vadd.f32 %v8044, 1.1283791
        %v8046 = vmul.f32 %v7831, %v8045
        %v8047 = vmul.f32 %v8035, 3.8918573e-05
        %v8048 = vadd.f32 %v8047, 0.001143296
        %v8049 = vmul.f32 %v8035, %v8048
        %v8050 = vadd.f32 %v8049, 0.014752088
        %v8051 = vmul.f32 %v8035, %v8050
        %v8052 = vadd.f32 %v8051, 0.112945676
        %v8053 = vmul.f32 %v8035, %v8052
        %v8054 = vadd.f32 %v8053, 0.4994258
        %v8055 = vmul.f32 %v8035, %v8054
        %v8056 = vadd.f32 %v8055, 1.0
        %v8057 = vrcp.pop %v8056
        %v8058 = vmul.f32 %v8056, %v8057
        %v8059 = vsub.f32 1.0, %v8058
        %v8060 = vmul.f32 %v8057, %v8059
        %v8061 = vadd.f32 %v8057, %v8060
        %vm8062 = vweird.f32 %v8056
        %vm8063 = vweird.f32 %v8057
        %vm8064 = vmor %vm8062, %vm8063
        %v8065 = vsel %vm8064, %v8057, %v8061
        %v8066 = vand.u32 2147483647, %v8056
        %vm8067 = vcmp.eq.f32.partialorder %v8066, 8.507059e+37
        %v8068 = vand.u32 %v8056, 2147483648
        %v8069 = vor.u32 1.1754944e-38, %v8068
        %v8070 = vsel %vm8067, %v8069, %v8065
        %v8071 = vmul.f32 %v8046, %v8070
        %v8072 = vmin.f32 %v8071, 1.0
        %v8073 = vmax.f32 %v8072, -1.0
        %v8074 = vmul.f32 %v7832, %v7832
        %v8075 = vmin.f32 16.0, %v8074
        %v8076 = vmul.f32 %v8075, 2.1237322e-06
        %v8077 = vadd.f32 %v8076, 0.00028619796
        %v8078 = vmul.f32 %v8075, %v8077
        %v8079 = vadd.f32 %v8078, 0.0036580483
        %v8080 = vmul.f32 %v8075, %v8079
        %v8081 = vadd.f32 %v8080, 0.05243302
        %v8082 = vmul.f32 %v8075, %v8081
        %v8083 = vadd.f32 %v8082, 0.18741608
        %v8084 = vmul.f32 %v8075, %v8083
        %v8085 = vadd.f32 %v8084, 1.1283791
        %v8086 = vmul.f32 %v7832, %v8085
        %v8087 = vmul.f32 %v8075, 3.8918573e-05
        %v8088 = vadd.f32 %v8087, 0.001143296
        %v8089 = vmul.f32 %v8075, %v8088
        %v8090 = vadd.f32 %v8089, 0.014752088
        %v8091 = vmul.f32 %v8075, %v8090
        %v8092 = vadd.f32 %v8091, 0.112945676
        %v8093 = vmul.f32 %v8075, %v8092
        %v8094 = vadd.f32 %v8093, 0.4994258
        %v8095 = vmul.f32 %v8075, %v8094
        %v8096 = vadd.f32 %v8095, 1.0
        %v8097 = vrcp.pop %v8096
        %v8098 = vmul.f32 %v8096, %v8097
        %v8099 = vsub.f32 1.0, %v8098
        %v8100 = vmul.f32 %v8097, %v8099
        %v8101 = vadd.f32 %v8097, %v8100
        %vm8102 = vweird.f32 %v8096
        %vm8103 = vweird.f32 %v8097
        %vm8104 = vmor %vm8102, %vm8103
        %v8105 = vsel %vm8104, %v8097, %v8101
        %v8106 = vand.u32 2147483647, %v8096
        %vm8107 = vcmp.eq.f32.partialorder %v8106, 8.507059e+37
        %v8108 = vand.u32 %v8096, 2147483648
        %v8109 = vor.u32 1.1754944e-38, %v8108
        %v8110 = vsel %vm8107, %v8109, %v8105
        %v8111 = vmul.f32 %v8086, %v8110
        %v8112 = vmin.f32 %v8111, 1.0
        %v8113 = vmax.f32 %v8112, -1.0
        %v8114 = vmul.f32 %v7833, %v7833
        %v8115 = vmin.f32 16.0, %v8114
        %v8116 = vmul.f32 %v8115, 2.1237322e-06
        %v8117 = vadd.f32 %v8116, 0.00028619796
        %v8118 = vmul.f32 %v8115, %v8117
        %v8119 = vadd.f32 %v8118, 0.0036580483
        %v8120 = vmul.f32 %v8115, %v8119
        %v8121 = vadd.f32 %v8120, 0.05243302
        %v8122 = vmul.f32 %v8115, %v8121
        %v8123 = vadd.f32 %v8122, 0.18741608
        %v8124 = vmul.f32 %v8115, %v8123
        %v8125 = vadd.f32 %v8124, 1.1283791
        %v8126 = vmul.f32 %v7833, %v8125
        %v8127 = vmul.f32 %v8115, 3.8918573e-05
        %v8128 = vadd.f32 %v8127, 0.001143296
        %v8129 = vmul.f32 %v8115, %v8128
        %v8130 = vadd.f32 %v8129, 0.014752088
        %v8131 = vmul.f32 %v8115, %v8130
        %v8132 = vadd.f32 %v8131, 0.112945676
        %v8133 = vmul.f32 %v8115, %v8132
        %v8134 = vadd.f32 %v8133, 0.4994258
        %v8135 = vmul.f32 %v8115, %v8134
        %v8136 = vadd.f32 %v8135, 1.0
        %v8137 = vrcp.pop %v8136
        %v8138 = vmul.f32 %v8136, %v8137
        %v8139 = vsub.f32 1.0, %v8138
        %v8140 = vmul.f32 %v8137, %v8139
        %v8141 = vadd.f32 %v8137, %v8140
        %vm8142 = vweird.f32 %v8136
        %vm8143 = vweird.f32 %v8137
        %vm8144 = vmor %vm8142, %vm8143
        %v8145 = vsel %vm8144, %v8137, %v8141
        %v8146 = vand.u32 2147483647, %v8136
        %vm8147 = vcmp.eq.f32.partialorder %v8146, 8.507059e+37
        %v8148 = vand.u32 %v8136, 2147483648
        %v8149 = vor.u32 1.1754944e-38, %v8148
        %v8150 = vsel %vm8147, %v8149, %v8145
        %v8151 = vmul.f32 %v8126, %v8150
        %v8152 = vmin.f32 %v8151, 1.0
        %v8153 = vmax.f32 %v8152, -1.0
        %v8154 = vadd.f32 %v7873, 1.0
        %v8155 = vadd.f32 %v7913, 1.0
        %v8156 = vadd.f32 %v7953, 1.0
        %v8157 = vadd.f32 %v7993, 1.0
        %v8158 = vadd.f32 %v8033, 1.0
        %v8159 = vadd.f32 %v8073, 1.0
        %v8160 = vadd.f32 %v8113, 1.0
        %v8161 = vadd.f32 %v8153, 1.0
        %v8162 = vmul.f32 %v7818, %v8154
        %v8163 = vmul.f32 %v7819, %v8155
        %v8164 = vmul.f32 %v7820, %v8156
        %v8165 = vmul.f32 %v7821, %v8157
        %v8166 = vmul.f32 %v7822, %v8158
        %v8167 = vmul.f32 %v7823, %v8159
        %v8168 = vmul.f32 %v7824, %v8160
        %v8169 = vmul.f32 %v7825, %v8161
        %v8170 = vld [vmem:[#allocation16 + $0x19] sm:$0x1]
        %v8172 = vperm.slane %v8170, 0
        %v8174 = vmul.f32 %v8162, %v8172
        %v8175 = vmul.f32 %v8163, %v8172
        %v8176 = vmul.f32 %v8164, %v8172
        %v8177 = vmul.f32 %v8165, %v8172
        %v8178 = vmul.f32 %v8166, %v8172
        %v8179 = vmul.f32 %v8167, %v8172
        %v8180 = vmul.f32 %v8168, %v8172
        %v8181 = vmul.f32 %v8169, %v8172
        %v8182 = vsel %vm1962, %v8174, 0.0
        %8183 = vadd.xlane.f32.xlu0 %v8182
        %v8184 = vpop.xlane.xlu0 %8183
        %v8185 = vsel %vm1962, %v8175, 0.0
        %8186 = vadd.xlane.f32.xlu0 %v8185
        %v8187 = vpop.xlane.xlu0 %8186
        %v8188 = vsel %vm1962, %v8176, 0.0
        %8189 = vadd.xlane.f32.xlu0 %v8188
        %v8190 = vpop.xlane.xlu0 %8189
        %v8191 = vsel %vm1962, %v8177, 0.0
        %8192 = vadd.xlane.f32.xlu0 %v8191
        %v8193 = vpop.xlane.xlu0 %8192
        %v8194 = vsel %vm1962, %v8178, 0.0
        %8195 = vadd.xlane.f32.xlu0 %v8194
        %v8196 = vpop.xlane.xlu0 %8195
        %v8197 = vsel %vm1962, %v8179, 0.0
        %8198 = vadd.xlane.f32.xlu0 %v8197
        %v8199 = vpop.xlane.xlu0 %8198
        %v8200 = vsel %vm1962, %v8180, 0.0
        %8201 = vadd.xlane.f32.xlu0 %v8200
        %v8202 = vpop.xlane.xlu0 %8201
        %v8203 = vsel %vm1962, %v8181, 0.0
        %8204 = vadd.xlane.f32.xlu0 %v8203
        %v8205 = vpop.xlane.xlu0 %8204
        %v8206 = vld [vmem:[#allocation16 + $0x1a] sm:$0x1]
        %v8208 = vperm.slane %v8206, 0
        %v8210 = vadd.f32 %v8184, %v8208
        %v8211 = vadd.f32 %v8187, %v8208
        %v8212 = vadd.f32 %v8190, %v8208
        %v8213 = vadd.f32 %v8193, %v8208
        %v8214 = vadd.f32 %v8196, %v8208
        %v8215 = vadd.f32 %v8199, %v8208
        %v8216 = vadd.f32 %v8202, %v8208
        %v8217 = vadd.f32 %v8205, %v8208
        %v8218 = vmul.f32 %v8210, 0.5
        %v8219 = vmul.f32 %v8211, 0.5
        %v8220 = vmul.f32 %v8212, 0.5
        %v8221 = vmul.f32 %v8213, 0.5
        %v8222 = vmul.f32 %v8214, 0.5
        %v8223 = vmul.f32 %v8215, 0.5
        %v8224 = vmul.f32 %v8216, 0.5
        %v8225 = vmul.f32 %v8217, 0.5
        %v8226 = vmul.f32 %v8210, 0.70710677
        %v8227 = vmul.f32 %v8211, 0.70710677
        %v8228 = vmul.f32 %v8212, 0.70710677
        %v8229 = vmul.f32 %v8213, 0.70710677
        %v8230 = vmul.f32 %v8214, 0.70710677
        %v8231 = vmul.f32 %v8215, 0.70710677
        %v8232 = vmul.f32 %v8216, 0.70710677
        %v8233 = vmul.f32 %v8217, 0.70710677
        %v8234 = vmul.f32 %v8226, %v8226
        %v8235 = vmin.f32 16.0, %v8234
        %v8236 = vmul.f32 %v8235, 2.1237322e-06
        %v8237 = vadd.f32 %v8236, 0.00028619796
        %v8238 = vmul.f32 %v8235, %v8237
        %v8239 = vadd.f32 %v8238, 0.0036580483
        %v8240 = vmul.f32 %v8235, %v8239
        %v8241 = vadd.f32 %v8240, 0.05243302
        %v8242 = vmul.f32 %v8235, %v8241
        %v8243 = vadd.f32 %v8242, 0.18741608
        %v8244 = vmul.f32 %v8235, %v8243
        %v8245 = vadd.f32 %v8244, 1.1283791
        %v8246 = vmul.f32 %v8226, %v8245
        %v8247 = vmul.f32 %v8235, 3.8918573e-05
        %v8248 = vadd.f32 %v8247, 0.001143296
        %v8249 = vmul.f32 %v8235, %v8248
        %v8250 = vadd.f32 %v8249, 0.014752088
        %v8251 = vmul.f32 %v8235, %v8250
        %v8252 = vadd.f32 %v8251, 0.112945676
        %v8253 = vmul.f32 %v8235, %v8252
        %v8254 = vadd.f32 %v8253, 0.4994258
        %v8255 = vmul.f32 %v8235, %v8254
        %v8256 = vadd.f32 %v8255, 1.0
        %v8257 = vrcp.pop %v8256
        %v8258 = vmul.f32 %v8256, %v8257
        %v8259 = vsub.f32 1.0, %v8258
        %v8260 = vmul.f32 %v8257, %v8259
        %v8261 = vadd.f32 %v8257, %v8260
        %vm8262 = vweird.f32 %v8256
        %vm8263 = vweird.f32 %v8257
        %vm8264 = vmor %vm8262, %vm8263
        %v8265 = vsel %vm8264, %v8257, %v8261
        %v8266 = vand.u32 2147483647, %v8256
        %vm8267 = vcmp.eq.f32.partialorder %v8266, 8.507059e+37
        %v8268 = vand.u32 %v8256, 2147483648
        %v8269 = vor.u32 1.1754944e-38, %v8268
        %v8270 = vsel %vm8267, %v8269, %v8265
        %v8271 = vmul.f32 %v8246, %v8270
        %v8272 = vmin.f32 %v8271, 1.0
        %v8273 = vmax.f32 %v8272, -1.0
        %v8274 = vmul.f32 %v8227, %v8227
        %v8275 = vmin.f32 16.0, %v8274
        %v8276 = vmul.f32 %v8275, 2.1237322e-06
        %v8277 = vadd.f32 %v8276, 0.00028619796
        %v8278 = vmul.f32 %v8275, %v8277
        %v8279 = vadd.f32 %v8278, 0.0036580483
        %v8280 = vmul.f32 %v8275, %v8279
        %v8281 = vadd.f32 %v8280, 0.05243302
        %v8282 = vmul.f32 %v8275, %v8281
        %v8283 = vadd.f32 %v8282, 0.18741608
        %v8284 = vmul.f32 %v8275, %v8283
        %v8285 = vadd.f32 %v8284, 1.1283791
        %v8286 = vmul.f32 %v8227, %v8285
        %v8287 = vmul.f32 %v8275, 3.8918573e-05
        %v8288 = vadd.f32 %v8287, 0.001143296
        %v8289 = vmul.f32 %v8275, %v8288
        %v8290 = vadd.f32 %v8289, 0.014752088
        %v8291 = vmul.f32 %v8275, %v8290
        %v8292 = vadd.f32 %v8291, 0.112945676
        %v8293 = vmul.f32 %v8275, %v8292
        %v8294 = vadd.f32 %v8293, 0.4994258
        %v8295 = vmul.f32 %v8275, %v8294
        %v8296 = vadd.f32 %v8295, 1.0
        %v8297 = vrcp.pop %v8296
        %v8298 = vmul.f32 %v8296, %v8297
        %v8299 = vsub.f32 1.0, %v8298
        %v8300 = vmul.f32 %v8297, %v8299
        %v8301 = vadd.f32 %v8297, %v8300
        %vm8302 = vweird.f32 %v8296
        %vm8303 = vweird.f32 %v8297
        %vm8304 = vmor %vm8302, %vm8303
        %v8305 = vsel %vm8304, %v8297, %v8301
        %v8306 = vand.u32 2147483647, %v8296
        %vm8307 = vcmp.eq.f32.partialorder %v8306, 8.507059e+37
        %v8308 = vand.u32 %v8296, 2147483648
        %v8309 = vor.u32 1.1754944e-38, %v8308
        %v8310 = vsel %vm8307, %v8309, %v8305
        %v8311 = vmul.f32 %v8286, %v8310
        %v8312 = vmin.f32 %v8311, 1.0
        %v8313 = vmax.f32 %v8312, -1.0
        %v8314 = vmul.f32 %v8228, %v8228
        %v8315 = vmin.f32 16.0, %v8314
        %v8316 = vmul.f32 %v8315, 2.1237322e-06
        %v8317 = vadd.f32 %v8316, 0.00028619796
        %v8318 = vmul.f32 %v8315, %v8317
        %v8319 = vadd.f32 %v8318, 0.0036580483
        %v8320 = vmul.f32 %v8315, %v8319
        %v8321 = vadd.f32 %v8320, 0.05243302
        %v8322 = vmul.f32 %v8315, %v8321
        %v8323 = vadd.f32 %v8322, 0.18741608
        %v8324 = vmul.f32 %v8315, %v8323
        %v8325 = vadd.f32 %v8324, 1.1283791
        %v8326 = vmul.f32 %v8228, %v8325
        %v8327 = vmul.f32 %v8315, 3.8918573e-05
        %v8328 = vadd.f32 %v8327, 0.001143296
        %v8329 = vmul.f32 %v8315, %v8328
        %v8330 = vadd.f32 %v8329, 0.014752088
        %v8331 = vmul.f32 %v8315, %v8330
        %v8332 = vadd.f32 %v8331, 0.112945676
        %v8333 = vmul.f32 %v8315, %v8332
        %v8334 = vadd.f32 %v8333, 0.4994258
        %v8335 = vmul.f32 %v8315, %v8334
        %v8336 = vadd.f32 %v8335, 1.0
        %v8337 = vrcp.pop %v8336
        %v8338 = vmul.f32 %v8336, %v8337
        %v8339 = vsub.f32 1.0, %v8338
        %v8340 = vmul.f32 %v8337, %v8339
        %v8341 = vadd.f32 %v8337, %v8340
        %vm8342 = vweird.f32 %v8336
        %vm8343 = vweird.f32 %v8337
        %vm8344 = vmor %vm8342, %vm8343
        %v8345 = vsel %vm8344, %v8337, %v8341
        %v8346 = vand.u32 2147483647, %v8336
        %vm8347 = vcmp.eq.f32.partialorder %v8346, 8.507059e+37
        %v8348 = vand.u32 %v8336, 2147483648
        %v8349 = vor.u32 1.1754944e-38, %v8348
        %v8350 = vsel %vm8347, %v8349, %v8345
        %v8351 = vmul.f32 %v8326, %v8350
        %v8352 = vmin.f32 %v8351, 1.0
        %v8353 = vmax.f32 %v8352, -1.0
        %v8354 = vmul.f32 %v8229, %v8229
        %v8355 = vmin.f32 16.0, %v8354
        %v8356 = vmul.f32 %v8355, 2.1237322e-06
        %v8357 = vadd.f32 %v8356, 0.00028619796
        %v8358 = vmul.f32 %v8355, %v8357
        %v8359 = vadd.f32 %v8358, 0.0036580483
        %v8360 = vmul.f32 %v8355, %v8359
        %v8361 = vadd.f32 %v8360, 0.05243302
        %v8362 = vmul.f32 %v8355, %v8361
        %v8363 = vadd.f32 %v8362, 0.18741608
        %v8364 = vmul.f32 %v8355, %v8363
        %v8365 = vadd.f32 %v8364, 1.1283791
        %v8366 = vmul.f32 %v8229, %v8365
        %v8367 = vmul.f32 %v8355, 3.8918573e-05
        %v8368 = vadd.f32 %v8367, 0.001143296
        %v8369 = vmul.f32 %v8355, %v8368
        %v8370 = vadd.f32 %v8369, 0.014752088
        %v8371 = vmul.f32 %v8355, %v8370
        %v8372 = vadd.f32 %v8371, 0.112945676
        %v8373 = vmul.f32 %v8355, %v8372
        %v8374 = vadd.f32 %v8373, 0.4994258
        %v8375 = vmul.f32 %v8355, %v8374
        %v8376 = vadd.f32 %v8375, 1.0
        %v8377 = vrcp.pop %v8376
        %v8378 = vmul.f32 %v8376, %v8377
        %v8379 = vsub.f32 1.0, %v8378
        %v8380 = vmul.f32 %v8377, %v8379
        %v8381 = vadd.f32 %v8377, %v8380
        %vm8382 = vweird.f32 %v8376
        %vm8383 = vweird.f32 %v8377
        %vm8384 = vmor %vm8382, %vm8383
        %v8385 = vsel %vm8384, %v8377, %v8381
        %v8386 = vand.u32 2147483647, %v8376
        %vm8387 = vcmp.eq.f32.partialorder %v8386, 8.507059e+37
        %v8388 = vand.u32 %v8376, 2147483648
        %v8389 = vor.u32 1.1754944e-38, %v8388
        %v8390 = vsel %vm8387, %v8389, %v8385
        %v8391 = vmul.f32 %v8366, %v8390
        %v8392 = vmin.f32 %v8391, 1.0
        %v8393 = vmax.f32 %v8392, -1.0
        %v8394 = vmul.f32 %v8230, %v8230
        %v8395 = vmin.f32 16.0, %v8394
        %v8396 = vmul.f32 %v8395, 2.1237322e-06
        %v8397 = vadd.f32 %v8396, 0.00028619796
        %v8398 = vmul.f32 %v8395, %v8397
        %v8399 = vadd.f32 %v8398, 0.0036580483
        %v8400 = vmul.f32 %v8395, %v8399
        %v8401 = vadd.f32 %v8400, 0.05243302
        %v8402 = vmul.f32 %v8395, %v8401
        %v8403 = vadd.f32 %v8402, 0.18741608
        %v8404 = vmul.f32 %v8395, %v8403
        %v8405 = vadd.f32 %v8404, 1.1283791
        %v8406 = vmul.f32 %v8230, %v8405
        %v8407 = vmul.f32 %v8395, 3.8918573e-05
        %v8408 = vadd.f32 %v8407, 0.001143296
        %v8409 = vmul.f32 %v8395, %v8408
        %v8410 = vadd.f32 %v8409, 0.014752088
        %v8411 = vmul.f32 %v8395, %v8410
        %v8412 = vadd.f32 %v8411, 0.112945676
        %v8413 = vmul.f32 %v8395, %v8412
        %v8414 = vadd.f32 %v8413, 0.4994258
        %v8415 = vmul.f32 %v8395, %v8414
        %v8416 = vadd.f32 %v8415, 1.0
        %v8417 = vrcp.pop %v8416
        %v8418 = vmul.f32 %v8416, %v8417
        %v8419 = vsub.f32 1.0, %v8418
        %v8420 = vmul.f32 %v8417, %v8419
        %v8421 = vadd.f32 %v8417, %v8420
        %vm8422 = vweird.f32 %v8416
        %vm8423 = vweird.f32 %v8417
        %vm8424 = vmor %vm8422, %vm8423
        %v8425 = vsel %vm8424, %v8417, %v8421
        %v8426 = vand.u32 2147483647, %v8416
        %vm8427 = vcmp.eq.f32.partialorder %v8426, 8.507059e+37
        %v8428 = vand.u32 %v8416, 2147483648
        %v8429 = vor.u32 1.1754944e-38, %v8428
        %v8430 = vsel %vm8427, %v8429, %v8425
        %v8431 = vmul.f32 %v8406, %v8430
        %v8432 = vmin.f32 %v8431, 1.0
        %v8433 = vmax.f32 %v8432, -1.0
        %v8434 = vmul.f32 %v8231, %v8231
        %v8435 = vmin.f32 16.0, %v8434
        %v8436 = vmul.f32 %v8435, 2.1237322e-06
        %v8437 = vadd.f32 %v8436, 0.00028619796
        %v8438 = vmul.f32 %v8435, %v8437
        %v8439 = vadd.f32 %v8438, 0.0036580483
        %v8440 = vmul.f32 %v8435, %v8439
        %v8441 = vadd.f32 %v8440, 0.05243302
        %v8442 = vmul.f32 %v8435, %v8441
        %v8443 = vadd.f32 %v8442, 0.18741608
        %v8444 = vmul.f32 %v8435, %v8443
        %v8445 = vadd.f32 %v8444, 1.1283791
        %v8446 = vmul.f32 %v8231, %v8445
        %v8447 = vmul.f32 %v8435, 3.8918573e-05
        %v8448 = vadd.f32 %v8447, 0.001143296
        %v8449 = vmul.f32 %v8435, %v8448
        %v8450 = vadd.f32 %v8449, 0.014752088
        %v8451 = vmul.f32 %v8435, %v8450
        %v8452 = vadd.f32 %v8451, 0.112945676
        %v8453 = vmul.f32 %v8435, %v8452
        %v8454 = vadd.f32 %v8453, 0.4994258
        %v8455 = vmul.f32 %v8435, %v8454
        %v8456 = vadd.f32 %v8455, 1.0
        %v8457 = vrcp.pop %v8456
        %v8458 = vmul.f32 %v8456, %v8457
        %v8459 = vsub.f32 1.0, %v8458
        %v8460 = vmul.f32 %v8457, %v8459
        %v8461 = vadd.f32 %v8457, %v8460
        %vm8462 = vweird.f32 %v8456
        %vm8463 = vweird.f32 %v8457
        %vm8464 = vmor %vm8462, %vm8463
        %v8465 = vsel %vm8464, %v8457, %v8461
        %v8466 = vand.u32 2147483647, %v8456
        %vm8467 = vcmp.eq.f32.partialorder %v8466, 8.507059e+37
        %v8468 = vand.u32 %v8456, 2147483648
        %v8469 = vor.u32 1.1754944e-38, %v8468
        %v8470 = vsel %vm8467, %v8469, %v8465
        %v8471 = vmul.f32 %v8446, %v8470
        %v8472 = vmin.f32 %v8471, 1.0
        %v8473 = vmax.f32 %v8472, -1.0
        %v8474 = vmul.f32 %v8232, %v8232
        %v8475 = vmin.f32 16.0, %v8474
        %v8476 = vmul.f32 %v8475, 2.1237322e-06
        %v8477 = vadd.f32 %v8476, 0.00028619796
        %v8478 = vmul.f32 %v8475, %v8477
        %v8479 = vadd.f32 %v8478, 0.0036580483
        %v8480 = vmul.f32 %v8475, %v8479
        %v8481 = vadd.f32 %v8480, 0.05243302
        %v8482 = vmul.f32 %v8475, %v8481
        %v8483 = vadd.f32 %v8482, 0.18741608
        %v8484 = vmul.f32 %v8475, %v8483
        %v8485 = vadd.f32 %v8484, 1.1283791
        %v8486 = vmul.f32 %v8232, %v8485
        %v8487 = vmul.f32 %v8475, 3.8918573e-05
        %v8488 = vadd.f32 %v8487, 0.001143296
        %v8489 = vmul.f32 %v8475, %v8488
        %v8490 = vadd.f32 %v8489, 0.014752088
        %v8491 = vmul.f32 %v8475, %v8490
        %v8492 = vadd.f32 %v8491, 0.112945676
        %v8493 = vmul.f32 %v8475, %v8492
        %v8494 = vadd.f32 %v8493, 0.4994258
        %v8495 = vmul.f32 %v8475, %v8494
        %v8496 = vadd.f32 %v8495, 1.0
        %v8497 = vrcp.pop %v8496
        %v8498 = vmul.f32 %v8496, %v8497
        %v8499 = vsub.f32 1.0, %v8498
        %v8500 = vmul.f32 %v8497, %v8499
        %v8501 = vadd.f32 %v8497, %v8500
        %vm8502 = vweird.f32 %v8496
        %vm8503 = vweird.f32 %v8497
        %vm8504 = vmor %vm8502, %vm8503
        %v8505 = vsel %vm8504, %v8497, %v8501
        %v8506 = vand.u32 2147483647, %v8496
        %vm8507 = vcmp.eq.f32.partialorder %v8506, 8.507059e+37
        %v8508 = vand.u32 %v8496, 2147483648
        %v8509 = vor.u32 1.1754944e-38, %v8508
        %v8510 = vsel %vm8507, %v8509, %v8505
        %v8511 = vmul.f32 %v8486, %v8510
        %v8512 = vmin.f32 %v8511, 1.0
        %v8513 = vmax.f32 %v8512, -1.0
        %v8514 = vmul.f32 %v8233, %v8233
        %v8515 = vmin.f32 16.0, %v8514
        %v8516 = vmul.f32 %v8515, 2.1237322e-06
        %v8517 = vadd.f32 %v8516, 0.00028619796
        %v8518 = vmul.f32 %v8515, %v8517
        %v8519 = vadd.f32 %v8518, 0.0036580483
        %v8520 = vmul.f32 %v8515, %v8519
        %v8521 = vadd.f32 %v8520, 0.05243302
        %v8522 = vmul.f32 %v8515, %v8521
        %v8523 = vadd.f32 %v8522, 0.18741608
        %v8524 = vmul.f32 %v8515, %v8523
        %v8525 = vadd.f32 %v8524, 1.1283791
        %v8526 = vmul.f32 %v8233, %v8525
        %v8527 = vmul.f32 %v8515, 3.8918573e-05
        %v8528 = vadd.f32 %v8527, 0.001143296
        %v8529 = vmul.f32 %v8515, %v8528
        %v8530 = vadd.f32 %v8529, 0.014752088
        %v8531 = vmul.f32 %v8515, %v8530
        %v8532 = vadd.f32 %v8531, 0.112945676
        %v8533 = vmul.f32 %v8515, %v8532
        %v8534 = vadd.f32 %v8533, 0.4994258
        %v8535 = vmul.f32 %v8515, %v8534
        %v8536 = vadd.f32 %v8535, 1.0
        %v8537 = vrcp.pop %v8536
        %v8538 = vmul.f32 %v8536, %v8537
        %v8539 = vsub.f32 1.0, %v8538
        %v8540 = vmul.f32 %v8537, %v8539
        %v8541 = vadd.f32 %v8537, %v8540
        %vm8542 = vweird.f32 %v8536
        %vm8543 = vweird.f32 %v8537
        %vm8544 = vmor %vm8542, %vm8543
        %v8545 = vsel %vm8544, %v8537, %v8541
        %v8546 = vand.u32 2147483647, %v8536
        %vm8547 = vcmp.eq.f32.partialorder %v8546, 8.507059e+37
        %v8548 = vand.u32 %v8536, 2147483648
        %v8549 = vor.u32 1.1754944e-38, %v8548
        %v8550 = vsel %vm8547, %v8549, %v8545
        %v8551 = vmul.f32 %v8526, %v8550
        %v8552 = vmin.f32 %v8551, 1.0
        %v8553 = vmax.f32 %v8552, -1.0
        %v8554 = vadd.f32 %v8273, 1.0
        %v8555 = vadd.f32 %v8313, 1.0
        %v8556 = vadd.f32 %v8353, 1.0
        %v8557 = vadd.f32 %v8393, 1.0
        %v8558 = vadd.f32 %v8433, 1.0
        %v8559 = vadd.f32 %v8473, 1.0
        %v8560 = vadd.f32 %v8513, 1.0
        %v8561 = vadd.f32 %v8553, 1.0
        %v8562 = vmul.f32 %v8218, %v8554
        %v8563 = vmul.f32 %v8219, %v8555
        %v8564 = vmul.f32 %v8220, %v8556
        %v8565 = vmul.f32 %v8221, %v8557
        %v8566 = vmul.f32 %v8222, %v8558
        %v8567 = vmul.f32 %v8223, %v8559
        %v8568 = vmul.f32 %v8224, %v8560
        %v8569 = vmul.f32 %v8225, %v8561
        %vm8570 = vcmask 7168
        %8571 = vst.msk [vmem:[%s766] sm:$0xff] %vm8570, %v8562
        %8572 = vst.msk [vmem:[%s766 + $0x8] sm:$0xff] %vm8570, %v8563
        %8573 = vst.msk [vmem:[%s766 + $0x10] sm:$0xff] %vm8570, %v8564
        %8574 = vst.msk [vmem:[%s766 + $0x18] sm:$0xff] %vm8570, %v8565
        %8575 = vst.msk [vmem:[%s766 + $0x20] sm:$0xff] %vm8570, %v8566
        %8576 = vst.msk [vmem:[%s766 + $0x28] sm:$0xff] %vm8570, %v8567
        %8577 = vst.msk [vmem:[%s766 + $0x30] sm:$0xff] %vm8570, %v8568
        %8578 = vst.msk [vmem:[%s766 + $0x38] sm:$0xff] %vm8570, %v8569
        %s8579 = smul.u32 8, %s35
        %p8580 = scmp.lt.s32.totalorder %s8579, 31
        %s8581 = scalar_select %p8580, %s8579, 31
        %s8582 = smul.addr %s8581, 8
        %s8583 = scalar_lea.vmem %s18, %s8582
        // Predicated region
        $region133: #{tpu_custom_call.1} parent=91 // pred_check
          %p8584 = pneg %p441
        $region134: #{tpu_custom_call.1} parent=91 // pred_check_branch
          %8586 = sbr.rel (%p8584) target = $region136
        $region135: #{tpu_custom_call.1} parent=91 // pred_region
          %s8587 = smul.u32 8, %s35
        $region136: #{tpu_custom_call.1} parent=91 // pred_fallthru
          _
      $region92: #{tpu_custom_call.1} parent=5 // pred_fallthru
        _
      %p8588 = scmp.le.s32.totalorder 2, %s30
      // Predicated region
      $region137: #{tpu_custom_call.1} parent=5 // pred_check
        %p8589 = pneg %p8588
      $region138: #{tpu_custom_call.1} parent=5 // pred_check_branch
        %8591 = sbr.rel (%p8589) target = $region140
      $region139: #{tpu_custom_call.1} parent=5 // pred_region
        %s8592 = ssub.s32 %s30, 2
        // Predicated region
        $region141: #{tpu_custom_call.1} parent=139 // pred_check
          %p8593 = pneg %p447
        $region142: #{tpu_custom_call.1} parent=139 // pred_check_branch
          %8595 = sbr.rel (%p8593) target = $region144
        $region143: #{tpu_custom_call.1} parent=139 // pred_region
          %s8596 = smul.u32 8, %s36
          %p8597 = scmp.lt.s32.totalorder %s8596, 31
          %s8598 = scalar_select %p8597, %s8596, 31
          %s8599 = smul.addr %s8598, 8
          %s8600 = scalar_lea.vmem %s18, %s8599
        $region144: #{tpu_custom_call.1} parent=139 // pred_fallthru
          _
      $region140: #{tpu_custom_call.1} parent=5 // pred_fallthru
        _
    $region6: #{tpu_custom_call.1} parent=1 // loop_footer
      %s34 = sadd.s32 1, %s30
    $region7: #{tpu_custom_call.1} parent=1 // loop_footer_branch
      %29 = sbr.rel target = $region3
    $region8: #{tpu_custom_call.1} parent=1 // loop_exit
      _
    %8601 = vsyncpa [#allocation3], 1
    %s8602 = scalar_lea.sflag [#allocation3], 1
    %8603 = vsyncpa %s8602, 1
    %8604 = vsyncpa [#allocation5], 1
    %8605 = vsyncpa [#allocation8], 1
    %8606 = vsyncpa [#allocation11], 1
    %8607 = vsyncpa [#allocation14], 1
    %8608 = vsyncpa [#allocation17], 1

</llo_original>
